<compile_context>
chip_gen: v7x
topology: tpu7x:2x2x1
jax: 0.10.0
libtpu: 0.0.40
codegen_flags: <defaults>
</compile_context>

<pallas_src>
import jax
import jax.numpy as jnp
from jax.experimental import pallas as pl
from jax.experimental.pallas import tpu as pltpu


# =============================================================================
# BasicBlock (stride = 1, downsample = None)
# =============================================================================
def basic_block_kernel(x_ref, w1_ref, s1_ref, b1_ref, w2_ref, s2_ref, b2_ref,
                       o_ref, pad_ref, p_ref):
    """Fused BasicBlock forward for one batch sample (batch dim squeezed by BlockSpec).

    x_ref  : (H, W, C)        bf16  un-padded NHWC input block
    w1/w2  : (9*C, C)         bf16  im2col weight matrices (tap-major, channel-minor)
    s*/b*  : (1, C)           f32   folded BatchNorm scale / bias
    o_ref  : (H*W, C)         f32   output block (reshaped to NHWC in the wrapper)
    pad_ref: (H+2, W+2, C)    bf16  VMEM scratch: zero-halo padded activation (reused by both convs)
    p_ref  : (H*W, 9*C)       bf16  VMEM scratch: im2col patch matrix
    """
    H, W, C = x_ref.shape
    Hp, Wp = H + 2, W + 2

    # Zero only the 1-pixel halo strips (the interior is always fully overwritten).
    # Done every grid step: scratch is not zero-initialized and, with "parallel"
    # semantics, each TensorCore has its own scratch instance.
    zrow = jnp.zeros((1, Wp, C), pad_ref.dtype)
    zcol = jnp.zeros((Hp, 1, C), pad_ref.dtype)
    pad_ref[0:1, :, :] = zrow
    pad_ref[Hp - 1:Hp, :, :] = zrow
    pad_ref[:, 0:1, :] = zcol
    pad_ref[:, Wp - 1:Wp, :] = zcol

    def conv3x3(w_ref):
        # im2col: build the (H*W, 9*C) bf16 patch matrix with 9 static-offset stores, then do a
        # single MXU matmul with K = 9*C (bf16 operands, f32 accumulation).
        for dh in range(3):
            for dw in range(3):
                t = dh * 3 + dw
                tap = pad_ref[dh:dh + H, dw:dw + W, :]          # (H, W, C) bf16 load
                p_ref[:, t * C:(t + 1) * C] = tap.reshape(H * W, C)
        return jnp.dot(p_ref[...], w_ref[...], preferred_element_type=jnp.float32)

    # ---- conv1 + folded BN1 + ReLU ----
    pad_ref[1:H + 1, 1:W + 1, :] = x_ref[...]                   # bf16 -> bf16, no cast
    out1 = jnp.maximum(conv3x3(w1_ref) * s1_ref[...] + b1_ref[...], 0.0)

    # ---- conv2 + folded BN2 (reuse the same padded scratch; halo is still zero) ----
    pad_ref[1:H + 1, 1:W + 1, :] = out1.astype(pad_ref.dtype).reshape(H, W, C)
    out2 = conv3x3(w2_ref) * s2_ref[...] + b2_ref[...]

    # ---- residual add (identity re-read lazily from the input ref) + ReLU ----
    identity = x_ref[...].astype(jnp.float32).reshape(H * W, C)
    o_ref[...] = jnp.maximum(out2 + identity, 0.0).astype(o_ref.dtype)


def _fold_bn(gamma, beta, mean, var, eps=1e-5):
    scale = gamma / jnp.sqrt(var + eps)
    bias = beta - mean * scale
    return (scale.reshape(1, -1).astype(jnp.float32),
            bias.reshape(1, -1).astype(jnp.float32))


def basic_block(x_nchw, params):
    """Wrapper: NCHW in / NCHW out, matching PyTorch BasicBlock (stride=1, downsample=None)."""
    (w1, g1, be1, m1, v1, w2, g2, be2, m2, v2) = params
    N, C, H, W = x_nchw.shape
    P = w1.shape[0]
    # stride=1 / downsample=None path => residual add requires Cin == Cout
    assert P == C and w1.shape[1] == C and w2.shape == (P, P, 3, 3)

    # TODO(synk): in a full ResNetSE these layout changes would be done once at the model
    # boundary (activations kept NHWC, weights pre-packed), not per block.
    x_nhwc = jnp.transpose(x_nchw, (0, 2, 3, 1)).astype(jnp.bfloat16)

    # PyTorch OIHW -> HWIO -> (9*Cin, Cout) im2col weight matrix, bf16 for the MXU.
    w1m = jnp.transpose(w1, (2, 3, 1, 0)).reshape(9 * C, P).astype(jnp.bfloat16)
    w2m = jnp.transpose(w2, (2, 3, 1, 0)).reshape(9 * P, P).astype(jnp.bfloat16)
    s1, b1 = _fold_bn(g1, be1, m1, v1)
    s2, b2 = _fold_bn(g2, be2, m2, v2)

    rep = lambda n: (0, 0)   # weights / BN params stay VMEM-resident across grid steps

    out_flat = pl.pallas_call(
        basic_block_kernel,
        out_shape=jax.ShapeDtypeStruct((N, H * W, P), jnp.float32),
        grid=(N,),
        in_specs=[
            pl.BlockSpec((None, H, W, C), lambda n: (n, 0, 0, 0)),   # per-sample input block
            pl.BlockSpec((9 * C, P), rep),
            pl.BlockSpec((1, P), rep),
            pl.BlockSpec((1, P), rep),
            pl.BlockSpec((9 * P, P), rep),
            pl.BlockSpec((1, P), rep),
            pl.BlockSpec((1, P), rep),
        ],
        out_specs=pl.BlockSpec((None, H * W, P), lambda n: (n, 0, 0)),
        scratch_shapes=[
            pltpu.VMEM((H + 2, W + 2, C), jnp.bfloat16),   # zero-halo padded activation
            pltpu.VMEM((H * W, 9 * C), jnp.bfloat16),      # im2col patch matrix
        ],
        compiler_params=pltpu.CompilerParams(
            dimension_semantics=("parallel",),             # shard batch across v7x's 2 TCs
            vmem_limit_bytes=32 * 1024 * 1024,             # safe on v5e / v6e / v7x
        ),
    )(x_nhwc, w1m, s1, b1, w2m, s2, b2)

    out_nhwc = out_flat.reshape(N, H, W, P)
    return jnp.transpose(out_nhwc, (0, 3, 1, 2))           # back to NCHW


# =============================================================================
# SELayer: global avg-pool -> FC -> ReLU -> FC -> sigmoid -> channel scale
# =============================================================================
def se_kernel(x_ref, w1_ref, w2_ref, o_ref):
    """Fused SE forward for one batch sample.

    x_ref : (H*W, C)   f32   per-sample activations (NHWC, spatial flattened)
    w1_ref: (C, Cr)    bf16  fc1 weight (transposed, no bias)
    w2_ref: (Cr, C)    bf16  fc2 weight (transposed, no bias)
    o_ref : (H*W, C)   f32   x scaled by the per-channel sigmoid gate
    """
    x = x_ref[...]                                            # (HW, C) f32
    y = jnp.mean(x, axis=0, keepdims=True)                    # (1, C)  global avg pool
    h = jnp.dot(y.astype(jnp.bfloat16), w1_ref[...],
                preferred_element_type=jnp.float32)           # (1, Cr)
    h = jnp.maximum(h, 0.0)
    logits = jnp.dot(h.astype(jnp.bfloat16), w2_ref[...],
                     preferred_element_type=jnp.float32)      # (1, C)
    gate = 1.0 / (1.0 + jnp.exp(-logits))                     # sigmoid (EUP exp + recip)
    o_ref[...] = (x * gate).astype(o_ref.dtype)


def se_layer(x_nchw, w_fc1, w_fc2):
    """Wrapper: NCHW in / NCHW out, matching PyTorch SELayer (bias-free FCs)."""
    N, C, H, W = x_nchw.shape
    Cr = w_fc1.shape[0]
    assert w_fc1.shape == (Cr, C) and w_fc2.shape == (C, Cr)

    x_flat = jnp.transpose(x_nchw, (0, 2, 3, 1)).reshape(N, H * W, C).astype(jnp.float32)
    w1 = jnp.transpose(w_fc1).astype(jnp.bfloat16)   # (C, Cr)
    w2 = jnp.transpose(w_fc2).astype(jnp.bfloat16)   # (Cr, C)

    rep = lambda n: (0, 0)
    out = pl.pallas_call(
        se_kernel,
        out_shape=jax.ShapeDtypeStruct((N, H * W, C), jnp.float32),
        grid=(N,),
        in_specs=[
            pl.BlockSpec((None, H * W, C), lambda n: (n, 0, 0)),
            pl.BlockSpec((C, Cr), rep),
            pl.BlockSpec((Cr, C), rep),
        ],
        out_specs=pl.BlockSpec((None, H * W, C), lambda n: (n, 0, 0)),
        compiler_params=pltpu.CompilerParams(
            dimension_semantics=("parallel",),
            vmem_limit_bytes=32 * 1024 * 1024,
        ),
    )(x_flat, w1, w2)

    out = out.reshape(N, H, W, C)
    return jnp.transpose(out, (0, 3, 1, 2))


# =============================================================================
# Pure-JAX references + demo
# =============================================================================
def _reference_basic_block(x, params, eps=1e-5):
    (w1, g1, be1, m1, v1, w2, g2, be2, m2, v2) = params

    def conv(y, w):
        return jax.lax.conv_general_dilated(
            y, w, window_strides=(1, 1), padding=((1, 1), (1, 1)),
            dimension_numbers=("NCHW", "OIHW", "NCHW"),
            precision=jax.lax.Precision.HIGHEST)

    def bn(y, g, b, m, v):
        g, b, m, v = (t[None, :, None, None] for t in (g, b, m, v))
        return (y - m) / jnp.sqrt(v + eps) * g + b

    out = jax.nn.relu(bn(conv(x, w1), g1, be1, m1, v1))
    out = bn(conv(out, w2), g2, be2, m2, v2)
    return jax.nn.relu(out + x)


def _reference_se(x, w_fc1, w_fc2):
    y = jnp.mean(x, axis=(2, 3))                              # (N, C)
    h = jax.nn.relu(y @ w_fc1.T)
    s = jax.nn.sigmoid(h @ w_fc2.T)
    return x * s[:, :, None, None]


def _init_params(key, inplanes, planes):
    ks = jax.random.split(key, 6)
    w1 = 0.1 * jax.random.normal(ks[0], (planes, inplanes, 3, 3), jnp.float32)
    w2 = 0.1 * jax.random.normal(ks[1], (planes, planes, 3, 3), jnp.float32)
    g1 = 1.0 + 0.1 * jax.random.normal(ks[2], (planes,), jnp.float32)
    be1 = 0.1 * jax.random.normal(ks[3], (planes,), jnp.float32)
    m1 = 0.05 * jax.random.normal(ks[4], (planes,), jnp.float32)
    v1 = 0.5 + jax.random.uniform(ks[5], (planes,), jnp.float32)
    g2 = 1.0 - 0.1 * jax.random.normal(ks[2], (planes,), jnp.float32)
    be2 = -0.1 * jax.random.normal(ks[3], (planes,), jnp.float32)
    m2 = -0.05 * jax.random.normal(ks[4], (planes,), jnp.float32)
    v2 = 0.75 + 0.5 * jax.random.uniform(ks[5], (planes,), jnp.float32)
    return (w1, g1, be1, m1, v1, w2, g2, be2, m2, v2)


if __name__ == "__main__":
    key = jax.random.PRNGKey(0)
    k_x, k_p, k_se_x, k_se_w = jax.random.split(key, 4)
    q = lambda a: a.astype(jnp.bfloat16).astype(jnp.float32)

    # ---- BasicBlock (inplanes = planes = 4, stride = 1, downsample = None) ----
    N, C, H, W = 2, 4, 16, 16
    x = jax.random.normal(k_x, (N, C, H, W), jnp.float32)
    params = _init_params(k_p, C, C)

    out = jax.block_until_ready(basic_block(x, params))

    (w1, g1, be1, m1, v1, w2, g2, be2, m2, v2) = params
    ref = _reference_basic_block(
        q(x), (q(w1), g1, be1, m1, v1, q(w2), g2, be2, m2, v2))
    assert out.shape == ref.shape == (N, C, H, W)
    err = float(jnp.max(jnp.abs(out - ref)))
    assert jnp.allclose(out, ref, rtol=5e-3, atol=5e-3), f"basic block max abs err = {err}"

    # ---- SELayer (channel = 64, reduction = 16) ----
    Ns, Cs, Hs, Ws, red = 2, 64, 8, 8, 16
    xs = jax.random.normal(k_se_x, (Ns, Cs, Hs, Ws), jnp.float32)
    kw1, kw2 = jax.random.split(k_se_w)
    w_fc1 = 0.2 * jax.random.normal(kw1, (Cs // red, Cs), jnp.float32)
    w_fc2 = 0.2 * jax.random.normal(kw2, (Cs, Cs // red), jnp.float32)

    out_se = jax.block_until_ready(se_layer(xs, w_fc1, w_fc2))

    ref_se = _reference_se(xs, q(w_fc1), q(w_fc2))
    assert out_se.shape == ref_se.shape == (Ns, Cs, Hs, Ws)
    err_se = float(jnp.max(jnp.abs(out_se - ref_se)))
    assert jnp.allclose(out_se, ref_se, rtol=5e-3, atol=5e-3), f"se max abs err = {err_se}"

    print("KERNEL_OK")
</pallas_src>

<mosaic_0001>
module attributes {stable_mosaic.version = 11 : i64} {
  func.func @basic_block_kernel(%arg0: i32, %arg1: memref<1x16x16x4xbf16, #tpu.memory_space<vmem>>, %arg2: memref<36x4xbf16, #tpu.memory_space<vmem>>, %arg3: memref<1x4xf32, #tpu.memory_space<vmem>>, %arg4: memref<1x4xf32, #tpu.memory_space<vmem>>, %arg5: memref<36x4xbf16, #tpu.memory_space<vmem>>, %arg6: memref<1x4xf32, #tpu.memory_space<vmem>>, %arg7: memref<1x4xf32, #tpu.memory_space<vmem>>, %arg8: memref<1x256x4xf32, #tpu.memory_space<vmem>>, %arg9: memref<18x18x4xbf16, #tpu.memory_space<vmem>>, %arg10: memref<256x36xbf16, #tpu.memory_space<vmem>>) attributes {dimension_semantics = [#tpu.dimension_semantics<parallel>], iteration_bounds = array<i64: 2>, scalar_prefetch = 0 : i64, scratch_operands = 2 : i64, tpu.core_type = #tpu.core_type<tc>, window_params = [{transform_indices = @transform_0, window_bounds = array<i64: 1, 16, 16, 4>}, {pipeline_mode = #tpu.pipeline_mode<synchronous>, transform_indices = @transform_1, window_bounds = array<i64: 36, 4>}, {pipeline_mode = #tpu.pipeline_mode<synchronous>, transform_indices = @transform_2, window_bounds = array<i64: 1, 4>}, {pipeline_mode = #tpu.pipeline_mode<synchronous>, transform_indices = @transform_3, window_bounds = array<i64: 1, 4>}, {pipeline_mode = #tpu.pipeline_mode<synchronous>, transform_indices = @transform_4, window_bounds = array<i64: 36, 4>}, {pipeline_mode = #tpu.pipeline_mode<synchronous>, transform_indices = @transform_5, window_bounds = array<i64: 1, 4>}, {pipeline_mode = #tpu.pipeline_mode<synchronous>, transform_indices = @transform_6, window_bounds = array<i64: 1, 4>}, {transform_indices = @transform_7, window_bounds = array<i64: 1, 256, 4>}]} {
    %cst = arith.constant 0.000000e+00 : bf16
    %0 = vector.broadcast %cst : bf16 to vector<1x18x4xbf16>
    %cst_0 = arith.constant 0.000000e+00 : bf16
    %1 = vector.broadcast %cst_0 : bf16 to vector<18x1x4xbf16>
    %c0 = arith.constant 0 : index
    %c0_1 = arith.constant 0 : index
    %c0_2 = arith.constant 0 : index
    %2 = vector.load %arg9[%c0, %c0_1, %c0_2] : memref<18x18x4xbf16, #tpu.memory_space<vmem>>, vector<1x18x4xbf16>
    tpu.vector_store %arg9[%c0, %c0_1, %c0_2], %0 {strides = array<i32>} : memref<18x18x4xbf16, #tpu.memory_space<vmem>>, vector<1x18x4xbf16>,
    %c17 = arith.constant 17 : index
    %c0_3 = arith.constant 0 : index
    %c0_4 = arith.constant 0 : index
    %3 = vector.load %arg9[%c17, %c0_3, %c0_4] : memref<18x18x4xbf16, #tpu.memory_space<vmem>>, vector<1x18x4xbf16>
    tpu.vector_store %arg9[%c17, %c0_3, %c0_4], %0 {strides = array<i32>} : memref<18x18x4xbf16, #tpu.memory_space<vmem>>, vector<1x18x4xbf16>,
    %c0_5 = arith.constant 0 : index
    %c0_6 = arith.constant 0 : index
    %c0_7 = arith.constant 0 : index
    %4 = vector.load %arg9[%c0_5, %c0_6, %c0_7] : memref<18x18x4xbf16, #tpu.memory_space<vmem>>, vector<18x1x4xbf16>
    tpu.vector_store %arg9[%c0_5, %c0_6, %c0_7], %1 {strides = array<i32>} : memref<18x18x4xbf16, #tpu.memory_space<vmem>>, vector<18x1x4xbf16>,
    %c0_8 = arith.constant 0 : index
    %c17_9 = arith.constant 17 : index
    %c0_10 = arith.constant 0 : index
    %5 = vector.load %arg9[%c0_8, %c17_9, %c0_10] : memref<18x18x4xbf16, #tpu.memory_space<vmem>>, vector<18x1x4xbf16>
    tpu.vector_store %arg9[%c0_8, %c17_9, %c0_10], %1 {strides = array<i32>} : memref<18x18x4xbf16, #tpu.memory_space<vmem>>, vector<18x1x4xbf16>,
    %c0_11 = arith.constant 0 : index
    %c0_12 = arith.constant 0 : index
    %c0_13 = arith.constant 0 : index
    %c0_14 = arith.constant 0 : index
    %6 = vector.load %arg1[%c0_11, %c0_12, %c0_13, %c0_14] : memref<1x16x16x4xbf16, #tpu.memory_space<vmem>>, vector<1x16x16x4xbf16>
    %7 = vector.shape_cast %6 : vector<1x16x16x4xbf16> to vector<16x16x4xbf16>
    %c1 = arith.constant 1 : index
    %c1_15 = arith.constant 1 : index
    %c0_16 = arith.constant 0 : index
    %8 = vector.load %arg9[%c1, %c1_15, %c0_16] : memref<18x18x4xbf16, #tpu.memory_space<vmem>>, vector<16x16x4xbf16>
    tpu.vector_store %arg9[%c1, %c1_15, %c0_16], %7 {strides = array<i32>} : memref<18x18x4xbf16, #tpu.memory_space<vmem>>, vector<16x16x4xbf16>,
    %c0_17 = arith.constant 0 : index
    %c0_18 = arith.constant 0 : index
    %c0_19 = arith.constant 0 : index
    %9 = vector.load %arg9[%c0_17, %c0_18, %c0_19] : memref<18x18x4xbf16, #tpu.memory_space<vmem>>, vector<16x16x4xbf16>
    %10 = vector.shape_cast %9 : vector<16x16x4xbf16> to vector<256x4xbf16>
    %c0_20 = arith.constant 0 : index
    %c0_21 = arith.constant 0 : index
    %11 = vector.load %arg10[%c0_20, %c0_21] : memref<256x36xbf16, #tpu.memory_space<vmem>>, vector<256x4xbf16>
    tpu.vector_store %arg10[%c0_20, %c0_21], %10 {strides = array<i32>} : memref<256x36xbf16, #tpu.memory_space<vmem>>, vector<256x4xbf16>,
    %c0_22 = arith.constant 0 : index
    %c1_23 = arith.constant 1 : index
    %c0_24 = arith.constant 0 : index
    %12 = vector.load %arg9[%c0_22, %c1_23, %c0_24] : memref<18x18x4xbf16, #tpu.memory_space<vmem>>, vector<16x16x4xbf16>
    %13 = vector.shape_cast %12 : vector<16x16x4xbf16> to vector<256x4xbf16>
    %c0_25 = arith.constant 0 : index
    %c4 = arith.constant 4 : index
    %14 = vector.load %arg10[%c0_25, %c4] : memref<256x36xbf16, #tpu.memory_space<vmem>>, vector<256x4xbf16>
    tpu.vector_store %arg10[%c0_25, %c4], %13 {strides = array<i32>} : memref<256x36xbf16, #tpu.memory_space<vmem>>, vector<256x4xbf16>,
    %c0_26 = arith.constant 0 : index
    %c2 = arith.constant 2 : index
    %c0_27 = arith.constant 0 : index
    %15 = vector.load %arg9[%c0_26, %c2, %c0_27] : memref<18x18x4xbf16, #tpu.memory_space<vmem>>, vector<16x16x4xbf16>
    %16 = vector.shape_cast %15 : vector<16x16x4xbf16> to vector<256x4xbf16>
    %c0_28 = arith.constant 0 : index
    %c8 = arith.constant 8 : index
    %17 = vector.load %arg10[%c0_28, %c8] : memref<256x36xbf16, #tpu.memory_space<vmem>>, vector<256x4xbf16>
    tpu.vector_store %arg10[%c0_28, %c8], %16 {strides = array<i32>} : memref<256x36xbf16, #tpu.memory_space<vmem>>, vector<256x4xbf16>,
    %c1_29 = arith.constant 1 : index
    %c0_30 = arith.constant 0 : index
    %c0_31 = arith.constant 0 : index
    %18 = vector.load %arg9[%c1_29, %c0_30, %c0_31] : memref<18x18x4xbf16, #tpu.memory_space<vmem>>, vector<16x16x4xbf16>
    %19 = vector.shape_cast %18 : vector<16x16x4xbf16> to vector<256x4xbf16>
    %c0_32 = arith.constant 0 : index
    %c12 = arith.constant 12 : index
    %20 = vector.load %arg10[%c0_32, %c12] : memref<256x36xbf16, #tpu.memory_space<vmem>>, vector<256x4xbf16>
    tpu.vector_store %arg10[%c0_32, %c12], %19 {strides = array<i32>} : memref<256x36xbf16, #tpu.memory_space<vmem>>, vector<256x4xbf16>,
    %c1_33 = arith.constant 1 : index
    %c1_34 = arith.constant 1 : index
    %c0_35 = arith.constant 0 : index
    %21 = vector.load %arg9[%c1_33, %c1_34, %c0_35] : memref<18x18x4xbf16, #tpu.memory_space<vmem>>, vector<16x16x4xbf16>
    %22 = vector.shape_cast %21 : vector<16x16x4xbf16> to vector<256x4xbf16>
    %c0_36 = arith.constant 0 : index
    %c16 = arith.constant 16 : index
    %23 = vector.load %arg10[%c0_36, %c16] : memref<256x36xbf16, #tpu.memory_space<vmem>>, vector<256x4xbf16>
    tpu.vector_store %arg10[%c0_36, %c16], %22 {strides = array<i32>} : memref<256x36xbf16, #tpu.memory_space<vmem>>, vector<256x4xbf16>,
    %c1_37 = arith.constant 1 : index
    %c2_38 = arith.constant 2 : index
    %c0_39 = arith.constant 0 : index
    %24 = vector.load %arg9[%c1_37, %c2_38, %c0_39] : memref<18x18x4xbf16, #tpu.memory_space<vmem>>, vector<16x16x4xbf16>
    %25 = vector.shape_cast %24 : vector<16x16x4xbf16> to vector<256x4xbf16>
    %c0_40 = arith.constant 0 : index
    %c20 = arith.constant 20 : index
    %26 = vector.load %arg10[%c0_40, %c20] : memref<256x36xbf16, #tpu.memory_space<vmem>>, vector<256x4xbf16>
    tpu.vector_store %arg10[%c0_40, %c20], %25 {strides = array<i32>} : memref<256x36xbf16, #tpu.memory_space<vmem>>, vector<256x4xbf16>,
    %c2_41 = arith.constant 2 : index
    %c0_42 = arith.constant 0 : index
    %c0_43 = arith.constant 0 : index
    %27 = vector.load %arg9[%c2_41, %c0_42, %c0_43] : memref<18x18x4xbf16, #tpu.memory_space<vmem>>, vector<16x16x4xbf16>
    %28 = vector.shape_cast %27 : vector<16x16x4xbf16> to vector<256x4xbf16>
    %c0_44 = arith.constant 0 : index
    %c24 = arith.constant 24 : index
    %29 = vector.load %arg10[%c0_44, %c24] : memref<256x36xbf16, #tpu.memory_space<vmem>>, vector<256x4xbf16>
    tpu.vector_store %arg10[%c0_44, %c24], %28 {strides = array<i32>} : memref<256x36xbf16, #tpu.memory_space<vmem>>, vector<256x4xbf16>,
    %c2_45 = arith.constant 2 : index
    %c1_46 = arith.constant 1 : index
    %c0_47 = arith.constant 0 : index
    %30 = vector.load %arg9[%c2_45, %c1_46, %c0_47] : memref<18x18x4xbf16, #tpu.memory_space<vmem>>, vector<16x16x4xbf16>
    %31 = vector.shape_cast %30 : vector<16x16x4xbf16> to vector<256x4xbf16>
    %c0_48 = arith.constant 0 : index
    %c28 = arith.constant 28 : index
    %32 = vector.load %arg10[%c0_48, %c28] : memref<256x36xbf16, #tpu.memory_space<vmem>>, vector<256x4xbf16>
    tpu.vector_store %arg10[%c0_48, %c28], %31 {strides = array<i32>} : memref<256x36xbf16, #tpu.memory_space<vmem>>, vector<256x4xbf16>,
    %c2_49 = arith.constant 2 : index
    %c2_50 = arith.constant 2 : index
    %c0_51 = arith.constant 0 : index
    %33 = vector.load %arg9[%c2_49, %c2_50, %c0_51] : memref<18x18x4xbf16, #tpu.memory_space<vmem>>, vector<16x16x4xbf16>
    %34 = vector.shape_cast %33 : vector<16x16x4xbf16> to vector<256x4xbf16>
    %c0_52 = arith.constant 0 : index
    %c32 = arith.constant 32 : index
    %35 = vector.load %arg10[%c0_52, %c32] : memref<256x36xbf16, #tpu.memory_space<vmem>>, vector<256x4xbf16>
    tpu.vector_store %arg10[%c0_52, %c32], %34 {strides = array<i32>} : memref<256x36xbf16, #tpu.memory_space<vmem>>, vector<256x4xbf16>,
    %c0_53 = arith.constant 0 : index
    %c0_54 = arith.constant 0 : index
    %36 = vector.load %arg10[%c0_53, %c0_54] : memref<256x36xbf16, #tpu.memory_space<vmem>>, vector<256x36xbf16>
    %c0_55 = arith.constant 0 : index
    %c0_56 = arith.constant 0 : index
    %37 = vector.load %arg2[%c0_55, %c0_56] : memref<36x4xbf16, #tpu.memory_space<vmem>>, vector<36x4xbf16>
    %cst_57 = arith.constant dense<0.000000e+00> : vector<256x4xf32>
    %38 = tpu.matmul %36, %37, %cst_57 {dimension_numbers = #tpu.dot_dimension_numbers<[1], [0], [0], [1], [0, 0, 1, 1], [], []>} : vector<256x36xbf16>, vector<36x4xbf16>, vector<256x4xf32> -> vector<256x4xf32>
    %c0_58 = arith.constant 0 : index
    %c0_59 = arith.constant 0 : index
    %39 = vector.load %arg3[%c0_58, %c0_59] : memref<1x4xf32, #tpu.memory_space<vmem>>, vector<1x4xf32>
    %40 = vector.broadcast %39 : vector<1x4xf32> to vector<256x4xf32>
    %41 = arith.mulf %38, %40 : vector<256x4xf32>
    %c0_60 = arith.constant 0 : index
    %c0_61 = arith.constant 0 : index
    %42 = vector.load %arg4[%c0_60, %c0_61] : memref<1x4xf32, #tpu.memory_space<vmem>>, vector<1x4xf32>
    %43 = vector.broadcast %42 : vector<1x4xf32> to vector<256x4xf32>
    %44 = arith.addf %41, %43 : vector<256x4xf32>
    %cst_62 = arith.constant 0.000000e+00 : f32
    %45 = vector.broadcast %cst_62 : f32 to vector<256x4xf32>
    %46 = arith.maximumf %44, %45 : vector<256x4xf32>
    %47 = arith.truncf %46 : vector<256x4xf32> to vector<256x4xbf16>
    %48 = vector.shape_cast %47 : vector<256x4xbf16> to vector<16x16x4xbf16>
    %c1_63 = arith.constant 1 : index
    %c1_64 = arith.constant 1 : index
    %c0_65 = arith.constant 0 : index
    %49 = vector.load %arg9[%c1_63, %c1_64, %c0_65] : memref<18x18x4xbf16, #tpu.memory_space<vmem>>, vector<16x16x4xbf16>
    tpu.vector_store %arg9[%c1_63, %c1_64, %c0_65], %48 {strides = array<i32>} : memref<18x18x4xbf16, #tpu.memory_space<vmem>>, vector<16x16x4xbf16>,
    %c0_66 = arith.constant 0 : index
    %c0_67 = arith.constant 0 : index
    %c0_68 = arith.constant 0 : index
    %50 = vector.load %arg9[%c0_66, %c0_67, %c0_68] : memref<18x18x4xbf16, #tpu.memory_space<vmem>>, vector<16x16x4xbf16>
    %51 = vector.shape_cast %50 : vector<16x16x4xbf16> to vector<256x4xbf16>
    %c0_69 = arith.constant 0 : index
    %c0_70 = arith.constant 0 : index
    %52 = vector.load %arg10[%c0_69, %c0_70] : memref<256x36xbf16, #tpu.memory_space<vmem>>, vector<256x4xbf16>
    tpu.vector_store %arg10[%c0_69, %c0_70], %51 {strides = array<i32>} : memref<256x36xbf16, #tpu.memory_space<vmem>>, vector<256x4xbf16>,
    %c0_71 = arith.constant 0 : index
    %c1_72 = arith.constant 1 : index
    %c0_73 = arith.constant 0 : index
    %53 = vector.load %arg9[%c0_71, %c1_72, %c0_73] : memref<18x18x4xbf16, #tpu.memory_space<vmem>>, vector<16x16x4xbf16>
    %54 = vector.shape_cast %53 : vector<16x16x4xbf16> to vector<256x4xbf16>
    %c0_74 = arith.constant 0 : index
    %c4_75 = arith.constant 4 : index
    %55 = vector.load %arg10[%c0_74, %c4_75] : memref<256x36xbf16, #tpu.memory_space<vmem>>, vector<256x4xbf16>
    tpu.vector_store %arg10[%c0_74, %c4_75], %54 {strides = array<i32>} : memref<256x36xbf16, #tpu.memory_space<vmem>>, vector<256x4xbf16>,
    %c0_76 = arith.constant 0 : index
    %c2_77 = arith.constant 2 : index
    %c0_78 = arith.constant 0 : index
    %56 = vector.load %arg9[%c0_76, %c2_77, %c0_78] : memref<18x18x4xbf16, #tpu.memory_space<vmem>>, vector<16x16x4xbf16>
    %57 = vector.shape_cast %56 : vector<16x16x4xbf16> to vector<256x4xbf16>
    %c0_79 = arith.constant 0 : index
    %c8_80 = arith.constant 8 : index
    %58 = vector.load %arg10[%c0_79, %c8_80] : memref<256x36xbf16, #tpu.memory_space<vmem>>, vector<256x4xbf16>
    tpu.vector_store %arg10[%c0_79, %c8_80], %57 {strides = array<i32>} : memref<256x36xbf16, #tpu.memory_space<vmem>>, vector<256x4xbf16>,
    %c1_81 = arith.constant 1 : index
    %c0_82 = arith.constant 0 : index
    %c0_83 = arith.constant 0 : index
    %59 = vector.load %arg9[%c1_81, %c0_82, %c0_83] : memref<18x18x4xbf16, #tpu.memory_space<vmem>>, vector<16x16x4xbf16>
    %60 = vector.shape_cast %59 : vector<16x16x4xbf16> to vector<256x4xbf16>
    %c0_84 = arith.constant 0 : index
    %c12_85 = arith.constant 12 : index
    %61 = vector.load %arg10[%c0_84, %c12_85] : memref<256x36xbf16, #tpu.memory_space<vmem>>, vector<256x4xbf16>
    tpu.vector_store %arg10[%c0_84, %c12_85], %60 {strides = array<i32>} : memref<256x36xbf16, #tpu.memory_space<vmem>>, vector<256x4xbf16>,
    %c1_86 = arith.constant 1 : index
    %c1_87 = arith.constant 1 : index
    %c0_88 = arith.constant 0 : index
    %62 = vector.load %arg9[%c1_86, %c1_87, %c0_88] : memref<18x18x4xbf16, #tpu.memory_space<vmem>>, vector<16x16x4xbf16>
    %63 = vector.shape_cast %62 : vector<16x16x4xbf16> to vector<256x4xbf16>
    %c0_89 = arith.constant 0 : index
    %c16_90 = arith.constant 16 : index
    %64 = vector.load %arg10[%c0_89, %c16_90] : memref<256x36xbf16, #tpu.memory_space<vmem>>, vector<256x4xbf16>
    tpu.vector_store %arg10[%c0_89, %c16_90], %63 {strides = array<i32>} : memref<256x36xbf16, #tpu.memory_space<vmem>>, vector<256x4xbf16>,
    %c1_91 = arith.constant 1 : index
    %c2_92 = arith.constant 2 : index
    %c0_93 = arith.constant 0 : index
    %65 = vector.load %arg9[%c1_91, %c2_92, %c0_93] : memref<18x18x4xbf16, #tpu.memory_space<vmem>>, vector<16x16x4xbf16>
    %66 = vector.shape_cast %65 : vector<16x16x4xbf16> to vector<256x4xbf16>
    %c0_94 = arith.constant 0 : index
    %c20_95 = arith.constant 20 : index
    %67 = vector.load %arg10[%c0_94, %c20_95] : memref<256x36xbf16, #tpu.memory_space<vmem>>, vector<256x4xbf16>
    tpu.vector_store %arg10[%c0_94, %c20_95], %66 {strides = array<i32>} : memref<256x36xbf16, #tpu.memory_space<vmem>>, vector<256x4xbf16>,
    %c2_96 = arith.constant 2 : index
    %c0_97 = arith.constant 0 : index
    %c0_98 = arith.constant 0 : index
    %68 = vector.load %arg9[%c2_96, %c0_97, %c0_98] : memref<18x18x4xbf16, #tpu.memory_space<vmem>>, vector<16x16x4xbf16>
    %69 = vector.shape_cast %68 : vector<16x16x4xbf16> to vector<256x4xbf16>
    %c0_99 = arith.constant 0 : index
    %c24_100 = arith.constant 24 : index
    %70 = vector.load %arg10[%c0_99, %c24_100] : memref<256x36xbf16, #tpu.memory_space<vmem>>, vector<256x4xbf16>
    tpu.vector_store %arg10[%c0_99, %c24_100], %69 {strides = array<i32>} : memref<256x36xbf16, #tpu.memory_space<vmem>>, vector<256x4xbf16>,
    %c2_101 = arith.constant 2 : index
    %c1_102 = arith.constant 1 : index
    %c0_103 = arith.constant 0 : index
    %71 = vector.load %arg9[%c2_101, %c1_102, %c0_103] : memref<18x18x4xbf16, #tpu.memory_space<vmem>>, vector<16x16x4xbf16>
    %72 = vector.shape_cast %71 : vector<16x16x4xbf16> to vector<256x4xbf16>
    %c0_104 = arith.constant 0 : index
    %c28_105 = arith.constant 28 : index
    %73 = vector.load %arg10[%c0_104, %c28_105] : memref<256x36xbf16, #tpu.memory_space<vmem>>, vector<256x4xbf16>
    tpu.vector_store %arg10[%c0_104, %c28_105], %72 {strides = array<i32>} : memref<256x36xbf16, #tpu.memory_space<vmem>>, vector<256x4xbf16>,
    %c2_106 = arith.constant 2 : index
    %c2_107 = arith.constant 2 : index
    %c0_108 = arith.constant 0 : index
    %74 = vector.load %arg9[%c2_106, %c2_107, %c0_108] : memref<18x18x4xbf16, #tpu.memory_space<vmem>>, vector<16x16x4xbf16>
    %75 = vector.shape_cast %74 : vector<16x16x4xbf16> to vector<256x4xbf16>
    %c0_109 = arith.constant 0 : index
    %c32_110 = arith.constant 32 : index
    %76 = vector.load %arg10[%c0_109, %c32_110] : memref<256x36xbf16, #tpu.memory_space<vmem>>, vector<256x4xbf16>
    tpu.vector_store %arg10[%c0_109, %c32_110], %75 {strides = array<i32>} : memref<256x36xbf16, #tpu.memory_space<vmem>>, vector<256x4xbf16>,
    %c0_111 = arith.constant 0 : index
    %c0_112 = arith.constant 0 : index
    %77 = vector.load %arg10[%c0_111, %c0_112] : memref<256x36xbf16, #tpu.memory_space<vmem>>, vector<256x36xbf16>
    %c0_113 = arith.constant 0 : index
    %c0_114 = arith.constant 0 : index
    %78 = vector.load %arg5[%c0_113, %c0_114] : memref<36x4xbf16, #tpu.memory_space<vmem>>, vector<36x4xbf16>
    %cst_115 = arith.constant dense<0.000000e+00> : vector<256x4xf32>
    %79 = tpu.matmul %77, %78, %cst_115 {dimension_numbers = #tpu.dot_dimension_numbers<[1], [0], [0], [1], [0, 0, 1, 1], [], []>} : vector<256x36xbf16>, vector<36x4xbf16>, vector<256x4xf32> -> vector<256x4xf32>
    %c0_116 = arith.constant 0 : index
    %c0_117 = arith.constant 0 : index
    %80 = vector.load %arg6[%c0_116, %c0_117] : memref<1x4xf32, #tpu.memory_space<vmem>>, vector<1x4xf32>
    %81 = vector.broadcast %80 : vector<1x4xf32> to vector<256x4xf32>
    %82 = arith.mulf %79, %81 : vector<256x4xf32>
    %c0_118 = arith.constant 0 : index
    %c0_119 = arith.constant 0 : index
    %83 = vector.load %arg7[%c0_118, %c0_119] : memref<1x4xf32, #tpu.memory_space<vmem>>, vector<1x4xf32>
    %84 = vector.broadcast %83 : vector<1x4xf32> to vector<256x4xf32>
    %85 = arith.addf %82, %84 : vector<256x4xf32>
    %c0_120 = arith.constant 0 : index
    %c0_121 = arith.constant 0 : index
    %c0_122 = arith.constant 0 : index
    %c0_123 = arith.constant 0 : index
    %86 = vector.load %arg1[%c0_120, %c0_121, %c0_122, %c0_123] : memref<1x16x16x4xbf16, #tpu.memory_space<vmem>>, vector<1x16x16x4xbf16>
    %87 = vector.shape_cast %86 : vector<1x16x16x4xbf16> to vector<16x16x4xbf16>
    %88 = arith.extf %87 : vector<16x16x4xbf16> to vector<16x16x4xf32>
    %89 = vector.shape_cast %88 : vector<16x16x4xf32> to vector<256x4xf32>
    %90 = arith.addf %85, %89 : vector<256x4xf32>
    %cst_124 = arith.constant 0.000000e+00 : f32
    %91 = vector.broadcast %cst_124 : f32 to vector<256x4xf32>
    %92 = arith.maximumf %90, %91 : vector<256x4xf32>
    %c0_125 = arith.constant 0 : index
    %c0_126 = arith.constant 0 : index
    %c0_127 = arith.constant 0 : index
    %93 = vector.load %arg8[%c0_125, %c0_126, %c0_127] : memref<1x256x4xf32, #tpu.memory_space<vmem>>, vector<1x256x4xf32>
    %94 = vector.shape_cast %93 : vector<1x256x4xf32> to vector<256x4xf32>
    %95 = vector.shape_cast %92 : vector<256x4xf32> to vector<1x256x4xf32>
    tpu.vector_store %arg8[%c0_125, %c0_126, %c0_127], %95 {strides = array<i32>} : memref<1x256x4xf32, #tpu.memory_space<vmem>>, vector<1x256x4xf32>,
    return
  }
  func.func @transform_0(%arg0: i32) -> (i32, i32, i32, i32) {
    %c0_i32 = arith.constant 0 : i32
    %c0_i32_0 = arith.constant 0 : i32
    %c0_i32_1 = arith.constant 0 : i32
    %c0_i32_2 = arith.constant 0 : i32
    return %arg0, %c0_i32, %c0_i32_0, %c0_i32_1 : i32, i32, i32, i32
  }
  func.func @transform_1(%arg0: i32) -> (i32, i32) {
    %c0_i32 = arith.constant 0 : i32
    %c0_i32_0 = arith.constant 0 : i32
    %c0_i32_1 = arith.constant 0 : i32
    return %c0_i32, %c0_i32_0 : i32, i32
  }
  func.func @transform_2(%arg0: i32) -> (i32, i32) {
    %c0_i32 = arith.constant 0 : i32
    %c0_i32_0 = arith.constant 0 : i32
    %c0_i32_1 = arith.constant 0 : i32
    return %c0_i32, %c0_i32_0 : i32, i32
  }
  func.func @transform_3(%arg0: i32) -> (i32, i32) {
    %c0_i32 = arith.constant 0 : i32
    %c0_i32_0 = arith.constant 0 : i32
    %c0_i32_1 = arith.constant 0 : i32
    return %c0_i32, %c0_i32_0 : i32, i32
  }
  func.func @transform_4(%arg0: i32) -> (i32, i32) {
    %c0_i32 = arith.constant 0 : i32
    %c0_i32_0 = arith.constant 0 : i32
    %c0_i32_1 = arith.constant 0 : i32
    return %c0_i32, %c0_i32_0 : i32, i32
  }
  func.func @transform_5(%arg0: i32) -> (i32, i32) {
    %c0_i32 = arith.constant 0 : i32
    %c0_i32_0 = arith.constant 0 : i32
    %c0_i32_1 = arith.constant 0 : i32
    return %c0_i32, %c0_i32_0 : i32, i32
  }
  func.func @transform_6(%arg0: i32) -> (i32, i32) {
    %c0_i32 = arith.constant 0 : i32
    %c0_i32_0 = arith.constant 0 : i32
    %c0_i32_1 = arith.constant 0 : i32
    return %c0_i32, %c0_i32_0 : i32, i32
  }
  func.func @transform_7(%arg0: i32) -> (i32, i32, i32) {
    %c0_i32 = arith.constant 0 : i32
    %c0_i32_0 = arith.constant 0 : i32
    %c0_i32_1 = arith.constant 0 : i32
    return %arg0, %c0_i32, %c0_i32_0 : i32, i32, i32
  }
}

</mosaic_0001>

<llo_original>
// kernel: tpu_custom_call.1
$region0: #{tpu_custom_call.1}
  #allocation0 [shape = 'u32[]', space=smem, size = 0x4, offset = 0x4, fixed_abs, tag = 'smem constant byte address 0x4 - core index']
  #allocation1 [shape = 'u32[144,128]{1,0:T(1,128)}', space=vmem, size = 0x12000, scoped, tag = 'internal scratch']
  #allocation2 [shape = 'bf16[18,18,4]{2,1,0:T(8,128)(2,1)}', space=vmem, size = 0x1b000, scoped, tag = 'scratch operand']
  #allocation3 [shape = 'bf16[256,36]{1,0:T(16,128)(2,1)}', space=vmem, size = 0x10000, scoped, tag = 'scratch operand']
  %s0 = inlined_call_operand.vmem [shape: bf16[2,16,16,4], index: 0, kind: input, shape index: {}]
  %s1 = inlined_call_operand.vmem [shape: bf16[36,4], index: 1, kind: input, shape index: {}]
  %s2 = inlined_call_operand.vmem [shape: f32[1,4], index: 2, kind: input, shape index: {}]
  %s3 = inlined_call_operand.vmem [shape: f32[1,4], index: 3, kind: input, shape index: {}]
  %s4 = inlined_call_operand.vmem [shape: bf16[36,4], index: 4, kind: input, shape index: {}]
  %s5 = inlined_call_operand.vmem [shape: f32[1,4], index: 5, kind: input, shape index: {}]
  %s6 = inlined_call_operand.vmem [shape: f32[1,4], index: 6, kind: input, shape index: {}]
  %s7 = inlined_call_operand.vmem [shape: f32[2,256,4], index: 7, kind: output, shape index: {}]
  %s8 = sld [smem:[#allocation0]]
  $region61: #{tpu_custom_call.1} parent=0
    _
  %s10 = ssub.s32 1, %s8
  %s11 = scalar_select 0, %s10, %s8
  loop: start=0, step=1, limit=4
  $region2: #{tpu_custom_call.1} parent=0 // loop_pre_header
    _
  $region3: #{tpu_custom_call.1} parent=0 // loop_header
    %s13 = sphi 0, %s17
    %p14 = scmp.ge.s32.totalorder %s13, 4
    %s23 = sphi 0, %s25
    %s26 = sphi 0, %s23
    %s27 = sphi 0, %s26
    %s43 = sphi 0, %s27
    %s47 = sphi 0, %s47
    %s49 = sphi 0, %s47
    %s50 = sphi 0, %s49
    %s64 = sphi 0, %s50
    %s68 = sphi 0, %s68
    %s70 = sphi 0, %s68
    %s71 = sphi 0, %s70
    %s85 = sphi 0, %s71
    %s89 = sphi 0, %s89
    %s91 = sphi 0, %s89
    %s92 = sphi 0, %s91
    %s106 = sphi 0, %s92
    %s110 = sphi 0, %s110
    %s112 = sphi 0, %s110
    %s113 = sphi 0, %s112
    %s127 = sphi 0, %s113
    %s131 = sphi 0, %s131
    %s133 = sphi 0, %s131
    %s134 = sphi 0, %s133
    %s148 = sphi 0, %s134
    %s152 = sphi 0, %s152
    %s154 = sphi 0, %s152
    %s155 = sphi 0, %s154
    %s169 = sphi 0, %s155
    %s175 = sphi 0, %s177
    %s178 = sphi 0, %s175
    %s179 = sphi 0, %s178
    %s195 = sphi 0, %s179
  $region4: #{tpu_custom_call.1} parent=0 // loop_header_branch
    %16 = sbr.rel (%p14) target = $region8
  $region5: #{tpu_custom_call.1} parent=0 // loop_body
    %s18 = ssub.s32 %s13, 1
    %s19 = ssub.s32 %s13, 2
    %s20 = sadd.s32 %s13, 1
    %s21 = ssub.s32 %s13, %s20
    %p22 = scmp.eq.s32.totalorder %s21, 0
    %s24 = sadd.s32 %s23, 1
    %s25 = scalar_select %p22, %s23, %s24
    %p28 = pneg %p22
    %p29 = scmp.eq.s32.totalorder %s13, 1
    %p30 = por %p28, %p29
    %p31 = scmp.ne.s32.totalorder %s23, %s26
    %p32 = scmp.eq.s32.totalorder %s13, 0
    %p33 = por %p31, %p32
    %p34 = scmp.ne.s32.totalorder %s23, %s26
    %p35 = scmp.eq.s32.totalorder %s18, 1
    %p36 = por %p34, %p35
    %p37 = scmp.ne.s32.totalorder %s26, %s27
    %p38 = scmp.eq.s32.totalorder %s18, 0
    %p39 = por %p37, %p38
    %p40 = scmp.ne.s32.totalorder %s26, %s27
    %p41 = scmp.eq.s32.totalorder %s19, 1
    %p42 = por %p40, %p41
    %p44 = scmp.ne.s32.totalorder %s27, %s43
    %p45 = scmp.eq.s32.totalorder %s19, 0
    %p46 = por %p44, %p45
    %s48 = sadd.s32 %s47, 1
    %p51 = scmp.eq.s32.totalorder %s13, 1
    %p52 = scmp.ne.s32.totalorder %s47, %s49
    %p53 = scmp.eq.s32.totalorder %s13, 0
    %p54 = por %p52, %p53
    %p55 = scmp.ne.s32.totalorder %s47, %s49
    %p56 = scmp.eq.s32.totalorder %s18, 1
    %p57 = por %p55, %p56
    %p58 = scmp.ne.s32.totalorder %s49, %s50
    %p59 = scmp.eq.s32.totalorder %s18, 0
    %p60 = por %p58, %p59
    %p61 = scmp.ne.s32.totalorder %s49, %s50
    %p62 = scmp.eq.s32.totalorder %s19, 1
    %p63 = por %p61, %p62
    %p65 = scmp.ne.s32.totalorder %s50, %s64
    %p66 = scmp.eq.s32.totalorder %s19, 0
    %p67 = por %p65, %p66
    %s69 = sadd.s32 %s68, 1
    %p72 = scmp.eq.s32.totalorder %s13, 1
    %p73 = scmp.ne.s32.totalorder %s68, %s70
    %p74 = scmp.eq.s32.totalorder %s13, 0
    %p75 = por %p73, %p74
    %p76 = scmp.ne.s32.totalorder %s68, %s70
    %p77 = scmp.eq.s32.totalorder %s18, 1
    %p78 = por %p76, %p77
    %p79 = scmp.ne.s32.totalorder %s70, %s71
    %p80 = scmp.eq.s32.totalorder %s18, 0
    %p81 = por %p79, %p80
    %p82 = scmp.ne.s32.totalorder %s70, %s71
    %p83 = scmp.eq.s32.totalorder %s19, 1
    %p84 = por %p82, %p83
    %p86 = scmp.ne.s32.totalorder %s71, %s85
    %p87 = scmp.eq.s32.totalorder %s19, 0
    %p88 = por %p86, %p87
    %s90 = sadd.s32 %s89, 1
    %p93 = scmp.eq.s32.totalorder %s13, 1
    %p94 = scmp.ne.s32.totalorder %s89, %s91
    %p95 = scmp.eq.s32.totalorder %s13, 0
    %p96 = por %p94, %p95
    %p97 = scmp.ne.s32.totalorder %s89, %s91
    %p98 = scmp.eq.s32.totalorder %s18, 1
    %p99 = por %p97, %p98
    %p100 = scmp.ne.s32.totalorder %s91, %s92
    %p101 = scmp.eq.s32.totalorder %s18, 0
    %p102 = por %p100, %p101
    %p103 = scmp.ne.s32.totalorder %s91, %s92
    %p104 = scmp.eq.s32.totalorder %s19, 1
    %p105 = por %p103, %p104
    %p107 = scmp.ne.s32.totalorder %s92, %s106
    %p108 = scmp.eq.s32.totalorder %s19, 0
    %p109 = por %p107, %p108
    %s111 = sadd.s32 %s110, 1
    %p114 = scmp.eq.s32.totalorder %s13, 1
    %p115 = scmp.ne.s32.totalorder %s110, %s112
    %p116 = scmp.eq.s32.totalorder %s13, 0
    %p117 = por %p115, %p116
    %p118 = scmp.ne.s32.totalorder %s110, %s112
    %p119 = scmp.eq.s32.totalorder %s18, 1
    %p120 = por %p118, %p119
    %p121 = scmp.ne.s32.totalorder %s112, %s113
    %p122 = scmp.eq.s32.totalorder %s18, 0
    %p123 = por %p121, %p122
    %p124 = scmp.ne.s32.totalorder %s112, %s113
    %p125 = scmp.eq.s32.totalorder %s19, 1
    %p126 = por %p124, %p125
    %p128 = scmp.ne.s32.totalorder %s113, %s127
    %p129 = scmp.eq.s32.totalorder %s19, 0
    %p130 = por %p128, %p129
    %s132 = sadd.s32 %s131, 1
    %p135 = scmp.eq.s32.totalorder %s13, 1
    %p136 = scmp.ne.s32.totalorder %s131, %s133
    %p137 = scmp.eq.s32.totalorder %s13, 0
    %p138 = por %p136, %p137
    %p139 = scmp.ne.s32.totalorder %s131, %s133
    %p140 = scmp.eq.s32.totalorder %s18, 1
    %p141 = por %p139, %p140
    %p142 = scmp.ne.s32.totalorder %s133, %s134
    %p143 = scmp.eq.s32.totalorder %s18, 0
    %p144 = por %p142, %p143
    %p145 = scmp.ne.s32.totalorder %s133, %s134
    %p146 = scmp.eq.s32.totalorder %s19, 1
    %p147 = por %p145, %p146
    %p149 = scmp.ne.s32.totalorder %s134, %s148
    %p150 = scmp.eq.s32.totalorder %s19, 0
    %p151 = por %p149, %p150
    %s153 = sadd.s32 %s152, 1
    %p156 = scmp.eq.s32.totalorder %s13, 1
    %p157 = scmp.ne.s32.totalorder %s152, %s154
    %p158 = scmp.eq.s32.totalorder %s13, 0
    %p159 = por %p157, %p158
    %p160 = scmp.ne.s32.totalorder %s152, %s154
    %p161 = scmp.eq.s32.totalorder %s18, 1
    %p162 = por %p160, %p161
    %p163 = scmp.ne.s32.totalorder %s154, %s155
    %p164 = scmp.eq.s32.totalorder %s18, 0
    %p165 = por %p163, %p164
    %p166 = scmp.ne.s32.totalorder %s154, %s155
    %p167 = scmp.eq.s32.totalorder %s19, 1
    %p168 = por %p166, %p167
    %p170 = scmp.ne.s32.totalorder %s155, %s169
    %p171 = scmp.eq.s32.totalorder %s19, 0
    %p172 = por %p170, %p171
    %s173 = ssub.s32 %s13, %s20
    %p174 = scmp.eq.s32.totalorder %s173, 0
    %s176 = sadd.s32 %s175, 1
    %s177 = scalar_select %p174, %s175, %s176
    %p180 = pneg %p174
    %p181 = scmp.eq.s32.totalorder %s13, 1
    %p182 = por %p180, %p181
    %p183 = scmp.ne.s32.totalorder %s175, %s178
    %p184 = scmp.eq.s32.totalorder %s13, 0
    %p185 = por %p183, %p184
    %p186 = scmp.ne.s32.totalorder %s175, %s178
    %p187 = scmp.eq.s32.totalorder %s18, 1
    %p188 = por %p186, %p187
    %p189 = scmp.ne.s32.totalorder %s178, %s179
    %p190 = scmp.eq.s32.totalorder %s18, 0
    %p191 = por %p189, %p190
    %p192 = scmp.ne.s32.totalorder %s178, %s179
    %p193 = scmp.eq.s32.totalorder %s19, 1
    %p194 = por %p192, %p193
    %p196 = scmp.ne.s32.totalorder %s179, %s195
    %p197 = scmp.eq.s32.totalorder %s19, 0
    %p198 = por %p196, %p197
    %p199 = scmp.le.s32.totalorder 1, %s13
    %p200 = scmp.lt.s32.totalorder %s13, 3
    %p201 = pnand %p199, %p200
    %p202 = pneg %p201
    // Predicated region
    $region9: #{tpu_custom_call.1} parent=5 // pred_check
      _
    $region10: #{tpu_custom_call.1} parent=5 // pred_check_branch
      %204 = sbr.rel (%p201) target = $region12
    $region11: #{tpu_custom_call.1} parent=5 // pred_region
      %s205 = ssub.s32 %s13, 1
      // Predicated region
      $region13: #{tpu_custom_call.1} parent=11 // pred_check
        %p206 = pneg %p60
      $region14: #{tpu_custom_call.1} parent=11 // pred_check_branch
        %208 = sbr.rel (%p206) target = $region16
      $region15: #{tpu_custom_call.1} parent=11 // pred_region
        _
      $region16: #{tpu_custom_call.1} parent=11 // pred_fallthru
        _
      // Predicated region
      $region17: #{tpu_custom_call.1} parent=11 // pred_check
        %p209 = pneg %p81
      $region18: #{tpu_custom_call.1} parent=11 // pred_check_branch
        %211 = sbr.rel (%p209) target = $region20
      $region19: #{tpu_custom_call.1} parent=11 // pred_region
        _
      $region20: #{tpu_custom_call.1} parent=11 // pred_fallthru
        _
      // Predicated region
      $region21: #{tpu_custom_call.1} parent=11 // pred_check
        %p212 = pneg %p102
      $region22: #{tpu_custom_call.1} parent=11 // pred_check_branch
        %214 = sbr.rel (%p212) target = $region24
      $region23: #{tpu_custom_call.1} parent=11 // pred_region
        _
      $region24: #{tpu_custom_call.1} parent=11 // pred_fallthru
        _
      // Predicated region
      $region25: #{tpu_custom_call.1} parent=11 // pred_check
        %p215 = pneg %p123
      $region26: #{tpu_custom_call.1} parent=11 // pred_check_branch
        %217 = sbr.rel (%p215) target = $region28
      $region27: #{tpu_custom_call.1} parent=11 // pred_region
        _
      $region28: #{tpu_custom_call.1} parent=11 // pred_fallthru
        _
      // Predicated region
      $region29: #{tpu_custom_call.1} parent=11 // pred_check
        %p218 = pneg %p144
      $region30: #{tpu_custom_call.1} parent=11 // pred_check_branch
        %220 = sbr.rel (%p218) target = $region32
      $region31: #{tpu_custom_call.1} parent=11 // pred_region
        _
      $region32: #{tpu_custom_call.1} parent=11 // pred_fallthru
        _
      // Predicated region
      $region33: #{tpu_custom_call.1} parent=11 // pred_check
        %p221 = pneg %p165
      $region34: #{tpu_custom_call.1} parent=11 // pred_check_branch
        %223 = sbr.rel (%p221) target = $region36
      $region35: #{tpu_custom_call.1} parent=11 // pred_region
        _
      $region36: #{tpu_custom_call.1} parent=11 // pred_fallthru
        _
    $region12: #{tpu_custom_call.1} parent=5 // pred_fallthru
      _
    %p224 = scmp.lt.s32.totalorder %s13, 2
    // Predicated region
    $region37: #{tpu_custom_call.1} parent=5 // pred_check
      %p225 = pneg %p224
    $region38: #{tpu_custom_call.1} parent=5 // pred_check_branch
      %227 = sbr.rel (%p225) target = $region40
    $region39: #{tpu_custom_call.1} parent=5 // pred_region
      // Predicated region
      $region41: #{tpu_custom_call.1} parent=39 // pred_check
        %p228 = pneg %p33
      $region42: #{tpu_custom_call.1} parent=39 // pred_check_branch
        %230 = sbr.rel (%p228) target = $region44
      $region43: #{tpu_custom_call.1} parent=39 // pred_region
        %p231 = scmp.lt.s32.totalorder %s13, 1
        %s232 = scalar_select %p231, %s13, 1
        %s233 = smul.addr %s232, 32
        %s234 = smul.addr %s233, 4
        %s235 = scalar_lea.vmem %s0, %s234
      $region44: #{tpu_custom_call.1} parent=39 // pred_fallthru
        _
    $region40: #{tpu_custom_call.1} parent=5 // pred_fallthru
      _
    %p236 = scmp.le.s32.totalorder 1, %s13
    %p237 = scmp.lt.s32.totalorder %s13, 3
    %p238 = pnand %p236, %p237
    %p239 = pneg %p238
    // Predicated region
    $region45: #{tpu_custom_call.1} parent=5 // pred_check
      _
    $region46: #{tpu_custom_call.1} parent=5 // pred_check_branch
      %241 = sbr.rel (%p238) target = $region48
    $region47: #{tpu_custom_call.1} parent=5 // pred_region
      %s242 = ssub.s32 %s13, 1
      %p243 = scmp.lt.s32.totalorder %s18, 1
      %s244 = scalar_select %p243, %s18, 1
      %s245 = smul.addr %s244, 32
      %s246 = smul.addr %s245, 4
      %s247 = scalar_lea.vmem %s0, %s246
      %p248 = pneg %p39
      %p249 = pneg %p36
      %p250 = pneg %p60
      %p251 = pneg %p57
      %p252 = pneg %p81
      %p253 = pneg %p78
      %p254 = pneg %p102
      %p255 = pneg %p99
      %p256 = pneg %p123
      %p257 = pneg %p120
      %p258 = pneg %p144
      %p259 = pneg %p141
      %p260 = pneg %p165
      %p261 = pneg %p162
      %p262 = pneg %p191
      %p263 = pneg %p188
      %p264 = scmp.lt.s32.totalorder %s18, 1
      %s265 = scalar_select %p264, %s18, 1
      %s266 = smul.addr %s265, 32
      %s267 = smul.addr %s266, 8
      %s268 = scalar_lea.vmem %s7, %s267
      %p269 = scmp.lt.s32.totalorder %s18, 1
      %s270 = scalar_select %p269, %s18, 1
      %s271 = smul.addr %s270, 32
      %s272 = smul.addr %s271, 4
      %s273 = scalar_lea.vmem %s0, %s272
      %p274 = scmp.lt.s32.totalorder %s18, 1
      %s275 = scalar_select %p274, %s18, 1
      %s276 = smul.addr %s275, 32
      %s277 = smul.addr %s276, 8
      %s278 = scalar_lea.vmem %s7, %s277
      %vm280 = vcmask 27648
      %281 = vst.msk [vmem:[#allocation2] sm:$0xf] %vm280, 0
      %282 = vst.msk [vmem:[#allocation2 + $0x4] sm:$0xf] %vm280, 0
      %vm283 = vcmask 24576
      %284 = vst.msk [vmem:[#allocation2 + $0x8] sm:$0x1] %vm283, 0
      %s285 = scalar_lea.vmem [#allocation2], 204
      %286 = vst.msk [vmem:[%s285] sm:$0xf] %vm280, 0
      %287 = vst.msk [vmem:[%s285 + $0x4] sm:$0xf] %vm280, 0
      %288 = vst.msk [vmem:[%s285 + $0x8] sm:$0x1] %vm283, 0
      %vm289 = vcmask 24576
      %vm290 = vsmask.f32 256
      %vm291 = vmand %vm289, %vm290
      %v292 = vld [vmem:[#allocation2] sm:$0x1]
      %v293 = vsel %vm291, 0, %v292
      %294 = vst [vmem:[#allocation2] sm:$0x1] %v293
      %v295 = vld [vmem:[#allocation2 + $0xc] sm:$0x1]
      %v296 = vsel %vm291, 0, %v295
      %297 = vst [vmem:[#allocation2 + $0xc] sm:$0x1] %v296
      %v298 = vld [vmem:[#allocation2 + $0x18] sm:$0x1]
      %v299 = vsel %vm291, 0, %v298
      %300 = vst [vmem:[#allocation2 + $0x18] sm:$0x1] %v299
      %v301 = vld [vmem:[#allocation2 + $0x24] sm:$0x1]
      %v302 = vsel %vm291, 0, %v301
      %303 = vst [vmem:[#allocation2 + $0x24] sm:$0x1] %v302
      %v304 = vld [vmem:[#allocation2 + $0x30] sm:$0x1]
      %v305 = vsel %vm291, 0, %v304
      %306 = vst [vmem:[#allocation2 + $0x30] sm:$0x1] %v305
      %v307 = vld [vmem:[#allocation2 + $0x3c] sm:$0x1]
      %v308 = vsel %vm291, 0, %v307
      %309 = vst [vmem:[#allocation2 + $0x3c] sm:$0x1] %v308
      %v310 = vld [vmem:[#allocation2 + $0x48] sm:$0x1]
      %v311 = vsel %vm291, 0, %v310
      %312 = vst [vmem:[#allocation2 + $0x48] sm:$0x1] %v311
      %v313 = vld [vmem:[#allocation2 + $0x54] sm:$0x1]
      %v314 = vsel %vm291, 0, %v313
      %315 = vst [vmem:[#allocation2 + $0x54] sm:$0x1] %v314
      %v316 = vld [vmem:[#allocation2 + $0x60] sm:$0x1]
      %v317 = vsel %vm291, 0, %v316
      %318 = vst [vmem:[#allocation2 + $0x60] sm:$0x1] %v317
      %v319 = vld [vmem:[#allocation2 + $0x6c] sm:$0x1]
      %v320 = vsel %vm291, 0, %v319
      %321 = vst [vmem:[#allocation2 + $0x6c] sm:$0x1] %v320
      %v322 = vld [vmem:[#allocation2 + $0x78] sm:$0x1]
      %v323 = vsel %vm291, 0, %v322
      %324 = vst [vmem:[#allocation2 + $0x78] sm:$0x1] %v323
      %v325 = vld [vmem:[#allocation2 + $0x84] sm:$0x1]
      %v326 = vsel %vm291, 0, %v325
      %327 = vst [vmem:[#allocation2 + $0x84] sm:$0x1] %v326
      %v328 = vld [vmem:[#allocation2 + $0x90] sm:$0x1]
      %v329 = vsel %vm291, 0, %v328
      %330 = vst [vmem:[#allocation2 + $0x90] sm:$0x1] %v329
      %v331 = vld [vmem:[#allocation2 + $0x9c] sm:$0x1]
      %v332 = vsel %vm291, 0, %v331
      %333 = vst [vmem:[#allocation2 + $0x9c] sm:$0x1] %v332
      %v334 = vld [vmem:[#allocation2 + $0xa8] sm:$0x1]
      %v335 = vsel %vm291, 0, %v334
      %336 = vst [vmem:[#allocation2 + $0xa8] sm:$0x1] %v335
      %v337 = vld [vmem:[#allocation2 + $0xb4] sm:$0x1]
      %v338 = vsel %vm291, 0, %v337
      %339 = vst [vmem:[#allocation2 + $0xb4] sm:$0x1] %v338
      %v340 = vld [vmem:[#allocation2 + $0xc0] sm:$0x1]
      %v341 = vsel %vm291, 0, %v340
      %342 = vst [vmem:[#allocation2 + $0xc0] sm:$0x1] %v341
      %v343 = vld [vmem:[#allocation2 + $0xcc] sm:$0x1]
      %v344 = vsel %vm291, 0, %v343
      %345 = vst [vmem:[#allocation2 + $0xcc] sm:$0x1] %v344
      %vm346 = vsmask.f32 7938
      %vm347 = vmand %vm289, %vm346
      %v348 = vld [vmem:[#allocation2 + $0x8] sm:$0x1]
      %v349 = vsel %vm347, 0, %v348
      %350 = vst [vmem:[#allocation2 + $0x8] sm:$0x1] %v349
      %v351 = vld [vmem:[#allocation2 + $0x14] sm:$0x1]
      %v352 = vsel %vm347, 0, %v351
      %353 = vst [vmem:[#allocation2 + $0x14] sm:$0x1] %v352
      %v354 = vld [vmem:[#allocation2 + $0x20] sm:$0x1]
      %v355 = vsel %vm347, 0, %v354
      %356 = vst [vmem:[#allocation2 + $0x20] sm:$0x1] %v355
      %v357 = vld [vmem:[#allocation2 + $0x2c] sm:$0x1]
      %v358 = vsel %vm347, 0, %v357
      %359 = vst [vmem:[#allocation2 + $0x2c] sm:$0x1] %v358
      %v360 = vld [vmem:[#allocation2 + $0x38] sm:$0x1]
      %v361 = vsel %vm347, 0, %v360
      %362 = vst [vmem:[#allocation2 + $0x38] sm:$0x1] %v361
      %v363 = vld [vmem:[#allocation2 + $0x44] sm:$0x1]
      %v364 = vsel %vm347, 0, %v363
      %365 = vst [vmem:[#allocation2 + $0x44] sm:$0x1] %v364
      %v366 = vld [vmem:[#allocation2 + $0x50] sm:$0x1]
      %v367 = vsel %vm347, 0, %v366
      %368 = vst [vmem:[#allocation2 + $0x50] sm:$0x1] %v367
      %v369 = vld [vmem:[#allocation2 + $0x5c] sm:$0x1]
      %v370 = vsel %vm347, 0, %v369
      %371 = vst [vmem:[#allocation2 + $0x5c] sm:$0x1] %v370
      %v372 = vld [vmem:[#allocation2 + $0x68] sm:$0x1]
      %v373 = vsel %vm347, 0, %v372
      %374 = vst [vmem:[#allocation2 + $0x68] sm:$0x1] %v373
      %v375 = vld [vmem:[#allocation2 + $0x74] sm:$0x1]
      %v376 = vsel %vm347, 0, %v375
      %377 = vst [vmem:[#allocation2 + $0x74] sm:$0x1] %v376
      %v378 = vld [vmem:[#allocation2 + $0x80] sm:$0x1]
      %v379 = vsel %vm347, 0, %v378
      %380 = vst [vmem:[#allocation2 + $0x80] sm:$0x1] %v379
      %v381 = vld [vmem:[#allocation2 + $0x8c] sm:$0x1]
      %v382 = vsel %vm347, 0, %v381
      %383 = vst [vmem:[#allocation2 + $0x8c] sm:$0x1] %v382
      %v384 = vld [vmem:[#allocation2 + $0x98] sm:$0x1]
      %v385 = vsel %vm347, 0, %v384
      %386 = vst [vmem:[#allocation2 + $0x98] sm:$0x1] %v385
      %v387 = vld [vmem:[#allocation2 + $0xa4] sm:$0x1]
      %v388 = vsel %vm347, 0, %v387
      %389 = vst [vmem:[#allocation2 + $0xa4] sm:$0x1] %v388
      %v390 = vld [vmem:[#allocation2 + $0xb0] sm:$0x1]
      %v391 = vsel %vm347, 0, %v390
      %392 = vst [vmem:[#allocation2 + $0xb0] sm:$0x1] %v391
      %v393 = vld [vmem:[#allocation2 + $0xbc] sm:$0x1]
      %v394 = vsel %vm347, 0, %v393
      %395 = vst [vmem:[#allocation2 + $0xbc] sm:$0x1] %v394
      %v396 = vld [vmem:[#allocation2 + $0xc8] sm:$0x1]
      %v397 = vsel %vm347, 0, %v396
      %398 = vst [vmem:[#allocation2 + $0xc8] sm:$0x1] %v397
      %v399 = vld [vmem:[#allocation2 + $0xd4] sm:$0x1]
      %v400 = vsel %vm347, 0, %v399
      %401 = vst [vmem:[#allocation2 + $0xd4] sm:$0x1] %v400
      %v402 = vld [vmem:[%s273] sm:$0xf]
      %v403 = vld [vmem:[%s273 + $0x4] sm:$0xf]
      %v404 = vld [vmem:[%s273 + $0x8] sm:$0xf]
      %v405 = vld [vmem:[%s273 + $0xc] sm:$0xf]
      %v406 = vld [vmem:[%s273 + $0x10] sm:$0xf]
      %v407 = vld [vmem:[%s273 + $0x14] sm:$0xf]
      %v408 = vld [vmem:[%s273 + $0x18] sm:$0xf]
      %v409 = vld [vmem:[%s273 + $0x1c] sm:$0xf]
      %v410 = vld [vmem:[%s273 + $0x20] sm:$0xf]
      %v411 = vld [vmem:[%s273 + $0x24] sm:$0xf]
      %v412 = vld [vmem:[%s273 + $0x28] sm:$0xf]
      %v413 = vld [vmem:[%s273 + $0x2c] sm:$0xf]
      %v414 = vld [vmem:[%s273 + $0x30] sm:$0xf]
      %v415 = vld [vmem:[%s273 + $0x34] sm:$0xf]
      %v416 = vld [vmem:[%s273 + $0x38] sm:$0xf]
      %v417 = vld [vmem:[%s273 + $0x3c] sm:$0xf]
      %v418 = vld [vmem:[%s273 + $0x40] sm:$0xf]
      %v419 = vld [vmem:[%s273 + $0x44] sm:$0xf]
      %v420 = vld [vmem:[%s273 + $0x48] sm:$0xf]
      %v421 = vld [vmem:[%s273 + $0x4c] sm:$0xf]
      %v422 = vld [vmem:[%s273 + $0x50] sm:$0xf]
      %v423 = vld [vmem:[%s273 + $0x54] sm:$0xf]
      %v424 = vld [vmem:[%s273 + $0x58] sm:$0xf]
      %v425 = vld [vmem:[%s273 + $0x5c] sm:$0xf]
      %v426 = vld [vmem:[%s273 + $0x60] sm:$0xf]
      %v427 = vld [vmem:[%s273 + $0x64] sm:$0xf]
      %v428 = vld [vmem:[%s273 + $0x68] sm:$0xf]
      %v429 = vld [vmem:[%s273 + $0x6c] sm:$0xf]
      %v430 = vld [vmem:[%s273 + $0x70] sm:$0xf]
      %v431 = vld [vmem:[%s273 + $0x74] sm:$0xf]
      %v432 = vld [vmem:[%s273 + $0x78] sm:$0xf]
      %v433 = vld [vmem:[%s273 + $0x7c] sm:$0xf]
      %vm434 = vsmask.f32 4368
      %vm435 = vmor %vm290, %vm434
      %v437 = vshrl.u32 %v402, 16
      %v439 = vrot.slane %v437, 7
      %v440 = vshll.u32 %v402, 16
      %v442 = vor.u32 %v439, %v440
      %v443 = vrot.slane %v439, 4
      %v445 = vshrl.u32 %v403, 16
      %v447 = vrot.slane %v445, 7
      %v448 = vshll.u32 %v403, 16
      %v450 = vor.u32 %v447, %v448
      %v451 = vsel %vm435, %v443, %v450
      %v452 = vrot.slane %v447, 4
      %v454 = vshrl.u32 %v404, 16
      %v456 = vrot.slane %v454, 7
      %v457 = vshll.u32 %v404, 16
      %v459 = vor.u32 %v456, %v457
      %v460 = vrot.slane %v456, 4
      %v462 = vshrl.u32 %v405, 16
      %v464 = vrot.slane %v462, 7
      %v465 = vshll.u32 %v405, 16
      %v467 = vor.u32 %v464, %v465
      %v468 = vsel %vm435, %v460, %v467
      %v469 = vrot.slane %v464, 4
      %v471 = vshrl.u32 %v406, 16
      %v473 = vrot.slane %v471, 7
      %v474 = vshll.u32 %v406, 16
      %v476 = vor.u32 %v473, %v474
      %v477 = vrot.slane %v473, 4
      %v479 = vshrl.u32 %v407, 16
      %v481 = vrot.slane %v479, 7
      %v482 = vshll.u32 %v407, 16
      %v484 = vor.u32 %v481, %v482
      %v485 = vsel %vm435, %v477, %v484
      %v486 = vrot.slane %v481, 4
      %v488 = vshrl.u32 %v408, 16
      %v490 = vrot.slane %v488, 7
      %v491 = vshll.u32 %v408, 16
      %v493 = vor.u32 %v490, %v491
      %v494 = vrot.slane %v490, 4
      %v496 = vshrl.u32 %v409, 16
      %v498 = vrot.slane %v496, 7
      %v499 = vshll.u32 %v409, 16
      %v501 = vor.u32 %v498, %v499
      %v502 = vsel %vm435, %v494, %v501
      %v503 = vrot.slane %v498, 4
      %v505 = vshrl.u32 %v410, 16
      %v507 = vrot.slane %v505, 7
      %v508 = vshll.u32 %v410, 16
      %v510 = vor.u32 %v507, %v508
      %v511 = vrot.slane %v507, 4
      %v513 = vshrl.u32 %v411, 16
      %v515 = vrot.slane %v513, 7
      %v516 = vshll.u32 %v411, 16
      %v518 = vor.u32 %v515, %v516
      %v519 = vsel %vm435, %v511, %v518
      %v520 = vrot.slane %v515, 4
      %v522 = vshrl.u32 %v412, 16
      %v524 = vrot.slane %v522, 7
      %v525 = vshll.u32 %v412, 16
      %v527 = vor.u32 %v524, %v525
      %v528 = vrot.slane %v524, 4
      %v530 = vshrl.u32 %v413, 16
      %v532 = vrot.slane %v530, 7
      %v533 = vshll.u32 %v413, 16
      %v535 = vor.u32 %v532, %v533
      %v536 = vsel %vm435, %v528, %v535
      %v537 = vrot.slane %v532, 4
      %v539 = vshrl.u32 %v414, 16
      %v541 = vrot.slane %v539, 7
      %v542 = vshll.u32 %v414, 16
      %v544 = vor.u32 %v541, %v542
      %v545 = vrot.slane %v541, 4
      %v547 = vshrl.u32 %v415, 16
      %v549 = vrot.slane %v547, 7
      %v550 = vshll.u32 %v415, 16
      %v552 = vor.u32 %v549, %v550
      %v553 = vsel %vm435, %v545, %v552
      %v554 = vrot.slane %v549, 4
      %v556 = vshrl.u32 %v416, 16
      %v558 = vrot.slane %v556, 7
      %v559 = vshll.u32 %v416, 16
      %v561 = vor.u32 %v558, %v559
      %v562 = vrot.slane %v558, 4
      %v564 = vshrl.u32 %v417, 16
      %v566 = vrot.slane %v564, 7
      %v567 = vshll.u32 %v417, 16
      %v569 = vor.u32 %v566, %v567
      %v570 = vsel %vm435, %v562, %v569
      %v571 = vrot.slane %v566, 4
      %v573 = vshrl.u32 %v418, 16
      %v575 = vrot.slane %v573, 7
      %v576 = vshll.u32 %v418, 16
      %v578 = vor.u32 %v575, %v576
      %v579 = vrot.slane %v575, 4
      %v581 = vshrl.u32 %v419, 16
      %v583 = vrot.slane %v581, 7
      %v584 = vshll.u32 %v419, 16
      %v586 = vor.u32 %v583, %v584
      %v587 = vsel %vm435, %v579, %v586
      %v588 = vrot.slane %v583, 4
      %v590 = vshrl.u32 %v420, 16
      %v592 = vrot.slane %v590, 7
      %v593 = vshll.u32 %v420, 16
      %v595 = vor.u32 %v592, %v593
      %v596 = vrot.slane %v592, 4
      %v598 = vshrl.u32 %v421, 16
      %v600 = vrot.slane %v598, 7
      %v601 = vshll.u32 %v421, 16
      %v603 = vor.u32 %v600, %v601
      %v604 = vsel %vm435, %v596, %v603
      %v605 = vrot.slane %v600, 4
      %v607 = vshrl.u32 %v422, 16
      %v609 = vrot.slane %v607, 7
      %v610 = vshll.u32 %v422, 16
      %v612 = vor.u32 %v609, %v610
      %v613 = vrot.slane %v609, 4
      %v615 = vshrl.u32 %v423, 16
      %v617 = vrot.slane %v615, 7
      %v618 = vshll.u32 %v423, 16
      %v620 = vor.u32 %v617, %v618
      %v621 = vsel %vm435, %v613, %v620
      %v622 = vrot.slane %v617, 4
      %v624 = vshrl.u32 %v424, 16
      %v626 = vrot.slane %v624, 7
      %v627 = vshll.u32 %v424, 16
      %v629 = vor.u32 %v626, %v627
      %v630 = vrot.slane %v626, 4
      %v632 = vshrl.u32 %v425, 16
      %v634 = vrot.slane %v632, 7
      %v635 = vshll.u32 %v425, 16
      %v637 = vor.u32 %v634, %v635
      %v638 = vsel %vm435, %v630, %v637
      %v639 = vrot.slane %v634, 4
      %v641 = vshrl.u32 %v426, 16
      %v643 = vrot.slane %v641, 7
      %v644 = vshll.u32 %v426, 16
      %v646 = vor.u32 %v643, %v644
      %v647 = vrot.slane %v643, 4
      %v649 = vshrl.u32 %v427, 16
      %v651 = vrot.slane %v649, 7
      %v652 = vshll.u32 %v427, 16
      %v654 = vor.u32 %v651, %v652
      %v655 = vsel %vm435, %v647, %v654
      %v656 = vrot.slane %v651, 4
      %v658 = vshrl.u32 %v428, 16
      %v660 = vrot.slane %v658, 7
      %v661 = vshll.u32 %v428, 16
      %v663 = vor.u32 %v660, %v661
      %v664 = vrot.slane %v660, 4
      %v666 = vshrl.u32 %v429, 16
      %v668 = vrot.slane %v666, 7
      %v669 = vshll.u32 %v429, 16
      %v671 = vor.u32 %v668, %v669
      %v672 = vsel %vm435, %v664, %v671
      %v673 = vrot.slane %v668, 4
      %v675 = vshrl.u32 %v430, 16
      %v677 = vrot.slane %v675, 7
      %v678 = vshll.u32 %v430, 16
      %v680 = vor.u32 %v677, %v678
      %v681 = vrot.slane %v677, 4
      %v683 = vshrl.u32 %v431, 16
      %v685 = vrot.slane %v683, 7
      %v686 = vshll.u32 %v431, 16
      %v688 = vor.u32 %v685, %v686
      %v689 = vsel %vm435, %v681, %v688
      %v690 = vrot.slane %v685, 4
      %v692 = vshrl.u32 %v432, 16
      %v694 = vrot.slane %v692, 7
      %v695 = vshll.u32 %v432, 16
      %v697 = vor.u32 %v694, %v695
      %v698 = vrot.slane %v694, 4
      %v700 = vshrl.u32 %v433, 16
      %v702 = vrot.slane %v700, 7
      %v703 = vshll.u32 %v433, 16
      %v705 = vor.u32 %v702, %v703
      %v706 = vsel %vm435, %v698, %v705
      %v707 = vrot.slane %v702, 4
      %s756 = scalar_lea.vmem [#allocation2], 12
      %vm757 = vcmask 27648
      %vm758 = vmand %vm757, %vm346
      %v759 = vld [vmem:[%s756] sm:$0xf]
      %v760 = vsel %vm758, %v442, %v759
      %761 = vst [vmem:[%s756] sm:$0xf] %v760
      %762 = vst.msk [vmem:[%s756 + $0x4] sm:$0xf] %vm280, %v451
      %v763 = vld [vmem:[%s756 + $0x8] sm:$0x1]
      %v764 = vsel %vm291, %v452, %v763
      %765 = vst [vmem:[%s756 + $0x8] sm:$0x1] %v764
      %v766 = vld [vmem:[%s756 + $0xc] sm:$0xf]
      %v767 = vsel %vm758, %v459, %v766
      %768 = vst [vmem:[%s756 + $0xc] sm:$0xf] %v767
      %769 = vst.msk [vmem:[%s756 + $0x10] sm:$0xf] %vm280, %v468
      %v770 = vld [vmem:[%s756 + $0x14] sm:$0x1]
      %v771 = vsel %vm291, %v469, %v770
      %772 = vst [vmem:[%s756 + $0x14] sm:$0x1] %v771
      %v773 = vld [vmem:[%s756 + $0x18] sm:$0xf]
      %v774 = vsel %vm758, %v476, %v773
      %775 = vst [vmem:[%s756 + $0x18] sm:$0xf] %v774
      %776 = vst.msk [vmem:[%s756 + $0x1c] sm:$0xf] %vm280, %v485
      %v777 = vld [vmem:[%s756 + $0x20] sm:$0x1]
      %v778 = vsel %vm291, %v486, %v777
      %779 = vst [vmem:[%s756 + $0x20] sm:$0x1] %v778
      %v780 = vld [vmem:[%s756 + $0x24] sm:$0xf]
      %v781 = vsel %vm758, %v493, %v780
      %782 = vst [vmem:[%s756 + $0x24] sm:$0xf] %v781
      %783 = vst.msk [vmem:[%s756 + $0x28] sm:$0xf] %vm280, %v502
      %v784 = vld [vmem:[%s756 + $0x2c] sm:$0x1]
      %v785 = vsel %vm291, %v503, %v784
      %786 = vst [vmem:[%s756 + $0x2c] sm:$0x1] %v785
      %v787 = vld [vmem:[%s756 + $0x30] sm:$0xf]
      %v788 = vsel %vm758, %v510, %v787
      %789 = vst [vmem:[%s756 + $0x30] sm:$0xf] %v788
      %790 = vst.msk [vmem:[%s756 + $0x34] sm:$0xf] %vm280, %v519
      %v791 = vld [vmem:[%s756 + $0x38] sm:$0x1]
      %v792 = vsel %vm291, %v520, %v791
      %793 = vst [vmem:[%s756 + $0x38] sm:$0x1] %v792
      %v794 = vld [vmem:[%s756 + $0x3c] sm:$0xf]
      %v795 = vsel %vm758, %v527, %v794
      %796 = vst [vmem:[%s756 + $0x3c] sm:$0xf] %v795
      %797 = vst.msk [vmem:[%s756 + $0x40] sm:$0xf] %vm280, %v536
      %v798 = vld [vmem:[%s756 + $0x44] sm:$0x1]
      %v799 = vsel %vm291, %v537, %v798
      %800 = vst [vmem:[%s756 + $0x44] sm:$0x1] %v799
      %v801 = vld [vmem:[%s756 + $0x48] sm:$0xf]
      %v802 = vsel %vm758, %v544, %v801
      %803 = vst [vmem:[%s756 + $0x48] sm:$0xf] %v802
      %804 = vst.msk [vmem:[%s756 + $0x4c] sm:$0xf] %vm280, %v553
      %v805 = vld [vmem:[%s756 + $0x50] sm:$0x1]
      %v806 = vsel %vm291, %v554, %v805
      %807 = vst [vmem:[%s756 + $0x50] sm:$0x1] %v806
      %v808 = vld [vmem:[%s756 + $0x54] sm:$0xf]
      %v809 = vsel %vm758, %v561, %v808
      %810 = vst [vmem:[%s756 + $0x54] sm:$0xf] %v809
      %811 = vst.msk [vmem:[%s756 + $0x58] sm:$0xf] %vm280, %v570
      %v812 = vld [vmem:[%s756 + $0x5c] sm:$0x1]
      %v813 = vsel %vm291, %v571, %v812
      %814 = vst [vmem:[%s756 + $0x5c] sm:$0x1] %v813
      %v815 = vld [vmem:[%s756 + $0x60] sm:$0xf]
      %v816 = vsel %vm758, %v578, %v815
      %817 = vst [vmem:[%s756 + $0x60] sm:$0xf] %v816
      %818 = vst.msk [vmem:[%s756 + $0x64] sm:$0xf] %vm280, %v587
      %v819 = vld [vmem:[%s756 + $0x68] sm:$0x1]
      %v820 = vsel %vm291, %v588, %v819
      %821 = vst [vmem:[%s756 + $0x68] sm:$0x1] %v820
      %v822 = vld [vmem:[%s756 + $0x6c] sm:$0xf]
      %v823 = vsel %vm758, %v595, %v822
      %824 = vst [vmem:[%s756 + $0x6c] sm:$0xf] %v823
      %825 = vst.msk [vmem:[%s756 + $0x70] sm:$0xf] %vm280, %v604
      %v826 = vld [vmem:[%s756 + $0x74] sm:$0x1]
      %v827 = vsel %vm291, %v605, %v826
      %828 = vst [vmem:[%s756 + $0x74] sm:$0x1] %v827
      %v829 = vld [vmem:[%s756 + $0x78] sm:$0xf]
      %v830 = vsel %vm758, %v612, %v829
      %831 = vst [vmem:[%s756 + $0x78] sm:$0xf] %v830
      %832 = vst.msk [vmem:[%s756 + $0x7c] sm:$0xf] %vm280, %v621
      %v833 = vld [vmem:[%s756 + $0x80] sm:$0x1]
      %v834 = vsel %vm291, %v622, %v833
      %835 = vst [vmem:[%s756 + $0x80] sm:$0x1] %v834
      %v836 = vld [vmem:[%s756 + $0x84] sm:$0xf]
      %v837 = vsel %vm758, %v629, %v836
      %838 = vst [vmem:[%s756 + $0x84] sm:$0xf] %v837
      %839 = vst.msk [vmem:[%s756 + $0x88] sm:$0xf] %vm280, %v638
      %v840 = vld [vmem:[%s756 + $0x8c] sm:$0x1]
      %v841 = vsel %vm291, %v639, %v840
      %842 = vst [vmem:[%s756 + $0x8c] sm:$0x1] %v841
      %v843 = vld [vmem:[%s756 + $0x90] sm:$0xf]
      %v844 = vsel %vm758, %v646, %v843
      %845 = vst [vmem:[%s756 + $0x90] sm:$0xf] %v844
      %846 = vst.msk [vmem:[%s756 + $0x94] sm:$0xf] %vm280, %v655
      %v847 = vld [vmem:[%s756 + $0x98] sm:$0x1]
      %v848 = vsel %vm291, %v656, %v847
      %849 = vst [vmem:[%s756 + $0x98] sm:$0x1] %v848
      %v850 = vld [vmem:[%s756 + $0x9c] sm:$0xf]
      %v851 = vsel %vm758, %v663, %v850
      %852 = vst [vmem:[%s756 + $0x9c] sm:$0xf] %v851
      %853 = vst.msk [vmem:[%s756 + $0xa0] sm:$0xf] %vm280, %v672
      %v854 = vld [vmem:[%s756 + $0xa4] sm:$0x1]
      %v855 = vsel %vm291, %v673, %v854
      %856 = vst [vmem:[%s756 + $0xa4] sm:$0x1] %v855
      %v857 = vld [vmem:[%s756 + $0xa8] sm:$0xf]
      %v858 = vsel %vm758, %v680, %v857
      %859 = vst [vmem:[%s756 + $0xa8] sm:$0xf] %v858
      %860 = vst.msk [vmem:[%s756 + $0xac] sm:$0xf] %vm280, %v689
      %v861 = vld [vmem:[%s756 + $0xb0] sm:$0x1]
      %v862 = vsel %vm291, %v690, %v861
      %863 = vst [vmem:[%s756 + $0xb0] sm:$0x1] %v862
      %v864 = vld [vmem:[%s756 + $0xb4] sm:$0xf]
      %v865 = vsel %vm758, %v697, %v864
      %866 = vst [vmem:[%s756 + $0xb4] sm:$0xf] %v865
      %867 = vst.msk [vmem:[%s756 + $0xb8] sm:$0xf] %vm280, %v706
      %v868 = vld [vmem:[%s756 + $0xbc] sm:$0x1]
      %v869 = vsel %vm291, %v707, %v868
      %870 = vst [vmem:[%s756 + $0xbc] sm:$0x1] %v869
      %v871 = vld [vmem:[#allocation2] sm:$0xf]
      %v872 = vld [vmem:[#allocation2 + $0x4] sm:$0xf]
      %v873 = vld [vmem:[#allocation2 + $0xc] sm:$0xf]
      %v874 = vld [vmem:[#allocation2 + $0x10] sm:$0xf]
      %v875 = vld [vmem:[#allocation2 + $0x18] sm:$0xf]
      %v876 = vld [vmem:[#allocation2 + $0x1c] sm:$0xf]
      %v877 = vld [vmem:[#allocation2 + $0x24] sm:$0xf]
      %v878 = vld [vmem:[#allocation2 + $0x28] sm:$0xf]
      %v879 = vld [vmem:[#allocation2 + $0x30] sm:$0xf]
      %v880 = vld [vmem:[#allocation2 + $0x34] sm:$0xf]
      %v881 = vld [vmem:[#allocation2 + $0x3c] sm:$0xf]
      %v882 = vld [vmem:[#allocation2 + $0x40] sm:$0xf]
      %v883 = vld [vmem:[#allocation2 + $0x48] sm:$0xf]
      %v884 = vld [vmem:[#allocation2 + $0x4c] sm:$0xf]
      %v885 = vld [vmem:[#allocation2 + $0x54] sm:$0xf]
      %v886 = vld [vmem:[#allocation2 + $0x58] sm:$0xf]
      %v887 = vld [vmem:[#allocation2 + $0x60] sm:$0xf]
      %v888 = vld [vmem:[#allocation2 + $0x64] sm:$0xf]
      %v889 = vld [vmem:[#allocation2 + $0x6c] sm:$0xf]
      %v890 = vld [vmem:[#allocation2 + $0x70] sm:$0xf]
      %v891 = vld [vmem:[#allocation2 + $0x78] sm:$0xf]
      %v892 = vld [vmem:[#allocation2 + $0x7c] sm:$0xf]
      %v893 = vld [vmem:[#allocation2 + $0x84] sm:$0xf]
      %v894 = vld [vmem:[#allocation2 + $0x88] sm:$0xf]
      %v895 = vld [vmem:[#allocation2 + $0x90] sm:$0xf]
      %v896 = vld [vmem:[#allocation2 + $0x94] sm:$0xf]
      %v897 = vld [vmem:[#allocation2 + $0x9c] sm:$0xf]
      %v898 = vld [vmem:[#allocation2 + $0xa0] sm:$0xf]
      %v899 = vld [vmem:[#allocation2 + $0xa8] sm:$0xf]
      %v900 = vld [vmem:[#allocation2 + $0xac] sm:$0xf]
      %v901 = vld [vmem:[#allocation2 + $0xb4] sm:$0xf]
      %v902 = vld [vmem:[#allocation2 + $0xb8] sm:$0xf]
      %v935 = vunpack.c.l.b16 %v871
      %v936 = vunpack.c.l.b16 %v872
      %v937 = vunpack.c.l.b16 %v873
      %v938 = vunpack.c.l.b16 %v874
      %v939 = vunpack.c.l.b16 %v875
      %v940 = vunpack.c.l.b16 %v876
      %v941 = vunpack.c.l.b16 %v877
      %v942 = vunpack.c.l.b16 %v878
      %v943 = vunpack.c.l.b16 %v879
      %v944 = vunpack.c.l.b16 %v880
      %v945 = vunpack.c.l.b16 %v881
      %v946 = vunpack.c.l.b16 %v882
      %v947 = vunpack.c.l.b16 %v883
      %v948 = vunpack.c.l.b16 %v884
      %v949 = vunpack.c.l.b16 %v885
      %v950 = vunpack.c.l.b16 %v886
      %v951 = vunpack.c.l.b16 %v887
      %v952 = vunpack.c.l.b16 %v888
      %v953 = vunpack.c.l.b16 %v889
      %v954 = vunpack.c.l.b16 %v890
      %v955 = vunpack.c.l.b16 %v891
      %v956 = vunpack.c.l.b16 %v892
      %v957 = vunpack.c.l.b16 %v893
      %v958 = vunpack.c.l.b16 %v894
      %v959 = vunpack.c.l.b16 %v895
      %v960 = vunpack.c.l.b16 %v896
      %v961 = vunpack.c.l.b16 %v897
      %v962 = vunpack.c.l.b16 %v898
      %v963 = vunpack.c.l.b16 %v899
      %v964 = vunpack.c.l.b16 %v900
      %v965 = vunpack.c.l.b16 %v901
      %v966 = vunpack.c.l.b16 %v902
      %v967 = vpack.c.b16 %v936, %v935
      %v968 = vpack.c.b16 %v938, %v937
      %v969 = vpack.c.b16 %v940, %v939
      %v970 = vpack.c.b16 %v942, %v941
      %v971 = vpack.c.b16 %v944, %v943
      %v972 = vpack.c.b16 %v946, %v945
      %v973 = vpack.c.b16 %v948, %v947
      %v974 = vpack.c.b16 %v950, %v949
      %v975 = vpack.c.b16 %v952, %v951
      %v976 = vpack.c.b16 %v954, %v953
      %v977 = vpack.c.b16 %v956, %v955
      %v978 = vpack.c.b16 %v958, %v957
      %v979 = vpack.c.b16 %v960, %v959
      %v980 = vpack.c.b16 %v962, %v961
      %v981 = vpack.c.b16 %v964, %v963
      %v982 = vpack.c.b16 %v966, %v965
      %vm999 = vcmask 31744
      %1000 = vst.msk [vmem:[#allocation3] sm:$0xff] %vm999, %v967
      %1001 = vst.msk [vmem:[#allocation3 + $0x8] sm:$0xff] %vm999, %v968
      %1002 = vst.msk [vmem:[#allocation3 + $0x10] sm:$0xff] %vm999, %v969
      %1003 = vst.msk [vmem:[#allocation3 + $0x18] sm:$0xff] %vm999, %v970
      %1004 = vst.msk [vmem:[#allocation3 + $0x20] sm:$0xff] %vm999, %v971
      %1005 = vst.msk [vmem:[#allocation3 + $0x28] sm:$0xff] %vm999, %v972
      %1006 = vst.msk [vmem:[#allocation3 + $0x30] sm:$0xff] %vm999, %v973
      %1007 = vst.msk [vmem:[#allocation3 + $0x38] sm:$0xff] %vm999, %v974
      %1008 = vst.msk [vmem:[#allocation3 + $0x40] sm:$0xff] %vm999, %v975
      %1009 = vst.msk [vmem:[#allocation3 + $0x48] sm:$0xff] %vm999, %v976
      %1010 = vst.msk [vmem:[#allocation3 + $0x50] sm:$0xff] %vm999, %v977
      %1011 = vst.msk [vmem:[#allocation3 + $0x58] sm:$0xff] %vm999, %v978
      %1012 = vst.msk [vmem:[#allocation3 + $0x60] sm:$0xff] %vm999, %v979
      %1013 = vst.msk [vmem:[#allocation3 + $0x68] sm:$0xff] %vm999, %v980
      %1014 = vst.msk [vmem:[#allocation3 + $0x70] sm:$0xff] %vm999, %v981
      %1015 = vst.msk [vmem:[#allocation3 + $0x78] sm:$0xff] %vm999, %v982
      %v1016 = vld [vmem:[#allocation2] sm:$0xf]
      %v1017 = vld [vmem:[#allocation2 + $0x4] sm:$0xf]
      %v1018 = vld [vmem:[#allocation2 + $0x8] sm:$0x1]
      %v1019 = vld [vmem:[#allocation2 + $0xc] sm:$0xf]
      %v1020 = vld [vmem:[#allocation2 + $0x10] sm:$0xf]
      %v1021 = vld [vmem:[#allocation2 + $0x14] sm:$0x1]
      %v1022 = vld [vmem:[#allocation2 + $0x18] sm:$0xf]
      %v1023 = vld [vmem:[#allocation2 + $0x1c] sm:$0xf]
      %v1024 = vld [vmem:[#allocation2 + $0x20] sm:$0x1]
      %v1025 = vld [vmem:[#allocation2 + $0x24] sm:$0xf]
      %v1026 = vld [vmem:[#allocation2 + $0x28] sm:$0xf]
      %v1027 = vld [vmem:[#allocation2 + $0x2c] sm:$0x1]
      %v1028 = vld [vmem:[#allocation2 + $0x30] sm:$0xf]
      %v1029 = vld [vmem:[#allocation2 + $0x34] sm:$0xf]
      %v1030 = vld [vmem:[#allocation2 + $0x38] sm:$0x1]
      %v1031 = vld [vmem:[#allocation2 + $0x3c] sm:$0xf]
      %v1032 = vld [vmem:[#allocation2 + $0x40] sm:$0xf]
      %v1033 = vld [vmem:[#allocation2 + $0x44] sm:$0x1]
      %v1034 = vld [vmem:[#allocation2 + $0x48] sm:$0xf]
      %v1035 = vld [vmem:[#allocation2 + $0x4c] sm:$0xf]
      %v1036 = vld [vmem:[#allocation2 + $0x50] sm:$0x1]
      %v1037 = vld [vmem:[#allocation2 + $0x54] sm:$0xf]
      %v1038 = vld [vmem:[#allocation2 + $0x58] sm:$0xf]
      %v1039 = vld [vmem:[#allocation2 + $0x5c] sm:$0x1]
      %v1040 = vld [vmem:[#allocation2 + $0x60] sm:$0xf]
      %v1041 = vld [vmem:[#allocation2 + $0x64] sm:$0xf]
      %v1042 = vld [vmem:[#allocation2 + $0x68] sm:$0x1]
      %v1043 = vld [vmem:[#allocation2 + $0x6c] sm:$0xf]
      %v1044 = vld [vmem:[#allocation2 + $0x70] sm:$0xf]
      %v1045 = vld [vmem:[#allocation2 + $0x74] sm:$0x1]
      %v1046 = vld [vmem:[#allocation2 + $0x78] sm:$0xf]
      %v1047 = vld [vmem:[#allocation2 + $0x7c] sm:$0xf]
      %v1048 = vld [vmem:[#allocation2 + $0x80] sm:$0x1]
      %v1049 = vld [vmem:[#allocation2 + $0x84] sm:$0xf]
      %v1050 = vld [vmem:[#allocation2 + $0x88] sm:$0xf]
      %v1051 = vld [vmem:[#allocation2 + $0x8c] sm:$0x1]
      %v1052 = vld [vmem:[#allocation2 + $0x90] sm:$0xf]
      %v1053 = vld [vmem:[#allocation2 + $0x94] sm:$0xf]
      %v1054 = vld [vmem:[#allocation2 + $0x98] sm:$0x1]
      %v1055 = vld [vmem:[#allocation2 + $0x9c] sm:$0xf]
      %v1056 = vld [vmem:[#allocation2 + $0xa0] sm:$0xf]
      %v1057 = vld [vmem:[#allocation2 + $0xa4] sm:$0x1]
      %v1058 = vld [vmem:[#allocation2 + $0xa8] sm:$0xf]
      %v1059 = vld [vmem:[#allocation2 + $0xac] sm:$0xf]
      %v1060 = vld [vmem:[#allocation2 + $0xb0] sm:$0x1]
      %v1061 = vld [vmem:[#allocation2 + $0xb4] sm:$0xf]
      %v1062 = vld [vmem:[#allocation2 + $0xb8] sm:$0xf]
      %v1063 = vld [vmem:[#allocation2 + $0xbc] sm:$0x1]
      %vm1064 = vsmask.f32 3328
      %vm1065 = vsmask.f32 7440
      %vm1066 = vmor %vm1064, %vm1065
      %v1068 = vshrl.u32 %v1016, 16
      %v1070 = vrot.slane %v1068, 4
      %v1071 = vshll.u32 %v1016, 16
      %v1073 = vrot.slane %v1071, 5
      %v1074 = vor.u32 %v1070, %v1073
      %v1075 = vrot.slane %v1074, 4
      %v1077 = vshll.u32 %v1017, 16
      %v1079 = vrot.slane %v1077, 5
      %v1080 = vsel %vm1066, %v1075, %v1079
      %v1081 = vshrl.u32 %v1017, 16
      %v1083 = vrot.slane %v1081, 4
      %v1084 = vor.u32 %v1083, %v1079
      %v1085 = vrot.slane %v1084, 4
      %v1087 = vshll.u32 %v1018, 16
      %v1089 = vrot.slane %v1087, 5
      %v1090 = vsel %vm1066, %v1085, %v1089
      %v1092 = vshrl.u32 %v1019, 16
      %v1094 = vrot.slane %v1092, 4
      %v1095 = vshll.u32 %v1019, 16
      %v1097 = vrot.slane %v1095, 5
      %v1098 = vor.u32 %v1094, %v1097
      %v1099 = vrot.slane %v1098, 4
      %v1101 = vshll.u32 %v1020, 16
      %v1103 = vrot.slane %v1101, 5
      %v1104 = vsel %vm1066, %v1099, %v1103
      %v1105 = vshrl.u32 %v1020, 16
      %v1107 = vrot.slane %v1105, 4
      %v1108 = vor.u32 %v1107, %v1103
      %v1109 = vrot.slane %v1108, 4
      %v1111 = vshll.u32 %v1021, 16
      %v1113 = vrot.slane %v1111, 5
      %v1114 = vsel %vm1066, %v1109, %v1113
      %v1116 = vshrl.u32 %v1022, 16
      %v1118 = vrot.slane %v1116, 4
      %v1119 = vshll.u32 %v1022, 16
      %v1121 = vrot.slane %v1119, 5
      %v1122 = vor.u32 %v1118, %v1121
      %v1123 = vrot.slane %v1122, 4
      %v1125 = vshll.u32 %v1023, 16
      %v1127 = vrot.slane %v1125, 5
      %v1128 = vsel %vm1066, %v1123, %v1127
      %v1129 = vshrl.u32 %v1023, 16
      %v1131 = vrot.slane %v1129, 4
      %v1132 = vor.u32 %v1131, %v1127
      %v1133 = vrot.slane %v1132, 4
      %v1135 = vshll.u32 %v1024, 16
      %v1137 = vrot.slane %v1135, 5
      %v1138 = vsel %vm1066, %v1133, %v1137
      %v1140 = vshrl.u32 %v1025, 16
      %v1142 = vrot.slane %v1140, 4
      %v1143 = vshll.u32 %v1025, 16
      %v1145 = vrot.slane %v1143, 5
      %v1146 = vor.u32 %v1142, %v1145
      %v1147 = vrot.slane %v1146, 4
      %v1149 = vshll.u32 %v1026, 16
      %v1151 = vrot.slane %v1149, 5
      %v1152 = vsel %vm1066, %v1147, %v1151
      %v1153 = vshrl.u32 %v1026, 16
      %v1155 = vrot.slane %v1153, 4
      %v1156 = vor.u32 %v1155, %v1151
      %v1157 = vrot.slane %v1156, 4
      %v1159 = vshll.u32 %v1027, 16
      %v1161 = vrot.slane %v1159, 5
      %v1162 = vsel %vm1066, %v1157, %v1161
      %v1164 = vshrl.u32 %v1028, 16
      %v1166 = vrot.slane %v1164, 4
      %v1167 = vshll.u32 %v1028, 16
      %v1169 = vrot.slane %v1167, 5
      %v1170 = vor.u32 %v1166, %v1169
      %v1171 = vrot.slane %v1170, 4
      %v1173 = vshll.u32 %v1029, 16
      %v1175 = vrot.slane %v1173, 5
      %v1176 = vsel %vm1066, %v1171, %v1175
      %v1177 = vshrl.u32 %v1029, 16
      %v1179 = vrot.slane %v1177, 4
      %v1180 = vor.u32 %v1179, %v1175
      %v1181 = vrot.slane %v1180, 4
      %v1183 = vshll.u32 %v1030, 16
      %v1185 = vrot.slane %v1183, 5
      %v1186 = vsel %vm1066, %v1181, %v1185
      %v1188 = vshrl.u32 %v1031, 16
      %v1190 = vrot.slane %v1188, 4
      %v1191 = vshll.u32 %v1031, 16
      %v1193 = vrot.slane %v1191, 5
      %v1194 = vor.u32 %v1190, %v1193
      %v1195 = vrot.slane %v1194, 4
      %v1197 = vshll.u32 %v1032, 16
      %v1199 = vrot.slane %v1197, 5
      %v1200 = vsel %vm1066, %v1195, %v1199
      %v1201 = vshrl.u32 %v1032, 16
      %v1203 = vrot.slane %v1201, 4
      %v1204 = vor.u32 %v1203, %v1199
      %v1205 = vrot.slane %v1204, 4
      %v1207 = vshll.u32 %v1033, 16
      %v1209 = vrot.slane %v1207, 5
      %v1210 = vsel %vm1066, %v1205, %v1209
      %v1212 = vshrl.u32 %v1034, 16
      %v1214 = vrot.slane %v1212, 4
      %v1215 = vshll.u32 %v1034, 16
      %v1217 = vrot.slane %v1215, 5
      %v1218 = vor.u32 %v1214, %v1217
      %v1219 = vrot.slane %v1218, 4
      %v1221 = vshll.u32 %v1035, 16
      %v1223 = vrot.slane %v1221, 5
      %v1224 = vsel %vm1066, %v1219, %v1223
      %v1225 = vshrl.u32 %v1035, 16
      %v1227 = vrot.slane %v1225, 4
      %v1228 = vor.u32 %v1227, %v1223
      %v1229 = vrot.slane %v1228, 4
      %v1231 = vshll.u32 %v1036, 16
      %v1233 = vrot.slane %v1231, 5
      %v1234 = vsel %vm1066, %v1229, %v1233
      %v1236 = vshrl.u32 %v1037, 16
      %v1238 = vrot.slane %v1236, 4
      %v1239 = vshll.u32 %v1037, 16
      %v1241 = vrot.slane %v1239, 5
      %v1242 = vor.u32 %v1238, %v1241
      %v1243 = vrot.slane %v1242, 4
      %v1245 = vshll.u32 %v1038, 16
      %v1247 = vrot.slane %v1245, 5
      %v1248 = vsel %vm1066, %v1243, %v1247
      %v1249 = vshrl.u32 %v1038, 16
      %v1251 = vrot.slane %v1249, 4
      %v1252 = vor.u32 %v1251, %v1247
      %v1253 = vrot.slane %v1252, 4
      %v1255 = vshll.u32 %v1039, 16
      %v1257 = vrot.slane %v1255, 5
      %v1258 = vsel %vm1066, %v1253, %v1257
      %v1260 = vshrl.u32 %v1040, 16
      %v1262 = vrot.slane %v1260, 4
      %v1263 = vshll.u32 %v1040, 16
      %v1265 = vrot.slane %v1263, 5
      %v1266 = vor.u32 %v1262, %v1265
      %v1267 = vrot.slane %v1266, 4
      %v1269 = vshll.u32 %v1041, 16
      %v1271 = vrot.slane %v1269, 5
      %v1272 = vsel %vm1066, %v1267, %v1271
      %v1273 = vshrl.u32 %v1041, 16
      %v1275 = vrot.slane %v1273, 4
      %v1276 = vor.u32 %v1275, %v1271
      %v1277 = vrot.slane %v1276, 4
      %v1279 = vshll.u32 %v1042, 16
      %v1281 = vrot.slane %v1279, 5
      %v1282 = vsel %vm1066, %v1277, %v1281
      %v1284 = vshrl.u32 %v1043, 16
      %v1286 = vrot.slane %v1284, 4
      %v1287 = vshll.u32 %v1043, 16
      %v1289 = vrot.slane %v1287, 5
      %v1290 = vor.u32 %v1286, %v1289
      %v1291 = vrot.slane %v1290, 4
      %v1293 = vshll.u32 %v1044, 16
      %v1295 = vrot.slane %v1293, 5
      %v1296 = vsel %vm1066, %v1291, %v1295
      %v1297 = vshrl.u32 %v1044, 16
      %v1299 = vrot.slane %v1297, 4
      %v1300 = vor.u32 %v1299, %v1295
      %v1301 = vrot.slane %v1300, 4
      %v1303 = vshll.u32 %v1045, 16
      %v1305 = vrot.slane %v1303, 5
      %v1306 = vsel %vm1066, %v1301, %v1305
      %v1308 = vshrl.u32 %v1046, 16
      %v1310 = vrot.slane %v1308, 4
      %v1311 = vshll.u32 %v1046, 16
      %v1313 = vrot.slane %v1311, 5
      %v1314 = vor.u32 %v1310, %v1313
      %v1315 = vrot.slane %v1314, 4
      %v1317 = vshll.u32 %v1047, 16
      %v1319 = vrot.slane %v1317, 5
      %v1320 = vsel %vm1066, %v1315, %v1319
      %v1321 = vshrl.u32 %v1047, 16
      %v1323 = vrot.slane %v1321, 4
      %v1324 = vor.u32 %v1323, %v1319
      %v1325 = vrot.slane %v1324, 4
      %v1327 = vshll.u32 %v1048, 16
      %v1329 = vrot.slane %v1327, 5
      %v1330 = vsel %vm1066, %v1325, %v1329
      %v1332 = vshrl.u32 %v1049, 16
      %v1334 = vrot.slane %v1332, 4
      %v1335 = vshll.u32 %v1049, 16
      %v1337 = vrot.slane %v1335, 5
      %v1338 = vor.u32 %v1334, %v1337
      %v1339 = vrot.slane %v1338, 4
      %v1341 = vshll.u32 %v1050, 16
      %v1343 = vrot.slane %v1341, 5
      %v1344 = vsel %vm1066, %v1339, %v1343
      %v1345 = vshrl.u32 %v1050, 16
      %v1347 = vrot.slane %v1345, 4
      %v1348 = vor.u32 %v1347, %v1343
      %v1349 = vrot.slane %v1348, 4
      %v1351 = vshll.u32 %v1051, 16
      %v1353 = vrot.slane %v1351, 5
      %v1354 = vsel %vm1066, %v1349, %v1353
      %v1356 = vshrl.u32 %v1052, 16
      %v1358 = vrot.slane %v1356, 4
      %v1359 = vshll.u32 %v1052, 16
      %v1361 = vrot.slane %v1359, 5
      %v1362 = vor.u32 %v1358, %v1361
      %v1363 = vrot.slane %v1362, 4
      %v1365 = vshll.u32 %v1053, 16
      %v1367 = vrot.slane %v1365, 5
      %v1368 = vsel %vm1066, %v1363, %v1367
      %v1369 = vshrl.u32 %v1053, 16
      %v1371 = vrot.slane %v1369, 4
      %v1372 = vor.u32 %v1371, %v1367
      %v1373 = vrot.slane %v1372, 4
      %v1375 = vshll.u32 %v1054, 16
      %v1377 = vrot.slane %v1375, 5
      %v1378 = vsel %vm1066, %v1373, %v1377
      %v1380 = vshrl.u32 %v1055, 16
      %v1382 = vrot.slane %v1380, 4
      %v1383 = vshll.u32 %v1055, 16
      %v1385 = vrot.slane %v1383, 5
      %v1386 = vor.u32 %v1382, %v1385
      %v1387 = vrot.slane %v1386, 4
      %v1389 = vshll.u32 %v1056, 16
      %v1391 = vrot.slane %v1389, 5
      %v1392 = vsel %vm1066, %v1387, %v1391
      %v1393 = vshrl.u32 %v1056, 16
      %v1395 = vrot.slane %v1393, 4
      %v1396 = vor.u32 %v1395, %v1391
      %v1397 = vrot.slane %v1396, 4
      %v1399 = vshll.u32 %v1057, 16
      %v1401 = vrot.slane %v1399, 5
      %v1402 = vsel %vm1066, %v1397, %v1401
      %v1404 = vshrl.u32 %v1058, 16
      %v1406 = vrot.slane %v1404, 4
      %v1407 = vshll.u32 %v1058, 16
      %v1409 = vrot.slane %v1407, 5
      %v1410 = vor.u32 %v1406, %v1409
      %v1411 = vrot.slane %v1410, 4
      %v1413 = vshll.u32 %v1059, 16
      %v1415 = vrot.slane %v1413, 5
      %v1416 = vsel %vm1066, %v1411, %v1415
      %v1417 = vshrl.u32 %v1059, 16
      %v1419 = vrot.slane %v1417, 4
      %v1420 = vor.u32 %v1419, %v1415
      %v1421 = vrot.slane %v1420, 4
      %v1423 = vshll.u32 %v1060, 16
      %v1425 = vrot.slane %v1423, 5
      %v1426 = vsel %vm1066, %v1421, %v1425
      %v1428 = vshrl.u32 %v1061, 16
      %v1430 = vrot.slane %v1428, 4
      %v1431 = vshll.u32 %v1061, 16
      %v1433 = vrot.slane %v1431, 5
      %v1434 = vor.u32 %v1430, %v1433
      %v1435 = vrot.slane %v1434, 4
      %v1437 = vshll.u32 %v1062, 16
      %v1439 = vrot.slane %v1437, 5
      %v1440 = vsel %vm1066, %v1435, %v1439
      %v1441 = vshrl.u32 %v1062, 16
      %v1443 = vrot.slane %v1441, 4
      %v1444 = vor.u32 %v1443, %v1439
      %v1445 = vrot.slane %v1444, 4
      %v1447 = vshll.u32 %v1063, 16
      %v1449 = vrot.slane %v1447, 5
      %v1450 = vsel %vm1066, %v1445, %v1449
      %v1451 = vunpack.c.l.b16 %v1080
      %v1452 = vunpack.c.l.b16 %v1090
      %v1453 = vunpack.c.l.b16 %v1104
      %v1454 = vunpack.c.l.b16 %v1114
      %v1455 = vunpack.c.l.b16 %v1128
      %v1456 = vunpack.c.l.b16 %v1138
      %v1457 = vunpack.c.l.b16 %v1152
      %v1458 = vunpack.c.l.b16 %v1162
      %v1459 = vunpack.c.l.b16 %v1176
      %v1460 = vunpack.c.l.b16 %v1186
      %v1461 = vunpack.c.l.b16 %v1200
      %v1462 = vunpack.c.l.b16 %v1210
      %v1463 = vunpack.c.l.b16 %v1224
      %v1464 = vunpack.c.l.b16 %v1234
      %v1465 = vunpack.c.l.b16 %v1248
      %v1466 = vunpack.c.l.b16 %v1258
      %v1467 = vunpack.c.l.b16 %v1272
      %v1468 = vunpack.c.l.b16 %v1282
      %v1469 = vunpack.c.l.b16 %v1296
      %v1470 = vunpack.c.l.b16 %v1306
      %v1471 = vunpack.c.l.b16 %v1320
      %v1472 = vunpack.c.l.b16 %v1330
      %v1473 = vunpack.c.l.b16 %v1344
      %v1474 = vunpack.c.l.b16 %v1354
      %v1475 = vunpack.c.l.b16 %v1368
      %v1476 = vunpack.c.l.b16 %v1378
      %v1477 = vunpack.c.l.b16 %v1392
      %v1478 = vunpack.c.l.b16 %v1402
      %v1479 = vunpack.c.l.b16 %v1416
      %v1480 = vunpack.c.l.b16 %v1426
      %v1481 = vunpack.c.l.b16 %v1440
      %v1482 = vunpack.c.l.b16 %v1450
      %v1483 = vpack.c.b16 %v1452, %v1451
      %v1484 = vpack.c.b16 %v1454, %v1453
      %v1485 = vpack.c.b16 %v1456, %v1455
      %v1486 = vpack.c.b16 %v1458, %v1457
      %v1487 = vpack.c.b16 %v1460, %v1459
      %v1488 = vpack.c.b16 %v1462, %v1461
      %v1489 = vpack.c.b16 %v1464, %v1463
      %v1490 = vpack.c.b16 %v1466, %v1465
      %v1491 = vpack.c.b16 %v1468, %v1467
      %v1492 = vpack.c.b16 %v1470, %v1469
      %v1493 = vpack.c.b16 %v1472, %v1471
      %v1494 = vpack.c.b16 %v1474, %v1473
      %v1495 = vpack.c.b16 %v1476, %v1475
      %v1496 = vpack.c.b16 %v1478, %v1477
      %v1497 = vpack.c.b16 %v1480, %v1479
      %v1498 = vpack.c.b16 %v1482, %v1481
      %1499 = vrot.lane.b32.xlu0 %v1483, 4
      %v1500 = vpop.permute.xlu0 %1499
      %1501 = vrot.lane.b32.xlu0 %v1484, 4
      %v1502 = vpop.permute.xlu0 %1501
      %1503 = vrot.lane.b32.xlu0 %v1485, 4
      %v1504 = vpop.permute.xlu0 %1503
      %1505 = vrot.lane.b32.xlu0 %v1486, 4
      %v1506 = vpop.permute.xlu0 %1505
      %1507 = vrot.lane.b32.xlu0 %v1487, 4
      %v1508 = vpop.permute.xlu0 %1507
      %1509 = vrot.lane.b32.xlu0 %v1488, 4
      %v1510 = vpop.permute.xlu0 %1509
      %1511 = vrot.lane.b32.xlu0 %v1489, 4
      %v1512 = vpop.permute.xlu0 %1511
      %1513 = vrot.lane.b32.xlu0 %v1490, 4
      %v1514 = vpop.permute.xlu0 %1513
      %1515 = vrot.lane.b32.xlu0 %v1491, 4
      %v1516 = vpop.permute.xlu0 %1515
      %1517 = vrot.lane.b32.xlu0 %v1492, 4
      %v1518 = vpop.permute.xlu0 %1517
      %1519 = vrot.lane.b32.xlu0 %v1493, 4
      %v1520 = vpop.permute.xlu0 %1519
      %1521 = vrot.lane.b32.xlu0 %v1494, 4
      %v1522 = vpop.permute.xlu0 %1521
      %1523 = vrot.lane.b32.xlu0 %v1495, 4
      %v1524 = vpop.permute.xlu0 %1523
      %1525 = vrot.lane.b32.xlu0 %v1496, 4
      %v1526 = vpop.permute.xlu0 %1525
      %1527 = vrot.lane.b32.xlu0 %v1497, 4
      %v1528 = vpop.permute.xlu0 %1527
      %1529 = vrot.lane.b32.xlu0 %v1498, 4
      %v1530 = vpop.permute.xlu0 %1529
      %vm1547 = vcmask 64544
      %1548 = vst.msk [vmem:[#allocation3] sm:$0xff] %vm1547, %v1500
      %1549 = vst.msk [vmem:[#allocation3 + $0x8] sm:$0xff] %vm1547, %v1502
      %1550 = vst.msk [vmem:[#allocation3 + $0x10] sm:$0xff] %vm1547, %v1504
      %1551 = vst.msk [vmem:[#allocation3 + $0x18] sm:$0xff] %vm1547, %v1506
      %1552 = vst.msk [vmem:[#allocation3 + $0x20] sm:$0xff] %vm1547, %v1508
      %1553 = vst.msk [vmem:[#allocation3 + $0x28] sm:$0xff] %vm1547, %v1510
      %1554 = vst.msk [vmem:[#allocation3 + $0x30] sm:$0xff] %vm1547, %v1512
      %1555 = vst.msk [vmem:[#allocation3 + $0x38] sm:$0xff] %vm1547, %v1514
      %1556 = vst.msk [vmem:[#allocation3 + $0x40] sm:$0xff] %vm1547, %v1516
      %1557 = vst.msk [vmem:[#allocation3 + $0x48] sm:$0xff] %vm1547, %v1518
      %1558 = vst.msk [vmem:[#allocation3 + $0x50] sm:$0xff] %vm1547, %v1520
      %1559 = vst.msk [vmem:[#allocation3 + $0x58] sm:$0xff] %vm1547, %v1522
      %1560 = vst.msk [vmem:[#allocation3 + $0x60] sm:$0xff] %vm1547, %v1524
      %1561 = vst.msk [vmem:[#allocation3 + $0x68] sm:$0xff] %vm1547, %v1526
      %1562 = vst.msk [vmem:[#allocation3 + $0x70] sm:$0xff] %vm1547, %v1528
      %1563 = vst.msk [vmem:[#allocation3 + $0x78] sm:$0xff] %vm1547, %v1530
      %v1564 = vld [vmem:[#allocation2] sm:$0xe]
      %v1565 = vld [vmem:[#allocation2 + $0x4] sm:$0xf]
      %v1566 = vld [vmem:[#allocation2 + $0x8] sm:$0x1]
      %v1567 = vld [vmem:[#allocation2 + $0xc] sm:$0xe]
      %v1568 = vld [vmem:[#allocation2 + $0x10] sm:$0xf]
      %v1569 = vld [vmem:[#allocation2 + $0x14] sm:$0x1]
      %v1570 = vld [vmem:[#allocation2 + $0x18] sm:$0xe]
      %v1571 = vld [vmem:[#allocation2 + $0x1c] sm:$0xf]
      %v1572 = vld [vmem:[#allocation2 + $0x20] sm:$0x1]
      %v1573 = vld [vmem:[#allocation2 + $0x24] sm:$0xe]
      %v1574 = vld [vmem:[#allocation2 + $0x28] sm:$0xf]
      %v1575 = vld [vmem:[#allocation2 + $0x2c] sm:$0x1]
      %v1576 = vld [vmem:[#allocation2 + $0x30] sm:$0xe]
      %v1577 = vld [vmem:[#allocation2 + $0x34] sm:$0xf]
      %v1578 = vld [vmem:[#allocation2 + $0x38] sm:$0x1]
      %v1579 = vld [vmem:[#allocation2 + $0x3c] sm:$0xe]
      %v1580 = vld [vmem:[#allocation2 + $0x40] sm:$0xf]
      %v1581 = vld [vmem:[#allocation2 + $0x44] sm:$0x1]
      %v1582 = vld [vmem:[#allocation2 + $0x48] sm:$0xe]
      %v1583 = vld [vmem:[#allocation2 + $0x4c] sm:$0xf]
      %v1584 = vld [vmem:[#allocation2 + $0x50] sm:$0x1]
      %v1585 = vld [vmem:[#allocation2 + $0x54] sm:$0xe]
      %v1586 = vld [vmem:[#allocation2 + $0x58] sm:$0xf]
      %v1587 = vld [vmem:[#allocation2 + $0x5c] sm:$0x1]
      %v1588 = vld [vmem:[#allocation2 + $0x60] sm:$0xe]
      %v1589 = vld [vmem:[#allocation2 + $0x64] sm:$0xf]
      %v1590 = vld [vmem:[#allocation2 + $0x68] sm:$0x1]
      %v1591 = vld [vmem:[#allocation2 + $0x6c] sm:$0xe]
      %v1592 = vld [vmem:[#allocation2 + $0x70] sm:$0xf]
      %v1593 = vld [vmem:[#allocation2 + $0x74] sm:$0x1]
      %v1594 = vld [vmem:[#allocation2 + $0x78] sm:$0xe]
      %v1595 = vld [vmem:[#allocation2 + $0x7c] sm:$0xf]
      %v1596 = vld [vmem:[#allocation2 + $0x80] sm:$0x1]
      %v1597 = vld [vmem:[#allocation2 + $0x84] sm:$0xe]
      %v1598 = vld [vmem:[#allocation2 + $0x88] sm:$0xf]
      %v1599 = vld [vmem:[#allocation2 + $0x8c] sm:$0x1]
      %v1600 = vld [vmem:[#allocation2 + $0x90] sm:$0xe]
      %v1601 = vld [vmem:[#allocation2 + $0x94] sm:$0xf]
      %v1602 = vld [vmem:[#allocation2 + $0x98] sm:$0x1]
      %v1603 = vld [vmem:[#allocation2 + $0x9c] sm:$0xe]
      %v1604 = vld [vmem:[#allocation2 + $0xa0] sm:$0xf]
      %v1605 = vld [vmem:[#allocation2 + $0xa4] sm:$0x1]
      %v1606 = vld [vmem:[#allocation2 + $0xa8] sm:$0xe]
      %v1607 = vld [vmem:[#allocation2 + $0xac] sm:$0xf]
      %v1608 = vld [vmem:[#allocation2 + $0xb0] sm:$0x1]
      %v1609 = vld [vmem:[#allocation2 + $0xb4] sm:$0xe]
      %v1610 = vld [vmem:[#allocation2 + $0xb8] sm:$0xf]
      %v1611 = vld [vmem:[#allocation2 + $0xbc] sm:$0x1]
      %vm1660 = vcmask 1042432
      %vm1661 = vcmask 1046532
      %vm1662 = vmor %vm1660, %vm1661
      %v1663 = vrot.slane %v1564, 5
      %v1664 = vrot.slane %v1663, 4
      %v1665 = vrot.slane %v1565, 5
      %v1666 = vsel %vm1662, %v1664, %v1665
      %v1667 = vrot.slane %v1665, 4
      %v1668 = vrot.slane %v1566, 5
      %v1669 = vsel %vm1662, %v1667, %v1668
      %v1670 = vrot.slane %v1567, 5
      %v1671 = vrot.slane %v1670, 4
      %v1672 = vrot.slane %v1568, 5
      %v1673 = vsel %vm1662, %v1671, %v1672
      %v1674 = vrot.slane %v1672, 4
      %v1675 = vrot.slane %v1569, 5
      %v1676 = vsel %vm1662, %v1674, %v1675
      %v1677 = vrot.slane %v1570, 5
      %v1678 = vrot.slane %v1677, 4
      %v1679 = vrot.slane %v1571, 5
      %v1680 = vsel %vm1662, %v1678, %v1679
      %v1681 = vrot.slane %v1679, 4
      %v1682 = vrot.slane %v1572, 5
      %v1683 = vsel %vm1662, %v1681, %v1682
      %v1684 = vrot.slane %v1573, 5
      %v1685 = vrot.slane %v1684, 4
      %v1686 = vrot.slane %v1574, 5
      %v1687 = vsel %vm1662, %v1685, %v1686
      %v1688 = vrot.slane %v1686, 4
      %v1689 = vrot.slane %v1575, 5
      %v1690 = vsel %vm1662, %v1688, %v1689
      %v1691 = vrot.slane %v1576, 5
      %v1692 = vrot.slane %v1691, 4
      %v1693 = vrot.slane %v1577, 5
      %v1694 = vsel %vm1662, %v1692, %v1693
      %v1695 = vrot.slane %v1693, 4
      %v1696 = vrot.slane %v1578, 5
      %v1697 = vsel %vm1662, %v1695, %v1696
      %v1698 = vrot.slane %v1579, 5
      %v1699 = vrot.slane %v1698, 4
      %v1700 = vrot.slane %v1580, 5
      %v1701 = vsel %vm1662, %v1699, %v1700
      %v1702 = vrot.slane %v1700, 4
      %v1703 = vrot.slane %v1581, 5
      %v1704 = vsel %vm1662, %v1702, %v1703
      %v1705 = vrot.slane %v1582, 5
      %v1706 = vrot.slane %v1705, 4
      %v1707 = vrot.slane %v1583, 5
      %v1708 = vsel %vm1662, %v1706, %v1707
      %v1709 = vrot.slane %v1707, 4
      %v1710 = vrot.slane %v1584, 5
      %v1711 = vsel %vm1662, %v1709, %v1710
      %v1712 = vrot.slane %v1585, 5
      %v1713 = vrot.slane %v1712, 4
      %v1714 = vrot.slane %v1586, 5
      %v1715 = vsel %vm1662, %v1713, %v1714
      %v1716 = vrot.slane %v1714, 4
      %v1717 = vrot.slane %v1587, 5
      %v1718 = vsel %vm1662, %v1716, %v1717
      %v1719 = vrot.slane %v1588, 5
      %v1720 = vrot.slane %v1719, 4
      %v1721 = vrot.slane %v1589, 5
      %v1722 = vsel %vm1662, %v1720, %v1721
      %v1723 = vrot.slane %v1721, 4
      %v1724 = vrot.slane %v1590, 5
      %v1725 = vsel %vm1662, %v1723, %v1724
      %v1726 = vrot.slane %v1591, 5
      %v1727 = vrot.slane %v1726, 4
      %v1728 = vrot.slane %v1592, 5
      %v1729 = vsel %vm1662, %v1727, %v1728
      %v1730 = vrot.slane %v1728, 4
      %v1731 = vrot.slane %v1593, 5
      %v1732 = vsel %vm1662, %v1730, %v1731
      %v1733 = vrot.slane %v1594, 5
      %v1734 = vrot.slane %v1733, 4
      %v1735 = vrot.slane %v1595, 5
      %v1736 = vsel %vm1662, %v1734, %v1735
      %v1737 = vrot.slane %v1735, 4
      %v1738 = vrot.slane %v1596, 5
      %v1739 = vsel %vm1662, %v1737, %v1738
      %v1740 = vrot.slane %v1597, 5
      %v1741 = vrot.slane %v1740, 4
      %v1742 = vrot.slane %v1598, 5
      %v1743 = vsel %vm1662, %v1741, %v1742
      %v1744 = vrot.slane %v1742, 4
      %v1745 = vrot.slane %v1599, 5
      %v1746 = vsel %vm1662, %v1744, %v1745
      %v1747 = vrot.slane %v1600, 5
      %v1748 = vrot.slane %v1747, 4
      %v1749 = vrot.slane %v1601, 5
      %v1750 = vsel %vm1662, %v1748, %v1749
      %v1751 = vrot.slane %v1749, 4
      %v1752 = vrot.slane %v1602, 5
      %v1753 = vsel %vm1662, %v1751, %v1752
      %v1754 = vrot.slane %v1603, 5
      %v1755 = vrot.slane %v1754, 4
      %v1756 = vrot.slane %v1604, 5
      %v1757 = vsel %vm1662, %v1755, %v1756
      %v1758 = vrot.slane %v1756, 4
      %v1759 = vrot.slane %v1605, 5
      %v1760 = vsel %vm1662, %v1758, %v1759
      %v1761 = vrot.slane %v1606, 5
      %v1762 = vrot.slane %v1761, 4
      %v1763 = vrot.slane %v1607, 5
      %v1764 = vsel %vm1662, %v1762, %v1763
      %v1765 = vrot.slane %v1763, 4
      %v1766 = vrot.slane %v1608, 5
      %v1767 = vsel %vm1662, %v1765, %v1766
      %v1768 = vrot.slane %v1609, 5
      %v1769 = vrot.slane %v1768, 4
      %v1770 = vrot.slane %v1610, 5
      %v1771 = vsel %vm1662, %v1769, %v1770
      %v1772 = vrot.slane %v1770, 4
      %v1773 = vrot.slane %v1611, 5
      %v1774 = vsel %vm1662, %v1772, %v1773
      %v1775 = vunpack.c.l.b16 %v1666
      %v1776 = vunpack.c.l.b16 %v1669
      %v1777 = vunpack.c.l.b16 %v1673
      %v1778 = vunpack.c.l.b16 %v1676
      %v1779 = vunpack.c.l.b16 %v1680
      %v1780 = vunpack.c.l.b16 %v1683
      %v1781 = vunpack.c.l.b16 %v1687
      %v1782 = vunpack.c.l.b16 %v1690
      %v1783 = vunpack.c.l.b16 %v1694
      %v1784 = vunpack.c.l.b16 %v1697
      %v1785 = vunpack.c.l.b16 %v1701
      %v1786 = vunpack.c.l.b16 %v1704
      %v1787 = vunpack.c.l.b16 %v1708
      %v1788 = vunpack.c.l.b16 %v1711
      %v1789 = vunpack.c.l.b16 %v1715
      %v1790 = vunpack.c.l.b16 %v1718
      %v1791 = vunpack.c.l.b16 %v1722
      %v1792 = vunpack.c.l.b16 %v1725
      %v1793 = vunpack.c.l.b16 %v1729
      %v1794 = vunpack.c.l.b16 %v1732
      %v1795 = vunpack.c.l.b16 %v1736
      %v1796 = vunpack.c.l.b16 %v1739
      %v1797 = vunpack.c.l.b16 %v1743
      %v1798 = vunpack.c.l.b16 %v1746
      %v1799 = vunpack.c.l.b16 %v1750
      %v1800 = vunpack.c.l.b16 %v1753
      %v1801 = vunpack.c.l.b16 %v1757
      %v1802 = vunpack.c.l.b16 %v1760
      %v1803 = vunpack.c.l.b16 %v1764
      %v1804 = vunpack.c.l.b16 %v1767
      %v1805 = vunpack.c.l.b16 %v1771
      %v1806 = vunpack.c.l.b16 %v1774
      %v1807 = vpack.c.b16 %v1776, %v1775
      %v1808 = vpack.c.b16 %v1778, %v1777
      %v1809 = vpack.c.b16 %v1780, %v1779
      %v1810 = vpack.c.b16 %v1782, %v1781
      %v1811 = vpack.c.b16 %v1784, %v1783
      %v1812 = vpack.c.b16 %v1786, %v1785
      %v1813 = vpack.c.b16 %v1788, %v1787
      %v1814 = vpack.c.b16 %v1790, %v1789
      %v1815 = vpack.c.b16 %v1792, %v1791
      %v1816 = vpack.c.b16 %v1794, %v1793
      %v1817 = vpack.c.b16 %v1796, %v1795
      %v1818 = vpack.c.b16 %v1798, %v1797
      %v1819 = vpack.c.b16 %v1800, %v1799
      %v1820 = vpack.c.b16 %v1802, %v1801
      %v1821 = vpack.c.b16 %v1804, %v1803
      %v1822 = vpack.c.b16 %v1806, %v1805
      %1823 = vrot.lane.b32.xlu0 %v1807, 8
      %v1824 = vpop.permute.xlu0 %1823
      %1825 = vrot.lane.b32.xlu0 %v1808, 8
      %v1826 = vpop.permute.xlu0 %1825
      %1827 = vrot.lane.b32.xlu0 %v1809, 8
      %v1828 = vpop.permute.xlu0 %1827
      %1829 = vrot.lane.b32.xlu0 %v1810, 8
      %v1830 = vpop.permute.xlu0 %1829
      %1831 = vrot.lane.b32.xlu0 %v1811, 8
      %v1832 = vpop.permute.xlu0 %1831
      %1833 = vrot.lane.b32.xlu0 %v1812, 8
      %v1834 = vpop.permute.xlu0 %1833
      %1835 = vrot.lane.b32.xlu0 %v1813, 8
      %v1836 = vpop.permute.xlu0 %1835
      %1837 = vrot.lane.b32.xlu0 %v1814, 8
      %v1838 = vpop.permute.xlu0 %1837
      %1839 = vrot.lane.b32.xlu0 %v1815, 8
      %v1840 = vpop.permute.xlu0 %1839
      %1841 = vrot.lane.b32.xlu0 %v1816, 8
      %v1842 = vpop.permute.xlu0 %1841
      %1843 = vrot.lane.b32.xlu0 %v1817, 8
      %v1844 = vpop.permute.xlu0 %1843
      %1845 = vrot.lane.b32.xlu0 %v1818, 8
      %v1846 = vpop.permute.xlu0 %1845
      %1847 = vrot.lane.b32.xlu0 %v1819, 8
      %v1848 = vpop.permute.xlu0 %1847
      %1849 = vrot.lane.b32.xlu0 %v1820, 8
      %v1850 = vpop.permute.xlu0 %1849
      %1851 = vrot.lane.b32.xlu0 %v1821, 8
      %v1852 = vpop.permute.xlu0 %1851
      %1853 = vrot.lane.b32.xlu0 %v1822, 8
      %v1854 = vpop.permute.xlu0 %1853
      %vm1871 = vcmask 97344
      %1872 = vst.msk [vmem:[#allocation3] sm:$0xff] %vm1871, %v1824
      %1873 = vst.msk [vmem:[#allocation3 + $0x8] sm:$0xff] %vm1871, %v1826
      %1874 = vst.msk [vmem:[#allocation3 + $0x10] sm:$0xff] %vm1871, %v1828
      %1875 = vst.msk [vmem:[#allocation3 + $0x18] sm:$0xff] %vm1871, %v1830
      %1876 = vst.msk [vmem:[#allocation3 + $0x20] sm:$0xff] %vm1871, %v1832
      %1877 = vst.msk [vmem:[#allocation3 + $0x28] sm:$0xff] %vm1871, %v1834
      %1878 = vst.msk [vmem:[#allocation3 + $0x30] sm:$0xff] %vm1871, %v1836
      %1879 = vst.msk [vmem:[#allocation3 + $0x38] sm:$0xff] %vm1871, %v1838
      %1880 = vst.msk [vmem:[#allocation3 + $0x40] sm:$0xff] %vm1871, %v1840
      %1881 = vst.msk [vmem:[#allocation3 + $0x48] sm:$0xff] %vm1871, %v1842
      %1882 = vst.msk [vmem:[#allocation3 + $0x50] sm:$0xff] %vm1871, %v1844
      %1883 = vst.msk [vmem:[#allocation3 + $0x58] sm:$0xff] %vm1871, %v1846
      %1884 = vst.msk [vmem:[#allocation3 + $0x60] sm:$0xff] %vm1871, %v1848
      %1885 = vst.msk [vmem:[#allocation3 + $0x68] sm:$0xff] %vm1871, %v1850
      %1886 = vst.msk [vmem:[#allocation3 + $0x70] sm:$0xff] %vm1871, %v1852
      %1887 = vst.msk [vmem:[#allocation3 + $0x78] sm:$0xff] %vm1871, %v1854
      %v1888 = vld [vmem:[%s756] sm:$0xf]
      %v1889 = vld [vmem:[%s756 + $0x4] sm:$0xf]
      %v1890 = vld [vmem:[%s756 + $0xc] sm:$0xf]
      %v1891 = vld [vmem:[%s756 + $0x10] sm:$0xf]
      %v1892 = vld [vmem:[%s756 + $0x18] sm:$0xf]
      %v1893 = vld [vmem:[%s756 + $0x1c] sm:$0xf]
      %v1894 = vld [vmem:[%s756 + $0x24] sm:$0xf]
      %v1895 = vld [vmem:[%s756 + $0x28] sm:$0xf]
      %v1896 = vld [vmem:[%s756 + $0x30] sm:$0xf]
      %v1897 = vld [vmem:[%s756 + $0x34] sm:$0xf]
      %v1898 = vld [vmem:[%s756 + $0x3c] sm:$0xf]
      %v1899 = vld [vmem:[%s756 + $0x40] sm:$0xf]
      %v1900 = vld [vmem:[%s756 + $0x48] sm:$0xf]
      %v1901 = vld [vmem:[%s756 + $0x4c] sm:$0xf]
      %v1902 = vld [vmem:[%s756 + $0x54] sm:$0xf]
      %v1903 = vld [vmem:[%s756 + $0x58] sm:$0xf]
      %v1904 = vld [vmem:[%s756 + $0x60] sm:$0xf]
      %v1905 = vld [vmem:[%s756 + $0x64] sm:$0xf]
      %v1906 = vld [vmem:[%s756 + $0x6c] sm:$0xf]
      %v1907 = vld [vmem:[%s756 + $0x70] sm:$0xf]
      %v1908 = vld [vmem:[%s756 + $0x78] sm:$0xf]
      %v1909 = vld [vmem:[%s756 + $0x7c] sm:$0xf]
      %v1910 = vld [vmem:[%s756 + $0x84] sm:$0xf]
      %v1911 = vld [vmem:[%s756 + $0x88] sm:$0xf]
      %v1912 = vld [vmem:[%s756 + $0x90] sm:$0xf]
      %v1913 = vld [vmem:[%s756 + $0x94] sm:$0xf]
      %v1914 = vld [vmem:[%s756 + $0x9c] sm:$0xf]
      %v1915 = vld [vmem:[%s756 + $0xa0] sm:$0xf]
      %v1916 = vld [vmem:[%s756 + $0xa8] sm:$0xf]
      %v1917 = vld [vmem:[%s756 + $0xac] sm:$0xf]
      %v1918 = vld [vmem:[%s756 + $0xb4] sm:$0xf]
      %v1919 = vld [vmem:[%s756 + $0xb8] sm:$0xf]
      %v1952 = vunpack.c.l.b16 %v1888
      %v1953 = vunpack.c.l.b16 %v1889
      %v1954 = vunpack.c.l.b16 %v1890
      %v1955 = vunpack.c.l.b16 %v1891
      %v1956 = vunpack.c.l.b16 %v1892
      %v1957 = vunpack.c.l.b16 %v1893
      %v1958 = vunpack.c.l.b16 %v1894
      %v1959 = vunpack.c.l.b16 %v1895
      %v1960 = vunpack.c.l.b16 %v1896
      %v1961 = vunpack.c.l.b16 %v1897
      %v1962 = vunpack.c.l.b16 %v1898
      %v1963 = vunpack.c.l.b16 %v1899
      %v1964 = vunpack.c.l.b16 %v1900
      %v1965 = vunpack.c.l.b16 %v1901
      %v1966 = vunpack.c.l.b16 %v1902
      %v1967 = vunpack.c.l.b16 %v1903
      %v1968 = vunpack.c.l.b16 %v1904
      %v1969 = vunpack.c.l.b16 %v1905
      %v1970 = vunpack.c.l.b16 %v1906
      %v1971 = vunpack.c.l.b16 %v1907
      %v1972 = vunpack.c.l.b16 %v1908
      %v1973 = vunpack.c.l.b16 %v1909
      %v1974 = vunpack.c.l.b16 %v1910
      %v1975 = vunpack.c.l.b16 %v1911
      %v1976 = vunpack.c.l.b16 %v1912
      %v1977 = vunpack.c.l.b16 %v1913
      %v1978 = vunpack.c.l.b16 %v1914
      %v1979 = vunpack.c.l.b16 %v1915
      %v1980 = vunpack.c.l.b16 %v1916
      %v1981 = vunpack.c.l.b16 %v1917
      %v1982 = vunpack.c.l.b16 %v1918
      %v1983 = vunpack.c.l.b16 %v1919
      %v1984 = vpack.c.b16 %v1953, %v1952
      %v1985 = vpack.c.b16 %v1955, %v1954
      %v1986 = vpack.c.b16 %v1957, %v1956
      %v1987 = vpack.c.b16 %v1959, %v1958
      %v1988 = vpack.c.b16 %v1961, %v1960
      %v1989 = vpack.c.b16 %v1963, %v1962
      %v1990 = vpack.c.b16 %v1965, %v1964
      %v1991 = vpack.c.b16 %v1967, %v1966
      %v1992 = vpack.c.b16 %v1969, %v1968
      %v1993 = vpack.c.b16 %v1971, %v1970
      %v1994 = vpack.c.b16 %v1973, %v1972
      %v1995 = vpack.c.b16 %v1975, %v1974
      %v1996 = vpack.c.b16 %v1977, %v1976
      %v1997 = vpack.c.b16 %v1979, %v1978
      %v1998 = vpack.c.b16 %v1981, %v1980
      %v1999 = vpack.c.b16 %v1983, %v1982
      %2000 = vrot.lane.b32.xlu0 %v1984, 12
      %v2001 = vpop.permute.xlu0 %2000
      %2002 = vrot.lane.b32.xlu0 %v1985, 12
      %v2003 = vpop.permute.xlu0 %2002
      %2004 = vrot.lane.b32.xlu0 %v1986, 12
      %v2005 = vpop.permute.xlu0 %2004
      %2006 = vrot.lane.b32.xlu0 %v1987, 12
      %v2007 = vpop.permute.xlu0 %2006
      %2008 = vrot.lane.b32.xlu0 %v1988, 12
      %v2009 = vpop.permute.xlu0 %2008
      %2010 = vrot.lane.b32.xlu0 %v1989, 12
      %v2011 = vpop.permute.xlu0 %2010
      %2012 = vrot.lane.b32.xlu0 %v1990, 12
      %v2013 = vpop.permute.xlu0 %2012
      %2014 = vrot.lane.b32.xlu0 %v1991, 12
      %v2015 = vpop.permute.xlu0 %2014
      %2016 = vrot.lane.b32.xlu0 %v1992, 12
      %v2017 = vpop.permute.xlu0 %2016
      %2018 = vrot.lane.b32.xlu0 %v1993, 12
      %v2019 = vpop.permute.xlu0 %2018
      %2020 = vrot.lane.b32.xlu0 %v1994, 12
      %v2021 = vpop.permute.xlu0 %2020
      %2022 = vrot.lane.b32.xlu0 %v1995, 12
      %v2023 = vpop.permute.xlu0 %2022
      %2024 = vrot.lane.b32.xlu0 %v1996, 12
      %v2025 = vpop.permute.xlu0 %2024
      %2026 = vrot.lane.b32.xlu0 %v1997, 12
      %v2027 = vpop.permute.xlu0 %2026
      %2028 = vrot.lane.b32.xlu0 %v1998, 12
      %v2029 = vpop.permute.xlu0 %2028
      %2030 = vrot.lane.b32.xlu0 %v1999, 12
      %v2031 = vpop.permute.xlu0 %2030
      %vm2048 = vcmask 130144
      %2049 = vst.msk [vmem:[#allocation3] sm:$0xff] %vm2048, %v2001
      %2050 = vst.msk [vmem:[#allocation3 + $0x8] sm:$0xff] %vm2048, %v2003
      %2051 = vst.msk [vmem:[#allocation3 + $0x10] sm:$0xff] %vm2048, %v2005
      %2052 = vst.msk [vmem:[#allocation3 + $0x18] sm:$0xff] %vm2048, %v2007
      %2053 = vst.msk [vmem:[#allocation3 + $0x20] sm:$0xff] %vm2048, %v2009
      %2054 = vst.msk [vmem:[#allocation3 + $0x28] sm:$0xff] %vm2048, %v2011
      %2055 = vst.msk [vmem:[#allocation3 + $0x30] sm:$0xff] %vm2048, %v2013
      %2056 = vst.msk [vmem:[#allocation3 + $0x38] sm:$0xff] %vm2048, %v2015
      %2057 = vst.msk [vmem:[#allocation3 + $0x40] sm:$0xff] %vm2048, %v2017
      %2058 = vst.msk [vmem:[#allocation3 + $0x48] sm:$0xff] %vm2048, %v2019
      %2059 = vst.msk [vmem:[#allocation3 + $0x50] sm:$0xff] %vm2048, %v2021
      %2060 = vst.msk [vmem:[#allocation3 + $0x58] sm:$0xff] %vm2048, %v2023
      %2061 = vst.msk [vmem:[#allocation3 + $0x60] sm:$0xff] %vm2048, %v2025
      %2062 = vst.msk [vmem:[#allocation3 + $0x68] sm:$0xff] %vm2048, %v2027
      %2063 = vst.msk [vmem:[#allocation3 + $0x70] sm:$0xff] %vm2048, %v2029
      %2064 = vst.msk [vmem:[#allocation3 + $0x78] sm:$0xff] %vm2048, %v2031
      %v2065 = vld [vmem:[%s756] sm:$0xf]
      %v2066 = vld [vmem:[%s756 + $0x4] sm:$0xf]
      %v2067 = vld [vmem:[%s756 + $0x8] sm:$0x1]
      %v2068 = vld [vmem:[%s756 + $0xc] sm:$0xf]
      %v2069 = vld [vmem:[%s756 + $0x10] sm:$0xf]
      %v2070 = vld [vmem:[%s756 + $0x14] sm:$0x1]
      %v2071 = vld [vmem:[%s756 + $0x18] sm:$0xf]
      %v2072 = vld [vmem:[%s756 + $0x1c] sm:$0xf]
      %v2073 = vld [vmem:[%s756 + $0x20] sm:$0x1]
      %v2074 = vld [vmem:[%s756 + $0x24] sm:$0xf]
      %v2075 = vld [vmem:[%s756 + $0x28] sm:$0xf]
      %v2076 = vld [vmem:[%s756 + $0x2c] sm:$0x1]
      %v2077 = vld [vmem:[%s756 + $0x30] sm:$0xf]
      %v2078 = vld [vmem:[%s756 + $0x34] sm:$0xf]
      %v2079 = vld [vmem:[%s756 + $0x38] sm:$0x1]
      %v2080 = vld [vmem:[%s756 + $0x3c] sm:$0xf]
      %v2081 = vld [vmem:[%s756 + $0x40] sm:$0xf]
      %v2082 = vld [vmem:[%s756 + $0x44] sm:$0x1]
      %v2083 = vld [vmem:[%s756 + $0x48] sm:$0xf]
      %v2084 = vld [vmem:[%s756 + $0x4c] sm:$0xf]
      %v2085 = vld [vmem:[%s756 + $0x50] sm:$0x1]
      %v2086 = vld [vmem:[%s756 + $0x54] sm:$0xf]
      %v2087 = vld [vmem:[%s756 + $0x58] sm:$0xf]
      %v2088 = vld [vmem:[%s756 + $0x5c] sm:$0x1]
      %v2089 = vld [vmem:[%s756 + $0x60] sm:$0xf]
      %v2090 = vld [vmem:[%s756 + $0x64] sm:$0xf]
      %v2091 = vld [vmem:[%s756 + $0x68] sm:$0x1]
      %v2092 = vld [vmem:[%s756 + $0x6c] sm:$0xf]
      %v2093 = vld [vmem:[%s756 + $0x70] sm:$0xf]
      %v2094 = vld [vmem:[%s756 + $0x74] sm:$0x1]
      %v2095 = vld [vmem:[%s756 + $0x78] sm:$0xf]
      %v2096 = vld [vmem:[%s756 + $0x7c] sm:$0xf]
      %v2097 = vld [vmem:[%s756 + $0x80] sm:$0x1]
      %v2098 = vld [vmem:[%s756 + $0x84] sm:$0xf]
      %v2099 = vld [vmem:[%s756 + $0x88] sm:$0xf]
      %v2100 = vld [vmem:[%s756 + $0x8c] sm:$0x1]
      %v2101 = vld [vmem:[%s756 + $0x90] sm:$0xf]
      %v2102 = vld [vmem:[%s756 + $0x94] sm:$0xf]
      %v2103 = vld [vmem:[%s756 + $0x98] sm:$0x1]
      %v2104 = vld [vmem:[%s756 + $0x9c] sm:$0xf]
      %v2105 = vld [vmem:[%s756 + $0xa0] sm:$0xf]
      %v2106 = vld [vmem:[%s756 + $0xa4] sm:$0x1]
      %v2107 = vld [vmem:[%s756 + $0xa8] sm:$0xf]
      %v2108 = vld [vmem:[%s756 + $0xac] sm:$0xf]
      %v2109 = vld [vmem:[%s756 + $0xb0] sm:$0x1]
      %v2110 = vld [vmem:[%s756 + $0xb4] sm:$0xf]
      %v2111 = vld [vmem:[%s756 + $0xb8] sm:$0xf]
      %v2112 = vld [vmem:[%s756 + $0xbc] sm:$0x1]
      %v2114 = vshrl.u32 %v2065, 16
      %v2116 = vrot.slane %v2114, 4
      %v2117 = vshll.u32 %v2065, 16
      %v2119 = vrot.slane %v2117, 5
      %v2120 = vor.u32 %v2116, %v2119
      %v2121 = vrot.slane %v2120, 4
      %v2123 = vshll.u32 %v2066, 16
      %v2125 = vrot.slane %v2123, 5
      %v2126 = vsel %vm1066, %v2121, %v2125
      %v2127 = vshrl.u32 %v2066, 16
      %v2129 = vrot.slane %v2127, 4
      %v2130 = vor.u32 %v2129, %v2125
      %v2131 = vrot.slane %v2130, 4
      %v2133 = vshll.u32 %v2067, 16
      %v2135 = vrot.slane %v2133, 5
      %v2136 = vsel %vm1066, %v2131, %v2135
      %v2138 = vshrl.u32 %v2068, 16
      %v2140 = vrot.slane %v2138, 4
      %v2141 = vshll.u32 %v2068, 16
      %v2143 = vrot.slane %v2141, 5
      %v2144 = vor.u32 %v2140, %v2143
      %v2145 = vrot.slane %v2144, 4
      %v2147 = vshll.u32 %v2069, 16
      %v2149 = vrot.slane %v2147, 5
      %v2150 = vsel %vm1066, %v2145, %v2149
      %v2151 = vshrl.u32 %v2069, 16
      %v2153 = vrot.slane %v2151, 4
      %v2154 = vor.u32 %v2153, %v2149
      %v2155 = vrot.slane %v2154, 4
      %v2157 = vshll.u32 %v2070, 16
      %v2159 = vrot.slane %v2157, 5
      %v2160 = vsel %vm1066, %v2155, %v2159
      %v2162 = vshrl.u32 %v2071, 16
      %v2164 = vrot.slane %v2162, 4
      %v2165 = vshll.u32 %v2071, 16
      %v2167 = vrot.slane %v2165, 5
      %v2168 = vor.u32 %v2164, %v2167
      %v2169 = vrot.slane %v2168, 4
      %v2171 = vshll.u32 %v2072, 16
      %v2173 = vrot.slane %v2171, 5
      %v2174 = vsel %vm1066, %v2169, %v2173
      %v2175 = vshrl.u32 %v2072, 16
      %v2177 = vrot.slane %v2175, 4
      %v2178 = vor.u32 %v2177, %v2173
      %v2179 = vrot.slane %v2178, 4
      %v2181 = vshll.u32 %v2073, 16
      %v2183 = vrot.slane %v2181, 5
      %v2184 = vsel %vm1066, %v2179, %v2183
      %v2186 = vshrl.u32 %v2074, 16
      %v2188 = vrot.slane %v2186, 4
      %v2189 = vshll.u32 %v2074, 16
      %v2191 = vrot.slane %v2189, 5
      %v2192 = vor.u32 %v2188, %v2191
      %v2193 = vrot.slane %v2192, 4
      %v2195 = vshll.u32 %v2075, 16
      %v2197 = vrot.slane %v2195, 5
      %v2198 = vsel %vm1066, %v2193, %v2197
      %v2199 = vshrl.u32 %v2075, 16
      %v2201 = vrot.slane %v2199, 4
      %v2202 = vor.u32 %v2201, %v2197
      %v2203 = vrot.slane %v2202, 4
      %v2205 = vshll.u32 %v2076, 16
      %v2207 = vrot.slane %v2205, 5
      %v2208 = vsel %vm1066, %v2203, %v2207
      %v2210 = vshrl.u32 %v2077, 16
      %v2212 = vrot.slane %v2210, 4
      %v2213 = vshll.u32 %v2077, 16
      %v2215 = vrot.slane %v2213, 5
      %v2216 = vor.u32 %v2212, %v2215
      %v2217 = vrot.slane %v2216, 4
      %v2219 = vshll.u32 %v2078, 16
      %v2221 = vrot.slane %v2219, 5
      %v2222 = vsel %vm1066, %v2217, %v2221
      %v2223 = vshrl.u32 %v2078, 16
      %v2225 = vrot.slane %v2223, 4
      %v2226 = vor.u32 %v2225, %v2221
      %v2227 = vrot.slane %v2226, 4
      %v2229 = vshll.u32 %v2079, 16
      %v2231 = vrot.slane %v2229, 5
      %v2232 = vsel %vm1066, %v2227, %v2231
      %v2234 = vshrl.u32 %v2080, 16
      %v2236 = vrot.slane %v2234, 4
      %v2237 = vshll.u32 %v2080, 16
      %v2239 = vrot.slane %v2237, 5
      %v2240 = vor.u32 %v2236, %v2239
      %v2241 = vrot.slane %v2240, 4
      %v2243 = vshll.u32 %v2081, 16
      %v2245 = vrot.slane %v2243, 5
      %v2246 = vsel %vm1066, %v2241, %v2245
      %v2247 = vshrl.u32 %v2081, 16
      %v2249 = vrot.slane %v2247, 4
      %v2250 = vor.u32 %v2249, %v2245
      %v2251 = vrot.slane %v2250, 4
      %v2253 = vshll.u32 %v2082, 16
      %v2255 = vrot.slane %v2253, 5
      %v2256 = vsel %vm1066, %v2251, %v2255
      %v2258 = vshrl.u32 %v2083, 16
      %v2260 = vrot.slane %v2258, 4
      %v2261 = vshll.u32 %v2083, 16
      %v2263 = vrot.slane %v2261, 5
      %v2264 = vor.u32 %v2260, %v2263
      %v2265 = vrot.slane %v2264, 4
      %v2267 = vshll.u32 %v2084, 16
      %v2269 = vrot.slane %v2267, 5
      %v2270 = vsel %vm1066, %v2265, %v2269
      %v2271 = vshrl.u32 %v2084, 16
      %v2273 = vrot.slane %v2271, 4
      %v2274 = vor.u32 %v2273, %v2269
      %v2275 = vrot.slane %v2274, 4
      %v2277 = vshll.u32 %v2085, 16
      %v2279 = vrot.slane %v2277, 5
      %v2280 = vsel %vm1066, %v2275, %v2279
      %v2282 = vshrl.u32 %v2086, 16
      %v2284 = vrot.slane %v2282, 4
      %v2285 = vshll.u32 %v2086, 16
      %v2287 = vrot.slane %v2285, 5
      %v2288 = vor.u32 %v2284, %v2287
      %v2289 = vrot.slane %v2288, 4
      %v2291 = vshll.u32 %v2087, 16
      %v2293 = vrot.slane %v2291, 5
      %v2294 = vsel %vm1066, %v2289, %v2293
      %v2295 = vshrl.u32 %v2087, 16
      %v2297 = vrot.slane %v2295, 4
      %v2298 = vor.u32 %v2297, %v2293
      %v2299 = vrot.slane %v2298, 4
      %v2301 = vshll.u32 %v2088, 16
      %v2303 = vrot.slane %v2301, 5
      %v2304 = vsel %vm1066, %v2299, %v2303
      %v2306 = vshrl.u32 %v2089, 16
      %v2308 = vrot.slane %v2306, 4
      %v2309 = vshll.u32 %v2089, 16
      %v2311 = vrot.slane %v2309, 5
      %v2312 = vor.u32 %v2308, %v2311
      %v2313 = vrot.slane %v2312, 4
      %v2315 = vshll.u32 %v2090, 16
      %v2317 = vrot.slane %v2315, 5
      %v2318 = vsel %vm1066, %v2313, %v2317
      %v2319 = vshrl.u32 %v2090, 16
      %v2321 = vrot.slane %v2319, 4
      %v2322 = vor.u32 %v2321, %v2317
      %v2323 = vrot.slane %v2322, 4
      %v2325 = vshll.u32 %v2091, 16
      %v2327 = vrot.slane %v2325, 5
      %v2328 = vsel %vm1066, %v2323, %v2327
      %v2330 = vshrl.u32 %v2092, 16
      %v2332 = vrot.slane %v2330, 4
      %v2333 = vshll.u32 %v2092, 16
      %v2335 = vrot.slane %v2333, 5
      %v2336 = vor.u32 %v2332, %v2335
      %v2337 = vrot.slane %v2336, 4
      %v2339 = vshll.u32 %v2093, 16
      %v2341 = vrot.slane %v2339, 5
      %v2342 = vsel %vm1066, %v2337, %v2341
      %v2343 = vshrl.u32 %v2093, 16
      %v2345 = vrot.slane %v2343, 4
      %v2346 = vor.u32 %v2345, %v2341
      %v2347 = vrot.slane %v2346, 4
      %v2349 = vshll.u32 %v2094, 16
      %v2351 = vrot.slane %v2349, 5
      %v2352 = vsel %vm1066, %v2347, %v2351
      %v2354 = vshrl.u32 %v2095, 16
      %v2356 = vrot.slane %v2354, 4
      %v2357 = vshll.u32 %v2095, 16
      %v2359 = vrot.slane %v2357, 5
      %v2360 = vor.u32 %v2356, %v2359
      %v2361 = vrot.slane %v2360, 4
      %v2363 = vshll.u32 %v2096, 16
      %v2365 = vrot.slane %v2363, 5
      %v2366 = vsel %vm1066, %v2361, %v2365
      %v2367 = vshrl.u32 %v2096, 16
      %v2369 = vrot.slane %v2367, 4
      %v2370 = vor.u32 %v2369, %v2365
      %v2371 = vrot.slane %v2370, 4
      %v2373 = vshll.u32 %v2097, 16
      %v2375 = vrot.slane %v2373, 5
      %v2376 = vsel %vm1066, %v2371, %v2375
      %v2378 = vshrl.u32 %v2098, 16
      %v2380 = vrot.slane %v2378, 4
      %v2381 = vshll.u32 %v2098, 16
      %v2383 = vrot.slane %v2381, 5
      %v2384 = vor.u32 %v2380, %v2383
      %v2385 = vrot.slane %v2384, 4
      %v2387 = vshll.u32 %v2099, 16
      %v2389 = vrot.slane %v2387, 5
      %v2390 = vsel %vm1066, %v2385, %v2389
      %v2391 = vshrl.u32 %v2099, 16
      %v2393 = vrot.slane %v2391, 4
      %v2394 = vor.u32 %v2393, %v2389
      %v2395 = vrot.slane %v2394, 4
      %v2397 = vshll.u32 %v2100, 16
      %v2399 = vrot.slane %v2397, 5
      %v2400 = vsel %vm1066, %v2395, %v2399
      %v2402 = vshrl.u32 %v2101, 16
      %v2404 = vrot.slane %v2402, 4
      %v2405 = vshll.u32 %v2101, 16
      %v2407 = vrot.slane %v2405, 5
      %v2408 = vor.u32 %v2404, %v2407
      %v2409 = vrot.slane %v2408, 4
      %v2411 = vshll.u32 %v2102, 16
      %v2413 = vrot.slane %v2411, 5
      %v2414 = vsel %vm1066, %v2409, %v2413
      %v2415 = vshrl.u32 %v2102, 16
      %v2417 = vrot.slane %v2415, 4
      %v2418 = vor.u32 %v2417, %v2413
      %v2419 = vrot.slane %v2418, 4
      %v2421 = vshll.u32 %v2103, 16
      %v2423 = vrot.slane %v2421, 5
      %v2424 = vsel %vm1066, %v2419, %v2423
      %v2426 = vshrl.u32 %v2104, 16
      %v2428 = vrot.slane %v2426, 4
      %v2429 = vshll.u32 %v2104, 16
      %v2431 = vrot.slane %v2429, 5
      %v2432 = vor.u32 %v2428, %v2431
      %v2433 = vrot.slane %v2432, 4
      %v2435 = vshll.u32 %v2105, 16
      %v2437 = vrot.slane %v2435, 5
      %v2438 = vsel %vm1066, %v2433, %v2437
      %v2439 = vshrl.u32 %v2105, 16
      %v2441 = vrot.slane %v2439, 4
      %v2442 = vor.u32 %v2441, %v2437
      %v2443 = vrot.slane %v2442, 4
      %v2445 = vshll.u32 %v2106, 16
      %v2447 = vrot.slane %v2445, 5
      %v2448 = vsel %vm1066, %v2443, %v2447
      %v2450 = vshrl.u32 %v2107, 16
      %v2452 = vrot.slane %v2450, 4
      %v2453 = vshll.u32 %v2107, 16
      %v2455 = vrot.slane %v2453, 5
      %v2456 = vor.u32 %v2452, %v2455
      %v2457 = vrot.slane %v2456, 4
      %v2459 = vshll.u32 %v2108, 16
      %v2461 = vrot.slane %v2459, 5
      %v2462 = vsel %vm1066, %v2457, %v2461
      %v2463 = vshrl.u32 %v2108, 16
      %v2465 = vrot.slane %v2463, 4
      %v2466 = vor.u32 %v2465, %v2461
      %v2467 = vrot.slane %v2466, 4
      %v2469 = vshll.u32 %v2109, 16
      %v2471 = vrot.slane %v2469, 5
      %v2472 = vsel %vm1066, %v2467, %v2471
      %v2474 = vshrl.u32 %v2110, 16
      %v2476 = vrot.slane %v2474, 4
      %v2477 = vshll.u32 %v2110, 16
      %v2479 = vrot.slane %v2477, 5
      %v2480 = vor.u32 %v2476, %v2479
      %v2481 = vrot.slane %v2480, 4
      %v2483 = vshll.u32 %v2111, 16
      %v2485 = vrot.slane %v2483, 5
      %v2486 = vsel %vm1066, %v2481, %v2485
      %v2487 = vshrl.u32 %v2111, 16
      %v2489 = vrot.slane %v2487, 4
      %v2490 = vor.u32 %v2489, %v2485
      %v2491 = vrot.slane %v2490, 4
      %v2493 = vshll.u32 %v2112, 16
      %v2495 = vrot.slane %v2493, 5
      %v2496 = vsel %vm1066, %v2491, %v2495
      %v2497 = vunpack.c.l.b16 %v2126
      %v2498 = vunpack.c.l.b16 %v2136
      %v2499 = vunpack.c.l.b16 %v2150
      %v2500 = vunpack.c.l.b16 %v2160
      %v2501 = vunpack.c.l.b16 %v2174
      %v2502 = vunpack.c.l.b16 %v2184
      %v2503 = vunpack.c.l.b16 %v2198
      %v2504 = vunpack.c.l.b16 %v2208
      %v2505 = vunpack.c.l.b16 %v2222
      %v2506 = vunpack.c.l.b16 %v2232
      %v2507 = vunpack.c.l.b16 %v2246
      %v2508 = vunpack.c.l.b16 %v2256
      %v2509 = vunpack.c.l.b16 %v2270
      %v2510 = vunpack.c.l.b16 %v2280
      %v2511 = vunpack.c.l.b16 %v2294
      %v2512 = vunpack.c.l.b16 %v2304
      %v2513 = vunpack.c.l.b16 %v2318
      %v2514 = vunpack.c.l.b16 %v2328
      %v2515 = vunpack.c.l.b16 %v2342
      %v2516 = vunpack.c.l.b16 %v2352
      %v2517 = vunpack.c.l.b16 %v2366
      %v2518 = vunpack.c.l.b16 %v2376
      %v2519 = vunpack.c.l.b16 %v2390
      %v2520 = vunpack.c.l.b16 %v2400
      %v2521 = vunpack.c.l.b16 %v2414
      %v2522 = vunpack.c.l.b16 %v2424
      %v2523 = vunpack.c.l.b16 %v2438
      %v2524 = vunpack.c.l.b16 %v2448
      %v2525 = vunpack.c.l.b16 %v2462
      %v2526 = vunpack.c.l.b16 %v2472
      %v2527 = vunpack.c.l.b16 %v2486
      %v2528 = vunpack.c.l.b16 %v2496
      %v2529 = vpack.c.b16 %v2498, %v2497
      %v2530 = vpack.c.b16 %v2500, %v2499
      %v2531 = vpack.c.b16 %v2502, %v2501
      %v2532 = vpack.c.b16 %v2504, %v2503
      %v2533 = vpack.c.b16 %v2506, %v2505
      %v2534 = vpack.c.b16 %v2508, %v2507
      %v2535 = vpack.c.b16 %v2510, %v2509
      %v2536 = vpack.c.b16 %v2512, %v2511
      %v2537 = vpack.c.b16 %v2514, %v2513
      %v2538 = vpack.c.b16 %v2516, %v2515
      %v2539 = vpack.c.b16 %v2518, %v2517
      %v2540 = vpack.c.b16 %v2520, %v2519
      %v2541 = vpack.c.b16 %v2522, %v2521
      %v2542 = vpack.c.b16 %v2524, %v2523
      %v2543 = vpack.c.b16 %v2526, %v2525
      %v2544 = vpack.c.b16 %v2528, %v2527
      %2545 = vrot.lane.b32.xlu0 %v2529, 16
      %v2546 = vpop.permute.xlu0 %2545
      %2547 = vrot.lane.b32.xlu0 %v2530, 16
      %v2548 = vpop.permute.xlu0 %2547
      %2549 = vrot.lane.b32.xlu0 %v2531, 16
      %v2550 = vpop.permute.xlu0 %2549
      %2551 = vrot.lane.b32.xlu0 %v2532, 16
      %v2552 = vpop.permute.xlu0 %2551
      %2553 = vrot.lane.b32.xlu0 %v2533, 16
      %v2554 = vpop.permute.xlu0 %2553
      %2555 = vrot.lane.b32.xlu0 %v2534, 16
      %v2556 = vpop.permute.xlu0 %2555
      %2557 = vrot.lane.b32.xlu0 %v2535, 16
      %v2558 = vpop.permute.xlu0 %2557
      %2559 = vrot.lane.b32.xlu0 %v2536, 16
      %v2560 = vpop.permute.xlu0 %2559
      %2561 = vrot.lane.b32.xlu0 %v2537, 16
      %v2562 = vpop.permute.xlu0 %2561
      %2563 = vrot.lane.b32.xlu0 %v2538, 16
      %v2564 = vpop.permute.xlu0 %2563
      %2565 = vrot.lane.b32.xlu0 %v2539, 16
      %v2566 = vpop.permute.xlu0 %2565
      %2567 = vrot.lane.b32.xlu0 %v2540, 16
      %v2568 = vpop.permute.xlu0 %2567
      %2569 = vrot.lane.b32.xlu0 %v2541, 16
      %v2570 = vpop.permute.xlu0 %2569
      %2571 = vrot.lane.b32.xlu0 %v2542, 16
      %v2572 = vpop.permute.xlu0 %2571
      %2573 = vrot.lane.b32.xlu0 %v2543, 16
      %v2574 = vpop.permute.xlu0 %2573
      %2575 = vrot.lane.b32.xlu0 %v2544, 16
      %v2576 = vpop.permute.xlu0 %2575
      %vm2593 = vcmask 162944
      %2594 = vst.msk [vmem:[#allocation3] sm:$0xff] %vm2593, %v2546
      %2595 = vst.msk [vmem:[#allocation3 + $0x8] sm:$0xff] %vm2593, %v2548
      %2596 = vst.msk [vmem:[#allocation3 + $0x10] sm:$0xff] %vm2593, %v2550
      %2597 = vst.msk [vmem:[#allocation3 + $0x18] sm:$0xff] %vm2593, %v2552
      %2598 = vst.msk [vmem:[#allocation3 + $0x20] sm:$0xff] %vm2593, %v2554
      %2599 = vst.msk [vmem:[#allocation3 + $0x28] sm:$0xff] %vm2593, %v2556
      %2600 = vst.msk [vmem:[#allocation3 + $0x30] sm:$0xff] %vm2593, %v2558
      %2601 = vst.msk [vmem:[#allocation3 + $0x38] sm:$0xff] %vm2593, %v2560
      %2602 = vst.msk [vmem:[#allocation3 + $0x40] sm:$0xff] %vm2593, %v2562
      %2603 = vst.msk [vmem:[#allocation3 + $0x48] sm:$0xff] %vm2593, %v2564
      %2604 = vst.msk [vmem:[#allocation3 + $0x50] sm:$0xff] %vm2593, %v2566
      %2605 = vst.msk [vmem:[#allocation3 + $0x58] sm:$0xff] %vm2593, %v2568
      %2606 = vst.msk [vmem:[#allocation3 + $0x60] sm:$0xff] %vm2593, %v2570
      %2607 = vst.msk [vmem:[#allocation3 + $0x68] sm:$0xff] %vm2593, %v2572
      %2608 = vst.msk [vmem:[#allocation3 + $0x70] sm:$0xff] %vm2593, %v2574
      %2609 = vst.msk [vmem:[#allocation3 + $0x78] sm:$0xff] %vm2593, %v2576
      %v2610 = vld [vmem:[%s756] sm:$0xe]
      %v2611 = vld [vmem:[%s756 + $0x4] sm:$0xf]
      %v2612 = vld [vmem:[%s756 + $0x8] sm:$0x1]
      %v2613 = vld [vmem:[%s756 + $0xc] sm:$0xe]
      %v2614 = vld [vmem:[%s756 + $0x10] sm:$0xf]
      %v2615 = vld [vmem:[%s756 + $0x14] sm:$0x1]
      %v2616 = vld [vmem:[%s756 + $0x18] sm:$0xe]
      %v2617 = vld [vmem:[%s756 + $0x1c] sm:$0xf]
      %v2618 = vld [vmem:[%s756 + $0x20] sm:$0x1]
      %v2619 = vld [vmem:[%s756 + $0x24] sm:$0xe]
      %v2620 = vld [vmem:[%s756 + $0x28] sm:$0xf]
      %v2621 = vld [vmem:[%s756 + $0x2c] sm:$0x1]
      %v2622 = vld [vmem:[%s756 + $0x30] sm:$0xe]
      %v2623 = vld [vmem:[%s756 + $0x34] sm:$0xf]
      %v2624 = vld [vmem:[%s756 + $0x38] sm:$0x1]
      %v2625 = vld [vmem:[%s756 + $0x3c] sm:$0xe]
      %v2626 = vld [vmem:[%s756 + $0x40] sm:$0xf]
      %v2627 = vld [vmem:[%s756 + $0x44] sm:$0x1]
      %v2628 = vld [vmem:[%s756 + $0x48] sm:$0xe]
      %v2629 = vld [vmem:[%s756 + $0x4c] sm:$0xf]
      %v2630 = vld [vmem:[%s756 + $0x50] sm:$0x1]
      %v2631 = vld [vmem:[%s756 + $0x54] sm:$0xe]
      %v2632 = vld [vmem:[%s756 + $0x58] sm:$0xf]
      %v2633 = vld [vmem:[%s756 + $0x5c] sm:$0x1]
      %v2634 = vld [vmem:[%s756 + $0x60] sm:$0xe]
      %v2635 = vld [vmem:[%s756 + $0x64] sm:$0xf]
      %v2636 = vld [vmem:[%s756 + $0x68] sm:$0x1]
      %v2637 = vld [vmem:[%s756 + $0x6c] sm:$0xe]
      %v2638 = vld [vmem:[%s756 + $0x70] sm:$0xf]
      %v2639 = vld [vmem:[%s756 + $0x74] sm:$0x1]
      %v2640 = vld [vmem:[%s756 + $0x78] sm:$0xe]
      %v2641 = vld [vmem:[%s756 + $0x7c] sm:$0xf]
      %v2642 = vld [vmem:[%s756 + $0x80] sm:$0x1]
      %v2643 = vld [vmem:[%s756 + $0x84] sm:$0xe]
      %v2644 = vld [vmem:[%s756 + $0x88] sm:$0xf]
      %v2645 = vld [vmem:[%s756 + $0x8c] sm:$0x1]
      %v2646 = vld [vmem:[%s756 + $0x90] sm:$0xe]
      %v2647 = vld [vmem:[%s756 + $0x94] sm:$0xf]
      %v2648 = vld [vmem:[%s756 + $0x98] sm:$0x1]
      %v2649 = vld [vmem:[%s756 + $0x9c] sm:$0xe]
      %v2650 = vld [vmem:[%s756 + $0xa0] sm:$0xf]
      %v2651 = vld [vmem:[%s756 + $0xa4] sm:$0x1]
      %v2652 = vld [vmem:[%s756 + $0xa8] sm:$0xe]
      %v2653 = vld [vmem:[%s756 + $0xac] sm:$0xf]
      %v2654 = vld [vmem:[%s756 + $0xb0] sm:$0x1]
      %v2655 = vld [vmem:[%s756 + $0xb4] sm:$0xe]
      %v2656 = vld [vmem:[%s756 + $0xb8] sm:$0xf]
      %v2657 = vld [vmem:[%s756 + $0xbc] sm:$0x1]
      %v2706 = vrot.slane %v2610, 5
      %v2707 = vrot.slane %v2706, 4
      %v2708 = vrot.slane %v2611, 5
      %v2709 = vsel %vm1662, %v2707, %v2708
      %v2710 = vrot.slane %v2708, 4
      %v2711 = vrot.slane %v2612, 5
      %v2712 = vsel %vm1662, %v2710, %v2711
      %v2713 = vrot.slane %v2613, 5
      %v2714 = vrot.slane %v2713, 4
      %v2715 = vrot.slane %v2614, 5
      %v2716 = vsel %vm1662, %v2714, %v2715
      %v2717 = vrot.slane %v2715, 4
      %v2718 = vrot.slane %v2615, 5
      %v2719 = vsel %vm1662, %v2717, %v2718
      %v2720 = vrot.slane %v2616, 5
      %v2721 = vrot.slane %v2720, 4
      %v2722 = vrot.slane %v2617, 5
      %v2723 = vsel %vm1662, %v2721, %v2722
      %v2724 = vrot.slane %v2722, 4
      %v2725 = vrot.slane %v2618, 5
      %v2726 = vsel %vm1662, %v2724, %v2725
      %v2727 = vrot.slane %v2619, 5
      %v2728 = vrot.slane %v2727, 4
      %v2729 = vrot.slane %v2620, 5
      %v2730 = vsel %vm1662, %v2728, %v2729
      %v2731 = vrot.slane %v2729, 4
      %v2732 = vrot.slane %v2621, 5
      %v2733 = vsel %vm1662, %v2731, %v2732
      %v2734 = vrot.slane %v2622, 5
      %v2735 = vrot.slane %v2734, 4
      %v2736 = vrot.slane %v2623, 5
      %v2737 = vsel %vm1662, %v2735, %v2736
      %v2738 = vrot.slane %v2736, 4
      %v2739 = vrot.slane %v2624, 5
      %v2740 = vsel %vm1662, %v2738, %v2739
      %v2741 = vrot.slane %v2625, 5
      %v2742 = vrot.slane %v2741, 4
      %v2743 = vrot.slane %v2626, 5
      %v2744 = vsel %vm1662, %v2742, %v2743
      %v2745 = vrot.slane %v2743, 4
      %v2746 = vrot.slane %v2627, 5
      %v2747 = vsel %vm1662, %v2745, %v2746
      %v2748 = vrot.slane %v2628, 5
      %v2749 = vrot.slane %v2748, 4
      %v2750 = vrot.slane %v2629, 5
      %v2751 = vsel %vm1662, %v2749, %v2750
      %v2752 = vrot.slane %v2750, 4
      %v2753 = vrot.slane %v2630, 5
      %v2754 = vsel %vm1662, %v2752, %v2753
      %v2755 = vrot.slane %v2631, 5
      %v2756 = vrot.slane %v2755, 4
      %v2757 = vrot.slane %v2632, 5
      %v2758 = vsel %vm1662, %v2756, %v2757
      %v2759 = vrot.slane %v2757, 4
      %v2760 = vrot.slane %v2633, 5
      %v2761 = vsel %vm1662, %v2759, %v2760
      %v2762 = vrot.slane %v2634, 5
      %v2763 = vrot.slane %v2762, 4
      %v2764 = vrot.slane %v2635, 5
      %v2765 = vsel %vm1662, %v2763, %v2764
      %v2766 = vrot.slane %v2764, 4
      %v2767 = vrot.slane %v2636, 5
      %v2768 = vsel %vm1662, %v2766, %v2767
      %v2769 = vrot.slane %v2637, 5
      %v2770 = vrot.slane %v2769, 4
      %v2771 = vrot.slane %v2638, 5
      %v2772 = vsel %vm1662, %v2770, %v2771
      %v2773 = vrot.slane %v2771, 4
      %v2774 = vrot.slane %v2639, 5
      %v2775 = vsel %vm1662, %v2773, %v2774
      %v2776 = vrot.slane %v2640, 5
      %v2777 = vrot.slane %v2776, 4
      %v2778 = vrot.slane %v2641, 5
      %v2779 = vsel %vm1662, %v2777, %v2778
      %v2780 = vrot.slane %v2778, 4
      %v2781 = vrot.slane %v2642, 5
      %v2782 = vsel %vm1662, %v2780, %v2781
      %v2783 = vrot.slane %v2643, 5
      %v2784 = vrot.slane %v2783, 4
      %v2785 = vrot.slane %v2644, 5
      %v2786 = vsel %vm1662, %v2784, %v2785
      %v2787 = vrot.slane %v2785, 4
      %v2788 = vrot.slane %v2645, 5
      %v2789 = vsel %vm1662, %v2787, %v2788
      %v2790 = vrot.slane %v2646, 5
      %v2791 = vrot.slane %v2790, 4
      %v2792 = vrot.slane %v2647, 5
      %v2793 = vsel %vm1662, %v2791, %v2792
      %v2794 = vrot.slane %v2792, 4
      %v2795 = vrot.slane %v2648, 5
      %v2796 = vsel %vm1662, %v2794, %v2795
      %v2797 = vrot.slane %v2649, 5
      %v2798 = vrot.slane %v2797, 4
      %v2799 = vrot.slane %v2650, 5
      %v2800 = vsel %vm1662, %v2798, %v2799
      %v2801 = vrot.slane %v2799, 4
      %v2802 = vrot.slane %v2651, 5
      %v2803 = vsel %vm1662, %v2801, %v2802
      %v2804 = vrot.slane %v2652, 5
      %v2805 = vrot.slane %v2804, 4
      %v2806 = vrot.slane %v2653, 5
      %v2807 = vsel %vm1662, %v2805, %v2806
      %v2808 = vrot.slane %v2806, 4
      %v2809 = vrot.slane %v2654, 5
      %v2810 = vsel %vm1662, %v2808, %v2809
      %v2811 = vrot.slane %v2655, 5
      %v2812 = vrot.slane %v2811, 4
      %v2813 = vrot.slane %v2656, 5
      %v2814 = vsel %vm1662, %v2812, %v2813
      %v2815 = vrot.slane %v2813, 4
      %v2816 = vrot.slane %v2657, 5
      %v2817 = vsel %vm1662, %v2815, %v2816
      %v2818 = vunpack.c.l.b16 %v2709
      %v2819 = vunpack.c.l.b16 %v2712
      %v2820 = vunpack.c.l.b16 %v2716
      %v2821 = vunpack.c.l.b16 %v2719
      %v2822 = vunpack.c.l.b16 %v2723
      %v2823 = vunpack.c.l.b16 %v2726
      %v2824 = vunpack.c.l.b16 %v2730
      %v2825 = vunpack.c.l.b16 %v2733
      %v2826 = vunpack.c.l.b16 %v2737
      %v2827 = vunpack.c.l.b16 %v2740
      %v2828 = vunpack.c.l.b16 %v2744
      %v2829 = vunpack.c.l.b16 %v2747
      %v2830 = vunpack.c.l.b16 %v2751
      %v2831 = vunpack.c.l.b16 %v2754
      %v2832 = vunpack.c.l.b16 %v2758
      %v2833 = vunpack.c.l.b16 %v2761
      %v2834 = vunpack.c.l.b16 %v2765
      %v2835 = vunpack.c.l.b16 %v2768
      %v2836 = vunpack.c.l.b16 %v2772
      %v2837 = vunpack.c.l.b16 %v2775
      %v2838 = vunpack.c.l.b16 %v2779
      %v2839 = vunpack.c.l.b16 %v2782
      %v2840 = vunpack.c.l.b16 %v2786
      %v2841 = vunpack.c.l.b16 %v2789
      %v2842 = vunpack.c.l.b16 %v2793
      %v2843 = vunpack.c.l.b16 %v2796
      %v2844 = vunpack.c.l.b16 %v2800
      %v2845 = vunpack.c.l.b16 %v2803
      %v2846 = vunpack.c.l.b16 %v2807
      %v2847 = vunpack.c.l.b16 %v2810
      %v2848 = vunpack.c.l.b16 %v2814
      %v2849 = vunpack.c.l.b16 %v2817
      %v2850 = vpack.c.b16 %v2819, %v2818
      %v2851 = vpack.c.b16 %v2821, %v2820
      %v2852 = vpack.c.b16 %v2823, %v2822
      %v2853 = vpack.c.b16 %v2825, %v2824
      %v2854 = vpack.c.b16 %v2827, %v2826
      %v2855 = vpack.c.b16 %v2829, %v2828
      %v2856 = vpack.c.b16 %v2831, %v2830
      %v2857 = vpack.c.b16 %v2833, %v2832
      %v2858 = vpack.c.b16 %v2835, %v2834
      %v2859 = vpack.c.b16 %v2837, %v2836
      %v2860 = vpack.c.b16 %v2839, %v2838
      %v2861 = vpack.c.b16 %v2841, %v2840
      %v2862 = vpack.c.b16 %v2843, %v2842
      %v2863 = vpack.c.b16 %v2845, %v2844
      %v2864 = vpack.c.b16 %v2847, %v2846
      %v2865 = vpack.c.b16 %v2849, %v2848
      %2866 = vrot.lane.b32.xlu0 %v2850, 20
      %v2867 = vpop.permute.xlu0 %2866
      %2868 = vrot.lane.b32.xlu0 %v2851, 20
      %v2869 = vpop.permute.xlu0 %2868
      %2870 = vrot.lane.b32.xlu0 %v2852, 20
      %v2871 = vpop.permute.xlu0 %2870
      %2872 = vrot.lane.b32.xlu0 %v2853, 20
      %v2873 = vpop.permute.xlu0 %2872
      %2874 = vrot.lane.b32.xlu0 %v2854, 20
      %v2875 = vpop.permute.xlu0 %2874
      %2876 = vrot.lane.b32.xlu0 %v2855, 20
      %v2877 = vpop.permute.xlu0 %2876
      %2878 = vrot.lane.b32.xlu0 %v2856, 20
      %v2879 = vpop.permute.xlu0 %2878
      %2880 = vrot.lane.b32.xlu0 %v2857, 20
      %v2881 = vpop.permute.xlu0 %2880
      %2882 = vrot.lane.b32.xlu0 %v2858, 20
      %v2883 = vpop.permute.xlu0 %2882
      %2884 = vrot.lane.b32.xlu0 %v2859, 20
      %v2885 = vpop.permute.xlu0 %2884
      %2886 = vrot.lane.b32.xlu0 %v2860, 20
      %v2887 = vpop.permute.xlu0 %2886
      %2888 = vrot.lane.b32.xlu0 %v2861, 20
      %v2889 = vpop.permute.xlu0 %2888
      %2890 = vrot.lane.b32.xlu0 %v2862, 20
      %v2891 = vpop.permute.xlu0 %2890
      %2892 = vrot.lane.b32.xlu0 %v2863, 20
      %v2893 = vpop.permute.xlu0 %2892
      %2894 = vrot.lane.b32.xlu0 %v2864, 20
      %v2895 = vpop.permute.xlu0 %2894
      %2896 = vrot.lane.b32.xlu0 %v2865, 20
      %v2897 = vpop.permute.xlu0 %2896
      %vm2914 = vcmask 195744
      %2915 = vst.msk [vmem:[#allocation3] sm:$0xff] %vm2914, %v2867
      %2916 = vst.msk [vmem:[#allocation3 + $0x8] sm:$0xff] %vm2914, %v2869
      %2917 = vst.msk [vmem:[#allocation3 + $0x10] sm:$0xff] %vm2914, %v2871
      %2918 = vst.msk [vmem:[#allocation3 + $0x18] sm:$0xff] %vm2914, %v2873
      %2919 = vst.msk [vmem:[#allocation3 + $0x20] sm:$0xff] %vm2914, %v2875
      %2920 = vst.msk [vmem:[#allocation3 + $0x28] sm:$0xff] %vm2914, %v2877
      %2921 = vst.msk [vmem:[#allocation3 + $0x30] sm:$0xff] %vm2914, %v2879
      %2922 = vst.msk [vmem:[#allocation3 + $0x38] sm:$0xff] %vm2914, %v2881
      %2923 = vst.msk [vmem:[#allocation3 + $0x40] sm:$0xff] %vm2914, %v2883
      %2924 = vst.msk [vmem:[#allocation3 + $0x48] sm:$0xff] %vm2914, %v2885
      %2925 = vst.msk [vmem:[#allocation3 + $0x50] sm:$0xff] %vm2914, %v2887
      %2926 = vst.msk [vmem:[#allocation3 + $0x58] sm:$0xff] %vm2914, %v2889
      %2927 = vst.msk [vmem:[#allocation3 + $0x60] sm:$0xff] %vm2914, %v2891
      %2928 = vst.msk [vmem:[#allocation3 + $0x68] sm:$0xff] %vm2914, %v2893
      %2929 = vst.msk [vmem:[#allocation3 + $0x70] sm:$0xff] %vm2914, %v2895
      %2930 = vst.msk [vmem:[#allocation3 + $0x78] sm:$0xff] %vm2914, %v2897
      %s2931 = scalar_lea.vmem [#allocation2], 24
      %v2932 = vld [vmem:[%s2931] sm:$0xf]
      %v2933 = vld [vmem:[%s2931 + $0x4] sm:$0xf]
      %v2934 = vld [vmem:[%s2931 + $0xc] sm:$0xf]
      %v2935 = vld [vmem:[%s2931 + $0x10] sm:$0xf]
      %v2936 = vld [vmem:[%s2931 + $0x18] sm:$0xf]
      %v2937 = vld [vmem:[%s2931 + $0x1c] sm:$0xf]
      %v2938 = vld [vmem:[%s2931 + $0x24] sm:$0xf]
      %v2939 = vld [vmem:[%s2931 + $0x28] sm:$0xf]
      %v2940 = vld [vmem:[%s2931 + $0x30] sm:$0xf]
      %v2941 = vld [vmem:[%s2931 + $0x34] sm:$0xf]
      %v2942 = vld [vmem:[%s2931 + $0x3c] sm:$0xf]
      %v2943 = vld [vmem:[%s2931 + $0x40] sm:$0xf]
      %v2944 = vld [vmem:[%s2931 + $0x48] sm:$0xf]
      %v2945 = vld [vmem:[%s2931 + $0x4c] sm:$0xf]
      %v2946 = vld [vmem:[%s2931 + $0x54] sm:$0xf]
      %v2947 = vld [vmem:[%s2931 + $0x58] sm:$0xf]
      %v2948 = vld [vmem:[%s2931 + $0x60] sm:$0xf]
      %v2949 = vld [vmem:[%s2931 + $0x64] sm:$0xf]
      %v2950 = vld [vmem:[%s2931 + $0x6c] sm:$0xf]
      %v2951 = vld [vmem:[%s2931 + $0x70] sm:$0xf]
      %v2952 = vld [vmem:[%s2931 + $0x78] sm:$0xf]
      %v2953 = vld [vmem:[%s2931 + $0x7c] sm:$0xf]
      %v2954 = vld [vmem:[%s2931 + $0x84] sm:$0xf]
      %v2955 = vld [vmem:[%s2931 + $0x88] sm:$0xf]
      %v2956 = vld [vmem:[%s2931 + $0x90] sm:$0xf]
      %v2957 = vld [vmem:[%s2931 + $0x94] sm:$0xf]
      %v2958 = vld [vmem:[%s2931 + $0x9c] sm:$0xf]
      %v2959 = vld [vmem:[%s2931 + $0xa0] sm:$0xf]
      %v2960 = vld [vmem:[%s2931 + $0xa8] sm:$0xf]
      %v2961 = vld [vmem:[%s2931 + $0xac] sm:$0xf]
      %v2962 = vld [vmem:[%s2931 + $0xb4] sm:$0xf]
      %v2963 = vld [vmem:[%s2931 + $0xb8] sm:$0xf]
      %v2996 = vunpack.c.l.b16 %v2932
      %v2997 = vunpack.c.l.b16 %v2933
      %v2998 = vunpack.c.l.b16 %v2934
      %v2999 = vunpack.c.l.b16 %v2935
      %v3000 = vunpack.c.l.b16 %v2936
      %v3001 = vunpack.c.l.b16 %v2937
      %v3002 = vunpack.c.l.b16 %v2938
      %v3003 = vunpack.c.l.b16 %v2939
      %v3004 = vunpack.c.l.b16 %v2940
      %v3005 = vunpack.c.l.b16 %v2941
      %v3006 = vunpack.c.l.b16 %v2942
      %v3007 = vunpack.c.l.b16 %v2943
      %v3008 = vunpack.c.l.b16 %v2944
      %v3009 = vunpack.c.l.b16 %v2945
      %v3010 = vunpack.c.l.b16 %v2946
      %v3011 = vunpack.c.l.b16 %v2947
      %v3012 = vunpack.c.l.b16 %v2948
      %v3013 = vunpack.c.l.b16 %v2949
      %v3014 = vunpack.c.l.b16 %v2950
      %v3015 = vunpack.c.l.b16 %v2951
      %v3016 = vunpack.c.l.b16 %v2952
      %v3017 = vunpack.c.l.b16 %v2953
      %v3018 = vunpack.c.l.b16 %v2954
      %v3019 = vunpack.c.l.b16 %v2955
      %v3020 = vunpack.c.l.b16 %v2956
      %v3021 = vunpack.c.l.b16 %v2957
      %v3022 = vunpack.c.l.b16 %v2958
      %v3023 = vunpack.c.l.b16 %v2959
      %v3024 = vunpack.c.l.b16 %v2960
      %v3025 = vunpack.c.l.b16 %v2961
      %v3026 = vunpack.c.l.b16 %v2962
      %v3027 = vunpack.c.l.b16 %v2963
      %v3028 = vpack.c.b16 %v2997, %v2996
      %v3029 = vpack.c.b16 %v2999, %v2998
      %v3030 = vpack.c.b16 %v3001, %v3000
      %v3031 = vpack.c.b16 %v3003, %v3002
      %v3032 = vpack.c.b16 %v3005, %v3004
      %v3033 = vpack.c.b16 %v3007, %v3006
      %v3034 = vpack.c.b16 %v3009, %v3008
      %v3035 = vpack.c.b16 %v3011, %v3010
      %v3036 = vpack.c.b16 %v3013, %v3012
      %v3037 = vpack.c.b16 %v3015, %v3014
      %v3038 = vpack.c.b16 %v3017, %v3016
      %v3039 = vpack.c.b16 %v3019, %v3018
      %v3040 = vpack.c.b16 %v3021, %v3020
      %v3041 = vpack.c.b16 %v3023, %v3022
      %v3042 = vpack.c.b16 %v3025, %v3024
      %v3043 = vpack.c.b16 %v3027, %v3026
      %3044 = vrot.lane.b32.xlu0 %v3028, 24
      %v3045 = vpop.permute.xlu0 %3044
      %3046 = vrot.lane.b32.xlu0 %v3029, 24
      %v3047 = vpop.permute.xlu0 %3046
      %3048 = vrot.lane.b32.xlu0 %v3030, 24
      %v3049 = vpop.permute.xlu0 %3048
      %3050 = vrot.lane.b32.xlu0 %v3031, 24
      %v3051 = vpop.permute.xlu0 %3050
      %3052 = vrot.lane.b32.xlu0 %v3032, 24
      %v3053 = vpop.permute.xlu0 %3052
      %3054 = vrot.lane.b32.xlu0 %v3033, 24
      %v3055 = vpop.permute.xlu0 %3054
      %3056 = vrot.lane.b32.xlu0 %v3034, 24
      %v3057 = vpop.permute.xlu0 %3056
      %3058 = vrot.lane.b32.xlu0 %v3035, 24
      %v3059 = vpop.permute.xlu0 %3058
      %3060 = vrot.lane.b32.xlu0 %v3036, 24
      %v3061 = vpop.permute.xlu0 %3060
      %3062 = vrot.lane.b32.xlu0 %v3037, 24
      %v3063 = vpop.permute.xlu0 %3062
      %3064 = vrot.lane.b32.xlu0 %v3038, 24
      %v3065 = vpop.permute.xlu0 %3064
      %3066 = vrot.lane.b32.xlu0 %v3039, 24
      %v3067 = vpop.permute.xlu0 %3066
      %3068 = vrot.lane.b32.xlu0 %v3040, 24
      %v3069 = vpop.permute.xlu0 %3068
      %3070 = vrot.lane.b32.xlu0 %v3041, 24
      %v3071 = vpop.permute.xlu0 %3070
      %3072 = vrot.lane.b32.xlu0 %v3042, 24
      %v3073 = vpop.permute.xlu0 %3072
      %3074 = vrot.lane.b32.xlu0 %v3043, 24
      %v3075 = vpop.permute.xlu0 %3074
      %vm3092 = vcmask 228544
      %3093 = vst.msk [vmem:[#allocation3] sm:$0xff] %vm3092, %v3045
      %3094 = vst.msk [vmem:[#allocation3 + $0x8] sm:$0xff] %vm3092, %v3047
      %3095 = vst.msk [vmem:[#allocation3 + $0x10] sm:$0xff] %vm3092, %v3049
      %3096 = vst.msk [vmem:[#allocation3 + $0x18] sm:$0xff] %vm3092, %v3051
      %3097 = vst.msk [vmem:[#allocation3 + $0x20] sm:$0xff] %vm3092, %v3053
      %3098 = vst.msk [vmem:[#allocation3 + $0x28] sm:$0xff] %vm3092, %v3055
      %3099 = vst.msk [vmem:[#allocation3 + $0x30] sm:$0xff] %vm3092, %v3057
      %3100 = vst.msk [vmem:[#allocation3 + $0x38] sm:$0xff] %vm3092, %v3059
      %3101 = vst.msk [vmem:[#allocation3 + $0x40] sm:$0xff] %vm3092, %v3061
      %3102 = vst.msk [vmem:[#allocation3 + $0x48] sm:$0xff] %vm3092, %v3063
      %3103 = vst.msk [vmem:[#allocation3 + $0x50] sm:$0xff] %vm3092, %v3065
      %3104 = vst.msk [vmem:[#allocation3 + $0x58] sm:$0xff] %vm3092, %v3067
      %3105 = vst.msk [vmem:[#allocation3 + $0x60] sm:$0xff] %vm3092, %v3069
      %3106 = vst.msk [vmem:[#allocation3 + $0x68] sm:$0xff] %vm3092, %v3071
      %3107 = vst.msk [vmem:[#allocation3 + $0x70] sm:$0xff] %vm3092, %v3073
      %3108 = vst.msk [vmem:[#allocation3 + $0x78] sm:$0xff] %vm3092, %v3075
      %v3109 = vld [vmem:[%s2931] sm:$0xf]
      %v3110 = vld [vmem:[%s2931 + $0x4] sm:$0xf]
      %v3111 = vld [vmem:[%s2931 + $0x8] sm:$0x1]
      %v3112 = vld [vmem:[%s2931 + $0xc] sm:$0xf]
      %v3113 = vld [vmem:[%s2931 + $0x10] sm:$0xf]
      %v3114 = vld [vmem:[%s2931 + $0x14] sm:$0x1]
      %v3115 = vld [vmem:[%s2931 + $0x18] sm:$0xf]
      %v3116 = vld [vmem:[%s2931 + $0x1c] sm:$0xf]
      %v3117 = vld [vmem:[%s2931 + $0x20] sm:$0x1]
      %v3118 = vld [vmem:[%s2931 + $0x24] sm:$0xf]
      %v3119 = vld [vmem:[%s2931 + $0x28] sm:$0xf]
      %v3120 = vld [vmem:[%s2931 + $0x2c] sm:$0x1]
      %v3121 = vld [vmem:[%s2931 + $0x30] sm:$0xf]
      %v3122 = vld [vmem:[%s2931 + $0x34] sm:$0xf]
      %v3123 = vld [vmem:[%s2931 + $0x38] sm:$0x1]
      %v3124 = vld [vmem:[%s2931 + $0x3c] sm:$0xf]
      %v3125 = vld [vmem:[%s2931 + $0x40] sm:$0xf]
      %v3126 = vld [vmem:[%s2931 + $0x44] sm:$0x1]
      %v3127 = vld [vmem:[%s2931 + $0x48] sm:$0xf]
      %v3128 = vld [vmem:[%s2931 + $0x4c] sm:$0xf]
      %v3129 = vld [vmem:[%s2931 + $0x50] sm:$0x1]
      %v3130 = vld [vmem:[%s2931 + $0x54] sm:$0xf]
      %v3131 = vld [vmem:[%s2931 + $0x58] sm:$0xf]
      %v3132 = vld [vmem:[%s2931 + $0x5c] sm:$0x1]
      %v3133 = vld [vmem:[%s2931 + $0x60] sm:$0xf]
      %v3134 = vld [vmem:[%s2931 + $0x64] sm:$0xf]
      %v3135 = vld [vmem:[%s2931 + $0x68] sm:$0x1]
      %v3136 = vld [vmem:[%s2931 + $0x6c] sm:$0xf]
      %v3137 = vld [vmem:[%s2931 + $0x70] sm:$0xf]
      %v3138 = vld [vmem:[%s2931 + $0x74] sm:$0x1]
      %v3139 = vld [vmem:[%s2931 + $0x78] sm:$0xf]
      %v3140 = vld [vmem:[%s2931 + $0x7c] sm:$0xf]
      %v3141 = vld [vmem:[%s2931 + $0x80] sm:$0x1]
      %v3142 = vld [vmem:[%s2931 + $0x84] sm:$0xf]
      %v3143 = vld [vmem:[%s2931 + $0x88] sm:$0xf]
      %v3144 = vld [vmem:[%s2931 + $0x8c] sm:$0x1]
      %v3145 = vld [vmem:[%s2931 + $0x90] sm:$0xf]
      %v3146 = vld [vmem:[%s2931 + $0x94] sm:$0xf]
      %v3147 = vld [vmem:[%s2931 + $0x98] sm:$0x1]
      %v3148 = vld [vmem:[%s2931 + $0x9c] sm:$0xf]
      %v3149 = vld [vmem:[%s2931 + $0xa0] sm:$0xf]
      %v3150 = vld [vmem:[%s2931 + $0xa4] sm:$0x1]
      %v3151 = vld [vmem:[%s2931 + $0xa8] sm:$0xf]
      %v3152 = vld [vmem:[%s2931 + $0xac] sm:$0xf]
      %v3153 = vld [vmem:[%s2931 + $0xb0] sm:$0x1]
      %v3154 = vld [vmem:[%s2931 + $0xb4] sm:$0xf]
      %v3155 = vld [vmem:[%s2931 + $0xb8] sm:$0xf]
      %v3156 = vld [vmem:[%s2931 + $0xbc] sm:$0x1]
      %v3158 = vshrl.u32 %v3109, 16
      %v3160 = vrot.slane %v3158, 4
      %v3161 = vshll.u32 %v3109, 16
      %v3163 = vrot.slane %v3161, 5
      %v3164 = vor.u32 %v3160, %v3163
      %v3165 = vrot.slane %v3164, 4
      %v3167 = vshll.u32 %v3110, 16
      %v3169 = vrot.slane %v3167, 5
      %v3170 = vsel %vm1066, %v3165, %v3169
      %v3171 = vshrl.u32 %v3110, 16
      %v3173 = vrot.slane %v3171, 4
      %v3174 = vor.u32 %v3173, %v3169
      %v3175 = vrot.slane %v3174, 4
      %v3177 = vshll.u32 %v3111, 16
      %v3179 = vrot.slane %v3177, 5
      %v3180 = vsel %vm1066, %v3175, %v3179
      %v3182 = vshrl.u32 %v3112, 16
      %v3184 = vrot.slane %v3182, 4
      %v3185 = vshll.u32 %v3112, 16
      %v3187 = vrot.slane %v3185, 5
      %v3188 = vor.u32 %v3184, %v3187
      %v3189 = vrot.slane %v3188, 4
      %v3191 = vshll.u32 %v3113, 16
      %v3193 = vrot.slane %v3191, 5
      %v3194 = vsel %vm1066, %v3189, %v3193
      %v3195 = vshrl.u32 %v3113, 16
      %v3197 = vrot.slane %v3195, 4
      %v3198 = vor.u32 %v3197, %v3193
      %v3199 = vrot.slane %v3198, 4
      %v3201 = vshll.u32 %v3114, 16
      %v3203 = vrot.slane %v3201, 5
      %v3204 = vsel %vm1066, %v3199, %v3203
      %v3206 = vshrl.u32 %v3115, 16
      %v3208 = vrot.slane %v3206, 4
      %v3209 = vshll.u32 %v3115, 16
      %v3211 = vrot.slane %v3209, 5
      %v3212 = vor.u32 %v3208, %v3211
      %v3213 = vrot.slane %v3212, 4
      %v3215 = vshll.u32 %v3116, 16
      %v3217 = vrot.slane %v3215, 5
      %v3218 = vsel %vm1066, %v3213, %v3217
      %v3219 = vshrl.u32 %v3116, 16
      %v3221 = vrot.slane %v3219, 4
      %v3222 = vor.u32 %v3221, %v3217
      %v3223 = vrot.slane %v3222, 4
      %v3225 = vshll.u32 %v3117, 16
      %v3227 = vrot.slane %v3225, 5
      %v3228 = vsel %vm1066, %v3223, %v3227
      %v3230 = vshrl.u32 %v3118, 16
      %v3232 = vrot.slane %v3230, 4
      %v3233 = vshll.u32 %v3118, 16
      %v3235 = vrot.slane %v3233, 5
      %v3236 = vor.u32 %v3232, %v3235
      %v3237 = vrot.slane %v3236, 4
      %v3239 = vshll.u32 %v3119, 16
      %v3241 = vrot.slane %v3239, 5
      %v3242 = vsel %vm1066, %v3237, %v3241
      %v3243 = vshrl.u32 %v3119, 16
      %v3245 = vrot.slane %v3243, 4
      %v3246 = vor.u32 %v3245, %v3241
      %v3247 = vrot.slane %v3246, 4
      %v3249 = vshll.u32 %v3120, 16
      %v3251 = vrot.slane %v3249, 5
      %v3252 = vsel %vm1066, %v3247, %v3251
      %v3254 = vshrl.u32 %v3121, 16
      %v3256 = vrot.slane %v3254, 4
      %v3257 = vshll.u32 %v3121, 16
      %v3259 = vrot.slane %v3257, 5
      %v3260 = vor.u32 %v3256, %v3259
      %v3261 = vrot.slane %v3260, 4
      %v3263 = vshll.u32 %v3122, 16
      %v3265 = vrot.slane %v3263, 5
      %v3266 = vsel %vm1066, %v3261, %v3265
      %v3267 = vshrl.u32 %v3122, 16
      %v3269 = vrot.slane %v3267, 4
      %v3270 = vor.u32 %v3269, %v3265
      %v3271 = vrot.slane %v3270, 4
      %v3273 = vshll.u32 %v3123, 16
      %v3275 = vrot.slane %v3273, 5
      %v3276 = vsel %vm1066, %v3271, %v3275
      %v3278 = vshrl.u32 %v3124, 16
      %v3280 = vrot.slane %v3278, 4
      %v3281 = vshll.u32 %v3124, 16
      %v3283 = vrot.slane %v3281, 5
      %v3284 = vor.u32 %v3280, %v3283
      %v3285 = vrot.slane %v3284, 4
      %v3287 = vshll.u32 %v3125, 16
      %v3289 = vrot.slane %v3287, 5
      %v3290 = vsel %vm1066, %v3285, %v3289
      %v3291 = vshrl.u32 %v3125, 16
      %v3293 = vrot.slane %v3291, 4
      %v3294 = vor.u32 %v3293, %v3289
      %v3295 = vrot.slane %v3294, 4
      %v3297 = vshll.u32 %v3126, 16
      %v3299 = vrot.slane %v3297, 5
      %v3300 = vsel %vm1066, %v3295, %v3299
      %v3302 = vshrl.u32 %v3127, 16
      %v3304 = vrot.slane %v3302, 4
      %v3305 = vshll.u32 %v3127, 16
      %v3307 = vrot.slane %v3305, 5
      %v3308 = vor.u32 %v3304, %v3307
      %v3309 = vrot.slane %v3308, 4
      %v3311 = vshll.u32 %v3128, 16
      %v3313 = vrot.slane %v3311, 5
      %v3314 = vsel %vm1066, %v3309, %v3313
      %v3315 = vshrl.u32 %v3128, 16
      %v3317 = vrot.slane %v3315, 4
      %v3318 = vor.u32 %v3317, %v3313
      %v3319 = vrot.slane %v3318, 4
      %v3321 = vshll.u32 %v3129, 16
      %v3323 = vrot.slane %v3321, 5
      %v3324 = vsel %vm1066, %v3319, %v3323
      %v3326 = vshrl.u32 %v3130, 16
      %v3328 = vrot.slane %v3326, 4
      %v3329 = vshll.u32 %v3130, 16
      %v3331 = vrot.slane %v3329, 5
      %v3332 = vor.u32 %v3328, %v3331
      %v3333 = vrot.slane %v3332, 4
      %v3335 = vshll.u32 %v3131, 16
      %v3337 = vrot.slane %v3335, 5
      %v3338 = vsel %vm1066, %v3333, %v3337
      %v3339 = vshrl.u32 %v3131, 16
      %v3341 = vrot.slane %v3339, 4
      %v3342 = vor.u32 %v3341, %v3337
      %v3343 = vrot.slane %v3342, 4
      %v3345 = vshll.u32 %v3132, 16
      %v3347 = vrot.slane %v3345, 5
      %v3348 = vsel %vm1066, %v3343, %v3347
      %v3350 = vshrl.u32 %v3133, 16
      %v3352 = vrot.slane %v3350, 4
      %v3353 = vshll.u32 %v3133, 16
      %v3355 = vrot.slane %v3353, 5
      %v3356 = vor.u32 %v3352, %v3355
      %v3357 = vrot.slane %v3356, 4
      %v3359 = vshll.u32 %v3134, 16
      %v3361 = vrot.slane %v3359, 5
      %v3362 = vsel %vm1066, %v3357, %v3361
      %v3363 = vshrl.u32 %v3134, 16
      %v3365 = vrot.slane %v3363, 4
      %v3366 = vor.u32 %v3365, %v3361
      %v3367 = vrot.slane %v3366, 4
      %v3369 = vshll.u32 %v3135, 16
      %v3371 = vrot.slane %v3369, 5
      %v3372 = vsel %vm1066, %v3367, %v3371
      %v3374 = vshrl.u32 %v3136, 16
      %v3376 = vrot.slane %v3374, 4
      %v3377 = vshll.u32 %v3136, 16
      %v3379 = vrot.slane %v3377, 5
      %v3380 = vor.u32 %v3376, %v3379
      %v3381 = vrot.slane %v3380, 4
      %v3383 = vshll.u32 %v3137, 16
      %v3385 = vrot.slane %v3383, 5
      %v3386 = vsel %vm1066, %v3381, %v3385
      %v3387 = vshrl.u32 %v3137, 16
      %v3389 = vrot.slane %v3387, 4
      %v3390 = vor.u32 %v3389, %v3385
      %v3391 = vrot.slane %v3390, 4
      %v3393 = vshll.u32 %v3138, 16
      %v3395 = vrot.slane %v3393, 5
      %v3396 = vsel %vm1066, %v3391, %v3395
      %v3398 = vshrl.u32 %v3139, 16
      %v3400 = vrot.slane %v3398, 4
      %v3401 = vshll.u32 %v3139, 16
      %v3403 = vrot.slane %v3401, 5
      %v3404 = vor.u32 %v3400, %v3403
      %v3405 = vrot.slane %v3404, 4
      %v3407 = vshll.u32 %v3140, 16
      %v3409 = vrot.slane %v3407, 5
      %v3410 = vsel %vm1066, %v3405, %v3409
      %v3411 = vshrl.u32 %v3140, 16
      %v3413 = vrot.slane %v3411, 4
      %v3414 = vor.u32 %v3413, %v3409
      %v3415 = vrot.slane %v3414, 4
      %v3417 = vshll.u32 %v3141, 16
      %v3419 = vrot.slane %v3417, 5
      %v3420 = vsel %vm1066, %v3415, %v3419
      %v3422 = vshrl.u32 %v3142, 16
      %v3424 = vrot.slane %v3422, 4
      %v3425 = vshll.u32 %v3142, 16
      %v3427 = vrot.slane %v3425, 5
      %v3428 = vor.u32 %v3424, %v3427
      %v3429 = vrot.slane %v3428, 4
      %v3431 = vshll.u32 %v3143, 16
      %v3433 = vrot.slane %v3431, 5
      %v3434 = vsel %vm1066, %v3429, %v3433
      %v3435 = vshrl.u32 %v3143, 16
      %v3437 = vrot.slane %v3435, 4
      %v3438 = vor.u32 %v3437, %v3433
      %v3439 = vrot.slane %v3438, 4
      %v3441 = vshll.u32 %v3144, 16
      %v3443 = vrot.slane %v3441, 5
      %v3444 = vsel %vm1066, %v3439, %v3443
      %v3446 = vshrl.u32 %v3145, 16
      %v3448 = vrot.slane %v3446, 4
      %v3449 = vshll.u32 %v3145, 16
      %v3451 = vrot.slane %v3449, 5
      %v3452 = vor.u32 %v3448, %v3451
      %v3453 = vrot.slane %v3452, 4
      %v3455 = vshll.u32 %v3146, 16
      %v3457 = vrot.slane %v3455, 5
      %v3458 = vsel %vm1066, %v3453, %v3457
      %v3459 = vshrl.u32 %v3146, 16
      %v3461 = vrot.slane %v3459, 4
      %v3462 = vor.u32 %v3461, %v3457
      %v3463 = vrot.slane %v3462, 4
      %v3465 = vshll.u32 %v3147, 16
      %v3467 = vrot.slane %v3465, 5
      %v3468 = vsel %vm1066, %v3463, %v3467
      %v3470 = vshrl.u32 %v3148, 16
      %v3472 = vrot.slane %v3470, 4
      %v3473 = vshll.u32 %v3148, 16
      %v3475 = vrot.slane %v3473, 5
      %v3476 = vor.u32 %v3472, %v3475
      %v3477 = vrot.slane %v3476, 4
      %v3479 = vshll.u32 %v3149, 16
      %v3481 = vrot.slane %v3479, 5
      %v3482 = vsel %vm1066, %v3477, %v3481
      %v3483 = vshrl.u32 %v3149, 16
      %v3485 = vrot.slane %v3483, 4
      %v3486 = vor.u32 %v3485, %v3481
      %v3487 = vrot.slane %v3486, 4
      %v3489 = vshll.u32 %v3150, 16
      %v3491 = vrot.slane %v3489, 5
      %v3492 = vsel %vm1066, %v3487, %v3491
      %v3494 = vshrl.u32 %v3151, 16
      %v3496 = vrot.slane %v3494, 4
      %v3497 = vshll.u32 %v3151, 16
      %v3499 = vrot.slane %v3497, 5
      %v3500 = vor.u32 %v3496, %v3499
      %v3501 = vrot.slane %v3500, 4
      %v3503 = vshll.u32 %v3152, 16
      %v3505 = vrot.slane %v3503, 5
      %v3506 = vsel %vm1066, %v3501, %v3505
      %v3507 = vshrl.u32 %v3152, 16
      %v3509 = vrot.slane %v3507, 4
      %v3510 = vor.u32 %v3509, %v3505
      %v3511 = vrot.slane %v3510, 4
      %v3513 = vshll.u32 %v3153, 16
      %v3515 = vrot.slane %v3513, 5
      %v3516 = vsel %vm1066, %v3511, %v3515
      %v3518 = vshrl.u32 %v3154, 16
      %v3520 = vrot.slane %v3518, 4
      %v3521 = vshll.u32 %v3154, 16
      %v3523 = vrot.slane %v3521, 5
      %v3524 = vor.u32 %v3520, %v3523
      %v3525 = vrot.slane %v3524, 4
      %v3527 = vshll.u32 %v3155, 16
      %v3529 = vrot.slane %v3527, 5
      %v3530 = vsel %vm1066, %v3525, %v3529
      %v3531 = vshrl.u32 %v3155, 16
      %v3533 = vrot.slane %v3531, 4
      %v3534 = vor.u32 %v3533, %v3529
      %v3535 = vrot.slane %v3534, 4
      %v3537 = vshll.u32 %v3156, 16
      %v3539 = vrot.slane %v3537, 5
      %v3540 = vsel %vm1066, %v3535, %v3539
      %v3541 = vunpack.c.l.b16 %v3170
      %v3542 = vunpack.c.l.b16 %v3180
      %v3543 = vunpack.c.l.b16 %v3194
      %v3544 = vunpack.c.l.b16 %v3204
      %v3545 = vunpack.c.l.b16 %v3218
      %v3546 = vunpack.c.l.b16 %v3228
      %v3547 = vunpack.c.l.b16 %v3242
      %v3548 = vunpack.c.l.b16 %v3252
      %v3549 = vunpack.c.l.b16 %v3266
      %v3550 = vunpack.c.l.b16 %v3276
      %v3551 = vunpack.c.l.b16 %v3290
      %v3552 = vunpack.c.l.b16 %v3300
      %v3553 = vunpack.c.l.b16 %v3314
      %v3554 = vunpack.c.l.b16 %v3324
      %v3555 = vunpack.c.l.b16 %v3338
      %v3556 = vunpack.c.l.b16 %v3348
      %v3557 = vunpack.c.l.b16 %v3362
      %v3558 = vunpack.c.l.b16 %v3372
      %v3559 = vunpack.c.l.b16 %v3386
      %v3560 = vunpack.c.l.b16 %v3396
      %v3561 = vunpack.c.l.b16 %v3410
      %v3562 = vunpack.c.l.b16 %v3420
      %v3563 = vunpack.c.l.b16 %v3434
      %v3564 = vunpack.c.l.b16 %v3444
      %v3565 = vunpack.c.l.b16 %v3458
      %v3566 = vunpack.c.l.b16 %v3468
      %v3567 = vunpack.c.l.b16 %v3482
      %v3568 = vunpack.c.l.b16 %v3492
      %v3569 = vunpack.c.l.b16 %v3506
      %v3570 = vunpack.c.l.b16 %v3516
      %v3571 = vunpack.c.l.b16 %v3530
      %v3572 = vunpack.c.l.b16 %v3540
      %v3573 = vpack.c.b16 %v3542, %v3541
      %v3574 = vpack.c.b16 %v3544, %v3543
      %v3575 = vpack.c.b16 %v3546, %v3545
      %v3576 = vpack.c.b16 %v3548, %v3547
      %v3577 = vpack.c.b16 %v3550, %v3549
      %v3578 = vpack.c.b16 %v3552, %v3551
      %v3579 = vpack.c.b16 %v3554, %v3553
      %v3580 = vpack.c.b16 %v3556, %v3555
      %v3581 = vpack.c.b16 %v3558, %v3557
      %v3582 = vpack.c.b16 %v3560, %v3559
      %v3583 = vpack.c.b16 %v3562, %v3561
      %v3584 = vpack.c.b16 %v3564, %v3563
      %v3585 = vpack.c.b16 %v3566, %v3565
      %v3586 = vpack.c.b16 %v3568, %v3567
      %v3587 = vpack.c.b16 %v3570, %v3569
      %v3588 = vpack.c.b16 %v3572, %v3571
      %3589 = vrot.lane.b32.xlu0 %v3573, 28
      %v3590 = vpop.permute.xlu0 %3589
      %3591 = vrot.lane.b32.xlu0 %v3574, 28
      %v3592 = vpop.permute.xlu0 %3591
      %3593 = vrot.lane.b32.xlu0 %v3575, 28
      %v3594 = vpop.permute.xlu0 %3593
      %3595 = vrot.lane.b32.xlu0 %v3576, 28
      %v3596 = vpop.permute.xlu0 %3595
      %3597 = vrot.lane.b32.xlu0 %v3577, 28
      %v3598 = vpop.permute.xlu0 %3597
      %3599 = vrot.lane.b32.xlu0 %v3578, 28
      %v3600 = vpop.permute.xlu0 %3599
      %3601 = vrot.lane.b32.xlu0 %v3579, 28
      %v3602 = vpop.permute.xlu0 %3601
      %3603 = vrot.lane.b32.xlu0 %v3580, 28
      %v3604 = vpop.permute.xlu0 %3603
      %3605 = vrot.lane.b32.xlu0 %v3581, 28
      %v3606 = vpop.permute.xlu0 %3605
      %3607 = vrot.lane.b32.xlu0 %v3582, 28
      %v3608 = vpop.permute.xlu0 %3607
      %3609 = vrot.lane.b32.xlu0 %v3583, 28
      %v3610 = vpop.permute.xlu0 %3609
      %3611 = vrot.lane.b32.xlu0 %v3584, 28
      %v3612 = vpop.permute.xlu0 %3611
      %3613 = vrot.lane.b32.xlu0 %v3585, 28
      %v3614 = vpop.permute.xlu0 %3613
      %3615 = vrot.lane.b32.xlu0 %v3586, 28
      %v3616 = vpop.permute.xlu0 %3615
      %3617 = vrot.lane.b32.xlu0 %v3587, 28
      %v3618 = vpop.permute.xlu0 %3617
      %3619 = vrot.lane.b32.xlu0 %v3588, 28
      %v3620 = vpop.permute.xlu0 %3619
      %vm3637 = vcmask 261344
      %3638 = vst.msk [vmem:[#allocation3] sm:$0xff] %vm3637, %v3590
      %3639 = vst.msk [vmem:[#allocation3 + $0x8] sm:$0xff] %vm3637, %v3592
      %3640 = vst.msk [vmem:[#allocation3 + $0x10] sm:$0xff] %vm3637, %v3594
      %3641 = vst.msk [vmem:[#allocation3 + $0x18] sm:$0xff] %vm3637, %v3596
      %3642 = vst.msk [vmem:[#allocation3 + $0x20] sm:$0xff] %vm3637, %v3598
      %3643 = vst.msk [vmem:[#allocation3 + $0x28] sm:$0xff] %vm3637, %v3600
      %3644 = vst.msk [vmem:[#allocation3 + $0x30] sm:$0xff] %vm3637, %v3602
      %3645 = vst.msk [vmem:[#allocation3 + $0x38] sm:$0xff] %vm3637, %v3604
      %3646 = vst.msk [vmem:[#allocation3 + $0x40] sm:$0xff] %vm3637, %v3606
      %3647 = vst.msk [vmem:[#allocation3 + $0x48] sm:$0xff] %vm3637, %v3608
      %3648 = vst.msk [vmem:[#allocation3 + $0x50] sm:$0xff] %vm3637, %v3610
      %3649 = vst.msk [vmem:[#allocation3 + $0x58] sm:$0xff] %vm3637, %v3612
      %3650 = vst.msk [vmem:[#allocation3 + $0x60] sm:$0xff] %vm3637, %v3614
      %3651 = vst.msk [vmem:[#allocation3 + $0x68] sm:$0xff] %vm3637, %v3616
      %3652 = vst.msk [vmem:[#allocation3 + $0x70] sm:$0xff] %vm3637, %v3618
      %3653 = vst.msk [vmem:[#allocation3 + $0x78] sm:$0xff] %vm3637, %v3620
      %v3654 = vld [vmem:[%s2931] sm:$0xe]
      %v3655 = vld [vmem:[%s2931 + $0x4] sm:$0xf]
      %v3656 = vld [vmem:[%s2931 + $0x8] sm:$0x1]
      %v3657 = vld [vmem:[%s2931 + $0xc] sm:$0xe]
      %v3658 = vld [vmem:[%s2931 + $0x10] sm:$0xf]
      %v3659 = vld [vmem:[%s2931 + $0x14] sm:$0x1]
      %v3660 = vld [vmem:[%s2931 + $0x18] sm:$0xe]
      %v3661 = vld [vmem:[%s2931 + $0x1c] sm:$0xf]
      %v3662 = vld [vmem:[%s2931 + $0x20] sm:$0x1]
      %v3663 = vld [vmem:[%s2931 + $0x24] sm:$0xe]
      %v3664 = vld [vmem:[%s2931 + $0x28] sm:$0xf]
      %v3665 = vld [vmem:[%s2931 + $0x2c] sm:$0x1]
      %v3666 = vld [vmem:[%s2931 + $0x30] sm:$0xe]
      %v3667 = vld [vmem:[%s2931 + $0x34] sm:$0xf]
      %v3668 = vld [vmem:[%s2931 + $0x38] sm:$0x1]
      %v3669 = vld [vmem:[%s2931 + $0x3c] sm:$0xe]
      %v3670 = vld [vmem:[%s2931 + $0x40] sm:$0xf]
      %v3671 = vld [vmem:[%s2931 + $0x44] sm:$0x1]
      %v3672 = vld [vmem:[%s2931 + $0x48] sm:$0xe]
      %v3673 = vld [vmem:[%s2931 + $0x4c] sm:$0xf]
      %v3674 = vld [vmem:[%s2931 + $0x50] sm:$0x1]
      %v3675 = vld [vmem:[%s2931 + $0x54] sm:$0xe]
      %v3676 = vld [vmem:[%s2931 + $0x58] sm:$0xf]
      %v3677 = vld [vmem:[%s2931 + $0x5c] sm:$0x1]
      %v3678 = vld [vmem:[%s2931 + $0x60] sm:$0xe]
      %v3679 = vld [vmem:[%s2931 + $0x64] sm:$0xf]
      %v3680 = vld [vmem:[%s2931 + $0x68] sm:$0x1]
      %v3681 = vld [vmem:[%s2931 + $0x6c] sm:$0xe]
      %v3682 = vld [vmem:[%s2931 + $0x70] sm:$0xf]
      %v3683 = vld [vmem:[%s2931 + $0x74] sm:$0x1]
      %v3684 = vld [vmem:[%s2931 + $0x78] sm:$0xe]
      %v3685 = vld [vmem:[%s2931 + $0x7c] sm:$0xf]
      %v3686 = vld [vmem:[%s2931 + $0x80] sm:$0x1]
      %v3687 = vld [vmem:[%s2931 + $0x84] sm:$0xe]
      %v3688 = vld [vmem:[%s2931 + $0x88] sm:$0xf]
      %v3689 = vld [vmem:[%s2931 + $0x8c] sm:$0x1]
      %v3690 = vld [vmem:[%s2931 + $0x90] sm:$0xe]
      %v3691 = vld [vmem:[%s2931 + $0x94] sm:$0xf]
      %v3692 = vld [vmem:[%s2931 + $0x98] sm:$0x1]
      %v3693 = vld [vmem:[%s2931 + $0x9c] sm:$0xe]
      %v3694 = vld [vmem:[%s2931 + $0xa0] sm:$0xf]
      %v3695 = vld [vmem:[%s2931 + $0xa4] sm:$0x1]
      %v3696 = vld [vmem:[%s2931 + $0xa8] sm:$0xe]
      %v3697 = vld [vmem:[%s2931 + $0xac] sm:$0xf]
      %v3698 = vld [vmem:[%s2931 + $0xb0] sm:$0x1]
      %v3699 = vld [vmem:[%s2931 + $0xb4] sm:$0xe]
      %v3700 = vld [vmem:[%s2931 + $0xb8] sm:$0xf]
      %v3701 = vld [vmem:[%s2931 + $0xbc] sm:$0x1]
      %v3750 = vrot.slane %v3654, 5
      %v3751 = vrot.slane %v3750, 4
      %v3752 = vrot.slane %v3655, 5
      %v3753 = vsel %vm1662, %v3751, %v3752
      %v3754 = vrot.slane %v3752, 4
      %v3755 = vrot.slane %v3656, 5
      %v3756 = vsel %vm1662, %v3754, %v3755
      %v3757 = vrot.slane %v3657, 5
      %v3758 = vrot.slane %v3757, 4
      %v3759 = vrot.slane %v3658, 5
      %v3760 = vsel %vm1662, %v3758, %v3759
      %v3761 = vrot.slane %v3759, 4
      %v3762 = vrot.slane %v3659, 5
      %v3763 = vsel %vm1662, %v3761, %v3762
      %v3764 = vrot.slane %v3660, 5
      %v3765 = vrot.slane %v3764, 4
      %v3766 = vrot.slane %v3661, 5
      %v3767 = vsel %vm1662, %v3765, %v3766
      %v3768 = vrot.slane %v3766, 4
      %v3769 = vrot.slane %v3662, 5
      %v3770 = vsel %vm1662, %v3768, %v3769
      %v3771 = vrot.slane %v3663, 5
      %v3772 = vrot.slane %v3771, 4
      %v3773 = vrot.slane %v3664, 5
      %v3774 = vsel %vm1662, %v3772, %v3773
      %v3775 = vrot.slane %v3773, 4
      %v3776 = vrot.slane %v3665, 5
      %v3777 = vsel %vm1662, %v3775, %v3776
      %v3778 = vrot.slane %v3666, 5
      %v3779 = vrot.slane %v3778, 4
      %v3780 = vrot.slane %v3667, 5
      %v3781 = vsel %vm1662, %v3779, %v3780
      %v3782 = vrot.slane %v3780, 4
      %v3783 = vrot.slane %v3668, 5
      %v3784 = vsel %vm1662, %v3782, %v3783
      %v3785 = vrot.slane %v3669, 5
      %v3786 = vrot.slane %v3785, 4
      %v3787 = vrot.slane %v3670, 5
      %v3788 = vsel %vm1662, %v3786, %v3787
      %v3789 = vrot.slane %v3787, 4
      %v3790 = vrot.slane %v3671, 5
      %v3791 = vsel %vm1662, %v3789, %v3790
      %v3792 = vrot.slane %v3672, 5
      %v3793 = vrot.slane %v3792, 4
      %v3794 = vrot.slane %v3673, 5
      %v3795 = vsel %vm1662, %v3793, %v3794
      %v3796 = vrot.slane %v3794, 4
      %v3797 = vrot.slane %v3674, 5
      %v3798 = vsel %vm1662, %v3796, %v3797
      %v3799 = vrot.slane %v3675, 5
      %v3800 = vrot.slane %v3799, 4
      %v3801 = vrot.slane %v3676, 5
      %v3802 = vsel %vm1662, %v3800, %v3801
      %v3803 = vrot.slane %v3801, 4
      %v3804 = vrot.slane %v3677, 5
      %v3805 = vsel %vm1662, %v3803, %v3804
      %v3806 = vrot.slane %v3678, 5
      %v3807 = vrot.slane %v3806, 4
      %v3808 = vrot.slane %v3679, 5
      %v3809 = vsel %vm1662, %v3807, %v3808
      %v3810 = vrot.slane %v3808, 4
      %v3811 = vrot.slane %v3680, 5
      %v3812 = vsel %vm1662, %v3810, %v3811
      %v3813 = vrot.slane %v3681, 5
      %v3814 = vrot.slane %v3813, 4
      %v3815 = vrot.slane %v3682, 5
      %v3816 = vsel %vm1662, %v3814, %v3815
      %v3817 = vrot.slane %v3815, 4
      %v3818 = vrot.slane %v3683, 5
      %v3819 = vsel %vm1662, %v3817, %v3818
      %v3820 = vrot.slane %v3684, 5
      %v3821 = vrot.slane %v3820, 4
      %v3822 = vrot.slane %v3685, 5
      %v3823 = vsel %vm1662, %v3821, %v3822
      %v3824 = vrot.slane %v3822, 4
      %v3825 = vrot.slane %v3686, 5
      %v3826 = vsel %vm1662, %v3824, %v3825
      %v3827 = vrot.slane %v3687, 5
      %v3828 = vrot.slane %v3827, 4
      %v3829 = vrot.slane %v3688, 5
      %v3830 = vsel %vm1662, %v3828, %v3829
      %v3831 = vrot.slane %v3829, 4
      %v3832 = vrot.slane %v3689, 5
      %v3833 = vsel %vm1662, %v3831, %v3832
      %v3834 = vrot.slane %v3690, 5
      %v3835 = vrot.slane %v3834, 4
      %v3836 = vrot.slane %v3691, 5
      %v3837 = vsel %vm1662, %v3835, %v3836
      %v3838 = vrot.slane %v3836, 4
      %v3839 = vrot.slane %v3692, 5
      %v3840 = vsel %vm1662, %v3838, %v3839
      %v3841 = vrot.slane %v3693, 5
      %v3842 = vrot.slane %v3841, 4
      %v3843 = vrot.slane %v3694, 5
      %v3844 = vsel %vm1662, %v3842, %v3843
      %v3845 = vrot.slane %v3843, 4
      %v3846 = vrot.slane %v3695, 5
      %v3847 = vsel %vm1662, %v3845, %v3846
      %v3848 = vrot.slane %v3696, 5
      %v3849 = vrot.slane %v3848, 4
      %v3850 = vrot.slane %v3697, 5
      %v3851 = vsel %vm1662, %v3849, %v3850
      %v3852 = vrot.slane %v3850, 4
      %v3853 = vrot.slane %v3698, 5
      %v3854 = vsel %vm1662, %v3852, %v3853
      %v3855 = vrot.slane %v3699, 5
      %v3856 = vrot.slane %v3855, 4
      %v3857 = vrot.slane %v3700, 5
      %v3858 = vsel %vm1662, %v3856, %v3857
      %v3859 = vrot.slane %v3857, 4
      %v3860 = vrot.slane %v3701, 5
      %v3861 = vsel %vm1662, %v3859, %v3860
      %v3862 = vunpack.c.l.b16 %v3753
      %v3863 = vunpack.c.l.b16 %v3756
      %v3864 = vunpack.c.l.b16 %v3760
      %v3865 = vunpack.c.l.b16 %v3763
      %v3866 = vunpack.c.l.b16 %v3767
      %v3867 = vunpack.c.l.b16 %v3770
      %v3868 = vunpack.c.l.b16 %v3774
      %v3869 = vunpack.c.l.b16 %v3777
      %v3870 = vunpack.c.l.b16 %v3781
      %v3871 = vunpack.c.l.b16 %v3784
      %v3872 = vunpack.c.l.b16 %v3788
      %v3873 = vunpack.c.l.b16 %v3791
      %v3874 = vunpack.c.l.b16 %v3795
      %v3875 = vunpack.c.l.b16 %v3798
      %v3876 = vunpack.c.l.b16 %v3802
      %v3877 = vunpack.c.l.b16 %v3805
      %v3878 = vunpack.c.l.b16 %v3809
      %v3879 = vunpack.c.l.b16 %v3812
      %v3880 = vunpack.c.l.b16 %v3816
      %v3881 = vunpack.c.l.b16 %v3819
      %v3882 = vunpack.c.l.b16 %v3823
      %v3883 = vunpack.c.l.b16 %v3826
      %v3884 = vunpack.c.l.b16 %v3830
      %v3885 = vunpack.c.l.b16 %v3833
      %v3886 = vunpack.c.l.b16 %v3837
      %v3887 = vunpack.c.l.b16 %v3840
      %v3888 = vunpack.c.l.b16 %v3844
      %v3889 = vunpack.c.l.b16 %v3847
      %v3890 = vunpack.c.l.b16 %v3851
      %v3891 = vunpack.c.l.b16 %v3854
      %v3892 = vunpack.c.l.b16 %v3858
      %v3893 = vunpack.c.l.b16 %v3861
      %v3894 = vpack.c.b16 %v3863, %v3862
      %v3895 = vpack.c.b16 %v3865, %v3864
      %v3896 = vpack.c.b16 %v3867, %v3866
      %v3897 = vpack.c.b16 %v3869, %v3868
      %v3898 = vpack.c.b16 %v3871, %v3870
      %v3899 = vpack.c.b16 %v3873, %v3872
      %v3900 = vpack.c.b16 %v3875, %v3874
      %v3901 = vpack.c.b16 %v3877, %v3876
      %v3902 = vpack.c.b16 %v3879, %v3878
      %v3903 = vpack.c.b16 %v3881, %v3880
      %v3904 = vpack.c.b16 %v3883, %v3882
      %v3905 = vpack.c.b16 %v3885, %v3884
      %v3906 = vpack.c.b16 %v3887, %v3886
      %v3907 = vpack.c.b16 %v3889, %v3888
      %v3908 = vpack.c.b16 %v3891, %v3890
      %v3909 = vpack.c.b16 %v3893, %v3892
      %3910 = vrot.lane.b32.xlu0 %v3894, 32
      %v3911 = vpop.permute.xlu0 %3910
      %3912 = vrot.lane.b32.xlu0 %v3895, 32
      %v3913 = vpop.permute.xlu0 %3912
      %3914 = vrot.lane.b32.xlu0 %v3896, 32
      %v3915 = vpop.permute.xlu0 %3914
      %3916 = vrot.lane.b32.xlu0 %v3897, 32
      %v3917 = vpop.permute.xlu0 %3916
      %3918 = vrot.lane.b32.xlu0 %v3898, 32
      %v3919 = vpop.permute.xlu0 %3918
      %3920 = vrot.lane.b32.xlu0 %v3899, 32
      %v3921 = vpop.permute.xlu0 %3920
      %3922 = vrot.lane.b32.xlu0 %v3900, 32
      %v3923 = vpop.permute.xlu0 %3922
      %3924 = vrot.lane.b32.xlu0 %v3901, 32
      %v3925 = vpop.permute.xlu0 %3924
      %3926 = vrot.lane.b32.xlu0 %v3902, 32
      %v3927 = vpop.permute.xlu0 %3926
      %3928 = vrot.lane.b32.xlu0 %v3903, 32
      %v3929 = vpop.permute.xlu0 %3928
      %3930 = vrot.lane.b32.xlu0 %v3904, 32
      %v3931 = vpop.permute.xlu0 %3930
      %3932 = vrot.lane.b32.xlu0 %v3905, 32
      %v3933 = vpop.permute.xlu0 %3932
      %3934 = vrot.lane.b32.xlu0 %v3906, 32
      %v3935 = vpop.permute.xlu0 %3934
      %3936 = vrot.lane.b32.xlu0 %v3907, 32
      %v3937 = vpop.permute.xlu0 %3936
      %3938 = vrot.lane.b32.xlu0 %v3908, 32
      %v3939 = vpop.permute.xlu0 %3938
      %3940 = vrot.lane.b32.xlu0 %v3909, 32
      %v3941 = vpop.permute.xlu0 %3940
      %vm3958 = vcmask 294144
      %3959 = vst.msk [vmem:[#allocation3] sm:$0xff] %vm3958, %v3911
      %3960 = vst.msk [vmem:[#allocation3 + $0x8] sm:$0xff] %vm3958, %v3913
      %3961 = vst.msk [vmem:[#allocation3 + $0x10] sm:$0xff] %vm3958, %v3915
      %3962 = vst.msk [vmem:[#allocation3 + $0x18] sm:$0xff] %vm3958, %v3917
      %3963 = vst.msk [vmem:[#allocation3 + $0x20] sm:$0xff] %vm3958, %v3919
      %3964 = vst.msk [vmem:[#allocation3 + $0x28] sm:$0xff] %vm3958, %v3921
      %3965 = vst.msk [vmem:[#allocation3 + $0x30] sm:$0xff] %vm3958, %v3923
      %3966 = vst.msk [vmem:[#allocation3 + $0x38] sm:$0xff] %vm3958, %v3925
      %3967 = vst.msk [vmem:[#allocation3 + $0x40] sm:$0xff] %vm3958, %v3927
      %3968 = vst.msk [vmem:[#allocation3 + $0x48] sm:$0xff] %vm3958, %v3929
      %3969 = vst.msk [vmem:[#allocation3 + $0x50] sm:$0xff] %vm3958, %v3931
      %3970 = vst.msk [vmem:[#allocation3 + $0x58] sm:$0xff] %vm3958, %v3933
      %3971 = vst.msk [vmem:[#allocation3 + $0x60] sm:$0xff] %vm3958, %v3935
      %3972 = vst.msk [vmem:[#allocation3 + $0x68] sm:$0xff] %vm3958, %v3937
      %3973 = vst.msk [vmem:[#allocation3 + $0x70] sm:$0xff] %vm3958, %v3939
      %3974 = vst.msk [vmem:[#allocation3 + $0x78] sm:$0xff] %vm3958, %v3941
      %v3975 = vld [vmem:[#allocation3] sm:$0xff]
      %v3976 = vld [vmem:[#allocation3 + $0x8] sm:$0xff]
      %v3977 = vld [vmem:[#allocation3 + $0x10] sm:$0xff]
      %v3978 = vld [vmem:[#allocation3 + $0x18] sm:$0xff]
      %v3979 = vld [vmem:[#allocation3 + $0x20] sm:$0xff]
      %v3980 = vld [vmem:[#allocation3 + $0x28] sm:$0xff]
      %v3981 = vld [vmem:[#allocation3 + $0x30] sm:$0xff]
      %v3982 = vld [vmem:[#allocation3 + $0x38] sm:$0xff]
      %v3983 = vld [vmem:[#allocation3 + $0x40] sm:$0xff]
      %v3984 = vld [vmem:[#allocation3 + $0x48] sm:$0xff]
      %v3985 = vld [vmem:[#allocation3 + $0x50] sm:$0xff]
      %v3986 = vld [vmem:[#allocation3 + $0x58] sm:$0xff]
      %v3987 = vld [vmem:[#allocation3 + $0x60] sm:$0xff]
      %v3988 = vld [vmem:[#allocation3 + $0x68] sm:$0xff]
      %v3989 = vld [vmem:[#allocation3 + $0x70] sm:$0xff]
      %v3990 = vld [vmem:[#allocation3 + $0x78] sm:$0xff]
      %v3991 = vld [vmem:[%s1] sm:$0xf]
      %v3992 = vld [vmem:[%s1 + $0x4] sm:$0xf]
      %v3993 = vld [vmem:[%s1 + $0x8] sm:$0xf]
      %v3994 = vld [vmem:[%s1 + $0xc] sm:$0xf]
      %v3995 = vld [vmem:[%s1 + $0x10] sm:$0x3]
      %v4001 = vunpack.c.l.b16 %v3991
      %v4002 = vunpack.c.l.b16 %v3992
      %v4003 = vunpack.c.l.b16 %v3993
      %v4004 = vunpack.c.l.b16 %v3994
      %v4005 = vunpack.c.l.b16 %v3995
      %v4006 = vpack.c.b16 %v4002, %v4001
      %v4007 = vpack.c.b16 %v4004, %v4003
      %v4008 = vpack.c.b16 %v4005, %v4005
      %vm4011 = vcmask 293888
      %v4013 = vsel %vm4011, %v3975, 0
      %v4016 = vsel %vm4011, %v3976, 0
      %v4019 = vsel %vm4011, %v3977, 0
      %v4022 = vsel %vm4011, %v3978, 0
      %v4025 = vsel %vm4011, %v3979, 0
      %v4028 = vsel %vm4011, %v3980, 0
      %v4031 = vsel %vm4011, %v3981, 0
      %v4034 = vsel %vm4011, %v3982, 0
      %v4037 = vsel %vm4011, %v3983, 0
      %v4040 = vsel %vm4011, %v3984, 0
      %v4043 = vsel %vm4011, %v3985, 0
      %v4046 = vsel %vm4011, %v3986, 0
      %v4049 = vsel %vm4011, %v3987, 0
      %v4052 = vsel %vm4011, %v3988, 0
      %v4055 = vsel %vm4011, %v3989, 0
      %v4058 = vsel %vm4011, %v3990, 0
      %vm4060 = vcmask 1041408
      %v4062 = vsel %vm4060, %v4008, 0
      %4064 = vmatprep.subr.bf16.mxu0 0
      %4065 = vmatpush1.bf16.msra.mxu0 %v4006
      %4066 = vmatprep.subr.bf16.mxu0 0
      %4067 = vmatpush1.bf16.msra.mxu0 %v4007
      %4068 = vmatprep.subr.bf16.mxu0 0
      %4069 = vmatpush1.bf16.msra.mxu0 %v4062
      %4070 = vmatprep.subr.bf16.mxu0 0
      %4071 = vmatpush1.bf16.msra.mxu0 0
      %4072 = vmatprep.subr.bf16.mxu0 0
      %4073 = vmatpush1.bf16.msra.mxu0 0
      %4074 = vmatprep.subr.bf16.mxu0 0
      %4075 = vmatpush1.bf16.msra.mxu0 0
      %4076 = vmatprep.subr.bf16.mxu0 0
      %4077 = vmatpush1.bf16.msra.mxu0 0
      %4078 = vmatprep.subr.bf16.mxu0 0
      %4079 = vmatpush1.bf16.msra.mxu0 0
      %4080 = vmatprep.subr.bf16.mxu0 0
      %4081 = vmatpush1.bf16.msra.mxu0 0
      %4082 = vmatprep.subr.bf16.mxu0 0
      %4083 = vmatpush1.bf16.msra.mxu0 0
      %4084 = vmatprep.subr.bf16.mxu0 0
      %4085 = vmatpush1.bf16.msra.mxu0 0
      %4086 = vmatprep.subr.bf16.mxu0 0
      %4087 = vmatpush1.bf16.msra.mxu0 0
      %4088 = vmatprep.subr.bf16.mxu0 0
      %4089 = vmatpush1.bf16.msra.mxu0 0
      %4090 = vmatprep.subr.bf16.mxu0 0
      %4091 = vmatpush1.bf16.msra.mxu0 0
      %4092 = vmatprep.subr.bf16.mxu0 0
      %4093 = vmatpush1.bf16.msra.mxu0 0
      %4094 = vmatprep.subr.bf16.mxu0 0
      %4095 = vmatpush1.bf16.msra.mxu0 0
      %4096 = vmatprep.mubr.bf16.mxu0 0
      %4097 = vmatmul.mubr.bf16.gmra.mrb[0].mxu0 %v4013
      %v4098 = vpop.f32.mrb[0].mxu0
      %v4099 = vadd.f32 0.0, %v4098
      %v4100 = vpop.f32.mrb[0].mxu0
      %v4101 = vpop.f32.mrb[0].mxu0
      %v4102 = vadd.f32 0.0, %v4101
      %v4103 = vpop.f32.mrb[0].mxu0
      %4104 = vmatprep.mubr.bf16.mxu0 0
      %4105 = vmatmul.mubr.bf16.gmra.mrb[0].mxu0 %v4016
      %v4106 = vpop.f32.mrb[0].mxu0
      %v4107 = vadd.f32 0.0, %v4106
      %v4108 = vpop.f32.mrb[0].mxu0
      %v4109 = vpop.f32.mrb[0].mxu0
      %v4110 = vadd.f32 0.0, %v4109
      %v4111 = vpop.f32.mrb[0].mxu0
      %4112 = vmatprep.mubr.bf16.mxu0 0
      %4113 = vmatmul.mubr.bf16.gmra.mrb[0].mxu0 %v4019
      %v4114 = vpop.f32.mrb[0].mxu0
      %v4115 = vadd.f32 0.0, %v4114
      %v4116 = vpop.f32.mrb[0].mxu0
      %v4117 = vpop.f32.mrb[0].mxu0
      %v4118 = vadd.f32 0.0, %v4117
      %v4119 = vpop.f32.mrb[0].mxu0
      %4120 = vmatprep.mubr.bf16.mxu0 0
      %4121 = vmatmul.mubr.bf16.gmra.mrb[0].mxu0 %v4022
      %v4122 = vpop.f32.mrb[0].mxu0
      %v4123 = vadd.f32 0.0, %v4122
      %v4124 = vpop.f32.mrb[0].mxu0
      %v4125 = vpop.f32.mrb[0].mxu0
      %v4126 = vadd.f32 0.0, %v4125
      %v4127 = vpop.f32.mrb[0].mxu0
      %4128 = vmatprep.mubr.bf16.mxu0 0
      %4129 = vmatmul.mubr.bf16.gmra.mrb[0].mxu0 %v4025
      %v4130 = vpop.f32.mrb[0].mxu0
      %v4131 = vadd.f32 0.0, %v4130
      %v4132 = vpop.f32.mrb[0].mxu0
      %v4133 = vpop.f32.mrb[0].mxu0
      %v4134 = vadd.f32 0.0, %v4133
      %v4135 = vpop.f32.mrb[0].mxu0
      %4136 = vmatprep.mubr.bf16.mxu0 0
      %4137 = vmatmul.mubr.bf16.gmra.mrb[0].mxu0 %v4028
      %v4138 = vpop.f32.mrb[0].mxu0
      %v4139 = vadd.f32 0.0, %v4138
      %v4140 = vpop.f32.mrb[0].mxu0
      %v4141 = vpop.f32.mrb[0].mxu0
      %v4142 = vadd.f32 0.0, %v4141
      %v4143 = vpop.f32.mrb[0].mxu0
      %4144 = vmatprep.mubr.bf16.mxu0 0
      %4145 = vmatmul.mubr.bf16.gmra.mrb[0].mxu0 %v4031
      %v4146 = vpop.f32.mrb[0].mxu0
      %v4147 = vadd.f32 0.0, %v4146
      %v4148 = vpop.f32.mrb[0].mxu0
      %v4149 = vpop.f32.mrb[0].mxu0
      %v4150 = vadd.f32 0.0, %v4149
      %v4151 = vpop.f32.mrb[0].mxu0
      %4152 = vmatprep.mubr.bf16.mxu0 0
      %4153 = vmatmul.mubr.bf16.gmra.mrb[0].mxu0 %v4034
      %v4154 = vpop.f32.mrb[0].mxu0
      %v4155 = vadd.f32 0.0, %v4154
      %v4156 = vpop.f32.mrb[0].mxu0
      %v4157 = vpop.f32.mrb[0].mxu0
      %v4158 = vadd.f32 0.0, %v4157
      %v4159 = vpop.f32.mrb[0].mxu0
      %4160 = vmatprep.mubr.bf16.mxu0 0
      %4161 = vmatmul.mubr.bf16.gmra.mrb[0].mxu0 %v4037
      %v4162 = vpop.f32.mrb[0].mxu0
      %v4163 = vadd.f32 0.0, %v4162
      %v4164 = vpop.f32.mrb[0].mxu0
      %v4165 = vpop.f32.mrb[0].mxu0
      %v4166 = vadd.f32 0.0, %v4165
      %v4167 = vpop.f32.mrb[0].mxu0
      %4168 = vmatprep.mubr.bf16.mxu0 0
      %4169 = vmatmul.mubr.bf16.gmra.mrb[0].mxu0 %v4040
      %v4170 = vpop.f32.mrb[0].mxu0
      %v4171 = vadd.f32 0.0, %v4170
      %v4172 = vpop.f32.mrb[0].mxu0
      %v4173 = vpop.f32.mrb[0].mxu0
      %v4174 = vadd.f32 0.0, %v4173
      %v4175 = vpop.f32.mrb[0].mxu0
      %4176 = vmatprep.mubr.bf16.mxu0 0
      %4177 = vmatmul.mubr.bf16.gmra.mrb[0].mxu0 %v4043
      %v4178 = vpop.f32.mrb[0].mxu0
      %v4179 = vadd.f32 0.0, %v4178
      %v4180 = vpop.f32.mrb[0].mxu0
      %v4181 = vpop.f32.mrb[0].mxu0
      %v4182 = vadd.f32 0.0, %v4181
      %v4183 = vpop.f32.mrb[0].mxu0
      %4184 = vmatprep.mubr.bf16.mxu0 0
      %4185 = vmatmul.mubr.bf16.gmra.mrb[0].mxu0 %v4046
      %v4186 = vpop.f32.mrb[0].mxu0
      %v4187 = vadd.f32 0.0, %v4186
      %v4188 = vpop.f32.mrb[0].mxu0
      %v4189 = vpop.f32.mrb[0].mxu0
      %v4190 = vadd.f32 0.0, %v4189
      %v4191 = vpop.f32.mrb[0].mxu0
      %4192 = vmatprep.mubr.bf16.mxu0 0
      %4193 = vmatmul.mubr.bf16.gmra.mrb[0].mxu0 %v4049
      %v4194 = vpop.f32.mrb[0].mxu0
      %v4195 = vadd.f32 0.0, %v4194
      %v4196 = vpop.f32.mrb[0].mxu0
      %v4197 = vpop.f32.mrb[0].mxu0
      %v4198 = vadd.f32 0.0, %v4197
      %v4199 = vpop.f32.mrb[0].mxu0
      %4200 = vmatprep.mubr.bf16.mxu0 0
      %4201 = vmatmul.mubr.bf16.gmra.mrb[0].mxu0 %v4052
      %v4202 = vpop.f32.mrb[0].mxu0
      %v4203 = vadd.f32 0.0, %v4202
      %v4204 = vpop.f32.mrb[0].mxu0
      %v4205 = vpop.f32.mrb[0].mxu0
      %v4206 = vadd.f32 0.0, %v4205
      %v4207 = vpop.f32.mrb[0].mxu0
      %4208 = vmatprep.mubr.bf16.mxu0 0
      %4209 = vmatmul.mubr.bf16.gmra.mrb[0].mxu0 %v4055
      %v4210 = vpop.f32.mrb[0].mxu0
      %v4211 = vadd.f32 0.0, %v4210
      %v4212 = vpop.f32.mrb[0].mxu0
      %v4213 = vpop.f32.mrb[0].mxu0
      %v4214 = vadd.f32 0.0, %v4213
      %v4215 = vpop.f32.mrb[0].mxu0
      %4216 = vmatprep.mubr.bf16.mxu0 0
      %4217 = vmatmul.mubr.bf16.gmra.mrb[0].mxu0 %v4058
      %v4218 = vpop.f32.mrb[0].mxu0
      %v4219 = vadd.f32 0.0, %v4218
      %v4220 = vpop.f32.mrb[0].mxu0
      %v4221 = vpop.f32.mrb[0].mxu0
      %v4222 = vadd.f32 0.0, %v4221
      %v4223 = vpop.f32.mrb[0].mxu0
      %4224 = vdwg.mxu0
      %v4225 = vld [vmem:[%s2] sm:$0x1]
      %v4227 = vlaneseq
      %v4228 = vshrl.u32 %v4227, 7
      %v4229 = vsub.s32 0, %v4228
      %v4230 = vrot.slane %v4225, %v4229
      %v4232 = vmul.f32 %v4099, %v4230
      %v4233 = vmul.f32 %v4102, %v4230
      %v4234 = vmul.f32 %v4107, %v4230
      %v4235 = vmul.f32 %v4110, %v4230
      %v4236 = vmul.f32 %v4115, %v4230
      %v4237 = vmul.f32 %v4118, %v4230
      %v4238 = vmul.f32 %v4123, %v4230
      %v4239 = vmul.f32 %v4126, %v4230
      %v4240 = vmul.f32 %v4131, %v4230
      %v4241 = vmul.f32 %v4134, %v4230
      %v4242 = vmul.f32 %v4139, %v4230
      %v4243 = vmul.f32 %v4142, %v4230
      %v4244 = vmul.f32 %v4147, %v4230
      %v4245 = vmul.f32 %v4150, %v4230
      %v4246 = vmul.f32 %v4155, %v4230
      %v4247 = vmul.f32 %v4158, %v4230
      %v4248 = vmul.f32 %v4163, %v4230
      %v4249 = vmul.f32 %v4166, %v4230
      %v4250 = vmul.f32 %v4171, %v4230
      %v4251 = vmul.f32 %v4174, %v4230
      %v4252 = vmul.f32 %v4179, %v4230
      %v4253 = vmul.f32 %v4182, %v4230
      %v4254 = vmul.f32 %v4187, %v4230
      %v4255 = vmul.f32 %v4190, %v4230
      %v4256 = vmul.f32 %v4195, %v4230
      %v4257 = vmul.f32 %v4198, %v4230
      %v4258 = vmul.f32 %v4203, %v4230
      %v4259 = vmul.f32 %v4206, %v4230
      %v4260 = vmul.f32 %v4211, %v4230
      %v4261 = vmul.f32 %v4214, %v4230
      %v4262 = vmul.f32 %v4219, %v4230
      %v4263 = vmul.f32 %v4222, %v4230
      %v4264 = vld [vmem:[%s3] sm:$0x1]
      %v4266 = vlaneseq
      %v4267 = vshrl.u32 %v4266, 7
      %v4268 = vsub.s32 0, %v4267
      %v4269 = vrot.slane %v4264, %v4268
      %v4271 = vadd.f32 %v4232, %v4269
      %v4272 = vadd.f32 %v4233, %v4269
      %v4273 = vadd.f32 %v4234, %v4269
      %v4274 = vadd.f32 %v4235, %v4269
      %v4275 = vadd.f32 %v4236, %v4269
      %v4276 = vadd.f32 %v4237, %v4269
      %v4277 = vadd.f32 %v4238, %v4269
      %v4278 = vadd.f32 %v4239, %v4269
      %v4279 = vadd.f32 %v4240, %v4269
      %v4280 = vadd.f32 %v4241, %v4269
      %v4281 = vadd.f32 %v4242, %v4269
      %v4282 = vadd.f32 %v4243, %v4269
      %v4283 = vadd.f32 %v4244, %v4269
      %v4284 = vadd.f32 %v4245, %v4269
      %v4285 = vadd.f32 %v4246, %v4269
      %v4286 = vadd.f32 %v4247, %v4269
      %v4287 = vadd.f32 %v4248, %v4269
      %v4288 = vadd.f32 %v4249, %v4269
      %v4289 = vadd.f32 %v4250, %v4269
      %v4290 = vadd.f32 %v4251, %v4269
      %v4291 = vadd.f32 %v4252, %v4269
      %v4292 = vadd.f32 %v4253, %v4269
      %v4293 = vadd.f32 %v4254, %v4269
      %v4294 = vadd.f32 %v4255, %v4269
      %v4295 = vadd.f32 %v4256, %v4269
      %v4296 = vadd.f32 %v4257, %v4269
      %v4297 = vadd.f32 %v4258, %v4269
      %v4298 = vadd.f32 %v4259, %v4269
      %v4299 = vadd.f32 %v4260, %v4269
      %v4300 = vadd.f32 %v4261, %v4269
      %v4301 = vadd.f32 %v4262, %v4269
      %v4302 = vadd.f32 %v4263, %v4269
      %v4303 = vmax.f32 %v4271, 0.0
      %v4304 = vmax.f32 %v4272, 0.0
      %v4305 = vmax.f32 %v4273, 0.0
      %v4306 = vmax.f32 %v4274, 0.0
      %v4307 = vmax.f32 %v4275, 0.0
      %v4308 = vmax.f32 %v4276, 0.0
      %v4309 = vmax.f32 %v4277, 0.0
      %v4310 = vmax.f32 %v4278, 0.0
      %v4311 = vmax.f32 %v4279, 0.0
      %v4312 = vmax.f32 %v4280, 0.0
      %v4313 = vmax.f32 %v4281, 0.0
      %v4314 = vmax.f32 %v4282, 0.0
      %v4315 = vmax.f32 %v4283, 0.0
      %v4316 = vmax.f32 %v4284, 0.0
      %v4317 = vmax.f32 %v4285, 0.0
      %v4318 = vmax.f32 %v4286, 0.0
      %v4319 = vmax.f32 %v4287, 0.0
      %v4320 = vmax.f32 %v4288, 0.0
      %v4321 = vmax.f32 %v4289, 0.0
      %v4322 = vmax.f32 %v4290, 0.0
      %v4323 = vmax.f32 %v4291, 0.0
      %v4324 = vmax.f32 %v4292, 0.0
      %v4325 = vmax.f32 %v4293, 0.0
      %v4326 = vmax.f32 %v4294, 0.0
      %v4327 = vmax.f32 %v4295, 0.0
      %v4328 = vmax.f32 %v4296, 0.0
      %v4329 = vmax.f32 %v4297, 0.0
      %v4330 = vmax.f32 %v4298, 0.0
      %v4331 = vmax.f32 %v4299, 0.0
      %v4332 = vmax.f32 %v4300, 0.0
      %v4333 = vmax.f32 %v4301, 0.0
      %v4334 = vmax.f32 %v4302, 0.0
      %v4335 = vpack.c.bf16 %v4304, %v4303
      %v4336 = vpack.c.bf16 %v4306, %v4305
      %v4337 = vpack.c.bf16 %v4308, %v4307
      %v4338 = vpack.c.bf16 %v4310, %v4309
      %v4339 = vpack.c.bf16 %v4312, %v4311
      %v4340 = vpack.c.bf16 %v4314, %v4313
      %v4341 = vpack.c.bf16 %v4316, %v4315
      %v4342 = vpack.c.bf16 %v4318, %v4317
      %v4343 = vpack.c.bf16 %v4320, %v4319
      %v4344 = vpack.c.bf16 %v4322, %v4321
      %v4345 = vpack.c.bf16 %v4324, %v4323
      %v4346 = vpack.c.bf16 %v4326, %v4325
      %v4347 = vpack.c.bf16 %v4328, %v4327
      %v4348 = vpack.c.bf16 %v4330, %v4329
      %v4349 = vpack.c.bf16 %v4332, %v4331
      %v4350 = vpack.c.bf16 %v4334, %v4333
      %v4367 = vunpack.c.l.b16 %v4335
      %v4368 = vunpack.c.h.b16 %v4335
      %v4369 = vunpack.c.l.b16 %v4336
      %v4370 = vunpack.c.h.b16 %v4336
      %v4371 = vunpack.c.l.b16 %v4337
      %v4372 = vunpack.c.h.b16 %v4337
      %v4373 = vunpack.c.l.b16 %v4338
      %v4374 = vunpack.c.h.b16 %v4338
      %v4375 = vunpack.c.l.b16 %v4339
      %v4376 = vunpack.c.h.b16 %v4339
      %v4377 = vunpack.c.l.b16 %v4340
      %v4378 = vunpack.c.h.b16 %v4340
      %v4379 = vunpack.c.l.b16 %v4341
      %v4380 = vunpack.c.h.b16 %v4341
      %v4381 = vunpack.c.l.b16 %v4342
      %v4382 = vunpack.c.h.b16 %v4342
      %v4383 = vunpack.c.l.b16 %v4343
      %v4384 = vunpack.c.h.b16 %v4343
      %v4385 = vunpack.c.l.b16 %v4344
      %v4386 = vunpack.c.h.b16 %v4344
      %v4387 = vunpack.c.l.b16 %v4345
      %v4388 = vunpack.c.h.b16 %v4345
      %v4389 = vunpack.c.l.b16 %v4346
      %v4390 = vunpack.c.h.b16 %v4346
      %v4391 = vunpack.c.l.b16 %v4347
      %v4392 = vunpack.c.h.b16 %v4347
      %v4393 = vunpack.c.l.b16 %v4348
      %v4394 = vunpack.c.h.b16 %v4348
      %v4395 = vunpack.c.l.b16 %v4349
      %v4396 = vunpack.c.h.b16 %v4349
      %v4397 = vunpack.c.l.b16 %v4350
      %v4398 = vunpack.c.h.b16 %v4350
      %v4399 = vpack.c.b16 %v4367, %v4367
      %v4400 = vpack.c.b16 %v4368, %v4368
      %v4401 = vpack.c.b16 %v4369, %v4369
      %v4402 = vpack.c.b16 %v4370, %v4370
      %v4403 = vpack.c.b16 %v4371, %v4371
      %v4404 = vpack.c.b16 %v4372, %v4372
      %v4405 = vpack.c.b16 %v4373, %v4373
      %v4406 = vpack.c.b16 %v4374, %v4374
      %v4407 = vpack.c.b16 %v4375, %v4375
      %v4408 = vpack.c.b16 %v4376, %v4376
      %v4409 = vpack.c.b16 %v4377, %v4377
      %v4410 = vpack.c.b16 %v4378, %v4378
      %v4411 = vpack.c.b16 %v4379, %v4379
      %v4412 = vpack.c.b16 %v4380, %v4380
      %v4413 = vpack.c.b16 %v4381, %v4381
      %v4414 = vpack.c.b16 %v4382, %v4382
      %v4415 = vpack.c.b16 %v4383, %v4383
      %v4416 = vpack.c.b16 %v4384, %v4384
      %v4417 = vpack.c.b16 %v4385, %v4385
      %v4418 = vpack.c.b16 %v4386, %v4386
      %v4419 = vpack.c.b16 %v4387, %v4387
      %v4420 = vpack.c.b16 %v4388, %v4388
      %v4421 = vpack.c.b16 %v4389, %v4389
      %v4422 = vpack.c.b16 %v4390, %v4390
      %v4423 = vpack.c.b16 %v4391, %v4391
      %v4424 = vpack.c.b16 %v4392, %v4392
      %v4425 = vpack.c.b16 %v4393, %v4393
      %v4426 = vpack.c.b16 %v4394, %v4394
      %v4427 = vpack.c.b16 %v4395, %v4395
      %v4428 = vpack.c.b16 %v4396, %v4396
      %v4429 = vpack.c.b16 %v4397, %v4397
      %v4430 = vpack.c.b16 %v4398, %v4398
      %v4432 = vshrl.u32 %v4399, 16
      %v4434 = vrot.slane %v4432, 7
      %v4435 = vshll.u32 %v4399, 16
      %v4437 = vor.u32 %v4434, %v4435
      %v4438 = vrot.slane %v4434, 4
      %v4440 = vshrl.u32 %v4400, 16
      %v4442 = vrot.slane %v4440, 7
      %v4443 = vshll.u32 %v4400, 16
      %v4445 = vor.u32 %v4442, %v4443
      %v4446 = vsel %vm435, %v4438, %v4445
      %v4447 = vrot.slane %v4442, 4
      %v4449 = vshrl.u32 %v4401, 16
      %v4451 = vrot.slane %v4449, 7
      %v4452 = vshll.u32 %v4401, 16
      %v4454 = vor.u32 %v4451, %v4452
      %v4455 = vrot.slane %v4451, 4
      %v4457 = vshrl.u32 %v4402, 16
      %v4459 = vrot.slane %v4457, 7
      %v4460 = vshll.u32 %v4402, 16
      %v4462 = vor.u32 %v4459, %v4460
      %v4463 = vsel %vm435, %v4455, %v4462
      %v4464 = vrot.slane %v4459, 4
      %v4466 = vshrl.u32 %v4403, 16
      %v4468 = vrot.slane %v4466, 7
      %v4469 = vshll.u32 %v4403, 16
      %v4471 = vor.u32 %v4468, %v4469
      %v4472 = vrot.slane %v4468, 4
      %v4474 = vshrl.u32 %v4404, 16
      %v4476 = vrot.slane %v4474, 7
      %v4477 = vshll.u32 %v4404, 16
      %v4479 = vor.u32 %v4476, %v4477
      %v4480 = vsel %vm435, %v4472, %v4479
      %v4481 = vrot.slane %v4476, 4
      %v4483 = vshrl.u32 %v4405, 16
      %v4485 = vrot.slane %v4483, 7
      %v4486 = vshll.u32 %v4405, 16
      %v4488 = vor.u32 %v4485, %v4486
      %v4489 = vrot.slane %v4485, 4
      %v4491 = vshrl.u32 %v4406, 16
      %v4493 = vrot.slane %v4491, 7
      %v4494 = vshll.u32 %v4406, 16
      %v4496 = vor.u32 %v4493, %v4494
      %v4497 = vsel %vm435, %v4489, %v4496
      %v4498 = vrot.slane %v4493, 4
      %v4500 = vshrl.u32 %v4407, 16
      %v4502 = vrot.slane %v4500, 7
      %v4503 = vshll.u32 %v4407, 16
      %v4505 = vor.u32 %v4502, %v4503
      %v4506 = vrot.slane %v4502, 4
      %v4508 = vshrl.u32 %v4408, 16
      %v4510 = vrot.slane %v4508, 7
      %v4511 = vshll.u32 %v4408, 16
      %v4513 = vor.u32 %v4510, %v4511
      %v4514 = vsel %vm435, %v4506, %v4513
      %v4515 = vrot.slane %v4510, 4
      %v4517 = vshrl.u32 %v4409, 16
      %v4519 = vrot.slane %v4517, 7
      %v4520 = vshll.u32 %v4409, 16
      %v4522 = vor.u32 %v4519, %v4520
      %v4523 = vrot.slane %v4519, 4
      %v4525 = vshrl.u32 %v4410, 16
      %v4527 = vrot.slane %v4525, 7
      %v4528 = vshll.u32 %v4410, 16
      %v4530 = vor.u32 %v4527, %v4528
      %v4531 = vsel %vm435, %v4523, %v4530
      %v4532 = vrot.slane %v4527, 4
      %v4534 = vshrl.u32 %v4411, 16
      %v4536 = vrot.slane %v4534, 7
      %v4537 = vshll.u32 %v4411, 16
      %v4539 = vor.u32 %v4536, %v4537
      %v4540 = vrot.slane %v4536, 4
      %v4542 = vshrl.u32 %v4412, 16
      %v4544 = vrot.slane %v4542, 7
      %v4545 = vshll.u32 %v4412, 16
      %v4547 = vor.u32 %v4544, %v4545
      %v4548 = vsel %vm435, %v4540, %v4547
      %v4549 = vrot.slane %v4544, 4
      %v4551 = vshrl.u32 %v4413, 16
      %v4553 = vrot.slane %v4551, 7
      %v4554 = vshll.u32 %v4413, 16
      %v4556 = vor.u32 %v4553, %v4554
      %v4557 = vrot.slane %v4553, 4
      %v4559 = vshrl.u32 %v4414, 16
      %v4561 = vrot.slane %v4559, 7
      %v4562 = vshll.u32 %v4414, 16
      %v4564 = vor.u32 %v4561, %v4562
      %v4565 = vsel %vm435, %v4557, %v4564
      %v4566 = vrot.slane %v4561, 4
      %v4568 = vshrl.u32 %v4415, 16
      %v4570 = vrot.slane %v4568, 7
      %v4571 = vshll.u32 %v4415, 16
      %v4573 = vor.u32 %v4570, %v4571
      %v4574 = vrot.slane %v4570, 4
      %v4576 = vshrl.u32 %v4416, 16
      %v4578 = vrot.slane %v4576, 7
      %v4579 = vshll.u32 %v4416, 16
      %v4581 = vor.u32 %v4578, %v4579
      %v4582 = vsel %vm435, %v4574, %v4581
      %v4583 = vrot.slane %v4578, 4
      %v4585 = vshrl.u32 %v4417, 16
      %v4587 = vrot.slane %v4585, 7
      %v4588 = vshll.u32 %v4417, 16
      %v4590 = vor.u32 %v4587, %v4588
      %v4591 = vrot.slane %v4587, 4
      %v4593 = vshrl.u32 %v4418, 16
      %v4595 = vrot.slane %v4593, 7
      %v4596 = vshll.u32 %v4418, 16
      %v4598 = vor.u32 %v4595, %v4596
      %v4599 = vsel %vm435, %v4591, %v4598
      %v4600 = vrot.slane %v4595, 4
      %v4602 = vshrl.u32 %v4419, 16
      %v4604 = vrot.slane %v4602, 7
      %v4605 = vshll.u32 %v4419, 16
      %v4607 = vor.u32 %v4604, %v4605
      %v4608 = vrot.slane %v4604, 4
      %v4610 = vshrl.u32 %v4420, 16
      %v4612 = vrot.slane %v4610, 7
      %v4613 = vshll.u32 %v4420, 16
      %v4615 = vor.u32 %v4612, %v4613
      %v4616 = vsel %vm435, %v4608, %v4615
      %v4617 = vrot.slane %v4612, 4
      %v4619 = vshrl.u32 %v4421, 16
      %v4621 = vrot.slane %v4619, 7
      %v4622 = vshll.u32 %v4421, 16
      %v4624 = vor.u32 %v4621, %v4622
      %v4625 = vrot.slane %v4621, 4
      %v4627 = vshrl.u32 %v4422, 16
      %v4629 = vrot.slane %v4627, 7
      %v4630 = vshll.u32 %v4422, 16
      %v4632 = vor.u32 %v4629, %v4630
      %v4633 = vsel %vm435, %v4625, %v4632
      %v4634 = vrot.slane %v4629, 4
      %v4636 = vshrl.u32 %v4423, 16
      %v4638 = vrot.slane %v4636, 7
      %v4639 = vshll.u32 %v4423, 16
      %v4641 = vor.u32 %v4638, %v4639
      %v4642 = vrot.slane %v4638, 4
      %v4644 = vshrl.u32 %v4424, 16
      %v4646 = vrot.slane %v4644, 7
      %v4647 = vshll.u32 %v4424, 16
      %v4649 = vor.u32 %v4646, %v4647
      %v4650 = vsel %vm435, %v4642, %v4649
      %v4651 = vrot.slane %v4646, 4
      %v4653 = vshrl.u32 %v4425, 16
      %v4655 = vrot.slane %v4653, 7
      %v4656 = vshll.u32 %v4425, 16
      %v4658 = vor.u32 %v4655, %v4656
      %v4659 = vrot.slane %v4655, 4
      %v4661 = vshrl.u32 %v4426, 16
      %v4663 = vrot.slane %v4661, 7
      %v4664 = vshll.u32 %v4426, 16
      %v4666 = vor.u32 %v4663, %v4664
      %v4667 = vsel %vm435, %v4659, %v4666
      %v4668 = vrot.slane %v4663, 4
      %v4670 = vshrl.u32 %v4427, 16
      %v4672 = vrot.slane %v4670, 7
      %v4673 = vshll.u32 %v4427, 16
      %v4675 = vor.u32 %v4672, %v4673
      %v4676 = vrot.slane %v4672, 4
      %v4678 = vshrl.u32 %v4428, 16
      %v4680 = vrot.slane %v4678, 7
      %v4681 = vshll.u32 %v4428, 16
      %v4683 = vor.u32 %v4680, %v4681
      %v4684 = vsel %vm435, %v4676, %v4683
      %v4685 = vrot.slane %v4680, 4
      %v4687 = vshrl.u32 %v4429, 16
      %v4689 = vrot.slane %v4687, 7
      %v4690 = vshll.u32 %v4429, 16
      %v4692 = vor.u32 %v4689, %v4690
      %v4693 = vrot.slane %v4689, 4
      %v4695 = vshrl.u32 %v4430, 16
      %v4697 = vrot.slane %v4695, 7
      %v4698 = vshll.u32 %v4430, 16
      %v4700 = vor.u32 %v4697, %v4698
      %v4701 = vsel %vm435, %v4693, %v4700
      %v4702 = vrot.slane %v4697, 4
      %v4751 = vld [vmem:[%s756] sm:$0xf]
      %v4752 = vsel %vm758, %v4437, %v4751
      %4753 = vst [vmem:[%s756] sm:$0xf] %v4752
      %4754 = vst.msk [vmem:[%s756 + $0x4] sm:$0xf] %vm280, %v4446
      %v4755 = vld [vmem:[%s756 + $0x8] sm:$0x1]
      %v4756 = vsel %vm291, %v4447, %v4755
      %4757 = vst [vmem:[%s756 + $0x8] sm:$0x1] %v4756
      %v4758 = vld [vmem:[%s756 + $0xc] sm:$0xf]
      %v4759 = vsel %vm758, %v4454, %v4758
      %4760 = vst [vmem:[%s756 + $0xc] sm:$0xf] %v4759
      %4761 = vst.msk [vmem:[%s756 + $0x10] sm:$0xf] %vm280, %v4463
      %v4762 = vld [vmem:[%s756 + $0x14] sm:$0x1]
      %v4763 = vsel %vm291, %v4464, %v4762
      %4764 = vst [vmem:[%s756 + $0x14] sm:$0x1] %v4763
      %v4765 = vld [vmem:[%s756 + $0x18] sm:$0xf]
      %v4766 = vsel %vm758, %v4471, %v4765
      %4767 = vst [vmem:[%s756 + $0x18] sm:$0xf] %v4766
      %4768 = vst.msk [vmem:[%s756 + $0x1c] sm:$0xf] %vm280, %v4480
      %v4769 = vld [vmem:[%s756 + $0x20] sm:$0x1]
      %v4770 = vsel %vm291, %v4481, %v4769
      %4771 = vst [vmem:[%s756 + $0x20] sm:$0x1] %v4770
      %v4772 = vld [vmem:[%s756 + $0x24] sm:$0xf]
      %v4773 = vsel %vm758, %v4488, %v4772
      %4774 = vst [vmem:[%s756 + $0x24] sm:$0xf] %v4773
      %4775 = vst.msk [vmem:[%s756 + $0x28] sm:$0xf] %vm280, %v4497
      %v4776 = vld [vmem:[%s756 + $0x2c] sm:$0x1]
      %v4777 = vsel %vm291, %v4498, %v4776
      %4778 = vst [vmem:[%s756 + $0x2c] sm:$0x1] %v4777
      %v4779 = vld [vmem:[%s756 + $0x30] sm:$0xf]
      %v4780 = vsel %vm758, %v4505, %v4779
      %4781 = vst [vmem:[%s756 + $0x30] sm:$0xf] %v4780
      %4782 = vst.msk [vmem:[%s756 + $0x34] sm:$0xf] %vm280, %v4514
      %v4783 = vld [vmem:[%s756 + $0x38] sm:$0x1]
      %v4784 = vsel %vm291, %v4515, %v4783
      %4785 = vst [vmem:[%s756 + $0x38] sm:$0x1] %v4784
      %v4786 = vld [vmem:[%s756 + $0x3c] sm:$0xf]
      %v4787 = vsel %vm758, %v4522, %v4786
      %4788 = vst [vmem:[%s756 + $0x3c] sm:$0xf] %v4787
      %4789 = vst.msk [vmem:[%s756 + $0x40] sm:$0xf] %vm280, %v4531
      %v4790 = vld [vmem:[%s756 + $0x44] sm:$0x1]
      %v4791 = vsel %vm291, %v4532, %v4790
      %4792 = vst [vmem:[%s756 + $0x44] sm:$0x1] %v4791
      %v4793 = vld [vmem:[%s756 + $0x48] sm:$0xf]
      %v4794 = vsel %vm758, %v4539, %v4793
      %4795 = vst [vmem:[%s756 + $0x48] sm:$0xf] %v4794
      %4796 = vst.msk [vmem:[%s756 + $0x4c] sm:$0xf] %vm280, %v4548
      %v4797 = vld [vmem:[%s756 + $0x50] sm:$0x1]
      %v4798 = vsel %vm291, %v4549, %v4797
      %4799 = vst [vmem:[%s756 + $0x50] sm:$0x1] %v4798
      %v4800 = vld [vmem:[%s756 + $0x54] sm:$0xf]
      %v4801 = vsel %vm758, %v4556, %v4800
      %4802 = vst [vmem:[%s756 + $0x54] sm:$0xf] %v4801
      %4803 = vst.msk [vmem:[%s756 + $0x58] sm:$0xf] %vm280, %v4565
      %v4804 = vld [vmem:[%s756 + $0x5c] sm:$0x1]
      %v4805 = vsel %vm291, %v4566, %v4804
      %4806 = vst [vmem:[%s756 + $0x5c] sm:$0x1] %v4805
      %v4807 = vld [vmem:[%s756 + $0x60] sm:$0xf]
      %v4808 = vsel %vm758, %v4573, %v4807
      %4809 = vst [vmem:[%s756 + $0x60] sm:$0xf] %v4808
      %4810 = vst.msk [vmem:[%s756 + $0x64] sm:$0xf] %vm280, %v4582
      %v4811 = vld [vmem:[%s756 + $0x68] sm:$0x1]
      %v4812 = vsel %vm291, %v4583, %v4811
      %4813 = vst [vmem:[%s756 + $0x68] sm:$0x1] %v4812
      %v4814 = vld [vmem:[%s756 + $0x6c] sm:$0xf]
      %v4815 = vsel %vm758, %v4590, %v4814
      %4816 = vst [vmem:[%s756 + $0x6c] sm:$0xf] %v4815
      %4817 = vst.msk [vmem:[%s756 + $0x70] sm:$0xf] %vm280, %v4599
      %v4818 = vld [vmem:[%s756 + $0x74] sm:$0x1]
      %v4819 = vsel %vm291, %v4600, %v4818
      %4820 = vst [vmem:[%s756 + $0x74] sm:$0x1] %v4819
      %v4821 = vld [vmem:[%s756 + $0x78] sm:$0xf]
      %v4822 = vsel %vm758, %v4607, %v4821
      %4823 = vst [vmem:[%s756 + $0x78] sm:$0xf] %v4822
      %4824 = vst.msk [vmem:[%s756 + $0x7c] sm:$0xf] %vm280, %v4616
      %v4825 = vld [vmem:[%s756 + $0x80] sm:$0x1]
      %v4826 = vsel %vm291, %v4617, %v4825
      %4827 = vst [vmem:[%s756 + $0x80] sm:$0x1] %v4826
      %v4828 = vld [vmem:[%s756 + $0x84] sm:$0xf]
      %v4829 = vsel %vm758, %v4624, %v4828
      %4830 = vst [vmem:[%s756 + $0x84] sm:$0xf] %v4829
      %4831 = vst.msk [vmem:[%s756 + $0x88] sm:$0xf] %vm280, %v4633
      %v4832 = vld [vmem:[%s756 + $0x8c] sm:$0x1]
      %v4833 = vsel %vm291, %v4634, %v4832
      %4834 = vst [vmem:[%s756 + $0x8c] sm:$0x1] %v4833
      %v4835 = vld [vmem:[%s756 + $0x90] sm:$0xf]
      %v4836 = vsel %vm758, %v4641, %v4835
      %4837 = vst [vmem:[%s756 + $0x90] sm:$0xf] %v4836
      %4838 = vst.msk [vmem:[%s756 + $0x94] sm:$0xf] %vm280, %v4650
      %v4839 = vld [vmem:[%s756 + $0x98] sm:$0x1]
      %v4840 = vsel %vm291, %v4651, %v4839
      %4841 = vst [vmem:[%s756 + $0x98] sm:$0x1] %v4840
      %v4842 = vld [vmem:[%s756 + $0x9c] sm:$0xf]
      %v4843 = vsel %vm758, %v4658, %v4842
      %4844 = vst [vmem:[%s756 + $0x9c] sm:$0xf] %v4843
      %4845 = vst.msk [vmem:[%s756 + $0xa0] sm:$0xf] %vm280, %v4667
      %v4846 = vld [vmem:[%s756 + $0xa4] sm:$0x1]
      %v4847 = vsel %vm291, %v4668, %v4846
      %4848 = vst [vmem:[%s756 + $0xa4] sm:$0x1] %v4847
      %v4849 = vld [vmem:[%s756 + $0xa8] sm:$0xf]
      %v4850 = vsel %vm758, %v4675, %v4849
      %4851 = vst [vmem:[%s756 + $0xa8] sm:$0xf] %v4850
      %4852 = vst.msk [vmem:[%s756 + $0xac] sm:$0xf] %vm280, %v4684
      %v4853 = vld [vmem:[%s756 + $0xb0] sm:$0x1]
      %v4854 = vsel %vm291, %v4685, %v4853
      %4855 = vst [vmem:[%s756 + $0xb0] sm:$0x1] %v4854
      %v4856 = vld [vmem:[%s756 + $0xb4] sm:$0xf]
      %v4857 = vsel %vm758, %v4692, %v4856
      %4858 = vst [vmem:[%s756 + $0xb4] sm:$0xf] %v4857
      %4859 = vst.msk [vmem:[%s756 + $0xb8] sm:$0xf] %vm280, %v4701
      %v4860 = vld [vmem:[%s756 + $0xbc] sm:$0x1]
      %v4861 = vsel %vm291, %v4702, %v4860
      %4862 = vst [vmem:[%s756 + $0xbc] sm:$0x1] %v4861
      %v4863 = vld [vmem:[#allocation2] sm:$0xf]
      %v4864 = vld [vmem:[#allocation2 + $0x4] sm:$0xf]
      %v4865 = vld [vmem:[#allocation2 + $0xc] sm:$0xf]
      %v4866 = vld [vmem:[#allocation2 + $0x10] sm:$0xf]
      %v4867 = vld [vmem:[#allocation2 + $0x18] sm:$0xf]
      %v4868 = vld [vmem:[#allocation2 + $0x1c] sm:$0xf]
      %v4869 = vld [vmem:[#allocation2 + $0x24] sm:$0xf]
      %v4870 = vld [vmem:[#allocation2 + $0x28] sm:$0xf]
      %v4871 = vld [vmem:[#allocation2 + $0x30] sm:$0xf]
      %v4872 = vld [vmem:[#allocation2 + $0x34] sm:$0xf]
      %v4873 = vld [vmem:[#allocation2 + $0x3c] sm:$0xf]
      %v4874 = vld [vmem:[#allocation2 + $0x40] sm:$0xf]
      %v4875 = vld [vmem:[#allocation2 + $0x48] sm:$0xf]
      %v4876 = vld [vmem:[#allocation2 + $0x4c] sm:$0xf]
      %v4877 = vld [vmem:[#allocation2 + $0x54] sm:$0xf]
      %v4878 = vld [vmem:[#allocation2 + $0x58] sm:$0xf]
      %v4879 = vld [vmem:[#allocation2 + $0x60] sm:$0xf]
      %v4880 = vld [vmem:[#allocation2 + $0x64] sm:$0xf]
      %v4881 = vld [vmem:[#allocation2 + $0x6c] sm:$0xf]
      %v4882 = vld [vmem:[#allocation2 + $0x70] sm:$0xf]
      %v4883 = vld [vmem:[#allocation2 + $0x78] sm:$0xf]
      %v4884 = vld [vmem:[#allocation2 + $0x7c] sm:$0xf]
      %v4885 = vld [vmem:[#allocation2 + $0x84] sm:$0xf]
      %v4886 = vld [vmem:[#allocation2 + $0x88] sm:$0xf]
      %v4887 = vld [vmem:[#allocation2 + $0x90] sm:$0xf]
      %v4888 = vld [vmem:[#allocation2 + $0x94] sm:$0xf]
      %v4889 = vld [vmem:[#allocation2 + $0x9c] sm:$0xf]
      %v4890 = vld [vmem:[#allocation2 + $0xa0] sm:$0xf]
      %v4891 = vld [vmem:[#allocation2 + $0xa8] sm:$0xf]
      %v4892 = vld [vmem:[#allocation2 + $0xac] sm:$0xf]
      %v4893 = vld [vmem:[#allocation2 + $0xb4] sm:$0xf]
      %v4894 = vld [vmem:[#allocation2 + $0xb8] sm:$0xf]
      %v4927 = vunpack.c.l.b16 %v4863
      %v4928 = vunpack.c.l.b16 %v4864
      %v4929 = vunpack.c.l.b16 %v4865
      %v4930 = vunpack.c.l.b16 %v4866
      %v4931 = vunpack.c.l.b16 %v4867
      %v4932 = vunpack.c.l.b16 %v4868
      %v4933 = vunpack.c.l.b16 %v4869
      %v4934 = vunpack.c.l.b16 %v4870
      %v4935 = vunpack.c.l.b16 %v4871
      %v4936 = vunpack.c.l.b16 %v4872
      %v4937 = vunpack.c.l.b16 %v4873
      %v4938 = vunpack.c.l.b16 %v4874
      %v4939 = vunpack.c.l.b16 %v4875
      %v4940 = vunpack.c.l.b16 %v4876
      %v4941 = vunpack.c.l.b16 %v4877
      %v4942 = vunpack.c.l.b16 %v4878
      %v4943 = vunpack.c.l.b16 %v4879
      %v4944 = vunpack.c.l.b16 %v4880
      %v4945 = vunpack.c.l.b16 %v4881
      %v4946 = vunpack.c.l.b16 %v4882
      %v4947 = vunpack.c.l.b16 %v4883
      %v4948 = vunpack.c.l.b16 %v4884
      %v4949 = vunpack.c.l.b16 %v4885
      %v4950 = vunpack.c.l.b16 %v4886
      %v4951 = vunpack.c.l.b16 %v4887
      %v4952 = vunpack.c.l.b16 %v4888
      %v4953 = vunpack.c.l.b16 %v4889
      %v4954 = vunpack.c.l.b16 %v4890
      %v4955 = vunpack.c.l.b16 %v4891
      %v4956 = vunpack.c.l.b16 %v4892
      %v4957 = vunpack.c.l.b16 %v4893
      %v4958 = vunpack.c.l.b16 %v4894
      %v4959 = vpack.c.b16 %v4928, %v4927
      %v4960 = vpack.c.b16 %v4930, %v4929
      %v4961 = vpack.c.b16 %v4932, %v4931
      %v4962 = vpack.c.b16 %v4934, %v4933
      %v4963 = vpack.c.b16 %v4936, %v4935
      %v4964 = vpack.c.b16 %v4938, %v4937
      %v4965 = vpack.c.b16 %v4940, %v4939
      %v4966 = vpack.c.b16 %v4942, %v4941
      %v4967 = vpack.c.b16 %v4944, %v4943
      %v4968 = vpack.c.b16 %v4946, %v4945
      %v4969 = vpack.c.b16 %v4948, %v4947
      %v4970 = vpack.c.b16 %v4950, %v4949
      %v4971 = vpack.c.b16 %v4952, %v4951
      %v4972 = vpack.c.b16 %v4954, %v4953
      %v4973 = vpack.c.b16 %v4956, %v4955
      %v4974 = vpack.c.b16 %v4958, %v4957
      %4991 = vst.msk [vmem:[#allocation3] sm:$0xff] %vm999, %v4959
      %4992 = vst.msk [vmem:[#allocation3 + $0x8] sm:$0xff] %vm999, %v4960
      %4993 = vst.msk [vmem:[#allocation3 + $0x10] sm:$0xff] %vm999, %v4961
      %4994 = vst.msk [vmem:[#allocation3 + $0x18] sm:$0xff] %vm999, %v4962
      %4995 = vst.msk [vmem:[#allocation3 + $0x20] sm:$0xff] %vm999, %v4963
      %4996 = vst.msk [vmem:[#allocation3 + $0x28] sm:$0xff] %vm999, %v4964
      %4997 = vst.msk [vmem:[#allocation3 + $0x30] sm:$0xff] %vm999, %v4965
      %4998 = vst.msk [vmem:[#allocation3 + $0x38] sm:$0xff] %vm999, %v4966
      %4999 = vst.msk [vmem:[#allocation3 + $0x40] sm:$0xff] %vm999, %v4967
      %5000 = vst.msk [vmem:[#allocation3 + $0x48] sm:$0xff] %vm999, %v4968
      %5001 = vst.msk [vmem:[#allocation3 + $0x50] sm:$0xff] %vm999, %v4969
      %5002 = vst.msk [vmem:[#allocation3 + $0x58] sm:$0xff] %vm999, %v4970
      %5003 = vst.msk [vmem:[#allocation3 + $0x60] sm:$0xff] %vm999, %v4971
      %5004 = vst.msk [vmem:[#allocation3 + $0x68] sm:$0xff] %vm999, %v4972
      %5005 = vst.msk [vmem:[#allocation3 + $0x70] sm:$0xff] %vm999, %v4973
      %5006 = vst.msk [vmem:[#allocation3 + $0x78] sm:$0xff] %vm999, %v4974
      %v5007 = vld [vmem:[#allocation2] sm:$0xf]
      %v5008 = vld [vmem:[#allocation2 + $0x4] sm:$0xf]
      %v5009 = vld [vmem:[#allocation2 + $0x8] sm:$0x1]
      %v5010 = vld [vmem:[#allocation2 + $0xc] sm:$0xf]
      %v5011 = vld [vmem:[#allocation2 + $0x10] sm:$0xf]
      %v5012 = vld [vmem:[#allocation2 + $0x14] sm:$0x1]
      %v5013 = vld [vmem:[#allocation2 + $0x18] sm:$0xf]
      %v5014 = vld [vmem:[#allocation2 + $0x1c] sm:$0xf]
      %v5015 = vld [vmem:[#allocation2 + $0x20] sm:$0x1]
      %v5016 = vld [vmem:[#allocation2 + $0x24] sm:$0xf]
      %v5017 = vld [vmem:[#allocation2 + $0x28] sm:$0xf]
      %v5018 = vld [vmem:[#allocation2 + $0x2c] sm:$0x1]
      %v5019 = vld [vmem:[#allocation2 + $0x30] sm:$0xf]
      %v5020 = vld [vmem:[#allocation2 + $0x34] sm:$0xf]
      %v5021 = vld [vmem:[#allocation2 + $0x38] sm:$0x1]
      %v5022 = vld [vmem:[#allocation2 + $0x3c] sm:$0xf]
      %v5023 = vld [vmem:[#allocation2 + $0x40] sm:$0xf]
      %v5024 = vld [vmem:[#allocation2 + $0x44] sm:$0x1]
      %v5025 = vld [vmem:[#allocation2 + $0x48] sm:$0xf]
      %v5026 = vld [vmem:[#allocation2 + $0x4c] sm:$0xf]
      %v5027 = vld [vmem:[#allocation2 + $0x50] sm:$0x1]
      %v5028 = vld [vmem:[#allocation2 + $0x54] sm:$0xf]
      %v5029 = vld [vmem:[#allocation2 + $0x58] sm:$0xf]
      %v5030 = vld [vmem:[#allocation2 + $0x5c] sm:$0x1]
      %v5031 = vld [vmem:[#allocation2 + $0x60] sm:$0xf]
      %v5032 = vld [vmem:[#allocation2 + $0x64] sm:$0xf]
      %v5033 = vld [vmem:[#allocation2 + $0x68] sm:$0x1]
      %v5034 = vld [vmem:[#allocation2 + $0x6c] sm:$0xf]
      %v5035 = vld [vmem:[#allocation2 + $0x70] sm:$0xf]
      %v5036 = vld [vmem:[#allocation2 + $0x74] sm:$0x1]
      %v5037 = vld [vmem:[#allocation2 + $0x78] sm:$0xf]
      %v5038 = vld [vmem:[#allocation2 + $0x7c] sm:$0xf]
      %v5039 = vld [vmem:[#allocation2 + $0x80] sm:$0x1]
      %v5040 = vld [vmem:[#allocation2 + $0x84] sm:$0xf]
      %v5041 = vld [vmem:[#allocation2 + $0x88] sm:$0xf]
      %v5042 = vld [vmem:[#allocation2 + $0x8c] sm:$0x1]
      %v5043 = vld [vmem:[#allocation2 + $0x90] sm:$0xf]
      %v5044 = vld [vmem:[#allocation2 + $0x94] sm:$0xf]
      %v5045 = vld [vmem:[#allocation2 + $0x98] sm:$0x1]
      %v5046 = vld [vmem:[#allocation2 + $0x9c] sm:$0xf]
      %v5047 = vld [vmem:[#allocation2 + $0xa0] sm:$0xf]
      %v5048 = vld [vmem:[#allocation2 + $0xa4] sm:$0x1]
      %v5049 = vld [vmem:[#allocation2 + $0xa8] sm:$0xf]
      %v5050 = vld [vmem:[#allocation2 + $0xac] sm:$0xf]
      %v5051 = vld [vmem:[#allocation2 + $0xb0] sm:$0x1]
      %v5052 = vld [vmem:[#allocation2 + $0xb4] sm:$0xf]
      %v5053 = vld [vmem:[#allocation2 + $0xb8] sm:$0xf]
      %v5054 = vld [vmem:[#allocation2 + $0xbc] sm:$0x1]
      %v5056 = vshrl.u32 %v5007, 16
      %v5058 = vrot.slane %v5056, 4
      %v5059 = vshll.u32 %v5007, 16
      %v5061 = vrot.slane %v5059, 5
      %v5062 = vor.u32 %v5058, %v5061
      %v5063 = vrot.slane %v5062, 4
      %v5065 = vshll.u32 %v5008, 16
      %v5067 = vrot.slane %v5065, 5
      %v5068 = vsel %vm1066, %v5063, %v5067
      %v5069 = vshrl.u32 %v5008, 16
      %v5071 = vrot.slane %v5069, 4
      %v5072 = vor.u32 %v5071, %v5067
      %v5073 = vrot.slane %v5072, 4
      %v5075 = vshll.u32 %v5009, 16
      %v5077 = vrot.slane %v5075, 5
      %v5078 = vsel %vm1066, %v5073, %v5077
      %v5080 = vshrl.u32 %v5010, 16
      %v5082 = vrot.slane %v5080, 4
      %v5083 = vshll.u32 %v5010, 16
      %v5085 = vrot.slane %v5083, 5
      %v5086 = vor.u32 %v5082, %v5085
      %v5087 = vrot.slane %v5086, 4
      %v5089 = vshll.u32 %v5011, 16
      %v5091 = vrot.slane %v5089, 5
      %v5092 = vsel %vm1066, %v5087, %v5091
      %v5093 = vshrl.u32 %v5011, 16
      %v5095 = vrot.slane %v5093, 4
      %v5096 = vor.u32 %v5095, %v5091
      %v5097 = vrot.slane %v5096, 4
      %v5099 = vshll.u32 %v5012, 16
      %v5101 = vrot.slane %v5099, 5
      %v5102 = vsel %vm1066, %v5097, %v5101
      %v5104 = vshrl.u32 %v5013, 16
      %v5106 = vrot.slane %v5104, 4
      %v5107 = vshll.u32 %v5013, 16
      %v5109 = vrot.slane %v5107, 5
      %v5110 = vor.u32 %v5106, %v5109
      %v5111 = vrot.slane %v5110, 4
      %v5113 = vshll.u32 %v5014, 16
      %v5115 = vrot.slane %v5113, 5
      %v5116 = vsel %vm1066, %v5111, %v5115
      %v5117 = vshrl.u32 %v5014, 16
      %v5119 = vrot.slane %v5117, 4
      %v5120 = vor.u32 %v5119, %v5115
      %v5121 = vrot.slane %v5120, 4
      %v5123 = vshll.u32 %v5015, 16
      %v5125 = vrot.slane %v5123, 5
      %v5126 = vsel %vm1066, %v5121, %v5125
      %v5128 = vshrl.u32 %v5016, 16
      %v5130 = vrot.slane %v5128, 4
      %v5131 = vshll.u32 %v5016, 16
      %v5133 = vrot.slane %v5131, 5
      %v5134 = vor.u32 %v5130, %v5133
      %v5135 = vrot.slane %v5134, 4
      %v5137 = vshll.u32 %v5017, 16
      %v5139 = vrot.slane %v5137, 5
      %v5140 = vsel %vm1066, %v5135, %v5139
      %v5141 = vshrl.u32 %v5017, 16
      %v5143 = vrot.slane %v5141, 4
      %v5144 = vor.u32 %v5143, %v5139
      %v5145 = vrot.slane %v5144, 4
      %v5147 = vshll.u32 %v5018, 16
      %v5149 = vrot.slane %v5147, 5
      %v5150 = vsel %vm1066, %v5145, %v5149
      %v5152 = vshrl.u32 %v5019, 16
      %v5154 = vrot.slane %v5152, 4
      %v5155 = vshll.u32 %v5019, 16
      %v5157 = vrot.slane %v5155, 5
      %v5158 = vor.u32 %v5154, %v5157
      %v5159 = vrot.slane %v5158, 4
      %v5161 = vshll.u32 %v5020, 16
      %v5163 = vrot.slane %v5161, 5
      %v5164 = vsel %vm1066, %v5159, %v5163
      %v5165 = vshrl.u32 %v5020, 16
      %v5167 = vrot.slane %v5165, 4
      %v5168 = vor.u32 %v5167, %v5163
      %v5169 = vrot.slane %v5168, 4
      %v5171 = vshll.u32 %v5021, 16
      %v5173 = vrot.slane %v5171, 5
      %v5174 = vsel %vm1066, %v5169, %v5173
      %v5176 = vshrl.u32 %v5022, 16
      %v5178 = vrot.slane %v5176, 4
      %v5179 = vshll.u32 %v5022, 16
      %v5181 = vrot.slane %v5179, 5
      %v5182 = vor.u32 %v5178, %v5181
      %v5183 = vrot.slane %v5182, 4
      %v5185 = vshll.u32 %v5023, 16
      %v5187 = vrot.slane %v5185, 5
      %v5188 = vsel %vm1066, %v5183, %v5187
      %v5189 = vshrl.u32 %v5023, 16
      %v5191 = vrot.slane %v5189, 4
      %v5192 = vor.u32 %v5191, %v5187
      %v5193 = vrot.slane %v5192, 4
      %v5195 = vshll.u32 %v5024, 16
      %v5197 = vrot.slane %v5195, 5
      %v5198 = vsel %vm1066, %v5193, %v5197
      %v5200 = vshrl.u32 %v5025, 16
      %v5202 = vrot.slane %v5200, 4
      %v5203 = vshll.u32 %v5025, 16
      %v5205 = vrot.slane %v5203, 5
      %v5206 = vor.u32 %v5202, %v5205
      %v5207 = vrot.slane %v5206, 4
      %v5209 = vshll.u32 %v5026, 16
      %v5211 = vrot.slane %v5209, 5
      %v5212 = vsel %vm1066, %v5207, %v5211
      %v5213 = vshrl.u32 %v5026, 16
      %v5215 = vrot.slane %v5213, 4
      %v5216 = vor.u32 %v5215, %v5211
      %v5217 = vrot.slane %v5216, 4
      %v5219 = vshll.u32 %v5027, 16
      %v5221 = vrot.slane %v5219, 5
      %v5222 = vsel %vm1066, %v5217, %v5221
      %v5224 = vshrl.u32 %v5028, 16
      %v5226 = vrot.slane %v5224, 4
      %v5227 = vshll.u32 %v5028, 16
      %v5229 = vrot.slane %v5227, 5
      %v5230 = vor.u32 %v5226, %v5229
      %v5231 = vrot.slane %v5230, 4
      %v5233 = vshll.u32 %v5029, 16
      %v5235 = vrot.slane %v5233, 5
      %v5236 = vsel %vm1066, %v5231, %v5235
      %v5237 = vshrl.u32 %v5029, 16
      %v5239 = vrot.slane %v5237, 4
      %v5240 = vor.u32 %v5239, %v5235
      %v5241 = vrot.slane %v5240, 4
      %v5243 = vshll.u32 %v5030, 16
      %v5245 = vrot.slane %v5243, 5
      %v5246 = vsel %vm1066, %v5241, %v5245
      %v5248 = vshrl.u32 %v5031, 16
      %v5250 = vrot.slane %v5248, 4
      %v5251 = vshll.u32 %v5031, 16
      %v5253 = vrot.slane %v5251, 5
      %v5254 = vor.u32 %v5250, %v5253
      %v5255 = vrot.slane %v5254, 4
      %v5257 = vshll.u32 %v5032, 16
      %v5259 = vrot.slane %v5257, 5
      %v5260 = vsel %vm1066, %v5255, %v5259
      %v5261 = vshrl.u32 %v5032, 16
      %v5263 = vrot.slane %v5261, 4
      %v5264 = vor.u32 %v5263, %v5259
      %v5265 = vrot.slane %v5264, 4
      %v5267 = vshll.u32 %v5033, 16
      %v5269 = vrot.slane %v5267, 5
      %v5270 = vsel %vm1066, %v5265, %v5269
      %v5272 = vshrl.u32 %v5034, 16
      %v5274 = vrot.slane %v5272, 4
      %v5275 = vshll.u32 %v5034, 16
      %v5277 = vrot.slane %v5275, 5
      %v5278 = vor.u32 %v5274, %v5277
      %v5279 = vrot.slane %v5278, 4
      %v5281 = vshll.u32 %v5035, 16
      %v5283 = vrot.slane %v5281, 5
      %v5284 = vsel %vm1066, %v5279, %v5283
      %v5285 = vshrl.u32 %v5035, 16
      %v5287 = vrot.slane %v5285, 4
      %v5288 = vor.u32 %v5287, %v5283
      %v5289 = vrot.slane %v5288, 4
      %v5291 = vshll.u32 %v5036, 16
      %v5293 = vrot.slane %v5291, 5
      %v5294 = vsel %vm1066, %v5289, %v5293
      %v5296 = vshrl.u32 %v5037, 16
      %v5298 = vrot.slane %v5296, 4
      %v5299 = vshll.u32 %v5037, 16
      %v5301 = vrot.slane %v5299, 5
      %v5302 = vor.u32 %v5298, %v5301
      %v5303 = vrot.slane %v5302, 4
      %v5305 = vshll.u32 %v5038, 16
      %v5307 = vrot.slane %v5305, 5
      %v5308 = vsel %vm1066, %v5303, %v5307
      %v5309 = vshrl.u32 %v5038, 16
      %v5311 = vrot.slane %v5309, 4
      %v5312 = vor.u32 %v5311, %v5307
      %v5313 = vrot.slane %v5312, 4
      %v5315 = vshll.u32 %v5039, 16
      %v5317 = vrot.slane %v5315, 5
      %v5318 = vsel %vm1066, %v5313, %v5317
      %v5320 = vshrl.u32 %v5040, 16
      %v5322 = vrot.slane %v5320, 4
      %v5323 = vshll.u32 %v5040, 16
      %v5325 = vrot.slane %v5323, 5
      %v5326 = vor.u32 %v5322, %v5325
      %v5327 = vrot.slane %v5326, 4
      %v5329 = vshll.u32 %v5041, 16
      %v5331 = vrot.slane %v5329, 5
      %v5332 = vsel %vm1066, %v5327, %v5331
      %v5333 = vshrl.u32 %v5041, 16
      %v5335 = vrot.slane %v5333, 4
      %v5336 = vor.u32 %v5335, %v5331
      %v5337 = vrot.slane %v5336, 4
      %v5339 = vshll.u32 %v5042, 16
      %v5341 = vrot.slane %v5339, 5
      %v5342 = vsel %vm1066, %v5337, %v5341
      %v5344 = vshrl.u32 %v5043, 16
      %v5346 = vrot.slane %v5344, 4
      %v5347 = vshll.u32 %v5043, 16
      %v5349 = vrot.slane %v5347, 5
      %v5350 = vor.u32 %v5346, %v5349
      %v5351 = vrot.slane %v5350, 4
      %v5353 = vshll.u32 %v5044, 16
      %v5355 = vrot.slane %v5353, 5
      %v5356 = vsel %vm1066, %v5351, %v5355
      %v5357 = vshrl.u32 %v5044, 16
      %v5359 = vrot.slane %v5357, 4
      %v5360 = vor.u32 %v5359, %v5355
      %v5361 = vrot.slane %v5360, 4
      %v5363 = vshll.u32 %v5045, 16
      %v5365 = vrot.slane %v5363, 5
      %v5366 = vsel %vm1066, %v5361, %v5365
      %v5368 = vshrl.u32 %v5046, 16
      %v5370 = vrot.slane %v5368, 4
      %v5371 = vshll.u32 %v5046, 16
      %v5373 = vrot.slane %v5371, 5
      %v5374 = vor.u32 %v5370, %v5373
      %v5375 = vrot.slane %v5374, 4
      %v5377 = vshll.u32 %v5047, 16
      %v5379 = vrot.slane %v5377, 5
      %v5380 = vsel %vm1066, %v5375, %v5379
      %v5381 = vshrl.u32 %v5047, 16
      %v5383 = vrot.slane %v5381, 4
      %v5384 = vor.u32 %v5383, %v5379
      %v5385 = vrot.slane %v5384, 4
      %v5387 = vshll.u32 %v5048, 16
      %v5389 = vrot.slane %v5387, 5
      %v5390 = vsel %vm1066, %v5385, %v5389
      %v5392 = vshrl.u32 %v5049, 16
      %v5394 = vrot.slane %v5392, 4
      %v5395 = vshll.u32 %v5049, 16
      %v5397 = vrot.slane %v5395, 5
      %v5398 = vor.u32 %v5394, %v5397
      %v5399 = vrot.slane %v5398, 4
      %v5401 = vshll.u32 %v5050, 16
      %v5403 = vrot.slane %v5401, 5
      %v5404 = vsel %vm1066, %v5399, %v5403
      %v5405 = vshrl.u32 %v5050, 16
      %v5407 = vrot.slane %v5405, 4
      %v5408 = vor.u32 %v5407, %v5403
      %v5409 = vrot.slane %v5408, 4
      %v5411 = vshll.u32 %v5051, 16
      %v5413 = vrot.slane %v5411, 5
      %v5414 = vsel %vm1066, %v5409, %v5413
      %v5416 = vshrl.u32 %v5052, 16
      %v5418 = vrot.slane %v5416, 4
      %v5419 = vshll.u32 %v5052, 16
      %v5421 = vrot.slane %v5419, 5
      %v5422 = vor.u32 %v5418, %v5421
      %v5423 = vrot.slane %v5422, 4
      %v5425 = vshll.u32 %v5053, 16
      %v5427 = vrot.slane %v5425, 5
      %v5428 = vsel %vm1066, %v5423, %v5427
      %v5429 = vshrl.u32 %v5053, 16
      %v5431 = vrot.slane %v5429, 4
      %v5432 = vor.u32 %v5431, %v5427
      %v5433 = vrot.slane %v5432, 4
      %v5435 = vshll.u32 %v5054, 16
      %v5437 = vrot.slane %v5435, 5
      %v5438 = vsel %vm1066, %v5433, %v5437
      %v5439 = vunpack.c.l.b16 %v5068
      %v5440 = vunpack.c.l.b16 %v5078
      %v5441 = vunpack.c.l.b16 %v5092
      %v5442 = vunpack.c.l.b16 %v5102
      %v5443 = vunpack.c.l.b16 %v5116
      %v5444 = vunpack.c.l.b16 %v5126
      %v5445 = vunpack.c.l.b16 %v5140
      %v5446 = vunpack.c.l.b16 %v5150
      %v5447 = vunpack.c.l.b16 %v5164
      %v5448 = vunpack.c.l.b16 %v5174
      %v5449 = vunpack.c.l.b16 %v5188
      %v5450 = vunpack.c.l.b16 %v5198
      %v5451 = vunpack.c.l.b16 %v5212
      %v5452 = vunpack.c.l.b16 %v5222
      %v5453 = vunpack.c.l.b16 %v5236
      %v5454 = vunpack.c.l.b16 %v5246
      %v5455 = vunpack.c.l.b16 %v5260
      %v5456 = vunpack.c.l.b16 %v5270
      %v5457 = vunpack.c.l.b16 %v5284
      %v5458 = vunpack.c.l.b16 %v5294
      %v5459 = vunpack.c.l.b16 %v5308
      %v5460 = vunpack.c.l.b16 %v5318
      %v5461 = vunpack.c.l.b16 %v5332
      %v5462 = vunpack.c.l.b16 %v5342
      %v5463 = vunpack.c.l.b16 %v5356
      %v5464 = vunpack.c.l.b16 %v5366
      %v5465 = vunpack.c.l.b16 %v5380
      %v5466 = vunpack.c.l.b16 %v5390
      %v5467 = vunpack.c.l.b16 %v5404
      %v5468 = vunpack.c.l.b16 %v5414
      %v5469 = vunpack.c.l.b16 %v5428
      %v5470 = vunpack.c.l.b16 %v5438
      %v5471 = vpack.c.b16 %v5440, %v5439
      %v5472 = vpack.c.b16 %v5442, %v5441
      %v5473 = vpack.c.b16 %v5444, %v5443
      %v5474 = vpack.c.b16 %v5446, %v5445
      %v5475 = vpack.c.b16 %v5448, %v5447
      %v5476 = vpack.c.b16 %v5450, %v5449
      %v5477 = vpack.c.b16 %v5452, %v5451
      %v5478 = vpack.c.b16 %v5454, %v5453
      %v5479 = vpack.c.b16 %v5456, %v5455
      %v5480 = vpack.c.b16 %v5458, %v5457
      %v5481 = vpack.c.b16 %v5460, %v5459
      %v5482 = vpack.c.b16 %v5462, %v5461
      %v5483 = vpack.c.b16 %v5464, %v5463
      %v5484 = vpack.c.b16 %v5466, %v5465
      %v5485 = vpack.c.b16 %v5468, %v5467
      %v5486 = vpack.c.b16 %v5470, %v5469
      %5487 = vrot.lane.b32.xlu0 %v5471, 4
      %v5488 = vpop.permute.xlu0 %5487
      %5489 = vrot.lane.b32.xlu0 %v5472, 4
      %v5490 = vpop.permute.xlu0 %5489
      %5491 = vrot.lane.b32.xlu0 %v5473, 4
      %v5492 = vpop.permute.xlu0 %5491
      %5493 = vrot.lane.b32.xlu0 %v5474, 4
      %v5494 = vpop.permute.xlu0 %5493
      %5495 = vrot.lane.b32.xlu0 %v5475, 4
      %v5496 = vpop.permute.xlu0 %5495
      %5497 = vrot.lane.b32.xlu0 %v5476, 4
      %v5498 = vpop.permute.xlu0 %5497
      %5499 = vrot.lane.b32.xlu0 %v5477, 4
      %v5500 = vpop.permute.xlu0 %5499
      %5501 = vrot.lane.b32.xlu0 %v5478, 4
      %v5502 = vpop.permute.xlu0 %5501
      %5503 = vrot.lane.b32.xlu0 %v5479, 4
      %v5504 = vpop.permute.xlu0 %5503
      %5505 = vrot.lane.b32.xlu0 %v5480, 4
      %v5506 = vpop.permute.xlu0 %5505
      %5507 = vrot.lane.b32.xlu0 %v5481, 4
      %v5508 = vpop.permute.xlu0 %5507
      %5509 = vrot.lane.b32.xlu0 %v5482, 4
      %v5510 = vpop.permute.xlu0 %5509
      %5511 = vrot.lane.b32.xlu0 %v5483, 4
      %v5512 = vpop.permute.xlu0 %5511
      %5513 = vrot.lane.b32.xlu0 %v5484, 4
      %v5514 = vpop.permute.xlu0 %5513
      %5515 = vrot.lane.b32.xlu0 %v5485, 4
      %v5516 = vpop.permute.xlu0 %5515
      %5517 = vrot.lane.b32.xlu0 %v5486, 4
      %v5518 = vpop.permute.xlu0 %5517
      %5535 = vst.msk [vmem:[#allocation3] sm:$0xff] %vm1547, %v5488
      %5536 = vst.msk [vmem:[#allocation3 + $0x8] sm:$0xff] %vm1547, %v5490
      %5537 = vst.msk [vmem:[#allocation3 + $0x10] sm:$0xff] %vm1547, %v5492
      %5538 = vst.msk [vmem:[#allocation3 + $0x18] sm:$0xff] %vm1547, %v5494
      %5539 = vst.msk [vmem:[#allocation3 + $0x20] sm:$0xff] %vm1547, %v5496
      %5540 = vst.msk [vmem:[#allocation3 + $0x28] sm:$0xff] %vm1547, %v5498
      %5541 = vst.msk [vmem:[#allocation3 + $0x30] sm:$0xff] %vm1547, %v5500
      %5542 = vst.msk [vmem:[#allocation3 + $0x38] sm:$0xff] %vm1547, %v5502
      %5543 = vst.msk [vmem:[#allocation3 + $0x40] sm:$0xff] %vm1547, %v5504
      %5544 = vst.msk [vmem:[#allocation3 + $0x48] sm:$0xff] %vm1547, %v5506
      %5545 = vst.msk [vmem:[#allocation3 + $0x50] sm:$0xff] %vm1547, %v5508
      %5546 = vst.msk [vmem:[#allocation3 + $0x58] sm:$0xff] %vm1547, %v5510
      %5547 = vst.msk [vmem:[#allocation3 + $0x60] sm:$0xff] %vm1547, %v5512
      %5548 = vst.msk [vmem:[#allocation3 + $0x68] sm:$0xff] %vm1547, %v5514
      %5549 = vst.msk [vmem:[#allocation3 + $0x70] sm:$0xff] %vm1547, %v5516
      %5550 = vst.msk [vmem:[#allocation3 + $0x78] sm:$0xff] %vm1547, %v5518
      %v5551 = vld [vmem:[#allocation2] sm:$0xe]
      %v5552 = vld [vmem:[#allocation2 + $0x4] sm:$0xf]
      %v5553 = vld [vmem:[#allocation2 + $0x8] sm:$0x1]
      %v5554 = vld [vmem:[#allocation2 + $0xc] sm:$0xe]
      %v5555 = vld [vmem:[#allocation2 + $0x10] sm:$0xf]
      %v5556 = vld [vmem:[#allocation2 + $0x14] sm:$0x1]
      %v5557 = vld [vmem:[#allocation2 + $0x18] sm:$0xe]
      %v5558 = vld [vmem:[#allocation2 + $0x1c] sm:$0xf]
      %v5559 = vld [vmem:[#allocation2 + $0x20] sm:$0x1]
      %v5560 = vld [vmem:[#allocation2 + $0x24] sm:$0xe]
      %v5561 = vld [vmem:[#allocation2 + $0x28] sm:$0xf]
      %v5562 = vld [vmem:[#allocation2 + $0x2c] sm:$0x1]
      %v5563 = vld [vmem:[#allocation2 + $0x30] sm:$0xe]
      %v5564 = vld [vmem:[#allocation2 + $0x34] sm:$0xf]
      %v5565 = vld [vmem:[#allocation2 + $0x38] sm:$0x1]
      %v5566 = vld [vmem:[#allocation2 + $0x3c] sm:$0xe]
      %v5567 = vld [vmem:[#allocation2 + $0x40] sm:$0xf]
      %v5568 = vld [vmem:[#allocation2 + $0x44] sm:$0x1]
      %v5569 = vld [vmem:[#allocation2 + $0x48] sm:$0xe]
      %v5570 = vld [vmem:[#allocation2 + $0x4c] sm:$0xf]
      %v5571 = vld [vmem:[#allocation2 + $0x50] sm:$0x1]
      %v5572 = vld [vmem:[#allocation2 + $0x54] sm:$0xe]
      %v5573 = vld [vmem:[#allocation2 + $0x58] sm:$0xf]
      %v5574 = vld [vmem:[#allocation2 + $0x5c] sm:$0x1]
      %v5575 = vld [vmem:[#allocation2 + $0x60] sm:$0xe]
      %v5576 = vld [vmem:[#allocation2 + $0x64] sm:$0xf]
      %v5577 = vld [vmem:[#allocation2 + $0x68] sm:$0x1]
      %v5578 = vld [vmem:[#allocation2 + $0x6c] sm:$0xe]
      %v5579 = vld [vmem:[#allocation2 + $0x70] sm:$0xf]
      %v5580 = vld [vmem:[#allocation2 + $0x74] sm:$0x1]
      %v5581 = vld [vmem:[#allocation2 + $0x78] sm:$0xe]
      %v5582 = vld [vmem:[#allocation2 + $0x7c] sm:$0xf]
      %v5583 = vld [vmem:[#allocation2 + $0x80] sm:$0x1]
      %v5584 = vld [vmem:[#allocation2 + $0x84] sm:$0xe]
      %v5585 = vld [vmem:[#allocation2 + $0x88] sm:$0xf]
      %v5586 = vld [vmem:[#allocation2 + $0x8c] sm:$0x1]
      %v5587 = vld [vmem:[#allocation2 + $0x90] sm:$0xe]
      %v5588 = vld [vmem:[#allocation2 + $0x94] sm:$0xf]
      %v5589 = vld [vmem:[#allocation2 + $0x98] sm:$0x1]
      %v5590 = vld [vmem:[#allocation2 + $0x9c] sm:$0xe]
      %v5591 = vld [vmem:[#allocation2 + $0xa0] sm:$0xf]
      %v5592 = vld [vmem:[#allocation2 + $0xa4] sm:$0x1]
      %v5593 = vld [vmem:[#allocation2 + $0xa8] sm:$0xe]
      %v5594 = vld [vmem:[#allocation2 + $0xac] sm:$0xf]
      %v5595 = vld [vmem:[#allocation2 + $0xb0] sm:$0x1]
      %v5596 = vld [vmem:[#allocation2 + $0xb4] sm:$0xe]
      %v5597 = vld [vmem:[#allocation2 + $0xb8] sm:$0xf]
      %v5598 = vld [vmem:[#allocation2 + $0xbc] sm:$0x1]
      %v5647 = vrot.slane %v5551, 5
      %v5648 = vrot.slane %v5647, 4
      %v5649 = vrot.slane %v5552, 5
      %v5650 = vsel %vm1662, %v5648, %v5649
      %v5651 = vrot.slane %v5649, 4
      %v5652 = vrot.slane %v5553, 5
      %v5653 = vsel %vm1662, %v5651, %v5652
      %v5654 = vrot.slane %v5554, 5
      %v5655 = vrot.slane %v5654, 4
      %v5656 = vrot.slane %v5555, 5
      %v5657 = vsel %vm1662, %v5655, %v5656
      %v5658 = vrot.slane %v5656, 4
      %v5659 = vrot.slane %v5556, 5
      %v5660 = vsel %vm1662, %v5658, %v5659
      %v5661 = vrot.slane %v5557, 5
      %v5662 = vrot.slane %v5661, 4
      %v5663 = vrot.slane %v5558, 5
      %v5664 = vsel %vm1662, %v5662, %v5663
      %v5665 = vrot.slane %v5663, 4
      %v5666 = vrot.slane %v5559, 5
      %v5667 = vsel %vm1662, %v5665, %v5666
      %v5668 = vrot.slane %v5560, 5
      %v5669 = vrot.slane %v5668, 4
      %v5670 = vrot.slane %v5561, 5
      %v5671 = vsel %vm1662, %v5669, %v5670
      %v5672 = vrot.slane %v5670, 4
      %v5673 = vrot.slane %v5562, 5
      %v5674 = vsel %vm1662, %v5672, %v5673
      %v5675 = vrot.slane %v5563, 5
      %v5676 = vrot.slane %v5675, 4
      %v5677 = vrot.slane %v5564, 5
      %v5678 = vsel %vm1662, %v5676, %v5677
      %v5679 = vrot.slane %v5677, 4
      %v5680 = vrot.slane %v5565, 5
      %v5681 = vsel %vm1662, %v5679, %v5680
      %v5682 = vrot.slane %v5566, 5
      %v5683 = vrot.slane %v5682, 4
      %v5684 = vrot.slane %v5567, 5
      %v5685 = vsel %vm1662, %v5683, %v5684
      %v5686 = vrot.slane %v5684, 4
      %v5687 = vrot.slane %v5568, 5
      %v5688 = vsel %vm1662, %v5686, %v5687
      %v5689 = vrot.slane %v5569, 5
      %v5690 = vrot.slane %v5689, 4
      %v5691 = vrot.slane %v5570, 5
      %v5692 = vsel %vm1662, %v5690, %v5691
      %v5693 = vrot.slane %v5691, 4
      %v5694 = vrot.slane %v5571, 5
      %v5695 = vsel %vm1662, %v5693, %v5694
      %v5696 = vrot.slane %v5572, 5
      %v5697 = vrot.slane %v5696, 4
      %v5698 = vrot.slane %v5573, 5
      %v5699 = vsel %vm1662, %v5697, %v5698
      %v5700 = vrot.slane %v5698, 4
      %v5701 = vrot.slane %v5574, 5
      %v5702 = vsel %vm1662, %v5700, %v5701
      %v5703 = vrot.slane %v5575, 5
      %v5704 = vrot.slane %v5703, 4
      %v5705 = vrot.slane %v5576, 5
      %v5706 = vsel %vm1662, %v5704, %v5705
      %v5707 = vrot.slane %v5705, 4
      %v5708 = vrot.slane %v5577, 5
      %v5709 = vsel %vm1662, %v5707, %v5708
      %v5710 = vrot.slane %v5578, 5
      %v5711 = vrot.slane %v5710, 4
      %v5712 = vrot.slane %v5579, 5
      %v5713 = vsel %vm1662, %v5711, %v5712
      %v5714 = vrot.slane %v5712, 4
      %v5715 = vrot.slane %v5580, 5
      %v5716 = vsel %vm1662, %v5714, %v5715
      %v5717 = vrot.slane %v5581, 5
      %v5718 = vrot.slane %v5717, 4
      %v5719 = vrot.slane %v5582, 5
      %v5720 = vsel %vm1662, %v5718, %v5719
      %v5721 = vrot.slane %v5719, 4
      %v5722 = vrot.slane %v5583, 5
      %v5723 = vsel %vm1662, %v5721, %v5722
      %v5724 = vrot.slane %v5584, 5
      %v5725 = vrot.slane %v5724, 4
      %v5726 = vrot.slane %v5585, 5
      %v5727 = vsel %vm1662, %v5725, %v5726
      %v5728 = vrot.slane %v5726, 4
      %v5729 = vrot.slane %v5586, 5
      %v5730 = vsel %vm1662, %v5728, %v5729
      %v5731 = vrot.slane %v5587, 5
      %v5732 = vrot.slane %v5731, 4
      %v5733 = vrot.slane %v5588, 5
      %v5734 = vsel %vm1662, %v5732, %v5733
      %v5735 = vrot.slane %v5733, 4
      %v5736 = vrot.slane %v5589, 5
      %v5737 = vsel %vm1662, %v5735, %v5736
      %v5738 = vrot.slane %v5590, 5
      %v5739 = vrot.slane %v5738, 4
      %v5740 = vrot.slane %v5591, 5
      %v5741 = vsel %vm1662, %v5739, %v5740
      %v5742 = vrot.slane %v5740, 4
      %v5743 = vrot.slane %v5592, 5
      %v5744 = vsel %vm1662, %v5742, %v5743
      %v5745 = vrot.slane %v5593, 5
      %v5746 = vrot.slane %v5745, 4
      %v5747 = vrot.slane %v5594, 5
      %v5748 = vsel %vm1662, %v5746, %v5747
      %v5749 = vrot.slane %v5747, 4
      %v5750 = vrot.slane %v5595, 5
      %v5751 = vsel %vm1662, %v5749, %v5750
      %v5752 = vrot.slane %v5596, 5
      %v5753 = vrot.slane %v5752, 4
      %v5754 = vrot.slane %v5597, 5
      %v5755 = vsel %vm1662, %v5753, %v5754
      %v5756 = vrot.slane %v5754, 4
      %v5757 = vrot.slane %v5598, 5
      %v5758 = vsel %vm1662, %v5756, %v5757
      %v5759 = vunpack.c.l.b16 %v5650
      %v5760 = vunpack.c.l.b16 %v5653
      %v5761 = vunpack.c.l.b16 %v5657
      %v5762 = vunpack.c.l.b16 %v5660
      %v5763 = vunpack.c.l.b16 %v5664
      %v5764 = vunpack.c.l.b16 %v5667
      %v5765 = vunpack.c.l.b16 %v5671
      %v5766 = vunpack.c.l.b16 %v5674
      %v5767 = vunpack.c.l.b16 %v5678
      %v5768 = vunpack.c.l.b16 %v5681
      %v5769 = vunpack.c.l.b16 %v5685
      %v5770 = vunpack.c.l.b16 %v5688
      %v5771 = vunpack.c.l.b16 %v5692
      %v5772 = vunpack.c.l.b16 %v5695
      %v5773 = vunpack.c.l.b16 %v5699
      %v5774 = vunpack.c.l.b16 %v5702
      %v5775 = vunpack.c.l.b16 %v5706
      %v5776 = vunpack.c.l.b16 %v5709
      %v5777 = vunpack.c.l.b16 %v5713
      %v5778 = vunpack.c.l.b16 %v5716
      %v5779 = vunpack.c.l.b16 %v5720
      %v5780 = vunpack.c.l.b16 %v5723
      %v5781 = vunpack.c.l.b16 %v5727
      %v5782 = vunpack.c.l.b16 %v5730
      %v5783 = vunpack.c.l.b16 %v5734
      %v5784 = vunpack.c.l.b16 %v5737
      %v5785 = vunpack.c.l.b16 %v5741
      %v5786 = vunpack.c.l.b16 %v5744
      %v5787 = vunpack.c.l.b16 %v5748
      %v5788 = vunpack.c.l.b16 %v5751
      %v5789 = vunpack.c.l.b16 %v5755
      %v5790 = vunpack.c.l.b16 %v5758
      %v5791 = vpack.c.b16 %v5760, %v5759
      %v5792 = vpack.c.b16 %v5762, %v5761
      %v5793 = vpack.c.b16 %v5764, %v5763
      %v5794 = vpack.c.b16 %v5766, %v5765
      %v5795 = vpack.c.b16 %v5768, %v5767
      %v5796 = vpack.c.b16 %v5770, %v5769
      %v5797 = vpack.c.b16 %v5772, %v5771
      %v5798 = vpack.c.b16 %v5774, %v5773
      %v5799 = vpack.c.b16 %v5776, %v5775
      %v5800 = vpack.c.b16 %v5778, %v5777
      %v5801 = vpack.c.b16 %v5780, %v5779
      %v5802 = vpack.c.b16 %v5782, %v5781
      %v5803 = vpack.c.b16 %v5784, %v5783
      %v5804 = vpack.c.b16 %v5786, %v5785
      %v5805 = vpack.c.b16 %v5788, %v5787
      %v5806 = vpack.c.b16 %v5790, %v5789
      %5807 = vrot.lane.b32.xlu0 %v5791, 8
      %v5808 = vpop.permute.xlu0 %5807
      %5809 = vrot.lane.b32.xlu0 %v5792, 8
      %v5810 = vpop.permute.xlu0 %5809
      %5811 = vrot.lane.b32.xlu0 %v5793, 8
      %v5812 = vpop.permute.xlu0 %5811
      %5813 = vrot.lane.b32.xlu0 %v5794, 8
      %v5814 = vpop.permute.xlu0 %5813
      %5815 = vrot.lane.b32.xlu0 %v5795, 8
      %v5816 = vpop.permute.xlu0 %5815
      %5817 = vrot.lane.b32.xlu0 %v5796, 8
      %v5818 = vpop.permute.xlu0 %5817
      %5819 = vrot.lane.b32.xlu0 %v5797, 8
      %v5820 = vpop.permute.xlu0 %5819
      %5821 = vrot.lane.b32.xlu0 %v5798, 8
      %v5822 = vpop.permute.xlu0 %5821
      %5823 = vrot.lane.b32.xlu0 %v5799, 8
      %v5824 = vpop.permute.xlu0 %5823
      %5825 = vrot.lane.b32.xlu0 %v5800, 8
      %v5826 = vpop.permute.xlu0 %5825
      %5827 = vrot.lane.b32.xlu0 %v5801, 8
      %v5828 = vpop.permute.xlu0 %5827
      %5829 = vrot.lane.b32.xlu0 %v5802, 8
      %v5830 = vpop.permute.xlu0 %5829
      %5831 = vrot.lane.b32.xlu0 %v5803, 8
      %v5832 = vpop.permute.xlu0 %5831
      %5833 = vrot.lane.b32.xlu0 %v5804, 8
      %v5834 = vpop.permute.xlu0 %5833
      %5835 = vrot.lane.b32.xlu0 %v5805, 8
      %v5836 = vpop.permute.xlu0 %5835
      %5837 = vrot.lane.b32.xlu0 %v5806, 8
      %v5838 = vpop.permute.xlu0 %5837
      %5855 = vst.msk [vmem:[#allocation3] sm:$0xff] %vm1871, %v5808
      %5856 = vst.msk [vmem:[#allocation3 + $0x8] sm:$0xff] %vm1871, %v5810
      %5857 = vst.msk [vmem:[#allocation3 + $0x10] sm:$0xff] %vm1871, %v5812
      %5858 = vst.msk [vmem:[#allocation3 + $0x18] sm:$0xff] %vm1871, %v5814
      %5859 = vst.msk [vmem:[#allocation3 + $0x20] sm:$0xff] %vm1871, %v5816
      %5860 = vst.msk [vmem:[#allocation3 + $0x28] sm:$0xff] %vm1871, %v5818
      %5861 = vst.msk [vmem:[#allocation3 + $0x30] sm:$0xff] %vm1871, %v5820
      %5862 = vst.msk [vmem:[#allocation3 + $0x38] sm:$0xff] %vm1871, %v5822
      %5863 = vst.msk [vmem:[#allocation3 + $0x40] sm:$0xff] %vm1871, %v5824
      %5864 = vst.msk [vmem:[#allocation3 + $0x48] sm:$0xff] %vm1871, %v5826
      %5865 = vst.msk [vmem:[#allocation3 + $0x50] sm:$0xff] %vm1871, %v5828
      %5866 = vst.msk [vmem:[#allocation3 + $0x58] sm:$0xff] %vm1871, %v5830
      %5867 = vst.msk [vmem:[#allocation3 + $0x60] sm:$0xff] %vm1871, %v5832
      %5868 = vst.msk [vmem:[#allocation3 + $0x68] sm:$0xff] %vm1871, %v5834
      %5869 = vst.msk [vmem:[#allocation3 + $0x70] sm:$0xff] %vm1871, %v5836
      %5870 = vst.msk [vmem:[#allocation3 + $0x78] sm:$0xff] %vm1871, %v5838
      %v5871 = vld [vmem:[%s756] sm:$0xf]
      %v5872 = vld [vmem:[%s756 + $0x4] sm:$0xf]
      %v5873 = vld [vmem:[%s756 + $0xc] sm:$0xf]
      %v5874 = vld [vmem:[%s756 + $0x10] sm:$0xf]
      %v5875 = vld [vmem:[%s756 + $0x18] sm:$0xf]
      %v5876 = vld [vmem:[%s756 + $0x1c] sm:$0xf]
      %v5877 = vld [vmem:[%s756 + $0x24] sm:$0xf]
      %v5878 = vld [vmem:[%s756 + $0x28] sm:$0xf]
      %v5879 = vld [vmem:[%s756 + $0x30] sm:$0xf]
      %v5880 = vld [vmem:[%s756 + $0x34] sm:$0xf]
      %v5881 = vld [vmem:[%s756 + $0x3c] sm:$0xf]
      %v5882 = vld [vmem:[%s756 + $0x40] sm:$0xf]
      %v5883 = vld [vmem:[%s756 + $0x48] sm:$0xf]
      %v5884 = vld [vmem:[%s756 + $0x4c] sm:$0xf]
      %v5885 = vld [vmem:[%s756 + $0x54] sm:$0xf]
      %v5886 = vld [vmem:[%s756 + $0x58] sm:$0xf]
      %v5887 = vld [vmem:[%s756 + $0x60] sm:$0xf]
      %v5888 = vld [vmem:[%s756 + $0x64] sm:$0xf]
      %v5889 = vld [vmem:[%s756 + $0x6c] sm:$0xf]
      %v5890 = vld [vmem:[%s756 + $0x70] sm:$0xf]
      %v5891 = vld [vmem:[%s756 + $0x78] sm:$0xf]
      %v5892 = vld [vmem:[%s756 + $0x7c] sm:$0xf]
      %v5893 = vld [vmem:[%s756 + $0x84] sm:$0xf]
      %v5894 = vld [vmem:[%s756 + $0x88] sm:$0xf]
      %v5895 = vld [vmem:[%s756 + $0x90] sm:$0xf]
      %v5896 = vld [vmem:[%s756 + $0x94] sm:$0xf]
      %v5897 = vld [vmem:[%s756 + $0x9c] sm:$0xf]
      %v5898 = vld [vmem:[%s756 + $0xa0] sm:$0xf]
      %v5899 = vld [vmem:[%s756 + $0xa8] sm:$0xf]
      %v5900 = vld [vmem:[%s756 + $0xac] sm:$0xf]
      %v5901 = vld [vmem:[%s756 + $0xb4] sm:$0xf]
      %v5902 = vld [vmem:[%s756 + $0xb8] sm:$0xf]
      %v5935 = vunpack.c.l.b16 %v5871
      %v5936 = vunpack.c.l.b16 %v5872
      %v5937 = vunpack.c.l.b16 %v5873
      %v5938 = vunpack.c.l.b16 %v5874
      %v5939 = vunpack.c.l.b16 %v5875
      %v5940 = vunpack.c.l.b16 %v5876
      %v5941 = vunpack.c.l.b16 %v5877
      %v5942 = vunpack.c.l.b16 %v5878
      %v5943 = vunpack.c.l.b16 %v5879
      %v5944 = vunpack.c.l.b16 %v5880
      %v5945 = vunpack.c.l.b16 %v5881
      %v5946 = vunpack.c.l.b16 %v5882
      %v5947 = vunpack.c.l.b16 %v5883
      %v5948 = vunpack.c.l.b16 %v5884
      %v5949 = vunpack.c.l.b16 %v5885
      %v5950 = vunpack.c.l.b16 %v5886
      %v5951 = vunpack.c.l.b16 %v5887
      %v5952 = vunpack.c.l.b16 %v5888
      %v5953 = vunpack.c.l.b16 %v5889
      %v5954 = vunpack.c.l.b16 %v5890
      %v5955 = vunpack.c.l.b16 %v5891
      %v5956 = vunpack.c.l.b16 %v5892
      %v5957 = vunpack.c.l.b16 %v5893
      %v5958 = vunpack.c.l.b16 %v5894
      %v5959 = vunpack.c.l.b16 %v5895
      %v5960 = vunpack.c.l.b16 %v5896
      %v5961 = vunpack.c.l.b16 %v5897
      %v5962 = vunpack.c.l.b16 %v5898
      %v5963 = vunpack.c.l.b16 %v5899
      %v5964 = vunpack.c.l.b16 %v5900
      %v5965 = vunpack.c.l.b16 %v5901
      %v5966 = vunpack.c.l.b16 %v5902
      %v5967 = vpack.c.b16 %v5936, %v5935
      %v5968 = vpack.c.b16 %v5938, %v5937
      %v5969 = vpack.c.b16 %v5940, %v5939
      %v5970 = vpack.c.b16 %v5942, %v5941
      %v5971 = vpack.c.b16 %v5944, %v5943
      %v5972 = vpack.c.b16 %v5946, %v5945
      %v5973 = vpack.c.b16 %v5948, %v5947
      %v5974 = vpack.c.b16 %v5950, %v5949
      %v5975 = vpack.c.b16 %v5952, %v5951
      %v5976 = vpack.c.b16 %v5954, %v5953
      %v5977 = vpack.c.b16 %v5956, %v5955
      %v5978 = vpack.c.b16 %v5958, %v5957
      %v5979 = vpack.c.b16 %v5960, %v5959
      %v5980 = vpack.c.b16 %v5962, %v5961
      %v5981 = vpack.c.b16 %v5964, %v5963
      %v5982 = vpack.c.b16 %v5966, %v5965
      %5983 = vrot.lane.b32.xlu0 %v5967, 12
      %v5984 = vpop.permute.xlu0 %5983
      %5985 = vrot.lane.b32.xlu0 %v5968, 12
      %v5986 = vpop.permute.xlu0 %5985
      %5987 = vrot.lane.b32.xlu0 %v5969, 12
      %v5988 = vpop.permute.xlu0 %5987
      %5989 = vrot.lane.b32.xlu0 %v5970, 12
      %v5990 = vpop.permute.xlu0 %5989
      %5991 = vrot.lane.b32.xlu0 %v5971, 12
      %v5992 = vpop.permute.xlu0 %5991
      %5993 = vrot.lane.b32.xlu0 %v5972, 12
      %v5994 = vpop.permute.xlu0 %5993
      %5995 = vrot.lane.b32.xlu0 %v5973, 12
      %v5996 = vpop.permute.xlu0 %5995
      %5997 = vrot.lane.b32.xlu0 %v5974, 12
      %v5998 = vpop.permute.xlu0 %5997
      %5999 = vrot.lane.b32.xlu0 %v5975, 12
      %v6000 = vpop.permute.xlu0 %5999
      %6001 = vrot.lane.b32.xlu0 %v5976, 12
      %v6002 = vpop.permute.xlu0 %6001
      %6003 = vrot.lane.b32.xlu0 %v5977, 12
      %v6004 = vpop.permute.xlu0 %6003
      %6005 = vrot.lane.b32.xlu0 %v5978, 12
      %v6006 = vpop.permute.xlu0 %6005
      %6007 = vrot.lane.b32.xlu0 %v5979, 12
      %v6008 = vpop.permute.xlu0 %6007
      %6009 = vrot.lane.b32.xlu0 %v5980, 12
      %v6010 = vpop.permute.xlu0 %6009
      %6011 = vrot.lane.b32.xlu0 %v5981, 12
      %v6012 = vpop.permute.xlu0 %6011
      %6013 = vrot.lane.b32.xlu0 %v5982, 12
      %v6014 = vpop.permute.xlu0 %6013
      %6031 = vst.msk [vmem:[#allocation3] sm:$0xff] %vm2048, %v5984
      %6032 = vst.msk [vmem:[#allocation3 + $0x8] sm:$0xff] %vm2048, %v5986
      %6033 = vst.msk [vmem:[#allocation3 + $0x10] sm:$0xff] %vm2048, %v5988
      %6034 = vst.msk [vmem:[#allocation3 + $0x18] sm:$0xff] %vm2048, %v5990
      %6035 = vst.msk [vmem:[#allocation3 + $0x20] sm:$0xff] %vm2048, %v5992
      %6036 = vst.msk [vmem:[#allocation3 + $0x28] sm:$0xff] %vm2048, %v5994
      %6037 = vst.msk [vmem:[#allocation3 + $0x30] sm:$0xff] %vm2048, %v5996
      %6038 = vst.msk [vmem:[#allocation3 + $0x38] sm:$0xff] %vm2048, %v5998
      %6039 = vst.msk [vmem:[#allocation3 + $0x40] sm:$0xff] %vm2048, %v6000
      %6040 = vst.msk [vmem:[#allocation3 + $0x48] sm:$0xff] %vm2048, %v6002
      %6041 = vst.msk [vmem:[#allocation3 + $0x50] sm:$0xff] %vm2048, %v6004
      %6042 = vst.msk [vmem:[#allocation3 + $0x58] sm:$0xff] %vm2048, %v6006
      %6043 = vst.msk [vmem:[#allocation3 + $0x60] sm:$0xff] %vm2048, %v6008
      %6044 = vst.msk [vmem:[#allocation3 + $0x68] sm:$0xff] %vm2048, %v6010
      %6045 = vst.msk [vmem:[#allocation3 + $0x70] sm:$0xff] %vm2048, %v6012
      %6046 = vst.msk [vmem:[#allocation3 + $0x78] sm:$0xff] %vm2048, %v6014
      %v6047 = vld [vmem:[%s756] sm:$0xf]
      %v6048 = vld [vmem:[%s756 + $0x4] sm:$0xf]
      %v6049 = vld [vmem:[%s756 + $0x8] sm:$0x1]
      %v6050 = vld [vmem:[%s756 + $0xc] sm:$0xf]
      %v6051 = vld [vmem:[%s756 + $0x10] sm:$0xf]
      %v6052 = vld [vmem:[%s756 + $0x14] sm:$0x1]
      %v6053 = vld [vmem:[%s756 + $0x18] sm:$0xf]
      %v6054 = vld [vmem:[%s756 + $0x1c] sm:$0xf]
      %v6055 = vld [vmem:[%s756 + $0x20] sm:$0x1]
      %v6056 = vld [vmem:[%s756 + $0x24] sm:$0xf]
      %v6057 = vld [vmem:[%s756 + $0x28] sm:$0xf]
      %v6058 = vld [vmem:[%s756 + $0x2c] sm:$0x1]
      %v6059 = vld [vmem:[%s756 + $0x30] sm:$0xf]
      %v6060 = vld [vmem:[%s756 + $0x34] sm:$0xf]
      %v6061 = vld [vmem:[%s756 + $0x38] sm:$0x1]
      %v6062 = vld [vmem:[%s756 + $0x3c] sm:$0xf]
      %v6063 = vld [vmem:[%s756 + $0x40] sm:$0xf]
      %v6064 = vld [vmem:[%s756 + $0x44] sm:$0x1]
      %v6065 = vld [vmem:[%s756 + $0x48] sm:$0xf]
      %v6066 = vld [vmem:[%s756 + $0x4c] sm:$0xf]
      %v6067 = vld [vmem:[%s756 + $0x50] sm:$0x1]
      %v6068 = vld [vmem:[%s756 + $0x54] sm:$0xf]
      %v6069 = vld [vmem:[%s756 + $0x58] sm:$0xf]
      %v6070 = vld [vmem:[%s756 + $0x5c] sm:$0x1]
      %v6071 = vld [vmem:[%s756 + $0x60] sm:$0xf]
      %v6072 = vld [vmem:[%s756 + $0x64] sm:$0xf]
      %v6073 = vld [vmem:[%s756 + $0x68] sm:$0x1]
      %v6074 = vld [vmem:[%s756 + $0x6c] sm:$0xf]
      %v6075 = vld [vmem:[%s756 + $0x70] sm:$0xf]
      %v6076 = vld [vmem:[%s756 + $0x74] sm:$0x1]
      %v6077 = vld [vmem:[%s756 + $0x78] sm:$0xf]
      %v6078 = vld [vmem:[%s756 + $0x7c] sm:$0xf]
      %v6079 = vld [vmem:[%s756 + $0x80] sm:$0x1]
      %v6080 = vld [vmem:[%s756 + $0x84] sm:$0xf]
      %v6081 = vld [vmem:[%s756 + $0x88] sm:$0xf]
      %v6082 = vld [vmem:[%s756 + $0x8c] sm:$0x1]
      %v6083 = vld [vmem:[%s756 + $0x90] sm:$0xf]
      %v6084 = vld [vmem:[%s756 + $0x94] sm:$0xf]
      %v6085 = vld [vmem:[%s756 + $0x98] sm:$0x1]
      %v6086 = vld [vmem:[%s756 + $0x9c] sm:$0xf]
      %v6087 = vld [vmem:[%s756 + $0xa0] sm:$0xf]
      %v6088 = vld [vmem:[%s756 + $0xa4] sm:$0x1]
      %v6089 = vld [vmem:[%s756 + $0xa8] sm:$0xf]
      %v6090 = vld [vmem:[%s756 + $0xac] sm:$0xf]
      %v6091 = vld [vmem:[%s756 + $0xb0] sm:$0x1]
      %v6092 = vld [vmem:[%s756 + $0xb4] sm:$0xf]
      %v6093 = vld [vmem:[%s756 + $0xb8] sm:$0xf]
      %v6094 = vld [vmem:[%s756 + $0xbc] sm:$0x1]
      %v6096 = vshrl.u32 %v6047, 16
      %v6098 = vrot.slane %v6096, 4
      %v6099 = vshll.u32 %v6047, 16
      %v6101 = vrot.slane %v6099, 5
      %v6102 = vor.u32 %v6098, %v6101
      %v6103 = vrot.slane %v6102, 4
      %v6105 = vshll.u32 %v6048, 16
      %v6107 = vrot.slane %v6105, 5
      %v6108 = vsel %vm1066, %v6103, %v6107
      %v6109 = vshrl.u32 %v6048, 16
      %v6111 = vrot.slane %v6109, 4
      %v6112 = vor.u32 %v6111, %v6107
      %v6113 = vrot.slane %v6112, 4
      %v6115 = vshll.u32 %v6049, 16
      %v6117 = vrot.slane %v6115, 5
      %v6118 = vsel %vm1066, %v6113, %v6117
      %v6120 = vshrl.u32 %v6050, 16
      %v6122 = vrot.slane %v6120, 4
      %v6123 = vshll.u32 %v6050, 16
      %v6125 = vrot.slane %v6123, 5
      %v6126 = vor.u32 %v6122, %v6125
      %v6127 = vrot.slane %v6126, 4
      %v6129 = vshll.u32 %v6051, 16
      %v6131 = vrot.slane %v6129, 5
      %v6132 = vsel %vm1066, %v6127, %v6131
      %v6133 = vshrl.u32 %v6051, 16
      %v6135 = vrot.slane %v6133, 4
      %v6136 = vor.u32 %v6135, %v6131
      %v6137 = vrot.slane %v6136, 4
      %v6139 = vshll.u32 %v6052, 16
      %v6141 = vrot.slane %v6139, 5
      %v6142 = vsel %vm1066, %v6137, %v6141
      %v6144 = vshrl.u32 %v6053, 16
      %v6146 = vrot.slane %v6144, 4
      %v6147 = vshll.u32 %v6053, 16
      %v6149 = vrot.slane %v6147, 5
      %v6150 = vor.u32 %v6146, %v6149
      %v6151 = vrot.slane %v6150, 4
      %v6153 = vshll.u32 %v6054, 16
      %v6155 = vrot.slane %v6153, 5
      %v6156 = vsel %vm1066, %v6151, %v6155
      %v6157 = vshrl.u32 %v6054, 16
      %v6159 = vrot.slane %v6157, 4
      %v6160 = vor.u32 %v6159, %v6155
      %v6161 = vrot.slane %v6160, 4
      %v6163 = vshll.u32 %v6055, 16
      %v6165 = vrot.slane %v6163, 5
      %v6166 = vsel %vm1066, %v6161, %v6165
      %v6168 = vshrl.u32 %v6056, 16
      %v6170 = vrot.slane %v6168, 4
      %v6171 = vshll.u32 %v6056, 16
      %v6173 = vrot.slane %v6171, 5
      %v6174 = vor.u32 %v6170, %v6173
      %v6175 = vrot.slane %v6174, 4
      %v6177 = vshll.u32 %v6057, 16
      %v6179 = vrot.slane %v6177, 5
      %v6180 = vsel %vm1066, %v6175, %v6179
      %v6181 = vshrl.u32 %v6057, 16
      %v6183 = vrot.slane %v6181, 4
      %v6184 = vor.u32 %v6183, %v6179
      %v6185 = vrot.slane %v6184, 4
      %v6187 = vshll.u32 %v6058, 16
      %v6189 = vrot.slane %v6187, 5
      %v6190 = vsel %vm1066, %v6185, %v6189
      %v6192 = vshrl.u32 %v6059, 16
      %v6194 = vrot.slane %v6192, 4
      %v6195 = vshll.u32 %v6059, 16
      %v6197 = vrot.slane %v6195, 5
      %v6198 = vor.u32 %v6194, %v6197
      %v6199 = vrot.slane %v6198, 4
      %v6201 = vshll.u32 %v6060, 16
      %v6203 = vrot.slane %v6201, 5
      %v6204 = vsel %vm1066, %v6199, %v6203
      %v6205 = vshrl.u32 %v6060, 16
      %v6207 = vrot.slane %v6205, 4
      %v6208 = vor.u32 %v6207, %v6203
      %v6209 = vrot.slane %v6208, 4
      %v6211 = vshll.u32 %v6061, 16
      %v6213 = vrot.slane %v6211, 5
      %v6214 = vsel %vm1066, %v6209, %v6213
      %v6216 = vshrl.u32 %v6062, 16
      %v6218 = vrot.slane %v6216, 4
      %v6219 = vshll.u32 %v6062, 16
      %v6221 = vrot.slane %v6219, 5
      %v6222 = vor.u32 %v6218, %v6221
      %v6223 = vrot.slane %v6222, 4
      %v6225 = vshll.u32 %v6063, 16
      %v6227 = vrot.slane %v6225, 5
      %v6228 = vsel %vm1066, %v6223, %v6227
      %v6229 = vshrl.u32 %v6063, 16
      %v6231 = vrot.slane %v6229, 4
      %v6232 = vor.u32 %v6231, %v6227
      %v6233 = vrot.slane %v6232, 4
      %v6235 = vshll.u32 %v6064, 16
      %v6237 = vrot.slane %v6235, 5
      %v6238 = vsel %vm1066, %v6233, %v6237
      %v6240 = vshrl.u32 %v6065, 16
      %v6242 = vrot.slane %v6240, 4
      %v6243 = vshll.u32 %v6065, 16
      %v6245 = vrot.slane %v6243, 5
      %v6246 = vor.u32 %v6242, %v6245
      %v6247 = vrot.slane %v6246, 4
      %v6249 = vshll.u32 %v6066, 16
      %v6251 = vrot.slane %v6249, 5
      %v6252 = vsel %vm1066, %v6247, %v6251
      %v6253 = vshrl.u32 %v6066, 16
      %v6255 = vrot.slane %v6253, 4
      %v6256 = vor.u32 %v6255, %v6251
      %v6257 = vrot.slane %v6256, 4
      %v6259 = vshll.u32 %v6067, 16
      %v6261 = vrot.slane %v6259, 5
      %v6262 = vsel %vm1066, %v6257, %v6261
      %v6264 = vshrl.u32 %v6068, 16
      %v6266 = vrot.slane %v6264, 4
      %v6267 = vshll.u32 %v6068, 16
      %v6269 = vrot.slane %v6267, 5
      %v6270 = vor.u32 %v6266, %v6269
      %v6271 = vrot.slane %v6270, 4
      %v6273 = vshll.u32 %v6069, 16
      %v6275 = vrot.slane %v6273, 5
      %v6276 = vsel %vm1066, %v6271, %v6275
      %v6277 = vshrl.u32 %v6069, 16
      %v6279 = vrot.slane %v6277, 4
      %v6280 = vor.u32 %v6279, %v6275
      %v6281 = vrot.slane %v6280, 4
      %v6283 = vshll.u32 %v6070, 16
      %v6285 = vrot.slane %v6283, 5
      %v6286 = vsel %vm1066, %v6281, %v6285
      %v6288 = vshrl.u32 %v6071, 16
      %v6290 = vrot.slane %v6288, 4
      %v6291 = vshll.u32 %v6071, 16
      %v6293 = vrot.slane %v6291, 5
      %v6294 = vor.u32 %v6290, %v6293
      %v6295 = vrot.slane %v6294, 4
      %v6297 = vshll.u32 %v6072, 16
      %v6299 = vrot.slane %v6297, 5
      %v6300 = vsel %vm1066, %v6295, %v6299
      %v6301 = vshrl.u32 %v6072, 16
      %v6303 = vrot.slane %v6301, 4
      %v6304 = vor.u32 %v6303, %v6299
      %v6305 = vrot.slane %v6304, 4
      %v6307 = vshll.u32 %v6073, 16
      %v6309 = vrot.slane %v6307, 5
      %v6310 = vsel %vm1066, %v6305, %v6309
      %v6312 = vshrl.u32 %v6074, 16
      %v6314 = vrot.slane %v6312, 4
      %v6315 = vshll.u32 %v6074, 16
      %v6317 = vrot.slane %v6315, 5
      %v6318 = vor.u32 %v6314, %v6317
      %v6319 = vrot.slane %v6318, 4
      %v6321 = vshll.u32 %v6075, 16
      %v6323 = vrot.slane %v6321, 5
      %v6324 = vsel %vm1066, %v6319, %v6323
      %v6325 = vshrl.u32 %v6075, 16
      %v6327 = vrot.slane %v6325, 4
      %v6328 = vor.u32 %v6327, %v6323
      %v6329 = vrot.slane %v6328, 4
      %v6331 = vshll.u32 %v6076, 16
      %v6333 = vrot.slane %v6331, 5
      %v6334 = vsel %vm1066, %v6329, %v6333
      %v6336 = vshrl.u32 %v6077, 16
      %v6338 = vrot.slane %v6336, 4
      %v6339 = vshll.u32 %v6077, 16
      %v6341 = vrot.slane %v6339, 5
      %v6342 = vor.u32 %v6338, %v6341
      %v6343 = vrot.slane %v6342, 4
      %v6345 = vshll.u32 %v6078, 16
      %v6347 = vrot.slane %v6345, 5
      %v6348 = vsel %vm1066, %v6343, %v6347
      %v6349 = vshrl.u32 %v6078, 16
      %v6351 = vrot.slane %v6349, 4
      %v6352 = vor.u32 %v6351, %v6347
      %v6353 = vrot.slane %v6352, 4
      %v6355 = vshll.u32 %v6079, 16
      %v6357 = vrot.slane %v6355, 5
      %v6358 = vsel %vm1066, %v6353, %v6357
      %v6360 = vshrl.u32 %v6080, 16
      %v6362 = vrot.slane %v6360, 4
      %v6363 = vshll.u32 %v6080, 16
      %v6365 = vrot.slane %v6363, 5
      %v6366 = vor.u32 %v6362, %v6365
      %v6367 = vrot.slane %v6366, 4
      %v6369 = vshll.u32 %v6081, 16
      %v6371 = vrot.slane %v6369, 5
      %v6372 = vsel %vm1066, %v6367, %v6371
      %v6373 = vshrl.u32 %v6081, 16
      %v6375 = vrot.slane %v6373, 4
      %v6376 = vor.u32 %v6375, %v6371
      %v6377 = vrot.slane %v6376, 4
      %v6379 = vshll.u32 %v6082, 16
      %v6381 = vrot.slane %v6379, 5
      %v6382 = vsel %vm1066, %v6377, %v6381
      %v6384 = vshrl.u32 %v6083, 16
      %v6386 = vrot.slane %v6384, 4
      %v6387 = vshll.u32 %v6083, 16
      %v6389 = vrot.slane %v6387, 5
      %v6390 = vor.u32 %v6386, %v6389
      %v6391 = vrot.slane %v6390, 4
      %v6393 = vshll.u32 %v6084, 16
      %v6395 = vrot.slane %v6393, 5
      %v6396 = vsel %vm1066, %v6391, %v6395
      %v6397 = vshrl.u32 %v6084, 16
      %v6399 = vrot.slane %v6397, 4
      %v6400 = vor.u32 %v6399, %v6395
      %v6401 = vrot.slane %v6400, 4
      %v6403 = vshll.u32 %v6085, 16
      %v6405 = vrot.slane %v6403, 5
      %v6406 = vsel %vm1066, %v6401, %v6405
      %v6408 = vshrl.u32 %v6086, 16
      %v6410 = vrot.slane %v6408, 4
      %v6411 = vshll.u32 %v6086, 16
      %v6413 = vrot.slane %v6411, 5
      %v6414 = vor.u32 %v6410, %v6413
      %v6415 = vrot.slane %v6414, 4
      %v6417 = vshll.u32 %v6087, 16
      %v6419 = vrot.slane %v6417, 5
      %v6420 = vsel %vm1066, %v6415, %v6419
      %v6421 = vshrl.u32 %v6087, 16
      %v6423 = vrot.slane %v6421, 4
      %v6424 = vor.u32 %v6423, %v6419
      %v6425 = vrot.slane %v6424, 4
      %v6427 = vshll.u32 %v6088, 16
      %v6429 = vrot.slane %v6427, 5
      %v6430 = vsel %vm1066, %v6425, %v6429
      %v6432 = vshrl.u32 %v6089, 16
      %v6434 = vrot.slane %v6432, 4
      %v6435 = vshll.u32 %v6089, 16
      %v6437 = vrot.slane %v6435, 5
      %v6438 = vor.u32 %v6434, %v6437
      %v6439 = vrot.slane %v6438, 4
      %v6441 = vshll.u32 %v6090, 16
      %v6443 = vrot.slane %v6441, 5
      %v6444 = vsel %vm1066, %v6439, %v6443
      %v6445 = vshrl.u32 %v6090, 16
      %v6447 = vrot.slane %v6445, 4
      %v6448 = vor.u32 %v6447, %v6443
      %v6449 = vrot.slane %v6448, 4
      %v6451 = vshll.u32 %v6091, 16
      %v6453 = vrot.slane %v6451, 5
      %v6454 = vsel %vm1066, %v6449, %v6453
      %v6456 = vshrl.u32 %v6092, 16
      %v6458 = vrot.slane %v6456, 4
      %v6459 = vshll.u32 %v6092, 16
      %v6461 = vrot.slane %v6459, 5
      %v6462 = vor.u32 %v6458, %v6461
      %v6463 = vrot.slane %v6462, 4
      %v6465 = vshll.u32 %v6093, 16
      %v6467 = vrot.slane %v6465, 5
      %v6468 = vsel %vm1066, %v6463, %v6467
      %v6469 = vshrl.u32 %v6093, 16
      %v6471 = vrot.slane %v6469, 4
      %v6472 = vor.u32 %v6471, %v6467
      %v6473 = vrot.slane %v6472, 4
      %v6475 = vshll.u32 %v6094, 16
      %v6477 = vrot.slane %v6475, 5
      %v6478 = vsel %vm1066, %v6473, %v6477
      %v6479 = vunpack.c.l.b16 %v6108
      %v6480 = vunpack.c.l.b16 %v6118
      %v6481 = vunpack.c.l.b16 %v6132
      %v6482 = vunpack.c.l.b16 %v6142
      %v6483 = vunpack.c.l.b16 %v6156
      %v6484 = vunpack.c.l.b16 %v6166
      %v6485 = vunpack.c.l.b16 %v6180
      %v6486 = vunpack.c.l.b16 %v6190
      %v6487 = vunpack.c.l.b16 %v6204
      %v6488 = vunpack.c.l.b16 %v6214
      %v6489 = vunpack.c.l.b16 %v6228
      %v6490 = vunpack.c.l.b16 %v6238
      %v6491 = vunpack.c.l.b16 %v6252
      %v6492 = vunpack.c.l.b16 %v6262
      %v6493 = vunpack.c.l.b16 %v6276
      %v6494 = vunpack.c.l.b16 %v6286
      %v6495 = vunpack.c.l.b16 %v6300
      %v6496 = vunpack.c.l.b16 %v6310
      %v6497 = vunpack.c.l.b16 %v6324
      %v6498 = vunpack.c.l.b16 %v6334
      %v6499 = vunpack.c.l.b16 %v6348
      %v6500 = vunpack.c.l.b16 %v6358
      %v6501 = vunpack.c.l.b16 %v6372
      %v6502 = vunpack.c.l.b16 %v6382
      %v6503 = vunpack.c.l.b16 %v6396
      %v6504 = vunpack.c.l.b16 %v6406
      %v6505 = vunpack.c.l.b16 %v6420
      %v6506 = vunpack.c.l.b16 %v6430
      %v6507 = vunpack.c.l.b16 %v6444
      %v6508 = vunpack.c.l.b16 %v6454
      %v6509 = vunpack.c.l.b16 %v6468
      %v6510 = vunpack.c.l.b16 %v6478
      %v6511 = vpack.c.b16 %v6480, %v6479
      %v6512 = vpack.c.b16 %v6482, %v6481
      %v6513 = vpack.c.b16 %v6484, %v6483
      %v6514 = vpack.c.b16 %v6486, %v6485
      %v6515 = vpack.c.b16 %v6488, %v6487
      %v6516 = vpack.c.b16 %v6490, %v6489
      %v6517 = vpack.c.b16 %v6492, %v6491
      %v6518 = vpack.c.b16 %v6494, %v6493
      %v6519 = vpack.c.b16 %v6496, %v6495
      %v6520 = vpack.c.b16 %v6498, %v6497
      %v6521 = vpack.c.b16 %v6500, %v6499
      %v6522 = vpack.c.b16 %v6502, %v6501
      %v6523 = vpack.c.b16 %v6504, %v6503
      %v6524 = vpack.c.b16 %v6506, %v6505
      %v6525 = vpack.c.b16 %v6508, %v6507
      %v6526 = vpack.c.b16 %v6510, %v6509
      %6527 = vrot.lane.b32.xlu0 %v6511, 16
      %v6528 = vpop.permute.xlu0 %6527
      %6529 = vrot.lane.b32.xlu0 %v6512, 16
      %v6530 = vpop.permute.xlu0 %6529
      %6531 = vrot.lane.b32.xlu0 %v6513, 16
      %v6532 = vpop.permute.xlu0 %6531
      %6533 = vrot.lane.b32.xlu0 %v6514, 16
      %v6534 = vpop.permute.xlu0 %6533
      %6535 = vrot.lane.b32.xlu0 %v6515, 16
      %v6536 = vpop.permute.xlu0 %6535
      %6537 = vrot.lane.b32.xlu0 %v6516, 16
      %v6538 = vpop.permute.xlu0 %6537
      %6539 = vrot.lane.b32.xlu0 %v6517, 16
      %v6540 = vpop.permute.xlu0 %6539
      %6541 = vrot.lane.b32.xlu0 %v6518, 16
      %v6542 = vpop.permute.xlu0 %6541
      %6543 = vrot.lane.b32.xlu0 %v6519, 16
      %v6544 = vpop.permute.xlu0 %6543
      %6545 = vrot.lane.b32.xlu0 %v6520, 16
      %v6546 = vpop.permute.xlu0 %6545
      %6547 = vrot.lane.b32.xlu0 %v6521, 16
      %v6548 = vpop.permute.xlu0 %6547
      %6549 = vrot.lane.b32.xlu0 %v6522, 16
      %v6550 = vpop.permute.xlu0 %6549
      %6551 = vrot.lane.b32.xlu0 %v6523, 16
      %v6552 = vpop.permute.xlu0 %6551
      %6553 = vrot.lane.b32.xlu0 %v6524, 16
      %v6554 = vpop.permute.xlu0 %6553
      %6555 = vrot.lane.b32.xlu0 %v6525, 16
      %v6556 = vpop.permute.xlu0 %6555
      %6557 = vrot.lane.b32.xlu0 %v6526, 16
      %v6558 = vpop.permute.xlu0 %6557
      %6575 = vst.msk [vmem:[#allocation3] sm:$0xff] %vm2593, %v6528
      %6576 = vst.msk [vmem:[#allocation3 + $0x8] sm:$0xff] %vm2593, %v6530
      %6577 = vst.msk [vmem:[#allocation3 + $0x10] sm:$0xff] %vm2593, %v6532
      %6578 = vst.msk [vmem:[#allocation3 + $0x18] sm:$0xff] %vm2593, %v6534
      %6579 = vst.msk [vmem:[#allocation3 + $0x20] sm:$0xff] %vm2593, %v6536
      %6580 = vst.msk [vmem:[#allocation3 + $0x28] sm:$0xff] %vm2593, %v6538
      %6581 = vst.msk [vmem:[#allocation3 + $0x30] sm:$0xff] %vm2593, %v6540
      %6582 = vst.msk [vmem:[#allocation3 + $0x38] sm:$0xff] %vm2593, %v6542
      %6583 = vst.msk [vmem:[#allocation3 + $0x40] sm:$0xff] %vm2593, %v6544
      %6584 = vst.msk [vmem:[#allocation3 + $0x48] sm:$0xff] %vm2593, %v6546
      %6585 = vst.msk [vmem:[#allocation3 + $0x50] sm:$0xff] %vm2593, %v6548
      %6586 = vst.msk [vmem:[#allocation3 + $0x58] sm:$0xff] %vm2593, %v6550
      %6587 = vst.msk [vmem:[#allocation3 + $0x60] sm:$0xff] %vm2593, %v6552
      %6588 = vst.msk [vmem:[#allocation3 + $0x68] sm:$0xff] %vm2593, %v6554
      %6589 = vst.msk [vmem:[#allocation3 + $0x70] sm:$0xff] %vm2593, %v6556
      %6590 = vst.msk [vmem:[#allocation3 + $0x78] sm:$0xff] %vm2593, %v6558
      %v6591 = vld [vmem:[%s756] sm:$0xe]
      %v6592 = vld [vmem:[%s756 + $0x4] sm:$0xf]
      %v6593 = vld [vmem:[%s756 + $0x8] sm:$0x1]
      %v6594 = vld [vmem:[%s756 + $0xc] sm:$0xe]
      %v6595 = vld [vmem:[%s756 + $0x10] sm:$0xf]
      %v6596 = vld [vmem:[%s756 + $0x14] sm:$0x1]
      %v6597 = vld [vmem:[%s756 + $0x18] sm:$0xe]
      %v6598 = vld [vmem:[%s756 + $0x1c] sm:$0xf]
      %v6599 = vld [vmem:[%s756 + $0x20] sm:$0x1]
      %v6600 = vld [vmem:[%s756 + $0x24] sm:$0xe]
      %v6601 = vld [vmem:[%s756 + $0x28] sm:$0xf]
      %v6602 = vld [vmem:[%s756 + $0x2c] sm:$0x1]
      %v6603 = vld [vmem:[%s756 + $0x30] sm:$0xe]
      %v6604 = vld [vmem:[%s756 + $0x34] sm:$0xf]
      %v6605 = vld [vmem:[%s756 + $0x38] sm:$0x1]
      %v6606 = vld [vmem:[%s756 + $0x3c] sm:$0xe]
      %v6607 = vld [vmem:[%s756 + $0x40] sm:$0xf]
      %v6608 = vld [vmem:[%s756 + $0x44] sm:$0x1]
      %v6609 = vld [vmem:[%s756 + $0x48] sm:$0xe]
      %v6610 = vld [vmem:[%s756 + $0x4c] sm:$0xf]
      %v6611 = vld [vmem:[%s756 + $0x50] sm:$0x1]
      %v6612 = vld [vmem:[%s756 + $0x54] sm:$0xe]
      %v6613 = vld [vmem:[%s756 + $0x58] sm:$0xf]
      %v6614 = vld [vmem:[%s756 + $0x5c] sm:$0x1]
      %v6615 = vld [vmem:[%s756 + $0x60] sm:$0xe]
      %v6616 = vld [vmem:[%s756 + $0x64] sm:$0xf]
      %v6617 = vld [vmem:[%s756 + $0x68] sm:$0x1]
      %v6618 = vld [vmem:[%s756 + $0x6c] sm:$0xe]
      %v6619 = vld [vmem:[%s756 + $0x70] sm:$0xf]
      %v6620 = vld [vmem:[%s756 + $0x74] sm:$0x1]
      %v6621 = vld [vmem:[%s756 + $0x78] sm:$0xe]
      %v6622 = vld [vmem:[%s756 + $0x7c] sm:$0xf]
      %v6623 = vld [vmem:[%s756 + $0x80] sm:$0x1]
      %v6624 = vld [vmem:[%s756 + $0x84] sm:$0xe]
      %v6625 = vld [vmem:[%s756 + $0x88] sm:$0xf]
      %v6626 = vld [vmem:[%s756 + $0x8c] sm:$0x1]
      %v6627 = vld [vmem:[%s756 + $0x90] sm:$0xe]
      %v6628 = vld [vmem:[%s756 + $0x94] sm:$0xf]
      %v6629 = vld [vmem:[%s756 + $0x98] sm:$0x1]
      %v6630 = vld [vmem:[%s756 + $0x9c] sm:$0xe]
      %v6631 = vld [vmem:[%s756 + $0xa0] sm:$0xf]
      %v6632 = vld [vmem:[%s756 + $0xa4] sm:$0x1]
      %v6633 = vld [vmem:[%s756 + $0xa8] sm:$0xe]
      %v6634 = vld [vmem:[%s756 + $0xac] sm:$0xf]
      %v6635 = vld [vmem:[%s756 + $0xb0] sm:$0x1]
      %v6636 = vld [vmem:[%s756 + $0xb4] sm:$0xe]
      %v6637 = vld [vmem:[%s756 + $0xb8] sm:$0xf]
      %v6638 = vld [vmem:[%s756 + $0xbc] sm:$0x1]
      %v6687 = vrot.slane %v6591, 5
      %v6688 = vrot.slane %v6687, 4
      %v6689 = vrot.slane %v6592, 5
      %v6690 = vsel %vm1662, %v6688, %v6689
      %v6691 = vrot.slane %v6689, 4
      %v6692 = vrot.slane %v6593, 5
      %v6693 = vsel %vm1662, %v6691, %v6692
      %v6694 = vrot.slane %v6594, 5
      %v6695 = vrot.slane %v6694, 4
      %v6696 = vrot.slane %v6595, 5
      %v6697 = vsel %vm1662, %v6695, %v6696
      %v6698 = vrot.slane %v6696, 4
      %v6699 = vrot.slane %v6596, 5
      %v6700 = vsel %vm1662, %v6698, %v6699
      %v6701 = vrot.slane %v6597, 5
      %v6702 = vrot.slane %v6701, 4
      %v6703 = vrot.slane %v6598, 5
      %v6704 = vsel %vm1662, %v6702, %v6703
      %v6705 = vrot.slane %v6703, 4
      %v6706 = vrot.slane %v6599, 5
      %v6707 = vsel %vm1662, %v6705, %v6706
      %v6708 = vrot.slane %v6600, 5
      %v6709 = vrot.slane %v6708, 4
      %v6710 = vrot.slane %v6601, 5
      %v6711 = vsel %vm1662, %v6709, %v6710
      %v6712 = vrot.slane %v6710, 4
      %v6713 = vrot.slane %v6602, 5
      %v6714 = vsel %vm1662, %v6712, %v6713
      %v6715 = vrot.slane %v6603, 5
      %v6716 = vrot.slane %v6715, 4
      %v6717 = vrot.slane %v6604, 5
      %v6718 = vsel %vm1662, %v6716, %v6717
      %v6719 = vrot.slane %v6717, 4
      %v6720 = vrot.slane %v6605, 5
      %v6721 = vsel %vm1662, %v6719, %v6720
      %v6722 = vrot.slane %v6606, 5
      %v6723 = vrot.slane %v6722, 4
      %v6724 = vrot.slane %v6607, 5
      %v6725 = vsel %vm1662, %v6723, %v6724
      %v6726 = vrot.slane %v6724, 4
      %v6727 = vrot.slane %v6608, 5
      %v6728 = vsel %vm1662, %v6726, %v6727
      %v6729 = vrot.slane %v6609, 5
      %v6730 = vrot.slane %v6729, 4
      %v6731 = vrot.slane %v6610, 5
      %v6732 = vsel %vm1662, %v6730, %v6731
      %v6733 = vrot.slane %v6731, 4
      %v6734 = vrot.slane %v6611, 5
      %v6735 = vsel %vm1662, %v6733, %v6734
      %v6736 = vrot.slane %v6612, 5
      %v6737 = vrot.slane %v6736, 4
      %v6738 = vrot.slane %v6613, 5
      %v6739 = vsel %vm1662, %v6737, %v6738
      %v6740 = vrot.slane %v6738, 4
      %v6741 = vrot.slane %v6614, 5
      %v6742 = vsel %vm1662, %v6740, %v6741
      %v6743 = vrot.slane %v6615, 5
      %v6744 = vrot.slane %v6743, 4
      %v6745 = vrot.slane %v6616, 5
      %v6746 = vsel %vm1662, %v6744, %v6745
      %v6747 = vrot.slane %v6745, 4
      %v6748 = vrot.slane %v6617, 5
      %v6749 = vsel %vm1662, %v6747, %v6748
      %v6750 = vrot.slane %v6618, 5
      %v6751 = vrot.slane %v6750, 4
      %v6752 = vrot.slane %v6619, 5
      %v6753 = vsel %vm1662, %v6751, %v6752
      %v6754 = vrot.slane %v6752, 4
      %v6755 = vrot.slane %v6620, 5
      %v6756 = vsel %vm1662, %v6754, %v6755
      %v6757 = vrot.slane %v6621, 5
      %v6758 = vrot.slane %v6757, 4
      %v6759 = vrot.slane %v6622, 5
      %v6760 = vsel %vm1662, %v6758, %v6759
      %v6761 = vrot.slane %v6759, 4
      %v6762 = vrot.slane %v6623, 5
      %v6763 = vsel %vm1662, %v6761, %v6762
      %v6764 = vrot.slane %v6624, 5
      %v6765 = vrot.slane %v6764, 4
      %v6766 = vrot.slane %v6625, 5
      %v6767 = vsel %vm1662, %v6765, %v6766
      %v6768 = vrot.slane %v6766, 4
      %v6769 = vrot.slane %v6626, 5
      %v6770 = vsel %vm1662, %v6768, %v6769
      %v6771 = vrot.slane %v6627, 5
      %v6772 = vrot.slane %v6771, 4
      %v6773 = vrot.slane %v6628, 5
      %v6774 = vsel %vm1662, %v6772, %v6773
      %v6775 = vrot.slane %v6773, 4
      %v6776 = vrot.slane %v6629, 5
      %v6777 = vsel %vm1662, %v6775, %v6776
      %v6778 = vrot.slane %v6630, 5
      %v6779 = vrot.slane %v6778, 4
      %v6780 = vrot.slane %v6631, 5
      %v6781 = vsel %vm1662, %v6779, %v6780
      %v6782 = vrot.slane %v6780, 4
      %v6783 = vrot.slane %v6632, 5
      %v6784 = vsel %vm1662, %v6782, %v6783
      %v6785 = vrot.slane %v6633, 5
      %v6786 = vrot.slane %v6785, 4
      %v6787 = vrot.slane %v6634, 5
      %v6788 = vsel %vm1662, %v6786, %v6787
      %v6789 = vrot.slane %v6787, 4
      %v6790 = vrot.slane %v6635, 5
      %v6791 = vsel %vm1662, %v6789, %v6790
      %v6792 = vrot.slane %v6636, 5
      %v6793 = vrot.slane %v6792, 4
      %v6794 = vrot.slane %v6637, 5
      %v6795 = vsel %vm1662, %v6793, %v6794
      %v6796 = vrot.slane %v6794, 4
      %v6797 = vrot.slane %v6638, 5
      %v6798 = vsel %vm1662, %v6796, %v6797
      %v6799 = vunpack.c.l.b16 %v6690
      %v6800 = vunpack.c.l.b16 %v6693
      %v6801 = vunpack.c.l.b16 %v6697
      %v6802 = vunpack.c.l.b16 %v6700
      %v6803 = vunpack.c.l.b16 %v6704
      %v6804 = vunpack.c.l.b16 %v6707
      %v6805 = vunpack.c.l.b16 %v6711
      %v6806 = vunpack.c.l.b16 %v6714
      %v6807 = vunpack.c.l.b16 %v6718
      %v6808 = vunpack.c.l.b16 %v6721
      %v6809 = vunpack.c.l.b16 %v6725
      %v6810 = vunpack.c.l.b16 %v6728
      %v6811 = vunpack.c.l.b16 %v6732
      %v6812 = vunpack.c.l.b16 %v6735
      %v6813 = vunpack.c.l.b16 %v6739
      %v6814 = vunpack.c.l.b16 %v6742
      %v6815 = vunpack.c.l.b16 %v6746
      %v6816 = vunpack.c.l.b16 %v6749
      %v6817 = vunpack.c.l.b16 %v6753
      %v6818 = vunpack.c.l.b16 %v6756
      %v6819 = vunpack.c.l.b16 %v6760
      %v6820 = vunpack.c.l.b16 %v6763
      %v6821 = vunpack.c.l.b16 %v6767
      %v6822 = vunpack.c.l.b16 %v6770
      %v6823 = vunpack.c.l.b16 %v6774
      %v6824 = vunpack.c.l.b16 %v6777
      %v6825 = vunpack.c.l.b16 %v6781
      %v6826 = vunpack.c.l.b16 %v6784
      %v6827 = vunpack.c.l.b16 %v6788
      %v6828 = vunpack.c.l.b16 %v6791
      %v6829 = vunpack.c.l.b16 %v6795
      %v6830 = vunpack.c.l.b16 %v6798
      %v6831 = vpack.c.b16 %v6800, %v6799
      %v6832 = vpack.c.b16 %v6802, %v6801
      %v6833 = vpack.c.b16 %v6804, %v6803
      %v6834 = vpack.c.b16 %v6806, %v6805
      %v6835 = vpack.c.b16 %v6808, %v6807
      %v6836 = vpack.c.b16 %v6810, %v6809
      %v6837 = vpack.c.b16 %v6812, %v6811
      %v6838 = vpack.c.b16 %v6814, %v6813
      %v6839 = vpack.c.b16 %v6816, %v6815
      %v6840 = vpack.c.b16 %v6818, %v6817
      %v6841 = vpack.c.b16 %v6820, %v6819
      %v6842 = vpack.c.b16 %v6822, %v6821
      %v6843 = vpack.c.b16 %v6824, %v6823
      %v6844 = vpack.c.b16 %v6826, %v6825
      %v6845 = vpack.c.b16 %v6828, %v6827
      %v6846 = vpack.c.b16 %v6830, %v6829
      %6847 = vrot.lane.b32.xlu0 %v6831, 20
      %v6848 = vpop.permute.xlu0 %6847
      %6849 = vrot.lane.b32.xlu0 %v6832, 20
      %v6850 = vpop.permute.xlu0 %6849
      %6851 = vrot.lane.b32.xlu0 %v6833, 20
      %v6852 = vpop.permute.xlu0 %6851
      %6853 = vrot.lane.b32.xlu0 %v6834, 20
      %v6854 = vpop.permute.xlu0 %6853
      %6855 = vrot.lane.b32.xlu0 %v6835, 20
      %v6856 = vpop.permute.xlu0 %6855
      %6857 = vrot.lane.b32.xlu0 %v6836, 20
      %v6858 = vpop.permute.xlu0 %6857
      %6859 = vrot.lane.b32.xlu0 %v6837, 20
      %v6860 = vpop.permute.xlu0 %6859
      %6861 = vrot.lane.b32.xlu0 %v6838, 20
      %v6862 = vpop.permute.xlu0 %6861
      %6863 = vrot.lane.b32.xlu0 %v6839, 20
      %v6864 = vpop.permute.xlu0 %6863
      %6865 = vrot.lane.b32.xlu0 %v6840, 20
      %v6866 = vpop.permute.xlu0 %6865
      %6867 = vrot.lane.b32.xlu0 %v6841, 20
      %v6868 = vpop.permute.xlu0 %6867
      %6869 = vrot.lane.b32.xlu0 %v6842, 20
      %v6870 = vpop.permute.xlu0 %6869
      %6871 = vrot.lane.b32.xlu0 %v6843, 20
      %v6872 = vpop.permute.xlu0 %6871
      %6873 = vrot.lane.b32.xlu0 %v6844, 20
      %v6874 = vpop.permute.xlu0 %6873
      %6875 = vrot.lane.b32.xlu0 %v6845, 20
      %v6876 = vpop.permute.xlu0 %6875
      %6877 = vrot.lane.b32.xlu0 %v6846, 20
      %v6878 = vpop.permute.xlu0 %6877
      %6895 = vst.msk [vmem:[#allocation3] sm:$0xff] %vm2914, %v6848
      %6896 = vst.msk [vmem:[#allocation3 + $0x8] sm:$0xff] %vm2914, %v6850
      %6897 = vst.msk [vmem:[#allocation3 + $0x10] sm:$0xff] %vm2914, %v6852
      %6898 = vst.msk [vmem:[#allocation3 + $0x18] sm:$0xff] %vm2914, %v6854
      %6899 = vst.msk [vmem:[#allocation3 + $0x20] sm:$0xff] %vm2914, %v6856
      %6900 = vst.msk [vmem:[#allocation3 + $0x28] sm:$0xff] %vm2914, %v6858
      %6901 = vst.msk [vmem:[#allocation3 + $0x30] sm:$0xff] %vm2914, %v6860
      %6902 = vst.msk [vmem:[#allocation3 + $0x38] sm:$0xff] %vm2914, %v6862
      %6903 = vst.msk [vmem:[#allocation3 + $0x40] sm:$0xff] %vm2914, %v6864
      %6904 = vst.msk [vmem:[#allocation3 + $0x48] sm:$0xff] %vm2914, %v6866
      %6905 = vst.msk [vmem:[#allocation3 + $0x50] sm:$0xff] %vm2914, %v6868
      %6906 = vst.msk [vmem:[#allocation3 + $0x58] sm:$0xff] %vm2914, %v6870
      %6907 = vst.msk [vmem:[#allocation3 + $0x60] sm:$0xff] %vm2914, %v6872
      %6908 = vst.msk [vmem:[#allocation3 + $0x68] sm:$0xff] %vm2914, %v6874
      %6909 = vst.msk [vmem:[#allocation3 + $0x70] sm:$0xff] %vm2914, %v6876
      %6910 = vst.msk [vmem:[#allocation3 + $0x78] sm:$0xff] %vm2914, %v6878
      %v6911 = vld [vmem:[%s2931] sm:$0xf]
      %v6912 = vld [vmem:[%s2931 + $0x4] sm:$0xf]
      %v6913 = vld [vmem:[%s2931 + $0xc] sm:$0xf]
      %v6914 = vld [vmem:[%s2931 + $0x10] sm:$0xf]
      %v6915 = vld [vmem:[%s2931 + $0x18] sm:$0xf]
      %v6916 = vld [vmem:[%s2931 + $0x1c] sm:$0xf]
      %v6917 = vld [vmem:[%s2931 + $0x24] sm:$0xf]
      %v6918 = vld [vmem:[%s2931 + $0x28] sm:$0xf]
      %v6919 = vld [vmem:[%s2931 + $0x30] sm:$0xf]
      %v6920 = vld [vmem:[%s2931 + $0x34] sm:$0xf]
      %v6921 = vld [vmem:[%s2931 + $0x3c] sm:$0xf]
      %v6922 = vld [vmem:[%s2931 + $0x40] sm:$0xf]
      %v6923 = vld [vmem:[%s2931 + $0x48] sm:$0xf]
      %v6924 = vld [vmem:[%s2931 + $0x4c] sm:$0xf]
      %v6925 = vld [vmem:[%s2931 + $0x54] sm:$0xf]
      %v6926 = vld [vmem:[%s2931 + $0x58] sm:$0xf]
      %v6927 = vld [vmem:[%s2931 + $0x60] sm:$0xf]
      %v6928 = vld [vmem:[%s2931 + $0x64] sm:$0xf]
      %v6929 = vld [vmem:[%s2931 + $0x6c] sm:$0xf]
      %v6930 = vld [vmem:[%s2931 + $0x70] sm:$0xf]
      %v6931 = vld [vmem:[%s2931 + $0x78] sm:$0xf]
      %v6932 = vld [vmem:[%s2931 + $0x7c] sm:$0xf]
      %v6933 = vld [vmem:[%s2931 + $0x84] sm:$0xf]
      %v6934 = vld [vmem:[%s2931 + $0x88] sm:$0xf]
      %v6935 = vld [vmem:[%s2931 + $0x90] sm:$0xf]
      %v6936 = vld [vmem:[%s2931 + $0x94] sm:$0xf]
      %v6937 = vld [vmem:[%s2931 + $0x9c] sm:$0xf]
      %v6938 = vld [vmem:[%s2931 + $0xa0] sm:$0xf]
      %v6939 = vld [vmem:[%s2931 + $0xa8] sm:$0xf]
      %v6940 = vld [vmem:[%s2931 + $0xac] sm:$0xf]
      %v6941 = vld [vmem:[%s2931 + $0xb4] sm:$0xf]
      %v6942 = vld [vmem:[%s2931 + $0xb8] sm:$0xf]
      %v6975 = vunpack.c.l.b16 %v6911
      %v6976 = vunpack.c.l.b16 %v6912
      %v6977 = vunpack.c.l.b16 %v6913
      %v6978 = vunpack.c.l.b16 %v6914
      %v6979 = vunpack.c.l.b16 %v6915
      %v6980 = vunpack.c.l.b16 %v6916
      %v6981 = vunpack.c.l.b16 %v6917
      %v6982 = vunpack.c.l.b16 %v6918
      %v6983 = vunpack.c.l.b16 %v6919
      %v6984 = vunpack.c.l.b16 %v6920
      %v6985 = vunpack.c.l.b16 %v6921
      %v6986 = vunpack.c.l.b16 %v6922
      %v6987 = vunpack.c.l.b16 %v6923
      %v6988 = vunpack.c.l.b16 %v6924
      %v6989 = vunpack.c.l.b16 %v6925
      %v6990 = vunpack.c.l.b16 %v6926
      %v6991 = vunpack.c.l.b16 %v6927
      %v6992 = vunpack.c.l.b16 %v6928
      %v6993 = vunpack.c.l.b16 %v6929
      %v6994 = vunpack.c.l.b16 %v6930
      %v6995 = vunpack.c.l.b16 %v6931
      %v6996 = vunpack.c.l.b16 %v6932
      %v6997 = vunpack.c.l.b16 %v6933
      %v6998 = vunpack.c.l.b16 %v6934
      %v6999 = vunpack.c.l.b16 %v6935
      %v7000 = vunpack.c.l.b16 %v6936
      %v7001 = vunpack.c.l.b16 %v6937
      %v7002 = vunpack.c.l.b16 %v6938
      %v7003 = vunpack.c.l.b16 %v6939
      %v7004 = vunpack.c.l.b16 %v6940
      %v7005 = vunpack.c.l.b16 %v6941
      %v7006 = vunpack.c.l.b16 %v6942
      %v7007 = vpack.c.b16 %v6976, %v6975
      %v7008 = vpack.c.b16 %v6978, %v6977
      %v7009 = vpack.c.b16 %v6980, %v6979
      %v7010 = vpack.c.b16 %v6982, %v6981
      %v7011 = vpack.c.b16 %v6984, %v6983
      %v7012 = vpack.c.b16 %v6986, %v6985
      %v7013 = vpack.c.b16 %v6988, %v6987
      %v7014 = vpack.c.b16 %v6990, %v6989
      %v7015 = vpack.c.b16 %v6992, %v6991
      %v7016 = vpack.c.b16 %v6994, %v6993
      %v7017 = vpack.c.b16 %v6996, %v6995
      %v7018 = vpack.c.b16 %v6998, %v6997
      %v7019 = vpack.c.b16 %v7000, %v6999
      %v7020 = vpack.c.b16 %v7002, %v7001
      %v7021 = vpack.c.b16 %v7004, %v7003
      %v7022 = vpack.c.b16 %v7006, %v7005
      %7023 = vrot.lane.b32.xlu0 %v7007, 24
      %v7024 = vpop.permute.xlu0 %7023
      %7025 = vrot.lane.b32.xlu0 %v7008, 24
      %v7026 = vpop.permute.xlu0 %7025
      %7027 = vrot.lane.b32.xlu0 %v7009, 24
      %v7028 = vpop.permute.xlu0 %7027
      %7029 = vrot.lane.b32.xlu0 %v7010, 24
      %v7030 = vpop.permute.xlu0 %7029
      %7031 = vrot.lane.b32.xlu0 %v7011, 24
      %v7032 = vpop.permute.xlu0 %7031
      %7033 = vrot.lane.b32.xlu0 %v7012, 24
      %v7034 = vpop.permute.xlu0 %7033
      %7035 = vrot.lane.b32.xlu0 %v7013, 24
      %v7036 = vpop.permute.xlu0 %7035
      %7037 = vrot.lane.b32.xlu0 %v7014, 24
      %v7038 = vpop.permute.xlu0 %7037
      %7039 = vrot.lane.b32.xlu0 %v7015, 24
      %v7040 = vpop.permute.xlu0 %7039
      %7041 = vrot.lane.b32.xlu0 %v7016, 24
      %v7042 = vpop.permute.xlu0 %7041
      %7043 = vrot.lane.b32.xlu0 %v7017, 24
      %v7044 = vpop.permute.xlu0 %7043
      %7045 = vrot.lane.b32.xlu0 %v7018, 24
      %v7046 = vpop.permute.xlu0 %7045
      %7047 = vrot.lane.b32.xlu0 %v7019, 24
      %v7048 = vpop.permute.xlu0 %7047
      %7049 = vrot.lane.b32.xlu0 %v7020, 24
      %v7050 = vpop.permute.xlu0 %7049
      %7051 = vrot.lane.b32.xlu0 %v7021, 24
      %v7052 = vpop.permute.xlu0 %7051
      %7053 = vrot.lane.b32.xlu0 %v7022, 24
      %v7054 = vpop.permute.xlu0 %7053
      %7071 = vst.msk [vmem:[#allocation3] sm:$0xff] %vm3092, %v7024
      %7072 = vst.msk [vmem:[#allocation3 + $0x8] sm:$0xff] %vm3092, %v7026
      %7073 = vst.msk [vmem:[#allocation3 + $0x10] sm:$0xff] %vm3092, %v7028
      %7074 = vst.msk [vmem:[#allocation3 + $0x18] sm:$0xff] %vm3092, %v7030
      %7075 = vst.msk [vmem:[#allocation3 + $0x20] sm:$0xff] %vm3092, %v7032
      %7076 = vst.msk [vmem:[#allocation3 + $0x28] sm:$0xff] %vm3092, %v7034
      %7077 = vst.msk [vmem:[#allocation3 + $0x30] sm:$0xff] %vm3092, %v7036
      %7078 = vst.msk [vmem:[#allocation3 + $0x38] sm:$0xff] %vm3092, %v7038
      %7079 = vst.msk [vmem:[#allocation3 + $0x40] sm:$0xff] %vm3092, %v7040
      %7080 = vst.msk [vmem:[#allocation3 + $0x48] sm:$0xff] %vm3092, %v7042
      %7081 = vst.msk [vmem:[#allocation3 + $0x50] sm:$0xff] %vm3092, %v7044
      %7082 = vst.msk [vmem:[#allocation3 + $0x58] sm:$0xff] %vm3092, %v7046
      %7083 = vst.msk [vmem:[#allocation3 + $0x60] sm:$0xff] %vm3092, %v7048
      %7084 = vst.msk [vmem:[#allocation3 + $0x68] sm:$0xff] %vm3092, %v7050
      %7085 = vst.msk [vmem:[#allocation3 + $0x70] sm:$0xff] %vm3092, %v7052
      %7086 = vst.msk [vmem:[#allocation3 + $0x78] sm:$0xff] %vm3092, %v7054
      %v7087 = vld [vmem:[%s2931] sm:$0xf]
      %v7088 = vld [vmem:[%s2931 + $0x4] sm:$0xf]
      %v7089 = vld [vmem:[%s2931 + $0x8] sm:$0x1]
      %v7090 = vld [vmem:[%s2931 + $0xc] sm:$0xf]
      %v7091 = vld [vmem:[%s2931 + $0x10] sm:$0xf]
      %v7092 = vld [vmem:[%s2931 + $0x14] sm:$0x1]
      %v7093 = vld [vmem:[%s2931 + $0x18] sm:$0xf]
      %v7094 = vld [vmem:[%s2931 + $0x1c] sm:$0xf]
      %v7095 = vld [vmem:[%s2931 + $0x20] sm:$0x1]
      %v7096 = vld [vmem:[%s2931 + $0x24] sm:$0xf]
      %v7097 = vld [vmem:[%s2931 + $0x28] sm:$0xf]
      %v7098 = vld [vmem:[%s2931 + $0x2c] sm:$0x1]
      %v7099 = vld [vmem:[%s2931 + $0x30] sm:$0xf]
      %v7100 = vld [vmem:[%s2931 + $0x34] sm:$0xf]
      %v7101 = vld [vmem:[%s2931 + $0x38] sm:$0x1]
      %v7102 = vld [vmem:[%s2931 + $0x3c] sm:$0xf]
      %v7103 = vld [vmem:[%s2931 + $0x40] sm:$0xf]
      %v7104 = vld [vmem:[%s2931 + $0x44] sm:$0x1]
      %v7105 = vld [vmem:[%s2931 + $0x48] sm:$0xf]
      %v7106 = vld [vmem:[%s2931 + $0x4c] sm:$0xf]
      %v7107 = vld [vmem:[%s2931 + $0x50] sm:$0x1]
      %v7108 = vld [vmem:[%s2931 + $0x54] sm:$0xf]
      %v7109 = vld [vmem:[%s2931 + $0x58] sm:$0xf]
      %v7110 = vld [vmem:[%s2931 + $0x5c] sm:$0x1]
      %v7111 = vld [vmem:[%s2931 + $0x60] sm:$0xf]
      %v7112 = vld [vmem:[%s2931 + $0x64] sm:$0xf]
      %v7113 = vld [vmem:[%s2931 + $0x68] sm:$0x1]
      %v7114 = vld [vmem:[%s2931 + $0x6c] sm:$0xf]
      %v7115 = vld [vmem:[%s2931 + $0x70] sm:$0xf]
      %v7116 = vld [vmem:[%s2931 + $0x74] sm:$0x1]
      %v7117 = vld [vmem:[%s2931 + $0x78] sm:$0xf]
      %v7118 = vld [vmem:[%s2931 + $0x7c] sm:$0xf]
      %v7119 = vld [vmem:[%s2931 + $0x80] sm:$0x1]
      %v7120 = vld [vmem:[%s2931 + $0x84] sm:$0xf]
      %v7121 = vld [vmem:[%s2931 + $0x88] sm:$0xf]
      %v7122 = vld [vmem:[%s2931 + $0x8c] sm:$0x1]
      %v7123 = vld [vmem:[%s2931 + $0x90] sm:$0xf]
      %v7124 = vld [vmem:[%s2931 + $0x94] sm:$0xf]
      %v7125 = vld [vmem:[%s2931 + $0x98] sm:$0x1]
      %v7126 = vld [vmem:[%s2931 + $0x9c] sm:$0xf]
      %v7127 = vld [vmem:[%s2931 + $0xa0] sm:$0xf]
      %v7128 = vld [vmem:[%s2931 + $0xa4] sm:$0x1]
      %v7129 = vld [vmem:[%s2931 + $0xa8] sm:$0xf]
      %v7130 = vld [vmem:[%s2931 + $0xac] sm:$0xf]
      %v7131 = vld [vmem:[%s2931 + $0xb0] sm:$0x1]
      %v7132 = vld [vmem:[%s2931 + $0xb4] sm:$0xf]
      %v7133 = vld [vmem:[%s2931 + $0xb8] sm:$0xf]
      %v7134 = vld [vmem:[%s2931 + $0xbc] sm:$0x1]
      %v7136 = vshrl.u32 %v7087, 16
      %v7138 = vrot.slane %v7136, 4
      %v7139 = vshll.u32 %v7087, 16
      %v7141 = vrot.slane %v7139, 5
      %v7142 = vor.u32 %v7138, %v7141
      %v7143 = vrot.slane %v7142, 4
      %v7145 = vshll.u32 %v7088, 16
      %v7147 = vrot.slane %v7145, 5
      %v7148 = vsel %vm1066, %v7143, %v7147
      %v7149 = vshrl.u32 %v7088, 16
      %v7151 = vrot.slane %v7149, 4
      %v7152 = vor.u32 %v7151, %v7147
      %v7153 = vrot.slane %v7152, 4
      %v7155 = vshll.u32 %v7089, 16
      %v7157 = vrot.slane %v7155, 5
      %v7158 = vsel %vm1066, %v7153, %v7157
      %v7160 = vshrl.u32 %v7090, 16
      %v7162 = vrot.slane %v7160, 4
      %v7163 = vshll.u32 %v7090, 16
      %v7165 = vrot.slane %v7163, 5
      %v7166 = vor.u32 %v7162, %v7165
      %v7167 = vrot.slane %v7166, 4
      %v7169 = vshll.u32 %v7091, 16
      %v7171 = vrot.slane %v7169, 5
      %v7172 = vsel %vm1066, %v7167, %v7171
      %v7173 = vshrl.u32 %v7091, 16
      %v7175 = vrot.slane %v7173, 4
      %v7176 = vor.u32 %v7175, %v7171
      %v7177 = vrot.slane %v7176, 4
      %v7179 = vshll.u32 %v7092, 16
      %v7181 = vrot.slane %v7179, 5
      %v7182 = vsel %vm1066, %v7177, %v7181
      %v7184 = vshrl.u32 %v7093, 16
      %v7186 = vrot.slane %v7184, 4
      %v7187 = vshll.u32 %v7093, 16
      %v7189 = vrot.slane %v7187, 5
      %v7190 = vor.u32 %v7186, %v7189
      %v7191 = vrot.slane %v7190, 4
      %v7193 = vshll.u32 %v7094, 16
      %v7195 = vrot.slane %v7193, 5
      %v7196 = vsel %vm1066, %v7191, %v7195
      %v7197 = vshrl.u32 %v7094, 16
      %v7199 = vrot.slane %v7197, 4
      %v7200 = vor.u32 %v7199, %v7195
      %v7201 = vrot.slane %v7200, 4
      %v7203 = vshll.u32 %v7095, 16
      %v7205 = vrot.slane %v7203, 5
      %v7206 = vsel %vm1066, %v7201, %v7205
      %v7208 = vshrl.u32 %v7096, 16
      %v7210 = vrot.slane %v7208, 4
      %v7211 = vshll.u32 %v7096, 16
      %v7213 = vrot.slane %v7211, 5
      %v7214 = vor.u32 %v7210, %v7213
      %v7215 = vrot.slane %v7214, 4
      %v7217 = vshll.u32 %v7097, 16
      %v7219 = vrot.slane %v7217, 5
      %v7220 = vsel %vm1066, %v7215, %v7219
      %v7221 = vshrl.u32 %v7097, 16
      %v7223 = vrot.slane %v7221, 4
      %v7224 = vor.u32 %v7223, %v7219
      %v7225 = vrot.slane %v7224, 4
      %v7227 = vshll.u32 %v7098, 16
      %v7229 = vrot.slane %v7227, 5
      %v7230 = vsel %vm1066, %v7225, %v7229
      %v7232 = vshrl.u32 %v7099, 16
      %v7234 = vrot.slane %v7232, 4
      %v7235 = vshll.u32 %v7099, 16
      %v7237 = vrot.slane %v7235, 5
      %v7238 = vor.u32 %v7234, %v7237
      %v7239 = vrot.slane %v7238, 4
      %v7241 = vshll.u32 %v7100, 16
      %v7243 = vrot.slane %v7241, 5
      %v7244 = vsel %vm1066, %v7239, %v7243
      %v7245 = vshrl.u32 %v7100, 16
      %v7247 = vrot.slane %v7245, 4
      %v7248 = vor.u32 %v7247, %v7243
      %v7249 = vrot.slane %v7248, 4
      %v7251 = vshll.u32 %v7101, 16
      %v7253 = vrot.slane %v7251, 5
      %v7254 = vsel %vm1066, %v7249, %v7253
      %v7256 = vshrl.u32 %v7102, 16
      %v7258 = vrot.slane %v7256, 4
      %v7259 = vshll.u32 %v7102, 16
      %v7261 = vrot.slane %v7259, 5
      %v7262 = vor.u32 %v7258, %v7261
      %v7263 = vrot.slane %v7262, 4
      %v7265 = vshll.u32 %v7103, 16
      %v7267 = vrot.slane %v7265, 5
      %v7268 = vsel %vm1066, %v7263, %v7267
      %v7269 = vshrl.u32 %v7103, 16
      %v7271 = vrot.slane %v7269, 4
      %v7272 = vor.u32 %v7271, %v7267
      %v7273 = vrot.slane %v7272, 4
      %v7275 = vshll.u32 %v7104, 16
      %v7277 = vrot.slane %v7275, 5
      %v7278 = vsel %vm1066, %v7273, %v7277
      %v7280 = vshrl.u32 %v7105, 16
      %v7282 = vrot.slane %v7280, 4
      %v7283 = vshll.u32 %v7105, 16
      %v7285 = vrot.slane %v7283, 5
      %v7286 = vor.u32 %v7282, %v7285
      %v7287 = vrot.slane %v7286, 4
      %v7289 = vshll.u32 %v7106, 16
      %v7291 = vrot.slane %v7289, 5
      %v7292 = vsel %vm1066, %v7287, %v7291
      %v7293 = vshrl.u32 %v7106, 16
      %v7295 = vrot.slane %v7293, 4
      %v7296 = vor.u32 %v7295, %v7291
      %v7297 = vrot.slane %v7296, 4
      %v7299 = vshll.u32 %v7107, 16
      %v7301 = vrot.slane %v7299, 5
      %v7302 = vsel %vm1066, %v7297, %v7301
      %v7304 = vshrl.u32 %v7108, 16
      %v7306 = vrot.slane %v7304, 4
      %v7307 = vshll.u32 %v7108, 16
      %v7309 = vrot.slane %v7307, 5
      %v7310 = vor.u32 %v7306, %v7309
      %v7311 = vrot.slane %v7310, 4
      %v7313 = vshll.u32 %v7109, 16
      %v7315 = vrot.slane %v7313, 5
      %v7316 = vsel %vm1066, %v7311, %v7315
      %v7317 = vshrl.u32 %v7109, 16
      %v7319 = vrot.slane %v7317, 4
      %v7320 = vor.u32 %v7319, %v7315
      %v7321 = vrot.slane %v7320, 4
      %v7323 = vshll.u32 %v7110, 16
      %v7325 = vrot.slane %v7323, 5
      %v7326 = vsel %vm1066, %v7321, %v7325
      %v7328 = vshrl.u32 %v7111, 16
      %v7330 = vrot.slane %v7328, 4
      %v7331 = vshll.u32 %v7111, 16
      %v7333 = vrot.slane %v7331, 5
      %v7334 = vor.u32 %v7330, %v7333
      %v7335 = vrot.slane %v7334, 4
      %v7337 = vshll.u32 %v7112, 16
      %v7339 = vrot.slane %v7337, 5
      %v7340 = vsel %vm1066, %v7335, %v7339
      %v7341 = vshrl.u32 %v7112, 16
      %v7343 = vrot.slane %v7341, 4
      %v7344 = vor.u32 %v7343, %v7339
      %v7345 = vrot.slane %v7344, 4
      %v7347 = vshll.u32 %v7113, 16
      %v7349 = vrot.slane %v7347, 5
      %v7350 = vsel %vm1066, %v7345, %v7349
      %v7352 = vshrl.u32 %v7114, 16
      %v7354 = vrot.slane %v7352, 4
      %v7355 = vshll.u32 %v7114, 16
      %v7357 = vrot.slane %v7355, 5
      %v7358 = vor.u32 %v7354, %v7357
      %v7359 = vrot.slane %v7358, 4
      %v7361 = vshll.u32 %v7115, 16
      %v7363 = vrot.slane %v7361, 5
      %v7364 = vsel %vm1066, %v7359, %v7363
      %v7365 = vshrl.u32 %v7115, 16
      %v7367 = vrot.slane %v7365, 4
      %v7368 = vor.u32 %v7367, %v7363
      %v7369 = vrot.slane %v7368, 4
      %v7371 = vshll.u32 %v7116, 16
      %v7373 = vrot.slane %v7371, 5
      %v7374 = vsel %vm1066, %v7369, %v7373
      %v7376 = vshrl.u32 %v7117, 16
      %v7378 = vrot.slane %v7376, 4
      %v7379 = vshll.u32 %v7117, 16
      %v7381 = vrot.slane %v7379, 5
      %v7382 = vor.u32 %v7378, %v7381
      %v7383 = vrot.slane %v7382, 4
      %v7385 = vshll.u32 %v7118, 16
      %v7387 = vrot.slane %v7385, 5
      %v7388 = vsel %vm1066, %v7383, %v7387
      %v7389 = vshrl.u32 %v7118, 16
      %v7391 = vrot.slane %v7389, 4
      %v7392 = vor.u32 %v7391, %v7387
      %v7393 = vrot.slane %v7392, 4
      %v7395 = vshll.u32 %v7119, 16
      %v7397 = vrot.slane %v7395, 5
      %v7398 = vsel %vm1066, %v7393, %v7397
      %v7400 = vshrl.u32 %v7120, 16
      %v7402 = vrot.slane %v7400, 4
      %v7403 = vshll.u32 %v7120, 16
      %v7405 = vrot.slane %v7403, 5
      %v7406 = vor.u32 %v7402, %v7405
      %v7407 = vrot.slane %v7406, 4
      %v7409 = vshll.u32 %v7121, 16
      %v7411 = vrot.slane %v7409, 5
      %v7412 = vsel %vm1066, %v7407, %v7411
      %v7413 = vshrl.u32 %v7121, 16
      %v7415 = vrot.slane %v7413, 4
      %v7416 = vor.u32 %v7415, %v7411
      %v7417 = vrot.slane %v7416, 4
      %v7419 = vshll.u32 %v7122, 16
      %v7421 = vrot.slane %v7419, 5
      %v7422 = vsel %vm1066, %v7417, %v7421
      %v7424 = vshrl.u32 %v7123, 16
      %v7426 = vrot.slane %v7424, 4
      %v7427 = vshll.u32 %v7123, 16
      %v7429 = vrot.slane %v7427, 5
      %v7430 = vor.u32 %v7426, %v7429
      %v7431 = vrot.slane %v7430, 4
      %v7433 = vshll.u32 %v7124, 16
      %v7435 = vrot.slane %v7433, 5
      %v7436 = vsel %vm1066, %v7431, %v7435
      %v7437 = vshrl.u32 %v7124, 16
      %v7439 = vrot.slane %v7437, 4
      %v7440 = vor.u32 %v7439, %v7435
      %v7441 = vrot.slane %v7440, 4
      %v7443 = vshll.u32 %v7125, 16
      %v7445 = vrot.slane %v7443, 5
      %v7446 = vsel %vm1066, %v7441, %v7445
      %v7448 = vshrl.u32 %v7126, 16
      %v7450 = vrot.slane %v7448, 4
      %v7451 = vshll.u32 %v7126, 16
      %v7453 = vrot.slane %v7451, 5
      %v7454 = vor.u32 %v7450, %v7453
      %v7455 = vrot.slane %v7454, 4
      %v7457 = vshll.u32 %v7127, 16
      %v7459 = vrot.slane %v7457, 5
      %v7460 = vsel %vm1066, %v7455, %v7459
      %v7461 = vshrl.u32 %v7127, 16
      %v7463 = vrot.slane %v7461, 4
      %v7464 = vor.u32 %v7463, %v7459
      %v7465 = vrot.slane %v7464, 4
      %v7467 = vshll.u32 %v7128, 16
      %v7469 = vrot.slane %v7467, 5
      %v7470 = vsel %vm1066, %v7465, %v7469
      %v7472 = vshrl.u32 %v7129, 16
      %v7474 = vrot.slane %v7472, 4
      %v7475 = vshll.u32 %v7129, 16
      %v7477 = vrot.slane %v7475, 5
      %v7478 = vor.u32 %v7474, %v7477
      %v7479 = vrot.slane %v7478, 4
      %v7481 = vshll.u32 %v7130, 16
      %v7483 = vrot.slane %v7481, 5
      %v7484 = vsel %vm1066, %v7479, %v7483
      %v7485 = vshrl.u32 %v7130, 16
      %v7487 = vrot.slane %v7485, 4
      %v7488 = vor.u32 %v7487, %v7483
      %v7489 = vrot.slane %v7488, 4
      %v7491 = vshll.u32 %v7131, 16
      %v7493 = vrot.slane %v7491, 5
      %v7494 = vsel %vm1066, %v7489, %v7493
      %v7496 = vshrl.u32 %v7132, 16
      %v7498 = vrot.slane %v7496, 4
      %v7499 = vshll.u32 %v7132, 16
      %v7501 = vrot.slane %v7499, 5
      %v7502 = vor.u32 %v7498, %v7501
      %v7503 = vrot.slane %v7502, 4
      %v7505 = vshll.u32 %v7133, 16
      %v7507 = vrot.slane %v7505, 5
      %v7508 = vsel %vm1066, %v7503, %v7507
      %v7509 = vshrl.u32 %v7133, 16
      %v7511 = vrot.slane %v7509, 4
      %v7512 = vor.u32 %v7511, %v7507
      %v7513 = vrot.slane %v7512, 4
      %v7515 = vshll.u32 %v7134, 16
      %v7517 = vrot.slane %v7515, 5
      %v7518 = vsel %vm1066, %v7513, %v7517
      %v7519 = vunpack.c.l.b16 %v7148
      %v7520 = vunpack.c.l.b16 %v7158
      %v7521 = vunpack.c.l.b16 %v7172
      %v7522 = vunpack.c.l.b16 %v7182
      %v7523 = vunpack.c.l.b16 %v7196
      %v7524 = vunpack.c.l.b16 %v7206
      %v7525 = vunpack.c.l.b16 %v7220
      %v7526 = vunpack.c.l.b16 %v7230
      %v7527 = vunpack.c.l.b16 %v7244
      %v7528 = vunpack.c.l.b16 %v7254
      %v7529 = vunpack.c.l.b16 %v7268
      %v7530 = vunpack.c.l.b16 %v7278
      %v7531 = vunpack.c.l.b16 %v7292
      %v7532 = vunpack.c.l.b16 %v7302
      %v7533 = vunpack.c.l.b16 %v7316
      %v7534 = vunpack.c.l.b16 %v7326
      %v7535 = vunpack.c.l.b16 %v7340
      %v7536 = vunpack.c.l.b16 %v7350
      %v7537 = vunpack.c.l.b16 %v7364
      %v7538 = vunpack.c.l.b16 %v7374
      %v7539 = vunpack.c.l.b16 %v7388
      %v7540 = vunpack.c.l.b16 %v7398
      %v7541 = vunpack.c.l.b16 %v7412
      %v7542 = vunpack.c.l.b16 %v7422
      %v7543 = vunpack.c.l.b16 %v7436
      %v7544 = vunpack.c.l.b16 %v7446
      %v7545 = vunpack.c.l.b16 %v7460
      %v7546 = vunpack.c.l.b16 %v7470
      %v7547 = vunpack.c.l.b16 %v7484
      %v7548 = vunpack.c.l.b16 %v7494
      %v7549 = vunpack.c.l.b16 %v7508
      %v7550 = vunpack.c.l.b16 %v7518
      %v7551 = vpack.c.b16 %v7520, %v7519
      %v7552 = vpack.c.b16 %v7522, %v7521
      %v7553 = vpack.c.b16 %v7524, %v7523
      %v7554 = vpack.c.b16 %v7526, %v7525
      %v7555 = vpack.c.b16 %v7528, %v7527
      %v7556 = vpack.c.b16 %v7530, %v7529
      %v7557 = vpack.c.b16 %v7532, %v7531
      %v7558 = vpack.c.b16 %v7534, %v7533
      %v7559 = vpack.c.b16 %v7536, %v7535
      %v7560 = vpack.c.b16 %v7538, %v7537
      %v7561 = vpack.c.b16 %v7540, %v7539
      %v7562 = vpack.c.b16 %v7542, %v7541
      %v7563 = vpack.c.b16 %v7544, %v7543
      %v7564 = vpack.c.b16 %v7546, %v7545
      %v7565 = vpack.c.b16 %v7548, %v7547
      %v7566 = vpack.c.b16 %v7550, %v7549
      %7567 = vrot.lane.b32.xlu0 %v7551, 28
      %v7568 = vpop.permute.xlu0 %7567
      %7569 = vrot.lane.b32.xlu0 %v7552, 28
      %v7570 = vpop.permute.xlu0 %7569
      %7571 = vrot.lane.b32.xlu0 %v7553, 28
      %v7572 = vpop.permute.xlu0 %7571
      %7573 = vrot.lane.b32.xlu0 %v7554, 28
      %v7574 = vpop.permute.xlu0 %7573
      %7575 = vrot.lane.b32.xlu0 %v7555, 28
      %v7576 = vpop.permute.xlu0 %7575
      %7577 = vrot.lane.b32.xlu0 %v7556, 28
      %v7578 = vpop.permute.xlu0 %7577
      %7579 = vrot.lane.b32.xlu0 %v7557, 28
      %v7580 = vpop.permute.xlu0 %7579
      %7581 = vrot.lane.b32.xlu0 %v7558, 28
      %v7582 = vpop.permute.xlu0 %7581
      %7583 = vrot.lane.b32.xlu0 %v7559, 28
      %v7584 = vpop.permute.xlu0 %7583
      %7585 = vrot.lane.b32.xlu0 %v7560, 28
      %v7586 = vpop.permute.xlu0 %7585
      %7587 = vrot.lane.b32.xlu0 %v7561, 28
      %v7588 = vpop.permute.xlu0 %7587
      %7589 = vrot.lane.b32.xlu0 %v7562, 28
      %v7590 = vpop.permute.xlu0 %7589
      %7591 = vrot.lane.b32.xlu0 %v7563, 28
      %v7592 = vpop.permute.xlu0 %7591
      %7593 = vrot.lane.b32.xlu0 %v7564, 28
      %v7594 = vpop.permute.xlu0 %7593
      %7595 = vrot.lane.b32.xlu0 %v7565, 28
      %v7596 = vpop.permute.xlu0 %7595
      %7597 = vrot.lane.b32.xlu0 %v7566, 28
      %v7598 = vpop.permute.xlu0 %7597
      %7615 = vst.msk [vmem:[#allocation3] sm:$0xff] %vm3637, %v7568
      %7616 = vst.msk [vmem:[#allocation3 + $0x8] sm:$0xff] %vm3637, %v7570
      %7617 = vst.msk [vmem:[#allocation3 + $0x10] sm:$0xff] %vm3637, %v7572
      %7618 = vst.msk [vmem:[#allocation3 + $0x18] sm:$0xff] %vm3637, %v7574
      %7619 = vst.msk [vmem:[#allocation3 + $0x20] sm:$0xff] %vm3637, %v7576
      %7620 = vst.msk [vmem:[#allocation3 + $0x28] sm:$0xff] %vm3637, %v7578
      %7621 = vst.msk [vmem:[#allocation3 + $0x30] sm:$0xff] %vm3637, %v7580
      %7622 = vst.msk [vmem:[#allocation3 + $0x38] sm:$0xff] %vm3637, %v7582
      %7623 = vst.msk [vmem:[#allocation3 + $0x40] sm:$0xff] %vm3637, %v7584
      %7624 = vst.msk [vmem:[#allocation3 + $0x48] sm:$0xff] %vm3637, %v7586
      %7625 = vst.msk [vmem:[#allocation3 + $0x50] sm:$0xff] %vm3637, %v7588
      %7626 = vst.msk [vmem:[#allocation3 + $0x58] sm:$0xff] %vm3637, %v7590
      %7627 = vst.msk [vmem:[#allocation3 + $0x60] sm:$0xff] %vm3637, %v7592
      %7628 = vst.msk [vmem:[#allocation3 + $0x68] sm:$0xff] %vm3637, %v7594
      %7629 = vst.msk [vmem:[#allocation3 + $0x70] sm:$0xff] %vm3637, %v7596
      %7630 = vst.msk [vmem:[#allocation3 + $0x78] sm:$0xff] %vm3637, %v7598
      %v7631 = vld [vmem:[%s2931] sm:$0xe]
      %v7632 = vld [vmem:[%s2931 + $0x4] sm:$0xf]
      %v7633 = vld [vmem:[%s2931 + $0x8] sm:$0x1]
      %v7634 = vld [vmem:[%s2931 + $0xc] sm:$0xe]
      %v7635 = vld [vmem:[%s2931 + $0x10] sm:$0xf]
      %v7636 = vld [vmem:[%s2931 + $0x14] sm:$0x1]
      %v7637 = vld [vmem:[%s2931 + $0x18] sm:$0xe]
      %v7638 = vld [vmem:[%s2931 + $0x1c] sm:$0xf]
      %v7639 = vld [vmem:[%s2931 + $0x20] sm:$0x1]
      %v7640 = vld [vmem:[%s2931 + $0x24] sm:$0xe]
      %v7641 = vld [vmem:[%s2931 + $0x28] sm:$0xf]
      %v7642 = vld [vmem:[%s2931 + $0x2c] sm:$0x1]
      %v7643 = vld [vmem:[%s2931 + $0x30] sm:$0xe]
      %v7644 = vld [vmem:[%s2931 + $0x34] sm:$0xf]
      %v7645 = vld [vmem:[%s2931 + $0x38] sm:$0x1]
      %v7646 = vld [vmem:[%s2931 + $0x3c] sm:$0xe]
      %v7647 = vld [vmem:[%s2931 + $0x40] sm:$0xf]
      %v7648 = vld [vmem:[%s2931 + $0x44] sm:$0x1]
      %v7649 = vld [vmem:[%s2931 + $0x48] sm:$0xe]
      %v7650 = vld [vmem:[%s2931 + $0x4c] sm:$0xf]
      %v7651 = vld [vmem:[%s2931 + $0x50] sm:$0x1]
      %v7652 = vld [vmem:[%s2931 + $0x54] sm:$0xe]
      %v7653 = vld [vmem:[%s2931 + $0x58] sm:$0xf]
      %v7654 = vld [vmem:[%s2931 + $0x5c] sm:$0x1]
      %v7655 = vld [vmem:[%s2931 + $0x60] sm:$0xe]
      %v7656 = vld [vmem:[%s2931 + $0x64] sm:$0xf]
      %v7657 = vld [vmem:[%s2931 + $0x68] sm:$0x1]
      %v7658 = vld [vmem:[%s2931 + $0x6c] sm:$0xe]
      %v7659 = vld [vmem:[%s2931 + $0x70] sm:$0xf]
      %v7660 = vld [vmem:[%s2931 + $0x74] sm:$0x1]
      %v7661 = vld [vmem:[%s2931 + $0x78] sm:$0xe]
      %v7662 = vld [vmem:[%s2931 + $0x7c] sm:$0xf]
      %v7663 = vld [vmem:[%s2931 + $0x80] sm:$0x1]
      %v7664 = vld [vmem:[%s2931 + $0x84] sm:$0xe]
      %v7665 = vld [vmem:[%s2931 + $0x88] sm:$0xf]
      %v7666 = vld [vmem:[%s2931 + $0x8c] sm:$0x1]
      %v7667 = vld [vmem:[%s2931 + $0x90] sm:$0xe]
      %v7668 = vld [vmem:[%s2931 + $0x94] sm:$0xf]
      %v7669 = vld [vmem:[%s2931 + $0x98] sm:$0x1]
      %v7670 = vld [vmem:[%s2931 + $0x9c] sm:$0xe]
      %v7671 = vld [vmem:[%s2931 + $0xa0] sm:$0xf]
      %v7672 = vld [vmem:[%s2931 + $0xa4] sm:$0x1]
      %v7673 = vld [vmem:[%s2931 + $0xa8] sm:$0xe]
      %v7674 = vld [vmem:[%s2931 + $0xac] sm:$0xf]
      %v7675 = vld [vmem:[%s2931 + $0xb0] sm:$0x1]
      %v7676 = vld [vmem:[%s2931 + $0xb4] sm:$0xe]
      %v7677 = vld [vmem:[%s2931 + $0xb8] sm:$0xf]
      %v7678 = vld [vmem:[%s2931 + $0xbc] sm:$0x1]
      %v7727 = vrot.slane %v7631, 5
      %v7728 = vrot.slane %v7727, 4
      %v7729 = vrot.slane %v7632, 5
      %v7730 = vsel %vm1662, %v7728, %v7729
      %v7731 = vrot.slane %v7729, 4
      %v7732 = vrot.slane %v7633, 5
      %v7733 = vsel %vm1662, %v7731, %v7732
      %v7734 = vrot.slane %v7634, 5
      %v7735 = vrot.slane %v7734, 4
      %v7736 = vrot.slane %v7635, 5
      %v7737 = vsel %vm1662, %v7735, %v7736
      %v7738 = vrot.slane %v7736, 4
      %v7739 = vrot.slane %v7636, 5
      %v7740 = vsel %vm1662, %v7738, %v7739
      %v7741 = vrot.slane %v7637, 5
      %v7742 = vrot.slane %v7741, 4
      %v7743 = vrot.slane %v7638, 5
      %v7744 = vsel %vm1662, %v7742, %v7743
      %v7745 = vrot.slane %v7743, 4
      %v7746 = vrot.slane %v7639, 5
      %v7747 = vsel %vm1662, %v7745, %v7746
      %v7748 = vrot.slane %v7640, 5
      %v7749 = vrot.slane %v7748, 4
      %v7750 = vrot.slane %v7641, 5
      %v7751 = vsel %vm1662, %v7749, %v7750
      %v7752 = vrot.slane %v7750, 4
      %v7753 = vrot.slane %v7642, 5
      %v7754 = vsel %vm1662, %v7752, %v7753
      %v7755 = vrot.slane %v7643, 5
      %v7756 = vrot.slane %v7755, 4
      %v7757 = vrot.slane %v7644, 5
      %v7758 = vsel %vm1662, %v7756, %v7757
      %v7759 = vrot.slane %v7757, 4
      %v7760 = vrot.slane %v7645, 5
      %v7761 = vsel %vm1662, %v7759, %v7760
      %v7762 = vrot.slane %v7646, 5
      %v7763 = vrot.slane %v7762, 4
      %v7764 = vrot.slane %v7647, 5
      %v7765 = vsel %vm1662, %v7763, %v7764
      %v7766 = vrot.slane %v7764, 4
      %v7767 = vrot.slane %v7648, 5
      %v7768 = vsel %vm1662, %v7766, %v7767
      %v7769 = vrot.slane %v7649, 5
      %v7770 = vrot.slane %v7769, 4
      %v7771 = vrot.slane %v7650, 5
      %v7772 = vsel %vm1662, %v7770, %v7771
      %v7773 = vrot.slane %v7771, 4
      %v7774 = vrot.slane %v7651, 5
      %v7775 = vsel %vm1662, %v7773, %v7774
      %v7776 = vrot.slane %v7652, 5
      %v7777 = vrot.slane %v7776, 4
      %v7778 = vrot.slane %v7653, 5
      %v7779 = vsel %vm1662, %v7777, %v7778
      %v7780 = vrot.slane %v7778, 4
      %v7781 = vrot.slane %v7654, 5
      %v7782 = vsel %vm1662, %v7780, %v7781
      %v7783 = vrot.slane %v7655, 5
      %v7784 = vrot.slane %v7783, 4
      %v7785 = vrot.slane %v7656, 5
      %v7786 = vsel %vm1662, %v7784, %v7785
      %v7787 = vrot.slane %v7785, 4
      %v7788 = vrot.slane %v7657, 5
      %v7789 = vsel %vm1662, %v7787, %v7788
      %v7790 = vrot.slane %v7658, 5
      %v7791 = vrot.slane %v7790, 4
      %v7792 = vrot.slane %v7659, 5
      %v7793 = vsel %vm1662, %v7791, %v7792
      %v7794 = vrot.slane %v7792, 4
      %v7795 = vrot.slane %v7660, 5
      %v7796 = vsel %vm1662, %v7794, %v7795
      %v7797 = vrot.slane %v7661, 5
      %v7798 = vrot.slane %v7797, 4
      %v7799 = vrot.slane %v7662, 5
      %v7800 = vsel %vm1662, %v7798, %v7799
      %v7801 = vrot.slane %v7799, 4
      %v7802 = vrot.slane %v7663, 5
      %v7803 = vsel %vm1662, %v7801, %v7802
      %v7804 = vrot.slane %v7664, 5
      %v7805 = vrot.slane %v7804, 4
      %v7806 = vrot.slane %v7665, 5
      %v7807 = vsel %vm1662, %v7805, %v7806
      %v7808 = vrot.slane %v7806, 4
      %v7809 = vrot.slane %v7666, 5
      %v7810 = vsel %vm1662, %v7808, %v7809
      %v7811 = vrot.slane %v7667, 5
      %v7812 = vrot.slane %v7811, 4
      %v7813 = vrot.slane %v7668, 5
      %v7814 = vsel %vm1662, %v7812, %v7813
      %v7815 = vrot.slane %v7813, 4
      %v7816 = vrot.slane %v7669, 5
      %v7817 = vsel %vm1662, %v7815, %v7816
      %v7818 = vrot.slane %v7670, 5
      %v7819 = vrot.slane %v7818, 4
      %v7820 = vrot.slane %v7671, 5
      %v7821 = vsel %vm1662, %v7819, %v7820
      %v7822 = vrot.slane %v7820, 4
      %v7823 = vrot.slane %v7672, 5
      %v7824 = vsel %vm1662, %v7822, %v7823
      %v7825 = vrot.slane %v7673, 5
      %v7826 = vrot.slane %v7825, 4
      %v7827 = vrot.slane %v7674, 5
      %v7828 = vsel %vm1662, %v7826, %v7827
      %v7829 = vrot.slane %v7827, 4
      %v7830 = vrot.slane %v7675, 5
      %v7831 = vsel %vm1662, %v7829, %v7830
      %v7832 = vrot.slane %v7676, 5
      %v7833 = vrot.slane %v7832, 4
      %v7834 = vrot.slane %v7677, 5
      %v7835 = vsel %vm1662, %v7833, %v7834
      %v7836 = vrot.slane %v7834, 4
      %v7837 = vrot.slane %v7678, 5
      %v7838 = vsel %vm1662, %v7836, %v7837
      %v7839 = vunpack.c.l.b16 %v7730
      %v7840 = vunpack.c.l.b16 %v7733
      %v7841 = vunpack.c.l.b16 %v7737
      %v7842 = vunpack.c.l.b16 %v7740
      %v7843 = vunpack.c.l.b16 %v7744
      %v7844 = vunpack.c.l.b16 %v7747
      %v7845 = vunpack.c.l.b16 %v7751
      %v7846 = vunpack.c.l.b16 %v7754
      %v7847 = vunpack.c.l.b16 %v7758
      %v7848 = vunpack.c.l.b16 %v7761
      %v7849 = vunpack.c.l.b16 %v7765
      %v7850 = vunpack.c.l.b16 %v7768
      %v7851 = vunpack.c.l.b16 %v7772
      %v7852 = vunpack.c.l.b16 %v7775
      %v7853 = vunpack.c.l.b16 %v7779
      %v7854 = vunpack.c.l.b16 %v7782
      %v7855 = vunpack.c.l.b16 %v7786
      %v7856 = vunpack.c.l.b16 %v7789
      %v7857 = vunpack.c.l.b16 %v7793
      %v7858 = vunpack.c.l.b16 %v7796
      %v7859 = vunpack.c.l.b16 %v7800
      %v7860 = vunpack.c.l.b16 %v7803
      %v7861 = vunpack.c.l.b16 %v7807
      %v7862 = vunpack.c.l.b16 %v7810
      %v7863 = vunpack.c.l.b16 %v7814
      %v7864 = vunpack.c.l.b16 %v7817
      %v7865 = vunpack.c.l.b16 %v7821
      %v7866 = vunpack.c.l.b16 %v7824
      %v7867 = vunpack.c.l.b16 %v7828
      %v7868 = vunpack.c.l.b16 %v7831
      %v7869 = vunpack.c.l.b16 %v7835
      %v7870 = vunpack.c.l.b16 %v7838
      %v7871 = vpack.c.b16 %v7840, %v7839
      %v7872 = vpack.c.b16 %v7842, %v7841
      %v7873 = vpack.c.b16 %v7844, %v7843
      %v7874 = vpack.c.b16 %v7846, %v7845
      %v7875 = vpack.c.b16 %v7848, %v7847
      %v7876 = vpack.c.b16 %v7850, %v7849
      %v7877 = vpack.c.b16 %v7852, %v7851
      %v7878 = vpack.c.b16 %v7854, %v7853
      %v7879 = vpack.c.b16 %v7856, %v7855
      %v7880 = vpack.c.b16 %v7858, %v7857
      %v7881 = vpack.c.b16 %v7860, %v7859
      %v7882 = vpack.c.b16 %v7862, %v7861
      %v7883 = vpack.c.b16 %v7864, %v7863
      %v7884 = vpack.c.b16 %v7866, %v7865
      %v7885 = vpack.c.b16 %v7868, %v7867
      %v7886 = vpack.c.b16 %v7870, %v7869
      %7887 = vrot.lane.b32.xlu0 %v7871, 32
      %v7888 = vpop.permute.xlu0 %7887
      %7889 = vrot.lane.b32.xlu0 %v7872, 32
      %v7890 = vpop.permute.xlu0 %7889
      %7891 = vrot.lane.b32.xlu0 %v7873, 32
      %v7892 = vpop.permute.xlu0 %7891
      %7893 = vrot.lane.b32.xlu0 %v7874, 32
      %v7894 = vpop.permute.xlu0 %7893
      %7895 = vrot.lane.b32.xlu0 %v7875, 32
      %v7896 = vpop.permute.xlu0 %7895
      %7897 = vrot.lane.b32.xlu0 %v7876, 32
      %v7898 = vpop.permute.xlu0 %7897
      %7899 = vrot.lane.b32.xlu0 %v7877, 32
      %v7900 = vpop.permute.xlu0 %7899
      %7901 = vrot.lane.b32.xlu0 %v7878, 32
      %v7902 = vpop.permute.xlu0 %7901
      %7903 = vrot.lane.b32.xlu0 %v7879, 32
      %v7904 = vpop.permute.xlu0 %7903
      %7905 = vrot.lane.b32.xlu0 %v7880, 32
      %v7906 = vpop.permute.xlu0 %7905
      %7907 = vrot.lane.b32.xlu0 %v7881, 32
      %v7908 = vpop.permute.xlu0 %7907
      %7909 = vrot.lane.b32.xlu0 %v7882, 32
      %v7910 = vpop.permute.xlu0 %7909
      %7911 = vrot.lane.b32.xlu0 %v7883, 32
      %v7912 = vpop.permute.xlu0 %7911
      %7913 = vrot.lane.b32.xlu0 %v7884, 32
      %v7914 = vpop.permute.xlu0 %7913
      %7915 = vrot.lane.b32.xlu0 %v7885, 32
      %v7916 = vpop.permute.xlu0 %7915
      %7917 = vrot.lane.b32.xlu0 %v7886, 32
      %v7918 = vpop.permute.xlu0 %7917
      %7935 = vst.msk [vmem:[#allocation3] sm:$0xff] %vm3958, %v7888
      %7936 = vst.msk [vmem:[#allocation3 + $0x8] sm:$0xff] %vm3958, %v7890
      %7937 = vst.msk [vmem:[#allocation3 + $0x10] sm:$0xff] %vm3958, %v7892
      %7938 = vst.msk [vmem:[#allocation3 + $0x18] sm:$0xff] %vm3958, %v7894
      %7939 = vst.msk [vmem:[#allocation3 + $0x20] sm:$0xff] %vm3958, %v7896
      %7940 = vst.msk [vmem:[#allocation3 + $0x28] sm:$0xff] %vm3958, %v7898
      %7941 = vst.msk [vmem:[#allocation3 + $0x30] sm:$0xff] %vm3958, %v7900
      %7942 = vst.msk [vmem:[#allocation3 + $0x38] sm:$0xff] %vm3958, %v7902
      %7943 = vst.msk [vmem:[#allocation3 + $0x40] sm:$0xff] %vm3958, %v7904
      %7944 = vst.msk [vmem:[#allocation3 + $0x48] sm:$0xff] %vm3958, %v7906
      %7945 = vst.msk [vmem:[#allocation3 + $0x50] sm:$0xff] %vm3958, %v7908
      %7946 = vst.msk [vmem:[#allocation3 + $0x58] sm:$0xff] %vm3958, %v7910
      %7947 = vst.msk [vmem:[#allocation3 + $0x60] sm:$0xff] %vm3958, %v7912
      %7948 = vst.msk [vmem:[#allocation3 + $0x68] sm:$0xff] %vm3958, %v7914
      %7949 = vst.msk [vmem:[#allocation3 + $0x70] sm:$0xff] %vm3958, %v7916
      %7950 = vst.msk [vmem:[#allocation3 + $0x78] sm:$0xff] %vm3958, %v7918
      %v7951 = vld [vmem:[#allocation3] sm:$0xff]
      %v7952 = vld [vmem:[#allocation3 + $0x8] sm:$0xff]
      %v7953 = vld [vmem:[#allocation3 + $0x10] sm:$0xff]
      %v7954 = vld [vmem:[#allocation3 + $0x18] sm:$0xff]
      %v7955 = vld [vmem:[#allocation3 + $0x20] sm:$0xff]
      %v7956 = vld [vmem:[#allocation3 + $0x28] sm:$0xff]
      %v7957 = vld [vmem:[#allocation3 + $0x30] sm:$0xff]
      %v7958 = vld [vmem:[#allocation3 + $0x38] sm:$0xff]
      %v7959 = vld [vmem:[#allocation3 + $0x40] sm:$0xff]
      %v7960 = vld [vmem:[#allocation3 + $0x48] sm:$0xff]
      %v7961 = vld [vmem:[#allocation3 + $0x50] sm:$0xff]
      %v7962 = vld [vmem:[#allocation3 + $0x58] sm:$0xff]
      %v7963 = vld [vmem:[#allocation3 + $0x60] sm:$0xff]
      %v7964 = vld [vmem:[#allocation3 + $0x68] sm:$0xff]
      %v7965 = vld [vmem:[#allocation3 + $0x70] sm:$0xff]
      %v7966 = vld [vmem:[#allocation3 + $0x78] sm:$0xff]
      %v7967 = vld [vmem:[%s4] sm:$0xf]
      %v7968 = vld [vmem:[%s4 + $0x4] sm:$0xf]
      %v7969 = vld [vmem:[%s4 + $0x8] sm:$0xf]
      %v7970 = vld [vmem:[%s4 + $0xc] sm:$0xf]
      %v7971 = vld [vmem:[%s4 + $0x10] sm:$0x3]
      %v7977 = vunpack.c.l.b16 %v7967
      %v7978 = vunpack.c.l.b16 %v7968
      %v7979 = vunpack.c.l.b16 %v7969
      %v7980 = vunpack.c.l.b16 %v7970
      %v7981 = vunpack.c.l.b16 %v7971
      %v7982 = vpack.c.b16 %v7978, %v7977
      %v7983 = vpack.c.b16 %v7980, %v7979
      %v7984 = vpack.c.b16 %v7981, %v7981
      %v7988 = vsel %vm4011, %v7951, 0
      %v7991 = vsel %vm4011, %v7952, 0
      %v7994 = vsel %vm4011, %v7953, 0
      %v7997 = vsel %vm4011, %v7954, 0
      %v8000 = vsel %vm4011, %v7955, 0
      %v8003 = vsel %vm4011, %v7956, 0
      %v8006 = vsel %vm4011, %v7957, 0
      %v8009 = vsel %vm4011, %v7958, 0
      %v8012 = vsel %vm4011, %v7959, 0
      %v8015 = vsel %vm4011, %v7960, 0
      %v8018 = vsel %vm4011, %v7961, 0
      %v8021 = vsel %vm4011, %v7962, 0
      %v8024 = vsel %vm4011, %v7963, 0
      %v8027 = vsel %vm4011, %v7964, 0
      %v8030 = vsel %vm4011, %v7965, 0
      %v8033 = vsel %vm4011, %v7966, 0
      %v8036 = vsel %vm4060, %v7984, 0
      %8038 = vmatprep.subr.bf16.mxu0 0
      %8039 = vmatpush1.bf16.msra.mxu0 %v7982
      %8040 = vmatprep.subr.bf16.mxu0 0
      %8041 = vmatpush1.bf16.msra.mxu0 %v7983
      %8042 = vmatprep.subr.bf16.mxu0 0
      %8043 = vmatpush1.bf16.msra.mxu0 %v8036
      %8044 = vmatprep.subr.bf16.mxu0 0
      %8045 = vmatpush1.bf16.msra.mxu0 0
      %8046 = vmatprep.subr.bf16.mxu0 0
      %8047 = vmatpush1.bf16.msra.mxu0 0
      %8048 = vmatprep.subr.bf16.mxu0 0
      %8049 = vmatpush1.bf16.msra.mxu0 0
      %8050 = vmatprep.subr.bf16.mxu0 0
      %8051 = vmatpush1.bf16.msra.mxu0 0
      %8052 = vmatprep.subr.bf16.mxu0 0
      %8053 = vmatpush1.bf16.msra.mxu0 0
      %8054 = vmatprep.subr.bf16.mxu0 0
      %8055 = vmatpush1.bf16.msra.mxu0 0
      %8056 = vmatprep.subr.bf16.mxu0 0
      %8057 = vmatpush1.bf16.msra.mxu0 0
      %8058 = vmatprep.subr.bf16.mxu0 0
      %8059 = vmatpush1.bf16.msra.mxu0 0
      %8060 = vmatprep.subr.bf16.mxu0 0
      %8061 = vmatpush1.bf16.msra.mxu0 0
      %8062 = vmatprep.subr.bf16.mxu0 0
      %8063 = vmatpush1.bf16.msra.mxu0 0
      %8064 = vmatprep.subr.bf16.mxu0 0
      %8065 = vmatpush1.bf16.msra.mxu0 0
      %8066 = vmatprep.subr.bf16.mxu0 0
      %8067 = vmatpush1.bf16.msra.mxu0 0
      %8068 = vmatprep.subr.bf16.mxu0 0
      %8069 = vmatpush1.bf16.msra.mxu0 0
      %8070 = vmatprep.mubr.bf16.mxu0 0
      %8071 = vmatmul.mubr.bf16.gmra.mrb[0].mxu0 %v7988
      %v8072 = vpop.f32.mrb[0].mxu0
      %v8073 = vadd.f32 0.0, %v8072
      %v8074 = vpop.f32.mrb[0].mxu0
      %v8075 = vpop.f32.mrb[0].mxu0
      %v8076 = vadd.f32 0.0, %v8075
      %v8077 = vpop.f32.mrb[0].mxu0
      %8078 = vmatprep.mubr.bf16.mxu0 0
      %8079 = vmatmul.mubr.bf16.gmra.mrb[0].mxu0 %v7991
      %v8080 = vpop.f32.mrb[0].mxu0
      %v8081 = vadd.f32 0.0, %v8080
      %v8082 = vpop.f32.mrb[0].mxu0
      %v8083 = vpop.f32.mrb[0].mxu0
      %v8084 = vadd.f32 0.0, %v8083
      %v8085 = vpop.f32.mrb[0].mxu0
      %8086 = vmatprep.mubr.bf16.mxu0 0
      %8087 = vmatmul.mubr.bf16.gmra.mrb[0].mxu0 %v7994
      %v8088 = vpop.f32.mrb[0].mxu0
      %v8089 = vadd.f32 0.0, %v8088
      %v8090 = vpop.f32.mrb[0].mxu0
      %v8091 = vpop.f32.mrb[0].mxu0
      %v8092 = vadd.f32 0.0, %v8091
      %v8093 = vpop.f32.mrb[0].mxu0
      %8094 = vmatprep.mubr.bf16.mxu0 0
      %8095 = vmatmul.mubr.bf16.gmra.mrb[0].mxu0 %v7997
      %v8096 = vpop.f32.mrb[0].mxu0
      %v8097 = vadd.f32 0.0, %v8096
      %v8098 = vpop.f32.mrb[0].mxu0
      %v8099 = vpop.f32.mrb[0].mxu0
      %v8100 = vadd.f32 0.0, %v8099
      %v8101 = vpop.f32.mrb[0].mxu0
      %8102 = vmatprep.mubr.bf16.mxu0 0
      %8103 = vmatmul.mubr.bf16.gmra.mrb[0].mxu0 %v8000
      %v8104 = vpop.f32.mrb[0].mxu0
      %v8105 = vadd.f32 0.0, %v8104
      %v8106 = vpop.f32.mrb[0].mxu0
      %v8107 = vpop.f32.mrb[0].mxu0
      %v8108 = vadd.f32 0.0, %v8107
      %v8109 = vpop.f32.mrb[0].mxu0
      %8110 = vmatprep.mubr.bf16.mxu0 0
      %8111 = vmatmul.mubr.bf16.gmra.mrb[0].mxu0 %v8003
      %v8112 = vpop.f32.mrb[0].mxu0
      %v8113 = vadd.f32 0.0, %v8112
      %v8114 = vpop.f32.mrb[0].mxu0
      %v8115 = vpop.f32.mrb[0].mxu0
      %v8116 = vadd.f32 0.0, %v8115
      %v8117 = vpop.f32.mrb[0].mxu0
      %8118 = vmatprep.mubr.bf16.mxu0 0
      %8119 = vmatmul.mubr.bf16.gmra.mrb[0].mxu0 %v8006
      %v8120 = vpop.f32.mrb[0].mxu0
      %v8121 = vadd.f32 0.0, %v8120
      %v8122 = vpop.f32.mrb[0].mxu0
      %v8123 = vpop.f32.mrb[0].mxu0
      %v8124 = vadd.f32 0.0, %v8123
      %v8125 = vpop.f32.mrb[0].mxu0
      %8126 = vmatprep.mubr.bf16.mxu0 0
      %8127 = vmatmul.mubr.bf16.gmra.mrb[0].mxu0 %v8009
      %v8128 = vpop.f32.mrb[0].mxu0
      %v8129 = vadd.f32 0.0, %v8128
      %v8130 = vpop.f32.mrb[0].mxu0
      %v8131 = vpop.f32.mrb[0].mxu0
      %v8132 = vadd.f32 0.0, %v8131
      %v8133 = vpop.f32.mrb[0].mxu0
      %8134 = vmatprep.mubr.bf16.mxu0 0
      %8135 = vmatmul.mubr.bf16.gmra.mrb[0].mxu0 %v8012
      %v8136 = vpop.f32.mrb[0].mxu0
      %v8137 = vadd.f32 0.0, %v8136
      %v8138 = vpop.f32.mrb[0].mxu0
      %v8139 = vpop.f32.mrb[0].mxu0
      %v8140 = vadd.f32 0.0, %v8139
      %v8141 = vpop.f32.mrb[0].mxu0
      %8142 = vmatprep.mubr.bf16.mxu0 0
      %8143 = vmatmul.mubr.bf16.gmra.mrb[0].mxu0 %v8015
      %v8144 = vpop.f32.mrb[0].mxu0
      %v8145 = vadd.f32 0.0, %v8144
      %v8146 = vpop.f32.mrb[0].mxu0
      %v8147 = vpop.f32.mrb[0].mxu0
      %v8148 = vadd.f32 0.0, %v8147
      %v8149 = vpop.f32.mrb[0].mxu0
      %8150 = vmatprep.mubr.bf16.mxu0 0
      %8151 = vmatmul.mubr.bf16.gmra.mrb[0].mxu0 %v8018
      %v8152 = vpop.f32.mrb[0].mxu0
      %v8153 = vadd.f32 0.0, %v8152
      %v8154 = vpop.f32.mrb[0].mxu0
      %v8155 = vpop.f32.mrb[0].mxu0
      %v8156 = vadd.f32 0.0, %v8155
      %v8157 = vpop.f32.mrb[0].mxu0
      %8158 = vmatprep.mubr.bf16.mxu0 0
      %8159 = vmatmul.mubr.bf16.gmra.mrb[0].mxu0 %v8021
      %v8160 = vpop.f32.mrb[0].mxu0
      %v8161 = vadd.f32 0.0, %v8160
      %v8162 = vpop.f32.mrb[0].mxu0
      %v8163 = vpop.f32.mrb[0].mxu0
      %v8164 = vadd.f32 0.0, %v8163
      %v8165 = vpop.f32.mrb[0].mxu0
      %8166 = vmatprep.mubr.bf16.mxu0 0
      %8167 = vmatmul.mubr.bf16.gmra.mrb[0].mxu0 %v8024
      %v8168 = vpop.f32.mrb[0].mxu0
      %v8169 = vadd.f32 0.0, %v8168
      %v8170 = vpop.f32.mrb[0].mxu0
      %v8171 = vpop.f32.mrb[0].mxu0
      %v8172 = vadd.f32 0.0, %v8171
      %v8173 = vpop.f32.mrb[0].mxu0
      %8174 = vmatprep.mubr.bf16.mxu0 0
      %8175 = vmatmul.mubr.bf16.gmra.mrb[0].mxu0 %v8027
      %v8176 = vpop.f32.mrb[0].mxu0
      %v8177 = vadd.f32 0.0, %v8176
      %v8178 = vpop.f32.mrb[0].mxu0
      %v8179 = vpop.f32.mrb[0].mxu0
      %v8180 = vadd.f32 0.0, %v8179
      %v8181 = vpop.f32.mrb[0].mxu0
      %8182 = vmatprep.mubr.bf16.mxu0 0
      %8183 = vmatmul.mubr.bf16.gmra.mrb[0].mxu0 %v8030
      %v8184 = vpop.f32.mrb[0].mxu0
      %v8185 = vadd.f32 0.0, %v8184
      %v8186 = vpop.f32.mrb[0].mxu0
      %v8187 = vpop.f32.mrb[0].mxu0
      %v8188 = vadd.f32 0.0, %v8187
      %v8189 = vpop.f32.mrb[0].mxu0
      %8190 = vmatprep.mubr.bf16.mxu0 0
      %8191 = vmatmul.mubr.bf16.gmra.mrb[0].mxu0 %v8033
      %v8192 = vpop.f32.mrb[0].mxu0
      %v8193 = vadd.f32 0.0, %v8192
      %v8194 = vpop.f32.mrb[0].mxu0
      %v8195 = vpop.f32.mrb[0].mxu0
      %v8196 = vadd.f32 0.0, %v8195
      %v8197 = vpop.f32.mrb[0].mxu0
      %8198 = vdwg.mxu0
      %v8199 = vld [vmem:[%s5] sm:$0x1]
      %v8201 = vlaneseq
      %v8202 = vshrl.u32 %v8201, 7
      %v8203 = vsub.s32 0, %v8202
      %v8204 = vrot.slane %v8199, %v8203
      %v8206 = vmul.f32 %v8073, %v8204
      %v8207 = vmul.f32 %v8076, %v8204
      %v8208 = vmul.f32 %v8081, %v8204
      %v8209 = vmul.f32 %v8084, %v8204
      %v8210 = vmul.f32 %v8089, %v8204
      %v8211 = vmul.f32 %v8092, %v8204
      %v8212 = vmul.f32 %v8097, %v8204
      %v8213 = vmul.f32 %v8100, %v8204
      %v8214 = vmul.f32 %v8105, %v8204
      %v8215 = vmul.f32 %v8108, %v8204
      %v8216 = vmul.f32 %v8113, %v8204
      %v8217 = vmul.f32 %v8116, %v8204
      %v8218 = vmul.f32 %v8121, %v8204
      %v8219 = vmul.f32 %v8124, %v8204
      %v8220 = vmul.f32 %v8129, %v8204
      %v8221 = vmul.f32 %v8132, %v8204
      %v8222 = vmul.f32 %v8137, %v8204
      %v8223 = vmul.f32 %v8140, %v8204
      %v8224 = vmul.f32 %v8145, %v8204
      %v8225 = vmul.f32 %v8148, %v8204
      %v8226 = vmul.f32 %v8153, %v8204
      %v8227 = vmul.f32 %v8156, %v8204
      %v8228 = vmul.f32 %v8161, %v8204
      %v8229 = vmul.f32 %v8164, %v8204
      %v8230 = vmul.f32 %v8169, %v8204
      %v8231 = vmul.f32 %v8172, %v8204
      %v8232 = vmul.f32 %v8177, %v8204
      %v8233 = vmul.f32 %v8180, %v8204
      %v8234 = vmul.f32 %v8185, %v8204
      %v8235 = vmul.f32 %v8188, %v8204
      %v8236 = vmul.f32 %v8193, %v8204
      %v8237 = vmul.f32 %v8196, %v8204
      %v8238 = vld [vmem:[%s6] sm:$0x1]
      %v8240 = vlaneseq
      %v8241 = vshrl.u32 %v8240, 7
      %v8242 = vsub.s32 0, %v8241
      %v8243 = vrot.slane %v8238, %v8242
      %v8245 = vadd.f32 %v8206, %v8243
      %v8246 = vadd.f32 %v8207, %v8243
      %v8247 = vadd.f32 %v8208, %v8243
      %v8248 = vadd.f32 %v8209, %v8243
      %v8249 = vadd.f32 %v8210, %v8243
      %v8250 = vadd.f32 %v8211, %v8243
      %v8251 = vadd.f32 %v8212, %v8243
      %v8252 = vadd.f32 %v8213, %v8243
      %v8253 = vadd.f32 %v8214, %v8243
      %v8254 = vadd.f32 %v8215, %v8243
      %v8255 = vadd.f32 %v8216, %v8243
      %v8256 = vadd.f32 %v8217, %v8243
      %v8257 = vadd.f32 %v8218, %v8243
      %v8258 = vadd.f32 %v8219, %v8243
      %v8259 = vadd.f32 %v8220, %v8243
      %v8260 = vadd.f32 %v8221, %v8243
      %v8261 = vadd.f32 %v8222, %v8243
      %v8262 = vadd.f32 %v8223, %v8243
      %v8263 = vadd.f32 %v8224, %v8243
      %v8264 = vadd.f32 %v8225, %v8243
      %v8265 = vadd.f32 %v8226, %v8243
      %v8266 = vadd.f32 %v8227, %v8243
      %v8267 = vadd.f32 %v8228, %v8243
      %v8268 = vadd.f32 %v8229, %v8243
      %v8269 = vadd.f32 %v8230, %v8243
      %v8270 = vadd.f32 %v8231, %v8243
      %v8271 = vadd.f32 %v8232, %v8243
      %v8272 = vadd.f32 %v8233, %v8243
      %v8273 = vadd.f32 %v8234, %v8243
      %v8274 = vadd.f32 %v8235, %v8243
      %v8275 = vadd.f32 %v8236, %v8243
      %v8276 = vadd.f32 %v8237, %v8243
      %v8277 = vld [vmem:[%s273] sm:$0xf]
      %v8278 = vld [vmem:[%s273 + $0x4] sm:$0xf]
      %v8279 = vld [vmem:[%s273 + $0x8] sm:$0xf]
      %v8280 = vld [vmem:[%s273 + $0xc] sm:$0xf]
      %v8281 = vld [vmem:[%s273 + $0x10] sm:$0xf]
      %v8282 = vld [vmem:[%s273 + $0x14] sm:$0xf]
      %v8283 = vld [vmem:[%s273 + $0x18] sm:$0xf]
      %v8284 = vld [vmem:[%s273 + $0x1c] sm:$0xf]
      %v8285 = vld [vmem:[%s273 + $0x20] sm:$0xf]
      %v8286 = vld [vmem:[%s273 + $0x24] sm:$0xf]
      %v8287 = vld [vmem:[%s273 + $0x28] sm:$0xf]
      %v8288 = vld [vmem:[%s273 + $0x2c] sm:$0xf]
      %v8289 = vld [vmem:[%s273 + $0x30] sm:$0xf]
      %v8290 = vld [vmem:[%s273 + $0x34] sm:$0xf]
      %v8291 = vld [vmem:[%s273 + $0x38] sm:$0xf]
      %v8292 = vld [vmem:[%s273 + $0x3c] sm:$0xf]
      %v8293 = vld [vmem:[%s273 + $0x40] sm:$0xf]
      %v8294 = vld [vmem:[%s273 + $0x44] sm:$0xf]
      %v8295 = vld [vmem:[%s273 + $0x48] sm:$0xf]
      %v8296 = vld [vmem:[%s273 + $0x4c] sm:$0xf]
      %v8297 = vld [vmem:[%s273 + $0x50] sm:$0xf]
      %v8298 = vld [vmem:[%s273 + $0x54] sm:$0xf]
      %v8299 = vld [vmem:[%s273 + $0x58] sm:$0xf]
      %v8300 = vld [vmem:[%s273 + $0x5c] sm:$0xf]
      %v8301 = vld [vmem:[%s273 + $0x60] sm:$0xf]
      %v8302 = vld [vmem:[%s273 + $0x64] sm:$0xf]
      %v8303 = vld [vmem:[%s273 + $0x68] sm:$0xf]
      %v8304 = vld [vmem:[%s273 + $0x6c] sm:$0xf]
      %v8305 = vld [vmem:[%s273 + $0x70] sm:$0xf]
      %v8306 = vld [vmem:[%s273 + $0x74] sm:$0xf]
      %v8307 = vld [vmem:[%s273 + $0x78] sm:$0xf]
      %v8308 = vld [vmem:[%s273 + $0x7c] sm:$0xf]
      %v8309 = vunpack.c.l.bf16 %v8277
      %v8310 = vunpack.c.l.bf16 %v8278
      %v8311 = vunpack.c.l.bf16 %v8279
      %v8312 = vunpack.c.l.bf16 %v8280
      %v8313 = vunpack.c.l.bf16 %v8281
      %v8314 = vunpack.c.l.bf16 %v8282
      %v8315 = vunpack.c.l.bf16 %v8283
      %v8316 = vunpack.c.l.bf16 %v8284
      %v8317 = vunpack.c.l.bf16 %v8285
      %v8318 = vunpack.c.l.bf16 %v8286
      %v8319 = vunpack.c.l.bf16 %v8287
      %v8320 = vunpack.c.l.bf16 %v8288
      %v8321 = vunpack.c.l.bf16 %v8289
      %v8322 = vunpack.c.l.bf16 %v8290
      %v8323 = vunpack.c.l.bf16 %v8291
      %v8324 = vunpack.c.l.bf16 %v8292
      %v8325 = vunpack.c.l.bf16 %v8293
      %v8326 = vunpack.c.l.bf16 %v8294
      %v8327 = vunpack.c.l.bf16 %v8295
      %v8328 = vunpack.c.l.bf16 %v8296
      %v8329 = vunpack.c.l.bf16 %v8297
      %v8330 = vunpack.c.l.bf16 %v8298
      %v8331 = vunpack.c.l.bf16 %v8299
      %v8332 = vunpack.c.l.bf16 %v8300
      %v8333 = vunpack.c.l.bf16 %v8301
      %v8334 = vunpack.c.l.bf16 %v8302
      %v8335 = vunpack.c.l.bf16 %v8303
      %v8336 = vunpack.c.l.bf16 %v8304
      %v8337 = vunpack.c.l.bf16 %v8305
      %v8338 = vunpack.c.l.bf16 %v8306
      %v8339 = vunpack.c.l.bf16 %v8307
      %v8340 = vunpack.c.l.bf16 %v8308
      %v8341 = vadd.f32 %v8245, %v8309
      %v8342 = vadd.f32 %v8246, %v8310
      %v8343 = vadd.f32 %v8247, %v8311
      %v8344 = vadd.f32 %v8248, %v8312
      %v8345 = vadd.f32 %v8249, %v8313
      %v8346 = vadd.f32 %v8250, %v8314
      %v8347 = vadd.f32 %v8251, %v8315
      %v8348 = vadd.f32 %v8252, %v8316
      %v8349 = vadd.f32 %v8253, %v8317
      %v8350 = vadd.f32 %v8254, %v8318
      %v8351 = vadd.f32 %v8255, %v8319
      %v8352 = vadd.f32 %v8256, %v8320
      %v8353 = vadd.f32 %v8257, %v8321
      %v8354 = vadd.f32 %v8258, %v8322
      %v8355 = vadd.f32 %v8259, %v8323
      %v8356 = vadd.f32 %v8260, %v8324
      %v8357 = vadd.f32 %v8261, %v8325
      %v8358 = vadd.f32 %v8262, %v8326
      %v8359 = vadd.f32 %v8263, %v8327
      %v8360 = vadd.f32 %v8264, %v8328
      %v8361 = vadd.f32 %v8265, %v8329
      %v8362 = vadd.f32 %v8266, %v8330
      %v8363 = vadd.f32 %v8267, %v8331
      %v8364 = vadd.f32 %v8268, %v8332
      %v8365 = vadd.f32 %v8269, %v8333
      %v8366 = vadd.f32 %v8270, %v8334
      %v8367 = vadd.f32 %v8271, %v8335
      %v8368 = vadd.f32 %v8272, %v8336
      %v8369 = vadd.f32 %v8273, %v8337
      %v8370 = vadd.f32 %v8274, %v8338
      %v8371 = vadd.f32 %v8275, %v8339
      %v8372 = vadd.f32 %v8276, %v8340
      %v8373 = vmax.f32 %v8341, 0.0
      %v8374 = vmax.f32 %v8342, 0.0
      %v8375 = vmax.f32 %v8343, 0.0
      %v8376 = vmax.f32 %v8344, 0.0
      %v8377 = vmax.f32 %v8345, 0.0
      %v8378 = vmax.f32 %v8346, 0.0
      %v8379 = vmax.f32 %v8347, 0.0
      %v8380 = vmax.f32 %v8348, 0.0
      %v8381 = vmax.f32 %v8349, 0.0
      %v8382 = vmax.f32 %v8350, 0.0
      %v8383 = vmax.f32 %v8351, 0.0
      %v8384 = vmax.f32 %v8352, 0.0
      %v8385 = vmax.f32 %v8353, 0.0
      %v8386 = vmax.f32 %v8354, 0.0
      %v8387 = vmax.f32 %v8355, 0.0
      %v8388 = vmax.f32 %v8356, 0.0
      %v8389 = vmax.f32 %v8357, 0.0
      %v8390 = vmax.f32 %v8358, 0.0
      %v8391 = vmax.f32 %v8359, 0.0
      %v8392 = vmax.f32 %v8360, 0.0
      %v8393 = vmax.f32 %v8361, 0.0
      %v8394 = vmax.f32 %v8362, 0.0
      %v8395 = vmax.f32 %v8363, 0.0
      %v8396 = vmax.f32 %v8364, 0.0
      %v8397 = vmax.f32 %v8365, 0.0
      %v8398 = vmax.f32 %v8366, 0.0
      %v8399 = vmax.f32 %v8367, 0.0
      %v8400 = vmax.f32 %v8368, 0.0
      %v8401 = vmax.f32 %v8369, 0.0
      %v8402 = vmax.f32 %v8370, 0.0
      %v8403 = vmax.f32 %v8371, 0.0
      %v8404 = vmax.f32 %v8372, 0.0
      %8405 = vst.msk [vmem:[%s278] sm:$0xff] %vm999, %v8373
      %8406 = vst.msk [vmem:[%s278 + $0x8] sm:$0xff] %vm999, %v8374
      %8407 = vst.msk [vmem:[%s278 + $0x10] sm:$0xff] %vm999, %v8375
      %8408 = vst.msk [vmem:[%s278 + $0x18] sm:$0xff] %vm999, %v8376
      %8409 = vst.msk [vmem:[%s278 + $0x20] sm:$0xff] %vm999, %v8377
      %8410 = vst.msk [vmem:[%s278 + $0x28] sm:$0xff] %vm999, %v8378
      %8411 = vst.msk [vmem:[%s278 + $0x30] sm:$0xff] %vm999, %v8379
      %8412 = vst.msk [vmem:[%s278 + $0x38] sm:$0xff] %vm999, %v8380
      %8413 = vst.msk [vmem:[%s278 + $0x40] sm:$0xff] %vm999, %v8381
      %8414 = vst.msk [vmem:[%s278 + $0x48] sm:$0xff] %vm999, %v8382
      %8415 = vst.msk [vmem:[%s278 + $0x50] sm:$0xff] %vm999, %v8383
      %8416 = vst.msk [vmem:[%s278 + $0x58] sm:$0xff] %vm999, %v8384
      %8417 = vst.msk [vmem:[%s278 + $0x60] sm:$0xff] %vm999, %v8385
      %8418 = vst.msk [vmem:[%s278 + $0x68] sm:$0xff] %vm999, %v8386
      %8419 = vst.msk [vmem:[%s278 + $0x70] sm:$0xff] %vm999, %v8387
      %8420 = vst.msk [vmem:[%s278 + $0x78] sm:$0xff] %vm999, %v8388
      %8421 = vst.msk [vmem:[%s278 + $0x80] sm:$0xff] %vm999, %v8389
      %8422 = vst.msk [vmem:[%s278 + $0x88] sm:$0xff] %vm999, %v8390
      %8423 = vst.msk [vmem:[%s278 + $0x90] sm:$0xff] %vm999, %v8391
      %8424 = vst.msk [vmem:[%s278 + $0x98] sm:$0xff] %vm999, %v8392
      %8425 = vst.msk [vmem:[%s278 + $0xa0] sm:$0xff] %vm999, %v8393
      %8426 = vst.msk [vmem:[%s278 + $0xa8] sm:$0xff] %vm999, %v8394
      %8427 = vst.msk [vmem:[%s278 + $0xb0] sm:$0xff] %vm999, %v8395
      %8428 = vst.msk [vmem:[%s278 + $0xb8] sm:$0xff] %vm999, %v8396
      %8429 = vst.msk [vmem:[%s278 + $0xc0] sm:$0xff] %vm999, %v8397
      %8430 = vst.msk [vmem:[%s278 + $0xc8] sm:$0xff] %vm999, %v8398
      %8431 = vst.msk [vmem:[%s278 + $0xd0] sm:$0xff] %vm999, %v8399
      %8432 = vst.msk [vmem:[%s278 + $0xd8] sm:$0xff] %vm999, %v8400
      %8433 = vst.msk [vmem:[%s278 + $0xe0] sm:$0xff] %vm999, %v8401
      %8434 = vst.msk [vmem:[%s278 + $0xe8] sm:$0xff] %vm999, %v8402
      %8435 = vst.msk [vmem:[%s278 + $0xf0] sm:$0xff] %vm999, %v8403
      %8436 = vst.msk [vmem:[%s278 + $0xf8] sm:$0xff] %vm999, %v8404
      %p8437 = scmp.lt.s32.totalorder %s18, 1
      %s8438 = scalar_select %p8437, %s18, 1
      %s8439 = smul.addr %s8438, 32
      %s8440 = smul.addr %s8439, 8
      %s8441 = scalar_lea.vmem %s7, %s8440
      // Predicated region
      $region49: #{tpu_custom_call.1} parent=47 // pred_check
        %p8442 = pneg %p188
      $region50: #{tpu_custom_call.1} parent=47 // pred_check_branch
        %8444 = sbr.rel (%p8442) target = $region52
      $region51: #{tpu_custom_call.1} parent=47 // pred_region
        _
      $region52: #{tpu_custom_call.1} parent=47 // pred_fallthru
        _
    $region48: #{tpu_custom_call.1} parent=5 // pred_fallthru
      _
    %p8445 = scmp.le.s32.totalorder 2, %s13
    // Predicated region
    $region53: #{tpu_custom_call.1} parent=5 // pred_check
      %p8446 = pneg %p8445
    $region54: #{tpu_custom_call.1} parent=5 // pred_check_branch
      %8448 = sbr.rel (%p8446) target = $region56
    $region55: #{tpu_custom_call.1} parent=5 // pred_region
      %s8449 = ssub.s32 %s13, 2
      // Predicated region
      $region57: #{tpu_custom_call.1} parent=55 // pred_check
        %p8450 = pneg %p194
      $region58: #{tpu_custom_call.1} parent=55 // pred_check_branch
        %8452 = sbr.rel (%p8450) target = $region60
      $region59: #{tpu_custom_call.1} parent=55 // pred_region
        %p8453 = scmp.lt.s32.totalorder %s19, 1
        %s8454 = scalar_select %p8453, %s19, 1
        %s8455 = smul.addr %s8454, 32
        %s8456 = smul.addr %s8455, 8
        %s8457 = scalar_lea.vmem %s7, %s8456
      $region60: #{tpu_custom_call.1} parent=55 // pred_fallthru
        _
    $region56: #{tpu_custom_call.1} parent=5 // pred_fallthru
      _
  $region6: #{tpu_custom_call.1} parent=0 // loop_footer
    %s17 = sadd.s32 1, %s13
  $region7: #{tpu_custom_call.1} parent=0 // loop_footer_branch
    %12 = sbr.rel target = $region3
  $region8: #{tpu_custom_call.1} parent=0 // loop_exit
    _

</llo_original>
